<compile_context>
chip_gen: v5e
topology: v5e:2x2
jax: 0.10.0
libtpu: 0.0.40
codegen_flags: <defaults>
</compile_context>

<pallas_src>
import jax
import jax.numpy as jnp
from jax.experimental import pallas as pl
from jax.experimental.pallas import tpu as pltpu

NUM_CLASSES = 10
FC2_PAD = 128                 # lane-dense fc2 output (sliced back to 10 outside)
MXU_DTYPE = jnp.bfloat16      # MXU input dtype; accumulation is always f32
CONV1_CIN_PAD = 8             # pad conv1's 3 input channels to a full sublane


# ----------------------------- Pallas kernels ------------------------------

def _make_conv3x3_kernel(Wp, Cout, n_chunks, Rc):
    """3x3 'same' conv + bias + ReLU for one image, channel-major.

    x_ref: (1, Cin, Lp)   zero-padded image, spatial flattened (Lp=(H+3)*Wp)
    w_ref: (9, Cout, Cin) tap-major weights (tap t = kh*3 + kw)
    b_ref: (Cout, 1)      bias
    o_ref: (1, Cout, R)   R = H*Wp; lanes w in {W, W+1} of each row are junk
                          'seam' columns dropped by the pool outside.

    Tap (kh, kw) is the contiguous lane window starting at kh*Wp + kw, so the
    conv is 9 statically-offset (Cout,Cin)@(Cin,Rc) MXU matmuls.  R is chunked
    so each chunk's f32 accumulator stays in vregs (no 9x VMEM RMW).
    """

    def kernel(x_ref, w_ref, b_ref, o_ref):
        for c in range(n_chunks):
            r0 = c * Rc
            acc = jnp.zeros((Cout, Rc), jnp.float32)
            for kh in range(3):
                for kw in range(3):
                    t = kh * 3 + kw
                    start = kh * Wp + kw + r0
                    rhs = x_ref[0, :, start:start + Rc]          # (Cin, Rc)
                    acc = acc + jnp.dot(w_ref[t], rhs,
                                        preferred_element_type=jnp.float32)
            y = jnp.maximum(acc + b_ref[...], 0.0)
            o_ref[0, :, r0:r0 + Rc] = y.astype(o_ref.dtype)

    return kernel


def _mlp_kernel(x_ref, w1_ref, b1_ref, w2_ref, b2_ref, o_ref, h_acc):
    """K-tiled fc1 (+bias, ReLU) -> fc2 (+bias); hidden stays in VMEM scratch."""
    k = pl.program_id(0)

    @pl.when(k == 0)
    def _():
        h_acc[...] = jnp.zeros_like(h_acc)

    h_acc[...] += jnp.dot(x_ref[...], w1_ref[...],
                          preferred_element_type=jnp.float32)

    @pl.when(k == pl.num_programs(0) - 1)
    def _():
        h = jnp.maximum(h_acc[...] + b1_ref[...], 0.0).astype(w2_ref.dtype)
        o = jnp.dot(h, w2_ref[...], preferred_element_type=jnp.float32)
        o_ref[...] = (o + b2_ref[...]).astype(o_ref.dtype)


# ------------------------------ wrappers ------------------------------------

def _pick_chunks(R, max_rc=288):
    n = 1
    while R % n != 0 or R // n > max_rc:
        n += 1
    return n


def _pad_flatten(x):
    """(B, C, H, W) -> (B, C, (H+3)*(W+2)); pad 1 top / 2 bottom / 1 left-right.
    The extra bottom row keeps the last tap's flat lane window in bounds."""
    B, C, H, W = x.shape
    xp = jnp.pad(x, ((0, 0), (0, 0), (1, 2), (1, 1)))
    return xp.reshape(B, C, (H + 3) * (W + 2))


def _conv3x3_relu(xf, w_taps, bias, *, H, W):
    """(B, Cin, (H+3)*(W+2)) -> (B, Cout, H*(W+2)) conv + bias + ReLU."""
    B, Cin, Lp = xf.shape
    Cout = w_taps.shape[1]
    Wp = W + 2
    R = H * Wp
    assert Lp == (H + 3) * Wp and w_taps.shape == (9, Cout, Cin)
    n_chunks = _pick_chunks(R)
    return pl.pallas_call(
        _make_conv3x3_kernel(Wp, Cout, n_chunks, R // n_chunks),
        out_shape=jax.ShapeDtypeStruct((B, Cout, R), MXU_DTYPE),
        grid=(B,),
        in_specs=[
            pl.BlockSpec((1, Cin, Lp), lambda b: (b, 0, 0)),
            pl.BlockSpec((9, Cout, Cin), lambda b: (0, 0, 0)),
            pl.BlockSpec((Cout, 1), lambda b: (0, 0)),
        ],
        out_specs=pl.BlockSpec((1, Cout, R), lambda b: (b, 0, 0)),
        compiler_params=pltpu.CompilerParams(
            dimension_semantics=("parallel",)),
    )(xf, w_taps, bias)


def _pool2x2_drop_seam(y, H, W):
    """(B, C, H*(W+2)) conv output -> 2x2/stride-2 max pool -> (B, C, H//2, W//2).

    Kept in XLA (fuses into one elementwise pass): the stride-2 decimation has
    no clean lane-dense Mosaic lowering and the data volume is tiny.
    """
    B, C, _ = y.shape
    y = y.reshape(B, C, H, W + 2)[:, :, :, :W]           # drop seam columns
    v = jnp.maximum(y[:, :, 0::2], y[:, :, 1::2])        # vertical pairs
    return jnp.maximum(v[:, :, :, 0::2], v[:, :, :, 1::2])  # horizontal pairs


def _mlp(x, w1, b1, w2, b2, *, kt=512):
    M, K = x.shape
    N1 = w1.shape[1]
    N2 = w2.shape[1]
    assert K % kt == 0
    return pl.pallas_call(
        _mlp_kernel,
        out_shape=jax.ShapeDtypeStruct((M, N2), jnp.float32),
        grid=(K // kt,),
        in_specs=[
            pl.BlockSpec((M, kt), lambda k: (0, k)),
            pl.BlockSpec((kt, N1), lambda k: (k, 0)),
            pl.BlockSpec((1, N1), lambda k: (0, 0)),
            pl.BlockSpec((N1, N2), lambda k: (0, 0)),
            pl.BlockSpec((1, N2), lambda k: (0, 0)),
        ],
        out_specs=pl.BlockSpec((M, N2), lambda k: (0, 0)),
        scratch_shapes=[pltpu.VMEM((M, N1), jnp.float32)],
        compiler_params=pltpu.CompilerParams(
            dimension_semantics=("arbitrary",)),
    )(x, w1, b1, w2, b2)


# ------------------------------ parameters ----------------------------------

def init_torch_params(key):
    """Random parameters in the PyTorch module's native layouts."""
    ks = jax.random.split(key, 8)
    s = 0.05
    return {
        "conv1_w": s * jax.random.normal(ks[0], (32, 3, 3, 3), jnp.float32),   # OIHW
        "conv1_b": s * jax.random.normal(ks[1], (32,), jnp.float32),
        "conv2_w": s * jax.random.normal(ks[2], (64, 32, 3, 3), jnp.float32),  # OIHW
        "conv2_b": s * jax.random.normal(ks[3], (64,), jnp.float32),
        "fc1_w": s * jax.random.normal(ks[4], (256, 64 * 8 * 8), jnp.float32),  # (out,in)
        "fc1_b": s * jax.random.normal(ks[5], (256,), jnp.float32),
        "fc2_w": s * jax.random.normal(ks[6], (10, 256), jnp.float32),
        "fc2_b": s * jax.random.normal(ks[7], (10,), jnp.float32),
    }


def prepare_params(tp):
    """One-time conversion from PyTorch layout to kernel layout (weights bf16)."""

    def conv_w(w, cin_pad=None):                      # OIHW -> (9, O, I) tap-major
        O, I, KH, KW = w.shape
        w = jnp.transpose(w, (2, 3, 0, 1)).reshape(KH * KW, O, I)
        if cin_pad is not None and cin_pad > I:
            w = jnp.pad(w, ((0, 0), (0, 0), (0, cin_pad - I)))
        return w.astype(MXU_DTYPE)

    fc2_w = jnp.zeros((256, FC2_PAD), jnp.float32).at[:, :NUM_CLASSES].set(tp["fc2_w"].T)
    fc2_b = jnp.zeros((1, FC2_PAD), jnp.float32).at[0, :NUM_CLASSES].set(tp["fc2_b"])

    return {
        "conv1_w": conv_w(tp["conv1_w"], CONV1_CIN_PAD),
        "conv1_b": tp["conv1_b"].reshape(-1, 1).astype(jnp.float32),
        "conv2_w": conv_w(tp["conv2_w"]),
        "conv2_b": tp["conv2_b"].reshape(-1, 1).astype(jnp.float32),
        # NCHW flatten matches PyTorch fc1 input order natively -> plain transpose.
        "fc1_w": tp["fc1_w"].T.astype(MXU_DTYPE),
        "fc1_b": tp["fc1_b"].reshape(1, -1).astype(jnp.float32),
        "fc2_w": fc2_w.astype(MXU_DTYPE),
        "fc2_b": fc2_b,
    }


# -------------------------------- forward -----------------------------------

def cnn_forward(x_nchw, params):
    B = x_nchw.shape[0]
    x = x_nchw.astype(MXU_DTYPE)
    x = jnp.pad(x, ((0, 0), (0, CONV1_CIN_PAD - x.shape[1]), (0, 0), (0, 0)))

    y = _conv3x3_relu(_pad_flatten(x), params["conv1_w"], params["conv1_b"],
                      H=32, W=32)                                  # (B,32,1088)
    y = _pool2x2_drop_seam(y, 32, 32)                              # (B,32,16,16)

    y = _conv3x3_relu(_pad_flatten(y), params["conv2_w"], params["conv2_b"],
                      H=16, W=16)                                  # (B,64,288)
    y = _pool2x2_drop_seam(y, 16, 16)                              # (B,64,8,8)

    feats = y.reshape(B, 64 * 8 * 8)          # NCHW flatten == PyTorch view order

    m_pad = max(8, ((B + 7) // 8) * 8)        # full sublane tile of FC rows
    xfc = jnp.pad(feats, ((0, m_pad - B), (0, 0)))

    logits = _mlp(xfc, params["fc1_w"], params["fc1_b"],
                  params["fc2_w"], params["fc2_b"])                # (m_pad, 128) f32
    return logits[:B, :NUM_CLASSES]


# ----------------------- pure-XLA reference (sanity) ------------------------

def reference_forward(x_nchw, tp):
    y = jax.lax.conv_general_dilated(x_nchw, tp["conv1_w"], (1, 1), ((1, 1), (1, 1)),
                                     dimension_numbers=("NCHW", "OIHW", "NCHW"))
    y = jax.nn.relu(y + tp["conv1_b"][None, :, None, None])
    y = jax.lax.reduce_window(y, -jnp.inf, jax.lax.max, (1, 1, 2, 2), (1, 1, 2, 2), "VALID")
    y = jax.lax.conv_general_dilated(y, tp["conv2_w"], (1, 1), ((1, 1), (1, 1)),
                                     dimension_numbers=("NCHW", "OIHW", "NCHW"))
    y = jax.nn.relu(y + tp["conv2_b"][None, :, None, None])
    y = jax.lax.reduce_window(y, -jnp.inf, jax.lax.max, (1, 1, 2, 2), (1, 1, 2, 2), "VALID")
    y = y.reshape(y.shape[0], -1)
    y = jax.nn.relu(y @ tp["fc1_w"].T + tp["fc1_b"])
    return y @ tp["fc2_w"].T + tp["fc2_b"]


# ---------------------------------- main -------------------------------------

if __name__ == "__main__":
    key = jax.random.PRNGKey(0)
    k_x, k_p = jax.random.split(key)

    # fc1 = 64*8*8 after two /2 pools => input is 3 x 32 x 32; batch = 2
    x = jax.random.normal(k_x, (2, 3, 32, 32), jnp.float32)
    torch_params = init_torch_params(k_p)
    params = prepare_params(torch_params)

    fwd = jax.jit(cnn_forward)
    out = fwd(x, params)
    jax.block_until_ready(out)

    assert out.shape == (2, NUM_CLASSES), out.shape
    assert out.dtype == jnp.float32

    ref = reference_forward(x, torch_params)
    err = float(jnp.max(jnp.abs(out - ref)))
    # bf16 MXU inputs (f32 accumulation) vs f32 XLA reference -> loose tolerance.
    assert jnp.allclose(out, ref, atol=5e-2, rtol=5e-2), err

    print("KERNEL_OK")
</pallas_src>

<mosaic_0001>
module attributes {stable_mosaic.version = 11 : i64} {
  func.func @kernel(%arg0: i32, %arg1: memref<1x8x1190xbf16, #tpu.memory_space<vmem>>, %arg2: memref<9x32x8xbf16, #tpu.memory_space<vmem>>, %arg3: memref<32x1xf32, #tpu.memory_space<vmem>>, %arg4: memref<1x32x1088xbf16, #tpu.memory_space<vmem>>) attributes {dimension_semantics = [#tpu.dimension_semantics<parallel>], iteration_bounds = array<i64: 2>, scalar_prefetch = 0 : i64, scratch_operands = 0 : i64, tpu.core_type = #tpu.core_type<tc>, window_params = [{transform_indices = @transform_0, window_bounds = array<i64: 1, 8, 1190>}, {pipeline_mode = #tpu.pipeline_mode<synchronous>, transform_indices = @transform_1, window_bounds = array<i64: 9, 32, 8>}, {pipeline_mode = #tpu.pipeline_mode<synchronous>, transform_indices = @transform_2, window_bounds = array<i64: 32, 1>}, {transform_indices = @transform_3, window_bounds = array<i64: 1, 32, 1088>}]} {
    %cst = arith.constant 0.000000e+00 : f32
    %0 = vector.broadcast %cst : f32 to vector<32x272xf32>
    %c0 = arith.constant 0 : index
    %c0_0 = arith.constant 0 : index
    %c0_1 = arith.constant 0 : index
    %1 = vector.load %arg1[%c0, %c0_0, %c0_1] : memref<1x8x1190xbf16, #tpu.memory_space<vmem>>, vector<1x8x272xbf16>
    %2 = vector.shape_cast %1 : vector<1x8x272xbf16> to vector<8x272xbf16>
    %c0_2 = arith.constant 0 : index
    %c0_3 = arith.constant 0 : index
    %c0_4 = arith.constant 0 : index
    %3 = vector.load %arg2[%c0_2, %c0_3, %c0_4] : memref<9x32x8xbf16, #tpu.memory_space<vmem>>, vector<1x32x8xbf16>
    %4 = vector.shape_cast %3 : vector<1x32x8xbf16> to vector<32x8xbf16>
    %cst_5 = arith.constant dense<0.000000e+00> : vector<32x272xf32>
    %5 = tpu.matmul %4, %2, %cst_5 {dimension_numbers = #tpu.dot_dimension_numbers<[1], [0], [0], [1], [0, 0, 1, 1], [], []>} : vector<32x8xbf16>, vector<8x272xbf16>, vector<32x272xf32> -> vector<32x272xf32>
    %6 = arith.addf %0, %5 : vector<32x272xf32>
    %c0_6 = arith.constant 0 : index
    %c0_7 = arith.constant 0 : index
    %c1 = arith.constant 1 : index
    %7 = vector.load %arg1[%c0_6, %c0_7, %c1] : memref<1x8x1190xbf16, #tpu.memory_space<vmem>>, vector<1x8x272xbf16>
    %8 = vector.shape_cast %7 : vector<1x8x272xbf16> to vector<8x272xbf16>
    %c1_8 = arith.constant 1 : index
    %c0_9 = arith.constant 0 : index
    %c0_10 = arith.constant 0 : index
    %9 = vector.load %arg2[%c1_8, %c0_9, %c0_10] : memref<9x32x8xbf16, #tpu.memory_space<vmem>>, vector<1x32x8xbf16>
    %10 = vector.shape_cast %9 : vector<1x32x8xbf16> to vector<32x8xbf16>
    %cst_11 = arith.constant dense<0.000000e+00> : vector<32x272xf32>
    %11 = tpu.matmul %10, %8, %cst_11 {dimension_numbers = #tpu.dot_dimension_numbers<[1], [0], [0], [1], [0, 0, 1, 1], [], []>} : vector<32x8xbf16>, vector<8x272xbf16>, vector<32x272xf32> -> vector<32x272xf32>
    %12 = arith.addf %6, %11 : vector<32x272xf32>
    %c0_12 = arith.constant 0 : index
    %c0_13 = arith.constant 0 : index
    %c2 = arith.constant 2 : index
    %13 = vector.load %arg1[%c0_12, %c0_13, %c2] : memref<1x8x1190xbf16, #tpu.memory_space<vmem>>, vector<1x8x272xbf16>
    %14 = vector.shape_cast %13 : vector<1x8x272xbf16> to vector<8x272xbf16>
    %c2_14 = arith.constant 2 : index
    %c0_15 = arith.constant 0 : index
    %c0_16 = arith.constant 0 : index
    %15 = vector.load %arg2[%c2_14, %c0_15, %c0_16] : memref<9x32x8xbf16, #tpu.memory_space<vmem>>, vector<1x32x8xbf16>
    %16 = vector.shape_cast %15 : vector<1x32x8xbf16> to vector<32x8xbf16>
    %cst_17 = arith.constant dense<0.000000e+00> : vector<32x272xf32>
    %17 = tpu.matmul %16, %14, %cst_17 {dimension_numbers = #tpu.dot_dimension_numbers<[1], [0], [0], [1], [0, 0, 1, 1], [], []>} : vector<32x8xbf16>, vector<8x272xbf16>, vector<32x272xf32> -> vector<32x272xf32>
    %18 = arith.addf %12, %17 : vector<32x272xf32>
    %c0_18 = arith.constant 0 : index
    %c0_19 = arith.constant 0 : index
    %c34 = arith.constant 34 : index
    %19 = vector.load %arg1[%c0_18, %c0_19, %c34] : memref<1x8x1190xbf16, #tpu.memory_space<vmem>>, vector<1x8x272xbf16>
    %20 = vector.shape_cast %19 : vector<1x8x272xbf16> to vector<8x272xbf16>
    %c3 = arith.constant 3 : index
    %c0_20 = arith.constant 0 : index
    %c0_21 = arith.constant 0 : index
    %21 = vector.load %arg2[%c3, %c0_20, %c0_21] : memref<9x32x8xbf16, #tpu.memory_space<vmem>>, vector<1x32x8xbf16>
    %22 = vector.shape_cast %21 : vector<1x32x8xbf16> to vector<32x8xbf16>
    %cst_22 = arith.constant dense<0.000000e+00> : vector<32x272xf32>
    %23 = tpu.matmul %22, %20, %cst_22 {dimension_numbers = #tpu.dot_dimension_numbers<[1], [0], [0], [1], [0, 0, 1, 1], [], []>} : vector<32x8xbf16>, vector<8x272xbf16>, vector<32x272xf32> -> vector<32x272xf32>
    %24 = arith.addf %18, %23 : vector<32x272xf32>
    %c0_23 = arith.constant 0 : index
    %c0_24 = arith.constant 0 : index
    %c35 = arith.constant 35 : index
    %25 = vector.load %arg1[%c0_23, %c0_24, %c35] : memref<1x8x1190xbf16, #tpu.memory_space<vmem>>, vector<1x8x272xbf16>
    %26 = vector.shape_cast %25 : vector<1x8x272xbf16> to vector<8x272xbf16>
    %c4 = arith.constant 4 : index
    %c0_25 = arith.constant 0 : index
    %c0_26 = arith.constant 0 : index
    %27 = vector.load %arg2[%c4, %c0_25, %c0_26] : memref<9x32x8xbf16, #tpu.memory_space<vmem>>, vector<1x32x8xbf16>
    %28 = vector.shape_cast %27 : vector<1x32x8xbf16> to vector<32x8xbf16>
    %cst_27 = arith.constant dense<0.000000e+00> : vector<32x272xf32>
    %29 = tpu.matmul %28, %26, %cst_27 {dimension_numbers = #tpu.dot_dimension_numbers<[1], [0], [0], [1], [0, 0, 1, 1], [], []>} : vector<32x8xbf16>, vector<8x272xbf16>, vector<32x272xf32> -> vector<32x272xf32>
    %30 = arith.addf %24, %29 : vector<32x272xf32>
    %c0_28 = arith.constant 0 : index
    %c0_29 = arith.constant 0 : index
    %c36 = arith.constant 36 : index
    %31 = vector.load %arg1[%c0_28, %c0_29, %c36] : memref<1x8x1190xbf16, #tpu.memory_space<vmem>>, vector<1x8x272xbf16>
    %32 = vector.shape_cast %31 : vector<1x8x272xbf16> to vector<8x272xbf16>
    %c5 = arith.constant 5 : index
    %c0_30 = arith.constant 0 : index
    %c0_31 = arith.constant 0 : index
    %33 = vector.load %arg2[%c5, %c0_30, %c0_31] : memref<9x32x8xbf16, #tpu.memory_space<vmem>>, vector<1x32x8xbf16>
    %34 = vector.shape_cast %33 : vector<1x32x8xbf16> to vector<32x8xbf16>
    %cst_32 = arith.constant dense<0.000000e+00> : vector<32x272xf32>
    %35 = tpu.matmul %34, %32, %cst_32 {dimension_numbers = #tpu.dot_dimension_numbers<[1], [0], [0], [1], [0, 0, 1, 1], [], []>} : vector<32x8xbf16>, vector<8x272xbf16>, vector<32x272xf32> -> vector<32x272xf32>
    %36 = arith.addf %30, %35 : vector<32x272xf32>
    %c0_33 = arith.constant 0 : index
    %c0_34 = arith.constant 0 : index
    %c68 = arith.constant 68 : index
    %37 = vector.load %arg1[%c0_33, %c0_34, %c68] : memref<1x8x1190xbf16, #tpu.memory_space<vmem>>, vector<1x8x272xbf16>
    %38 = vector.shape_cast %37 : vector<1x8x272xbf16> to vector<8x272xbf16>
    %c6 = arith.constant 6 : index
    %c0_35 = arith.constant 0 : index
    %c0_36 = arith.constant 0 : index
    %39 = vector.load %arg2[%c6, %c0_35, %c0_36] : memref<9x32x8xbf16, #tpu.memory_space<vmem>>, vector<1x32x8xbf16>
    %40 = vector.shape_cast %39 : vector<1x32x8xbf16> to vector<32x8xbf16>
    %cst_37 = arith.constant dense<0.000000e+00> : vector<32x272xf32>
    %41 = tpu.matmul %40, %38, %cst_37 {dimension_numbers = #tpu.dot_dimension_numbers<[1], [0], [0], [1], [0, 0, 1, 1], [], []>} : vector<32x8xbf16>, vector<8x272xbf16>, vector<32x272xf32> -> vector<32x272xf32>
    %42 = arith.addf %36, %41 : vector<32x272xf32>
    %c0_38 = arith.constant 0 : index
    %c0_39 = arith.constant 0 : index
    %c69 = arith.constant 69 : index
    %43 = vector.load %arg1[%c0_38, %c0_39, %c69] : memref<1x8x1190xbf16, #tpu.memory_space<vmem>>, vector<1x8x272xbf16>
    %44 = vector.shape_cast %43 : vector<1x8x272xbf16> to vector<8x272xbf16>
    %c7 = arith.constant 7 : index
    %c0_40 = arith.constant 0 : index
    %c0_41 = arith.constant 0 : index
    %45 = vector.load %arg2[%c7, %c0_40, %c0_41] : memref<9x32x8xbf16, #tpu.memory_space<vmem>>, vector<1x32x8xbf16>
    %46 = vector.shape_cast %45 : vector<1x32x8xbf16> to vector<32x8xbf16>
    %cst_42 = arith.constant dense<0.000000e+00> : vector<32x272xf32>
    %47 = tpu.matmul %46, %44, %cst_42 {dimension_numbers = #tpu.dot_dimension_numbers<[1], [0], [0], [1], [0, 0, 1, 1], [], []>} : vector<32x8xbf16>, vector<8x272xbf16>, vector<32x272xf32> -> vector<32x272xf32>
    %48 = arith.addf %42, %47 : vector<32x272xf32>
    %c0_43 = arith.constant 0 : index
    %c0_44 = arith.constant 0 : index
    %c70 = arith.constant 70 : index
    %49 = vector.load %arg1[%c0_43, %c0_44, %c70] : memref<1x8x1190xbf16, #tpu.memory_space<vmem>>, vector<1x8x272xbf16>
    %50 = vector.shape_cast %49 : vector<1x8x272xbf16> to vector<8x272xbf16>
    %c8 = arith.constant 8 : index
    %c0_45 = arith.constant 0 : index
    %c0_46 = arith.constant 0 : index
    %51 = vector.load %arg2[%c8, %c0_45, %c0_46] : memref<9x32x8xbf16, #tpu.memory_space<vmem>>, vector<1x32x8xbf16>
    %52 = vector.shape_cast %51 : vector<1x32x8xbf16> to vector<32x8xbf16>
    %cst_47 = arith.constant dense<0.000000e+00> : vector<32x272xf32>
    %53 = tpu.matmul %52, %50, %cst_47 {dimension_numbers = #tpu.dot_dimension_numbers<[1], [0], [0], [1], [0, 0, 1, 1], [], []>} : vector<32x8xbf16>, vector<8x272xbf16>, vector<32x272xf32> -> vector<32x272xf32>
    %54 = arith.addf %48, %53 : vector<32x272xf32>
    %c0_48 = arith.constant 0 : index
    %c0_49 = arith.constant 0 : index
    %55 = vector.load %arg3[%c0_48, %c0_49] : memref<32x1xf32, #tpu.memory_space<vmem>>, vector<32x1xf32>
    %56 = vector.broadcast %55 : vector<32x1xf32> to vector<32x272xf32>
    %57 = arith.addf %54, %56 : vector<32x272xf32>
    %cst_50 = arith.constant 0.000000e+00 : f32
    %58 = vector.broadcast %cst_50 : f32 to vector<32x272xf32>
    %59 = arith.maximumf %57, %58 : vector<32x272xf32>
    %60 = arith.truncf %59 : vector<32x272xf32> to vector<32x272xbf16>
    %c0_51 = arith.constant 0 : index
    %c0_52 = arith.constant 0 : index
    %c0_53 = arith.constant 0 : index
    %61 = vector.load %arg4[%c0_51, %c0_52, %c0_53] : memref<1x32x1088xbf16, #tpu.memory_space<vmem>>, vector<1x32x272xbf16>
    %62 = vector.shape_cast %61 : vector<1x32x272xbf16> to vector<32x272xbf16>
    %63 = vector.shape_cast %60 : vector<32x272xbf16> to vector<1x32x272xbf16>
    tpu.vector_store %arg4[%c0_51, %c0_52, %c0_53], %63 {strides = array<i32>} : memref<1x32x1088xbf16, #tpu.memory_space<vmem>>, vector<1x32x272xbf16>,
    %cst_54 = arith.constant 0.000000e+00 : f32
    %64 = vector.broadcast %cst_54 : f32 to vector<32x272xf32>
    %c0_55 = arith.constant 0 : index
    %c0_56 = arith.constant 0 : index
    %c272 = arith.constant 272 : index
    %65 = vector.load %arg1[%c0_55, %c0_56, %c272] : memref<1x8x1190xbf16, #tpu.memory_space<vmem>>, vector<1x8x272xbf16>
    %66 = vector.shape_cast %65 : vector<1x8x272xbf16> to vector<8x272xbf16>
    %c0_57 = arith.constant 0 : index
    %c0_58 = arith.constant 0 : index
    %c0_59 = arith.constant 0 : index
    %67 = vector.load %arg2[%c0_57, %c0_58, %c0_59] : memref<9x32x8xbf16, #tpu.memory_space<vmem>>, vector<1x32x8xbf16>
    %68 = vector.shape_cast %67 : vector<1x32x8xbf16> to vector<32x8xbf16>
    %cst_60 = arith.constant dense<0.000000e+00> : vector<32x272xf32>
    %69 = tpu.matmul %68, %66, %cst_60 {dimension_numbers = #tpu.dot_dimension_numbers<[1], [0], [0], [1], [0, 0, 1, 1], [], []>} : vector<32x8xbf16>, vector<8x272xbf16>, vector<32x272xf32> -> vector<32x272xf32>
    %70 = arith.addf %64, %69 : vector<32x272xf32>
    %c0_61 = arith.constant 0 : index
    %c0_62 = arith.constant 0 : index
    %c273 = arith.constant 273 : index
    %71 = vector.load %arg1[%c0_61, %c0_62, %c273] : memref<1x8x1190xbf16, #tpu.memory_space<vmem>>, vector<1x8x272xbf16>
    %72 = vector.shape_cast %71 : vector<1x8x272xbf16> to vector<8x272xbf16>
    %c1_63 = arith.constant 1 : index
    %c0_64 = arith.constant 0 : index
    %c0_65 = arith.constant 0 : index
    %73 = vector.load %arg2[%c1_63, %c0_64, %c0_65] : memref<9x32x8xbf16, #tpu.memory_space<vmem>>, vector<1x32x8xbf16>
    %74 = vector.shape_cast %73 : vector<1x32x8xbf16> to vector<32x8xbf16>
    %cst_66 = arith.constant dense<0.000000e+00> : vector<32x272xf32>
    %75 = tpu.matmul %74, %72, %cst_66 {dimension_numbers = #tpu.dot_dimension_numbers<[1], [0], [0], [1], [0, 0, 1, 1], [], []>} : vector<32x8xbf16>, vector<8x272xbf16>, vector<32x272xf32> -> vector<32x272xf32>
    %76 = arith.addf %70, %75 : vector<32x272xf32>
    %c0_67 = arith.constant 0 : index
    %c0_68 = arith.constant 0 : index
    %c274 = arith.constant 274 : index
    %77 = vector.load %arg1[%c0_67, %c0_68, %c274] : memref<1x8x1190xbf16, #tpu.memory_space<vmem>>, vector<1x8x272xbf16>
    %78 = vector.shape_cast %77 : vector<1x8x272xbf16> to vector<8x272xbf16>
    %c2_69 = arith.constant 2 : index
    %c0_70 = arith.constant 0 : index
    %c0_71 = arith.constant 0 : index
    %79 = vector.load %arg2[%c2_69, %c0_70, %c0_71] : memref<9x32x8xbf16, #tpu.memory_space<vmem>>, vector<1x32x8xbf16>
    %80 = vector.shape_cast %79 : vector<1x32x8xbf16> to vector<32x8xbf16>
    %cst_72 = arith.constant dense<0.000000e+00> : vector<32x272xf32>
    %81 = tpu.matmul %80, %78, %cst_72 {dimension_numbers = #tpu.dot_dimension_numbers<[1], [0], [0], [1], [0, 0, 1, 1], [], []>} : vector<32x8xbf16>, vector<8x272xbf16>, vector<32x272xf32> -> vector<32x272xf32>
    %82 = arith.addf %76, %81 : vector<32x272xf32>
    %c0_73 = arith.constant 0 : index
    %c0_74 = arith.constant 0 : index
    %c306 = arith.constant 306 : index
    %83 = vector.load %arg1[%c0_73, %c0_74, %c306] : memref<1x8x1190xbf16, #tpu.memory_space<vmem>>, vector<1x8x272xbf16>
    %84 = vector.shape_cast %83 : vector<1x8x272xbf16> to vector<8x272xbf16>
    %c3_75 = arith.constant 3 : index
    %c0_76 = arith.constant 0 : index
    %c0_77 = arith.constant 0 : index
    %85 = vector.load %arg2[%c3_75, %c0_76, %c0_77] : memref<9x32x8xbf16, #tpu.memory_space<vmem>>, vector<1x32x8xbf16>
    %86 = vector.shape_cast %85 : vector<1x32x8xbf16> to vector<32x8xbf16>
    %cst_78 = arith.constant dense<0.000000e+00> : vector<32x272xf32>
    %87 = tpu.matmul %86, %84, %cst_78 {dimension_numbers = #tpu.dot_dimension_numbers<[1], [0], [0], [1], [0, 0, 1, 1], [], []>} : vector<32x8xbf16>, vector<8x272xbf16>, vector<32x272xf32> -> vector<32x272xf32>
    %88 = arith.addf %82, %87 : vector<32x272xf32>
    %c0_79 = arith.constant 0 : index
    %c0_80 = arith.constant 0 : index
    %c307 = arith.constant 307 : index
    %89 = vector.load %arg1[%c0_79, %c0_80, %c307] : memref<1x8x1190xbf16, #tpu.memory_space<vmem>>, vector<1x8x272xbf16>
    %90 = vector.shape_cast %89 : vector<1x8x272xbf16> to vector<8x272xbf16>
    %c4_81 = arith.constant 4 : index
    %c0_82 = arith.constant 0 : index
    %c0_83 = arith.constant 0 : index
    %91 = vector.load %arg2[%c4_81, %c0_82, %c0_83] : memref<9x32x8xbf16, #tpu.memory_space<vmem>>, vector<1x32x8xbf16>
    %92 = vector.shape_cast %91 : vector<1x32x8xbf16> to vector<32x8xbf16>
    %cst_84 = arith.constant dense<0.000000e+00> : vector<32x272xf32>
    %93 = tpu.matmul %92, %90, %cst_84 {dimension_numbers = #tpu.dot_dimension_numbers<[1], [0], [0], [1], [0, 0, 1, 1], [], []>} : vector<32x8xbf16>, vector<8x272xbf16>, vector<32x272xf32> -> vector<32x272xf32>
    %94 = arith.addf %88, %93 : vector<32x272xf32>
    %c0_85 = arith.constant 0 : index
    %c0_86 = arith.constant 0 : index
    %c308 = arith.constant 308 : index
    %95 = vector.load %arg1[%c0_85, %c0_86, %c308] : memref<1x8x1190xbf16, #tpu.memory_space<vmem>>, vector<1x8x272xbf16>
    %96 = vector.shape_cast %95 : vector<1x8x272xbf16> to vector<8x272xbf16>
    %c5_87 = arith.constant 5 : index
    %c0_88 = arith.constant 0 : index
    %c0_89 = arith.constant 0 : index
    %97 = vector.load %arg2[%c5_87, %c0_88, %c0_89] : memref<9x32x8xbf16, #tpu.memory_space<vmem>>, vector<1x32x8xbf16>
    %98 = vector.shape_cast %97 : vector<1x32x8xbf16> to vector<32x8xbf16>
    %cst_90 = arith.constant dense<0.000000e+00> : vector<32x272xf32>
    %99 = tpu.matmul %98, %96, %cst_90 {dimension_numbers = #tpu.dot_dimension_numbers<[1], [0], [0], [1], [0, 0, 1, 1], [], []>} : vector<32x8xbf16>, vector<8x272xbf16>, vector<32x272xf32> -> vector<32x272xf32>
    %100 = arith.addf %94, %99 : vector<32x272xf32>
    %c0_91 = arith.constant 0 : index
    %c0_92 = arith.constant 0 : index
    %c340 = arith.constant 340 : index
    %101 = vector.load %arg1[%c0_91, %c0_92, %c340] : memref<1x8x1190xbf16, #tpu.memory_space<vmem>>, vector<1x8x272xbf16>
    %102 = vector.shape_cast %101 : vector<1x8x272xbf16> to vector<8x272xbf16>
    %c6_93 = arith.constant 6 : index
    %c0_94 = arith.constant 0 : index
    %c0_95 = arith.constant 0 : index
    %103 = vector.load %arg2[%c6_93, %c0_94, %c0_95] : memref<9x32x8xbf16, #tpu.memory_space<vmem>>, vector<1x32x8xbf16>
    %104 = vector.shape_cast %103 : vector<1x32x8xbf16> to vector<32x8xbf16>
    %cst_96 = arith.constant dense<0.000000e+00> : vector<32x272xf32>
    %105 = tpu.matmul %104, %102, %cst_96 {dimension_numbers = #tpu.dot_dimension_numbers<[1], [0], [0], [1], [0, 0, 1, 1], [], []>} : vector<32x8xbf16>, vector<8x272xbf16>, vector<32x272xf32> -> vector<32x272xf32>
    %106 = arith.addf %100, %105 : vector<32x272xf32>
    %c0_97 = arith.constant 0 : index
    %c0_98 = arith.constant 0 : index
    %c341 = arith.constant 341 : index
    %107 = vector.load %arg1[%c0_97, %c0_98, %c341] : memref<1x8x1190xbf16, #tpu.memory_space<vmem>>, vector<1x8x272xbf16>
    %108 = vector.shape_cast %107 : vector<1x8x272xbf16> to vector<8x272xbf16>
    %c7_99 = arith.constant 7 : index
    %c0_100 = arith.constant 0 : index
    %c0_101 = arith.constant 0 : index
    %109 = vector.load %arg2[%c7_99, %c0_100, %c0_101] : memref<9x32x8xbf16, #tpu.memory_space<vmem>>, vector<1x32x8xbf16>
    %110 = vector.shape_cast %109 : vector<1x32x8xbf16> to vector<32x8xbf16>
    %cst_102 = arith.constant dense<0.000000e+00> : vector<32x272xf32>
    %111 = tpu.matmul %110, %108, %cst_102 {dimension_numbers = #tpu.dot_dimension_numbers<[1], [0], [0], [1], [0, 0, 1, 1], [], []>} : vector<32x8xbf16>, vector<8x272xbf16>, vector<32x272xf32> -> vector<32x272xf32>
    %112 = arith.addf %106, %111 : vector<32x272xf32>
    %c0_103 = arith.constant 0 : index
    %c0_104 = arith.constant 0 : index
    %c342 = arith.constant 342 : index
    %113 = vector.load %arg1[%c0_103, %c0_104, %c342] : memref<1x8x1190xbf16, #tpu.memory_space<vmem>>, vector<1x8x272xbf16>
    %114 = vector.shape_cast %113 : vector<1x8x272xbf16> to vector<8x272xbf16>
    %c8_105 = arith.constant 8 : index
    %c0_106 = arith.constant 0 : index
    %c0_107 = arith.constant 0 : index
    %115 = vector.load %arg2[%c8_105, %c0_106, %c0_107] : memref<9x32x8xbf16, #tpu.memory_space<vmem>>, vector<1x32x8xbf16>
    %116 = vector.shape_cast %115 : vector<1x32x8xbf16> to vector<32x8xbf16>
    %cst_108 = arith.constant dense<0.000000e+00> : vector<32x272xf32>
    %117 = tpu.matmul %116, %114, %cst_108 {dimension_numbers = #tpu.dot_dimension_numbers<[1], [0], [0], [1], [0, 0, 1, 1], [], []>} : vector<32x8xbf16>, vector<8x272xbf16>, vector<32x272xf32> -> vector<32x272xf32>
    %118 = arith.addf %112, %117 : vector<32x272xf32>
    %c0_109 = arith.constant 0 : index
    %c0_110 = arith.constant 0 : index
    %119 = vector.load %arg3[%c0_109, %c0_110] : memref<32x1xf32, #tpu.memory_space<vmem>>, vector<32x1xf32>
    %120 = vector.broadcast %119 : vector<32x1xf32> to vector<32x272xf32>
    %121 = arith.addf %118, %120 : vector<32x272xf32>
    %cst_111 = arith.constant 0.000000e+00 : f32
    %122 = vector.broadcast %cst_111 : f32 to vector<32x272xf32>
    %123 = arith.maximumf %121, %122 : vector<32x272xf32>
    %124 = arith.truncf %123 : vector<32x272xf32> to vector<32x272xbf16>
    %c0_112 = arith.constant 0 : index
    %c0_113 = arith.constant 0 : index
    %c272_114 = arith.constant 272 : index
    %125 = vector.load %arg4[%c0_112, %c0_113, %c272_114] : memref<1x32x1088xbf16, #tpu.memory_space<vmem>>, vector<1x32x272xbf16>
    %126 = vector.shape_cast %125 : vector<1x32x272xbf16> to vector<32x272xbf16>
    %127 = vector.shape_cast %124 : vector<32x272xbf16> to vector<1x32x272xbf16>
    tpu.vector_store %arg4[%c0_112, %c0_113, %c272_114], %127 {strides = array<i32>} : memref<1x32x1088xbf16, #tpu.memory_space<vmem>>, vector<1x32x272xbf16>,
    %cst_115 = arith.constant 0.000000e+00 : f32
    %128 = vector.broadcast %cst_115 : f32 to vector<32x272xf32>
    %c0_116 = arith.constant 0 : index
    %c0_117 = arith.constant 0 : index
    %c544 = arith.constant 544 : index
    %129 = vector.load %arg1[%c0_116, %c0_117, %c544] : memref<1x8x1190xbf16, #tpu.memory_space<vmem>>, vector<1x8x272xbf16>
    %130 = vector.shape_cast %129 : vector<1x8x272xbf16> to vector<8x272xbf16>
    %c0_118 = arith.constant 0 : index
    %c0_119 = arith.constant 0 : index
    %c0_120 = arith.constant 0 : index
    %131 = vector.load %arg2[%c0_118, %c0_119, %c0_120] : memref<9x32x8xbf16, #tpu.memory_space<vmem>>, vector<1x32x8xbf16>
    %132 = vector.shape_cast %131 : vector<1x32x8xbf16> to vector<32x8xbf16>
    %cst_121 = arith.constant dense<0.000000e+00> : vector<32x272xf32>
    %133 = tpu.matmul %132, %130, %cst_121 {dimension_numbers = #tpu.dot_dimension_numbers<[1], [0], [0], [1], [0, 0, 1, 1], [], []>} : vector<32x8xbf16>, vector<8x272xbf16>, vector<32x272xf32> -> vector<32x272xf32>
    %134 = arith.addf %128, %133 : vector<32x272xf32>
    %c0_122 = arith.constant 0 : index
    %c0_123 = arith.constant 0 : index
    %c545 = arith.constant 545 : index
    %135 = vector.load %arg1[%c0_122, %c0_123, %c545] : memref<1x8x1190xbf16, #tpu.memory_space<vmem>>, vector<1x8x272xbf16>
    %136 = vector.shape_cast %135 : vector<1x8x272xbf16> to vector<8x272xbf16>
    %c1_124 = arith.constant 1 : index
    %c0_125 = arith.constant 0 : index
    %c0_126 = arith.constant 0 : index
    %137 = vector.load %arg2[%c1_124, %c0_125, %c0_126] : memref<9x32x8xbf16, #tpu.memory_space<vmem>>, vector<1x32x8xbf16>
    %138 = vector.shape_cast %137 : vector<1x32x8xbf16> to vector<32x8xbf16>
    %cst_127 = arith.constant dense<0.000000e+00> : vector<32x272xf32>
    %139 = tpu.matmul %138, %136, %cst_127 {dimension_numbers = #tpu.dot_dimension_numbers<[1], [0], [0], [1], [0, 0, 1, 1], [], []>} : vector<32x8xbf16>, vector<8x272xbf16>, vector<32x272xf32> -> vector<32x272xf32>
    %140 = arith.addf %134, %139 : vector<32x272xf32>
    %c0_128 = arith.constant 0 : index
    %c0_129 = arith.constant 0 : index
    %c546 = arith.constant 546 : index
    %141 = vector.load %arg1[%c0_128, %c0_129, %c546] : memref<1x8x1190xbf16, #tpu.memory_space<vmem>>, vector<1x8x272xbf16>
    %142 = vector.shape_cast %141 : vector<1x8x272xbf16> to vector<8x272xbf16>
    %c2_130 = arith.constant 2 : index
    %c0_131 = arith.constant 0 : index
    %c0_132 = arith.constant 0 : index
    %143 = vector.load %arg2[%c2_130, %c0_131, %c0_132] : memref<9x32x8xbf16, #tpu.memory_space<vmem>>, vector<1x32x8xbf16>
    %144 = vector.shape_cast %143 : vector<1x32x8xbf16> to vector<32x8xbf16>
    %cst_133 = arith.constant dense<0.000000e+00> : vector<32x272xf32>
    %145 = tpu.matmul %144, %142, %cst_133 {dimension_numbers = #tpu.dot_dimension_numbers<[1], [0], [0], [1], [0, 0, 1, 1], [], []>} : vector<32x8xbf16>, vector<8x272xbf16>, vector<32x272xf32> -> vector<32x272xf32>
    %146 = arith.addf %140, %145 : vector<32x272xf32>
    %c0_134 = arith.constant 0 : index
    %c0_135 = arith.constant 0 : index
    %c578 = arith.constant 578 : index
    %147 = vector.load %arg1[%c0_134, %c0_135, %c578] : memref<1x8x1190xbf16, #tpu.memory_space<vmem>>, vector<1x8x272xbf16>
    %148 = vector.shape_cast %147 : vector<1x8x272xbf16> to vector<8x272xbf16>
    %c3_136 = arith.constant 3 : index
    %c0_137 = arith.constant 0 : index
    %c0_138 = arith.constant 0 : index
    %149 = vector.load %arg2[%c3_136, %c0_137, %c0_138] : memref<9x32x8xbf16, #tpu.memory_space<vmem>>, vector<1x32x8xbf16>
    %150 = vector.shape_cast %149 : vector<1x32x8xbf16> to vector<32x8xbf16>
    %cst_139 = arith.constant dense<0.000000e+00> : vector<32x272xf32>
    %151 = tpu.matmul %150, %148, %cst_139 {dimension_numbers = #tpu.dot_dimension_numbers<[1], [0], [0], [1], [0, 0, 1, 1], [], []>} : vector<32x8xbf16>, vector<8x272xbf16>, vector<32x272xf32> -> vector<32x272xf32>
    %152 = arith.addf %146, %151 : vector<32x272xf32>
    %c0_140 = arith.constant 0 : index
    %c0_141 = arith.constant 0 : index
    %c579 = arith.constant 579 : index
    %153 = vector.load %arg1[%c0_140, %c0_141, %c579] : memref<1x8x1190xbf16, #tpu.memory_space<vmem>>, vector<1x8x272xbf16>
    %154 = vector.shape_cast %153 : vector<1x8x272xbf16> to vector<8x272xbf16>
    %c4_142 = arith.constant 4 : index
    %c0_143 = arith.constant 0 : index
    %c0_144 = arith.constant 0 : index
    %155 = vector.load %arg2[%c4_142, %c0_143, %c0_144] : memref<9x32x8xbf16, #tpu.memory_space<vmem>>, vector<1x32x8xbf16>
    %156 = vector.shape_cast %155 : vector<1x32x8xbf16> to vector<32x8xbf16>
    %cst_145 = arith.constant dense<0.000000e+00> : vector<32x272xf32>
    %157 = tpu.matmul %156, %154, %cst_145 {dimension_numbers = #tpu.dot_dimension_numbers<[1], [0], [0], [1], [0, 0, 1, 1], [], []>} : vector<32x8xbf16>, vector<8x272xbf16>, vector<32x272xf32> -> vector<32x272xf32>
    %158 = arith.addf %152, %157 : vector<32x272xf32>
    %c0_146 = arith.constant 0 : index
    %c0_147 = arith.constant 0 : index
    %c580 = arith.constant 580 : index
    %159 = vector.load %arg1[%c0_146, %c0_147, %c580] : memref<1x8x1190xbf16, #tpu.memory_space<vmem>>, vector<1x8x272xbf16>
    %160 = vector.shape_cast %159 : vector<1x8x272xbf16> to vector<8x272xbf16>
    %c5_148 = arith.constant 5 : index
    %c0_149 = arith.constant 0 : index
    %c0_150 = arith.constant 0 : index
    %161 = vector.load %arg2[%c5_148, %c0_149, %c0_150] : memref<9x32x8xbf16, #tpu.memory_space<vmem>>, vector<1x32x8xbf16>
    %162 = vector.shape_cast %161 : vector<1x32x8xbf16> to vector<32x8xbf16>
    %cst_151 = arith.constant dense<0.000000e+00> : vector<32x272xf32>
    %163 = tpu.matmul %162, %160, %cst_151 {dimension_numbers = #tpu.dot_dimension_numbers<[1], [0], [0], [1], [0, 0, 1, 1], [], []>} : vector<32x8xbf16>, vector<8x272xbf16>, vector<32x272xf32> -> vector<32x272xf32>
    %164 = arith.addf %158, %163 : vector<32x272xf32>
    %c0_152 = arith.constant 0 : index
    %c0_153 = arith.constant 0 : index
    %c612 = arith.constant 612 : index
    %165 = vector.load %arg1[%c0_152, %c0_153, %c612] : memref<1x8x1190xbf16, #tpu.memory_space<vmem>>, vector<1x8x272xbf16>
    %166 = vector.shape_cast %165 : vector<1x8x272xbf16> to vector<8x272xbf16>
    %c6_154 = arith.constant 6 : index
    %c0_155 = arith.constant 0 : index
    %c0_156 = arith.constant 0 : index
    %167 = vector.load %arg2[%c6_154, %c0_155, %c0_156] : memref<9x32x8xbf16, #tpu.memory_space<vmem>>, vector<1x32x8xbf16>
    %168 = vector.shape_cast %167 : vector<1x32x8xbf16> to vector<32x8xbf16>
    %cst_157 = arith.constant dense<0.000000e+00> : vector<32x272xf32>
    %169 = tpu.matmul %168, %166, %cst_157 {dimension_numbers = #tpu.dot_dimension_numbers<[1], [0], [0], [1], [0, 0, 1, 1], [], []>} : vector<32x8xbf16>, vector<8x272xbf16>, vector<32x272xf32> -> vector<32x272xf32>
    %170 = arith.addf %164, %169 : vector<32x272xf32>
    %c0_158 = arith.constant 0 : index
    %c0_159 = arith.constant 0 : index
    %c613 = arith.constant 613 : index
    %171 = vector.load %arg1[%c0_158, %c0_159, %c613] : memref<1x8x1190xbf16, #tpu.memory_space<vmem>>, vector<1x8x272xbf16>
    %172 = vector.shape_cast %171 : vector<1x8x272xbf16> to vector<8x272xbf16>
    %c7_160 = arith.constant 7 : index
    %c0_161 = arith.constant 0 : index
    %c0_162 = arith.constant 0 : index
    %173 = vector.load %arg2[%c7_160, %c0_161, %c0_162] : memref<9x32x8xbf16, #tpu.memory_space<vmem>>, vector<1x32x8xbf16>
    %174 = vector.shape_cast %173 : vector<1x32x8xbf16> to vector<32x8xbf16>
    %cst_163 = arith.constant dense<0.000000e+00> : vector<32x272xf32>
    %175 = tpu.matmul %174, %172, %cst_163 {dimension_numbers = #tpu.dot_dimension_numbers<[1], [0], [0], [1], [0, 0, 1, 1], [], []>} : vector<32x8xbf16>, vector<8x272xbf16>, vector<32x272xf32> -> vector<32x272xf32>
    %176 = arith.addf %170, %175 : vector<32x272xf32>
    %c0_164 = arith.constant 0 : index
    %c0_165 = arith.constant 0 : index
    %c614 = arith.constant 614 : index
    %177 = vector.load %arg1[%c0_164, %c0_165, %c614] : memref<1x8x1190xbf16, #tpu.memory_space<vmem>>, vector<1x8x272xbf16>
    %178 = vector.shape_cast %177 : vector<1x8x272xbf16> to vector<8x272xbf16>
    %c8_166 = arith.constant 8 : index
    %c0_167 = arith.constant 0 : index
    %c0_168 = arith.constant 0 : index
    %179 = vector.load %arg2[%c8_166, %c0_167, %c0_168] : memref<9x32x8xbf16, #tpu.memory_space<vmem>>, vector<1x32x8xbf16>
    %180 = vector.shape_cast %179 : vector<1x32x8xbf16> to vector<32x8xbf16>
    %cst_169 = arith.constant dense<0.000000e+00> : vector<32x272xf32>
    %181 = tpu.matmul %180, %178, %cst_169 {dimension_numbers = #tpu.dot_dimension_numbers<[1], [0], [0], [1], [0, 0, 1, 1], [], []>} : vector<32x8xbf16>, vector<8x272xbf16>, vector<32x272xf32> -> vector<32x272xf32>
    %182 = arith.addf %176, %181 : vector<32x272xf32>
    %c0_170 = arith.constant 0 : index
    %c0_171 = arith.constant 0 : index
    %183 = vector.load %arg3[%c0_170, %c0_171] : memref<32x1xf32, #tpu.memory_space<vmem>>, vector<32x1xf32>
    %184 = vector.broadcast %183 : vector<32x1xf32> to vector<32x272xf32>
    %185 = arith.addf %182, %184 : vector<32x272xf32>
    %cst_172 = arith.constant 0.000000e+00 : f32
    %186 = vector.broadcast %cst_172 : f32 to vector<32x272xf32>
    %187 = arith.maximumf %185, %186 : vector<32x272xf32>
    %188 = arith.truncf %187 : vector<32x272xf32> to vector<32x272xbf16>
    %c0_173 = arith.constant 0 : index
    %c0_174 = arith.constant 0 : index
    %c544_175 = arith.constant 544 : index
    %189 = vector.load %arg4[%c0_173, %c0_174, %c544_175] : memref<1x32x1088xbf16, #tpu.memory_space<vmem>>, vector<1x32x272xbf16>
    %190 = vector.shape_cast %189 : vector<1x32x272xbf16> to vector<32x272xbf16>
    %191 = vector.shape_cast %188 : vector<32x272xbf16> to vector<1x32x272xbf16>
    tpu.vector_store %arg4[%c0_173, %c0_174, %c544_175], %191 {strides = array<i32>} : memref<1x32x1088xbf16, #tpu.memory_space<vmem>>, vector<1x32x272xbf16>,
    %cst_176 = arith.constant 0.000000e+00 : f32
    %192 = vector.broadcast %cst_176 : f32 to vector<32x272xf32>
    %c0_177 = arith.constant 0 : index
    %c0_178 = arith.constant 0 : index
    %c816 = arith.constant 816 : index
    %193 = vector.load %arg1[%c0_177, %c0_178, %c816] : memref<1x8x1190xbf16, #tpu.memory_space<vmem>>, vector<1x8x272xbf16>
    %194 = vector.shape_cast %193 : vector<1x8x272xbf16> to vector<8x272xbf16>
    %c0_179 = arith.constant 0 : index
    %c0_180 = arith.constant 0 : index
    %c0_181 = arith.constant 0 : index
    %195 = vector.load %arg2[%c0_179, %c0_180, %c0_181] : memref<9x32x8xbf16, #tpu.memory_space<vmem>>, vector<1x32x8xbf16>
    %196 = vector.shape_cast %195 : vector<1x32x8xbf16> to vector<32x8xbf16>
    %cst_182 = arith.constant dense<0.000000e+00> : vector<32x272xf32>
    %197 = tpu.matmul %196, %194, %cst_182 {dimension_numbers = #tpu.dot_dimension_numbers<[1], [0], [0], [1], [0, 0, 1, 1], [], []>} : vector<32x8xbf16>, vector<8x272xbf16>, vector<32x272xf32> -> vector<32x272xf32>
    %198 = arith.addf %192, %197 : vector<32x272xf32>
    %c0_183 = arith.constant 0 : index
    %c0_184 = arith.constant 0 : index
    %c817 = arith.constant 817 : index
    %199 = vector.load %arg1[%c0_183, %c0_184, %c817] : memref<1x8x1190xbf16, #tpu.memory_space<vmem>>, vector<1x8x272xbf16>
    %200 = vector.shape_cast %199 : vector<1x8x272xbf16> to vector<8x272xbf16>
    %c1_185 = arith.constant 1 : index
    %c0_186 = arith.constant 0 : index
    %c0_187 = arith.constant 0 : index
    %201 = vector.load %arg2[%c1_185, %c0_186, %c0_187] : memref<9x32x8xbf16, #tpu.memory_space<vmem>>, vector<1x32x8xbf16>
    %202 = vector.shape_cast %201 : vector<1x32x8xbf16> to vector<32x8xbf16>
    %cst_188 = arith.constant dense<0.000000e+00> : vector<32x272xf32>
    %203 = tpu.matmul %202, %200, %cst_188 {dimension_numbers = #tpu.dot_dimension_numbers<[1], [0], [0], [1], [0, 0, 1, 1], [], []>} : vector<32x8xbf16>, vector<8x272xbf16>, vector<32x272xf32> -> vector<32x272xf32>
    %204 = arith.addf %198, %203 : vector<32x272xf32>
    %c0_189 = arith.constant 0 : index
    %c0_190 = arith.constant 0 : index
    %c818 = arith.constant 818 : index
    %205 = vector.load %arg1[%c0_189, %c0_190, %c818] : memref<1x8x1190xbf16, #tpu.memory_space<vmem>>, vector<1x8x272xbf16>
    %206 = vector.shape_cast %205 : vector<1x8x272xbf16> to vector<8x272xbf16>
    %c2_191 = arith.constant 2 : index
    %c0_192 = arith.constant 0 : index
    %c0_193 = arith.constant 0 : index
    %207 = vector.load %arg2[%c2_191, %c0_192, %c0_193] : memref<9x32x8xbf16, #tpu.memory_space<vmem>>, vector<1x32x8xbf16>
    %208 = vector.shape_cast %207 : vector<1x32x8xbf16> to vector<32x8xbf16>
    %cst_194 = arith.constant dense<0.000000e+00> : vector<32x272xf32>
    %209 = tpu.matmul %208, %206, %cst_194 {dimension_numbers = #tpu.dot_dimension_numbers<[1], [0], [0], [1], [0, 0, 1, 1], [], []>} : vector<32x8xbf16>, vector<8x272xbf16>, vector<32x272xf32> -> vector<32x272xf32>
    %210 = arith.addf %204, %209 : vector<32x272xf32>
    %c0_195 = arith.constant 0 : index
    %c0_196 = arith.constant 0 : index
    %c850 = arith.constant 850 : index
    %211 = vector.load %arg1[%c0_195, %c0_196, %c850] : memref<1x8x1190xbf16, #tpu.memory_space<vmem>>, vector<1x8x272xbf16>
    %212 = vector.shape_cast %211 : vector<1x8x272xbf16> to vector<8x272xbf16>
    %c3_197 = arith.constant 3 : index
    %c0_198 = arith.constant 0 : index
    %c0_199 = arith.constant 0 : index
    %213 = vector.load %arg2[%c3_197, %c0_198, %c0_199] : memref<9x32x8xbf16, #tpu.memory_space<vmem>>, vector<1x32x8xbf16>
    %214 = vector.shape_cast %213 : vector<1x32x8xbf16> to vector<32x8xbf16>
    %cst_200 = arith.constant dense<0.000000e+00> : vector<32x272xf32>
    %215 = tpu.matmul %214, %212, %cst_200 {dimension_numbers = #tpu.dot_dimension_numbers<[1], [0], [0], [1], [0, 0, 1, 1], [], []>} : vector<32x8xbf16>, vector<8x272xbf16>, vector<32x272xf32> -> vector<32x272xf32>
    %216 = arith.addf %210, %215 : vector<32x272xf32>
    %c0_201 = arith.constant 0 : index
    %c0_202 = arith.constant 0 : index
    %c851 = arith.constant 851 : index
    %217 = vector.load %arg1[%c0_201, %c0_202, %c851] : memref<1x8x1190xbf16, #tpu.memory_space<vmem>>, vector<1x8x272xbf16>
    %218 = vector.shape_cast %217 : vector<1x8x272xbf16> to vector<8x272xbf16>
    %c4_203 = arith.constant 4 : index
    %c0_204 = arith.constant 0 : index
    %c0_205 = arith.constant 0 : index
    %219 = vector.load %arg2[%c4_203, %c0_204, %c0_205] : memref<9x32x8xbf16, #tpu.memory_space<vmem>>, vector<1x32x8xbf16>
    %220 = vector.shape_cast %219 : vector<1x32x8xbf16> to vector<32x8xbf16>
    %cst_206 = arith.constant dense<0.000000e+00> : vector<32x272xf32>
    %221 = tpu.matmul %220, %218, %cst_206 {dimension_numbers = #tpu.dot_dimension_numbers<[1], [0], [0], [1], [0, 0, 1, 1], [], []>} : vector<32x8xbf16>, vector<8x272xbf16>, vector<32x272xf32> -> vector<32x272xf32>
    %222 = arith.addf %216, %221 : vector<32x272xf32>
    %c0_207 = arith.constant 0 : index
    %c0_208 = arith.constant 0 : index
    %c852 = arith.constant 852 : index
    %223 = vector.load %arg1[%c0_207, %c0_208, %c852] : memref<1x8x1190xbf16, #tpu.memory_space<vmem>>, vector<1x8x272xbf16>
    %224 = vector.shape_cast %223 : vector<1x8x272xbf16> to vector<8x272xbf16>
    %c5_209 = arith.constant 5 : index
    %c0_210 = arith.constant 0 : index
    %c0_211 = arith.constant 0 : index
    %225 = vector.load %arg2[%c5_209, %c0_210, %c0_211] : memref<9x32x8xbf16, #tpu.memory_space<vmem>>, vector<1x32x8xbf16>
    %226 = vector.shape_cast %225 : vector<1x32x8xbf16> to vector<32x8xbf16>
    %cst_212 = arith.constant dense<0.000000e+00> : vector<32x272xf32>
    %227 = tpu.matmul %226, %224, %cst_212 {dimension_numbers = #tpu.dot_dimension_numbers<[1], [0], [0], [1], [0, 0, 1, 1], [], []>} : vector<32x8xbf16>, vector<8x272xbf16>, vector<32x272xf32> -> vector<32x272xf32>
    %228 = arith.addf %222, %227 : vector<32x272xf32>
    %c0_213 = arith.constant 0 : index
    %c0_214 = arith.constant 0 : index
    %c884 = arith.constant 884 : index
    %229 = vector.load %arg1[%c0_213, %c0_214, %c884] : memref<1x8x1190xbf16, #tpu.memory_space<vmem>>, vector<1x8x272xbf16>
    %230 = vector.shape_cast %229 : vector<1x8x272xbf16> to vector<8x272xbf16>
    %c6_215 = arith.constant 6 : index
    %c0_216 = arith.constant 0 : index
    %c0_217 = arith.constant 0 : index
    %231 = vector.load %arg2[%c6_215, %c0_216, %c0_217] : memref<9x32x8xbf16, #tpu.memory_space<vmem>>, vector<1x32x8xbf16>
    %232 = vector.shape_cast %231 : vector<1x32x8xbf16> to vector<32x8xbf16>
    %cst_218 = arith.constant dense<0.000000e+00> : vector<32x272xf32>
    %233 = tpu.matmul %232, %230, %cst_218 {dimension_numbers = #tpu.dot_dimension_numbers<[1], [0], [0], [1], [0, 0, 1, 1], [], []>} : vector<32x8xbf16>, vector<8x272xbf16>, vector<32x272xf32> -> vector<32x272xf32>
    %234 = arith.addf %228, %233 : vector<32x272xf32>
    %c0_219 = arith.constant 0 : index
    %c0_220 = arith.constant 0 : index
    %c885 = arith.constant 885 : index
    %235 = vector.load %arg1[%c0_219, %c0_220, %c885] : memref<1x8x1190xbf16, #tpu.memory_space<vmem>>, vector<1x8x272xbf16>
    %236 = vector.shape_cast %235 : vector<1x8x272xbf16> to vector<8x272xbf16>
    %c7_221 = arith.constant 7 : index
    %c0_222 = arith.constant 0 : index
    %c0_223 = arith.constant 0 : index
    %237 = vector.load %arg2[%c7_221, %c0_222, %c0_223] : memref<9x32x8xbf16, #tpu.memory_space<vmem>>, vector<1x32x8xbf16>
    %238 = vector.shape_cast %237 : vector<1x32x8xbf16> to vector<32x8xbf16>
    %cst_224 = arith.constant dense<0.000000e+00> : vector<32x272xf32>
    %239 = tpu.matmul %238, %236, %cst_224 {dimension_numbers = #tpu.dot_dimension_numbers<[1], [0], [0], [1], [0, 0, 1, 1], [], []>} : vector<32x8xbf16>, vector<8x272xbf16>, vector<32x272xf32> -> vector<32x272xf32>
    %240 = arith.addf %234, %239 : vector<32x272xf32>
    %c0_225 = arith.constant 0 : index
    %c0_226 = arith.constant 0 : index
    %c886 = arith.constant 886 : index
    %241 = vector.load %arg1[%c0_225, %c0_226, %c886] : memref<1x8x1190xbf16, #tpu.memory_space<vmem>>, vector<1x8x272xbf16>
    %242 = vector.shape_cast %241 : vector<1x8x272xbf16> to vector<8x272xbf16>
    %c8_227 = arith.constant 8 : index
    %c0_228 = arith.constant 0 : index
    %c0_229 = arith.constant 0 : index
    %243 = vector.load %arg2[%c8_227, %c0_228, %c0_229] : memref<9x32x8xbf16, #tpu.memory_space<vmem>>, vector<1x32x8xbf16>
    %244 = vector.shape_cast %243 : vector<1x32x8xbf16> to vector<32x8xbf16>
    %cst_230 = arith.constant dense<0.000000e+00> : vector<32x272xf32>
    %245 = tpu.matmul %244, %242, %cst_230 {dimension_numbers = #tpu.dot_dimension_numbers<[1], [0], [0], [1], [0, 0, 1, 1], [], []>} : vector<32x8xbf16>, vector<8x272xbf16>, vector<32x272xf32> -> vector<32x272xf32>
    %246 = arith.addf %240, %245 : vector<32x272xf32>
    %c0_231 = arith.constant 0 : index
    %c0_232 = arith.constant 0 : index
    %247 = vector.load %arg3[%c0_231, %c0_232] : memref<32x1xf32, #tpu.memory_space<vmem>>, vector<32x1xf32>
    %248 = vector.broadcast %247 : vector<32x1xf32> to vector<32x272xf32>
    %249 = arith.addf %246, %248 : vector<32x272xf32>
    %cst_233 = arith.constant 0.000000e+00 : f32
    %250 = vector.broadcast %cst_233 : f32 to vector<32x272xf32>
    %251 = arith.maximumf %249, %250 : vector<32x272xf32>
    %252 = arith.truncf %251 : vector<32x272xf32> to vector<32x272xbf16>
    %c0_234 = arith.constant 0 : index
    %c0_235 = arith.constant 0 : index
    %c816_236 = arith.constant 816 : index
    %253 = vector.load %arg4[%c0_234, %c0_235, %c816_236] : memref<1x32x1088xbf16, #tpu.memory_space<vmem>>, vector<1x32x272xbf16>
    %254 = vector.shape_cast %253 : vector<1x32x272xbf16> to vector<32x272xbf16>
    %255 = vector.shape_cast %252 : vector<32x272xbf16> to vector<1x32x272xbf16>
    tpu.vector_store %arg4[%c0_234, %c0_235, %c816_236], %255 {strides = array<i32>} : memref<1x32x1088xbf16, #tpu.memory_space<vmem>>, vector<1x32x272xbf16>,
    return
  }
  func.func @transform_0(%arg0: i32) -> (i32, i32, i32) {
    %c0_i32 = arith.constant 0 : i32
    %c0_i32_0 = arith.constant 0 : i32
    %c0_i32_1 = arith.constant 0 : i32
    return %arg0, %c0_i32, %c0_i32_0 : i32, i32, i32
  }
  func.func @transform_1(%arg0: i32) -> (i32, i32, i32) {
    %c0_i32 = arith.constant 0 : i32
    %c0_i32_0 = arith.constant 0 : i32
    %c0_i32_1 = arith.constant 0 : i32
    %c0_i32_2 = arith.constant 0 : i32
    return %c0_i32, %c0_i32_0, %c0_i32_1 : i32, i32, i32
  }
  func.func @transform_2(%arg0: i32) -> (i32, i32) {
    %c0_i32 = arith.constant 0 : i32
    %c0_i32_0 = arith.constant 0 : i32
    %c0_i32_1 = arith.constant 0 : i32
    return %c0_i32, %c0_i32_0 : i32, i32
  }
  func.func @transform_3(%arg0: i32) -> (i32, i32, i32) {
    %c0_i32 = arith.constant 0 : i32
    %c0_i32_0 = arith.constant 0 : i32
    %c0_i32_1 = arith.constant 0 : i32
    return %arg0, %c0_i32, %c0_i32_0 : i32, i32, i32
  }
}

module attributes {stable_mosaic.version = 11 : i64} {
  func.func @kernel(%arg0: i32, %arg1: memref<1x32x342xbf16, #tpu.memory_space<vmem>>, %arg2: memref<9x64x32xbf16, #tpu.memory_space<vmem>>, %arg3: memref<64x1xf32, #tpu.memory_space<vmem>>, %arg4: memref<1x64x288xbf16, #tpu.memory_space<vmem>>) attributes {dimension_semantics = [#tpu.dimension_semantics<parallel>], iteration_bounds = array<i64: 2>, scalar_prefetch = 0 : i64, scratch_operands = 0 : i64, tpu.core_type = #tpu.core_type<tc>, window_params = [{transform_indices = @transform_0, window_bounds = array<i64: 1, 32, 342>}, {pipeline_mode = #tpu.pipeline_mode<synchronous>, transform_indices = @transform_1, window_bounds = array<i64: 9, 64, 32>}, {pipeline_mode = #tpu.pipeline_mode<synchronous>, transform_indices = @transform_2, window_bounds = array<i64: 64, 1>}, {transform_indices = @transform_3, window_bounds = array<i64: 1, 64, 288>}]} {
    %cst = arith.constant 0.000000e+00 : f32
    %0 = vector.broadcast %cst : f32 to vector<64x288xf32>
    %c0 = arith.constant 0 : index
    %c0_0 = arith.constant 0 : index
    %c0_1 = arith.constant 0 : index
    %1 = vector.load %arg1[%c0, %c0_0, %c0_1] : memref<1x32x342xbf16, #tpu.memory_space<vmem>>, vector<1x32x288xbf16>
    %2 = vector.shape_cast %1 : vector<1x32x288xbf16> to vector<32x288xbf16>
    %c0_2 = arith.constant 0 : index
    %c0_3 = arith.constant 0 : index
    %c0_4 = arith.constant 0 : index
    %3 = vector.load %arg2[%c0_2, %c0_3, %c0_4] : memref<9x64x32xbf16, #tpu.memory_space<vmem>>, vector<1x64x32xbf16>
    %4 = vector.shape_cast %3 : vector<1x64x32xbf16> to vector<64x32xbf16>
    %cst_5 = arith.constant dense<0.000000e+00> : vector<64x288xf32>
    %5 = tpu.matmul %4, %2, %cst_5 {dimension_numbers = #tpu.dot_dimension_numbers<[1], [0], [0], [1], [0, 0, 1, 1], [], []>} : vector<64x32xbf16>, vector<32x288xbf16>, vector<64x288xf32> -> vector<64x288xf32>
    %6 = arith.addf %0, %5 : vector<64x288xf32>
    %c0_6 = arith.constant 0 : index
    %c0_7 = arith.constant 0 : index
    %c1 = arith.constant 1 : index
    %7 = vector.load %arg1[%c0_6, %c0_7, %c1] : memref<1x32x342xbf16, #tpu.memory_space<vmem>>, vector<1x32x288xbf16>
    %8 = vector.shape_cast %7 : vector<1x32x288xbf16> to vector<32x288xbf16>
    %c1_8 = arith.constant 1 : index
    %c0_9 = arith.constant 0 : index
    %c0_10 = arith.constant 0 : index
    %9 = vector.load %arg2[%c1_8, %c0_9, %c0_10] : memref<9x64x32xbf16, #tpu.memory_space<vmem>>, vector<1x64x32xbf16>
    %10 = vector.shape_cast %9 : vector<1x64x32xbf16> to vector<64x32xbf16>
    %cst_11 = arith.constant dense<0.000000e+00> : vector<64x288xf32>
    %11 = tpu.matmul %10, %8, %cst_11 {dimension_numbers = #tpu.dot_dimension_numbers<[1], [0], [0], [1], [0, 0, 1, 1], [], []>} : vector<64x32xbf16>, vector<32x288xbf16>, vector<64x288xf32> -> vector<64x288xf32>
    %12 = arith.addf %6, %11 : vector<64x288xf32>
    %c0_12 = arith.constant 0 : index
    %c0_13 = arith.constant 0 : index
    %c2 = arith.constant 2 : index
    %13 = vector.load %arg1[%c0_12, %c0_13, %c2] : memref<1x32x342xbf16, #tpu.memory_space<vmem>>, vector<1x32x288xbf16>
    %14 = vector.shape_cast %13 : vector<1x32x288xbf16> to vector<32x288xbf16>
    %c2_14 = arith.constant 2 : index
    %c0_15 = arith.constant 0 : index
    %c0_16 = arith.constant 0 : index
    %15 = vector.load %arg2[%c2_14, %c0_15, %c0_16] : memref<9x64x32xbf16, #tpu.memory_space<vmem>>, vector<1x64x32xbf16>
    %16 = vector.shape_cast %15 : vector<1x64x32xbf16> to vector<64x32xbf16>
    %cst_17 = arith.constant dense<0.000000e+00> : vector<64x288xf32>
    %17 = tpu.matmul %16, %14, %cst_17 {dimension_numbers = #tpu.dot_dimension_numbers<[1], [0], [0], [1], [0, 0, 1, 1], [], []>} : vector<64x32xbf16>, vector<32x288xbf16>, vector<64x288xf32> -> vector<64x288xf32>
    %18 = arith.addf %12, %17 : vector<64x288xf32>
    %c0_18 = arith.constant 0 : index
    %c0_19 = arith.constant 0 : index
    %c18 = arith.constant 18 : index
    %19 = vector.load %arg1[%c0_18, %c0_19, %c18] : memref<1x32x342xbf16, #tpu.memory_space<vmem>>, vector<1x32x288xbf16>
    %20 = vector.shape_cast %19 : vector<1x32x288xbf16> to vector<32x288xbf16>
    %c3 = arith.constant 3 : index
    %c0_20 = arith.constant 0 : index
    %c0_21 = arith.constant 0 : index
    %21 = vector.load %arg2[%c3, %c0_20, %c0_21] : memref<9x64x32xbf16, #tpu.memory_space<vmem>>, vector<1x64x32xbf16>
    %22 = vector.shape_cast %21 : vector<1x64x32xbf16> to vector<64x32xbf16>
    %cst_22 = arith.constant dense<0.000000e+00> : vector<64x288xf32>
    %23 = tpu.matmul %22, %20, %cst_22 {dimension_numbers = #tpu.dot_dimension_numbers<[1], [0], [0], [1], [0, 0, 1, 1], [], []>} : vector<64x32xbf16>, vector<32x288xbf16>, vector<64x288xf32> -> vector<64x288xf32>
    %24 = arith.addf %18, %23 : vector<64x288xf32>
    %c0_23 = arith.constant 0 : index
    %c0_24 = arith.constant 0 : index
    %c19 = arith.constant 19 : index
    %25 = vector.load %arg1[%c0_23, %c0_24, %c19] : memref<1x32x342xbf16, #tpu.memory_space<vmem>>, vector<1x32x288xbf16>
    %26 = vector.shape_cast %25 : vector<1x32x288xbf16> to vector<32x288xbf16>
    %c4 = arith.constant 4 : index
    %c0_25 = arith.constant 0 : index
    %c0_26 = arith.constant 0 : index
    %27 = vector.load %arg2[%c4, %c0_25, %c0_26] : memref<9x64x32xbf16, #tpu.memory_space<vmem>>, vector<1x64x32xbf16>
    %28 = vector.shape_cast %27 : vector<1x64x32xbf16> to vector<64x32xbf16>
    %cst_27 = arith.constant dense<0.000000e+00> : vector<64x288xf32>
    %29 = tpu.matmul %28, %26, %cst_27 {dimension_numbers = #tpu.dot_dimension_numbers<[1], [0], [0], [1], [0, 0, 1, 1], [], []>} : vector<64x32xbf16>, vector<32x288xbf16>, vector<64x288xf32> -> vector<64x288xf32>
    %30 = arith.addf %24, %29 : vector<64x288xf32>
    %c0_28 = arith.constant 0 : index
    %c0_29 = arith.constant 0 : index
    %c20 = arith.constant 20 : index
    %31 = vector.load %arg1[%c0_28, %c0_29, %c20] : memref<1x32x342xbf16, #tpu.memory_space<vmem>>, vector<1x32x288xbf16>
    %32 = vector.shape_cast %31 : vector<1x32x288xbf16> to vector<32x288xbf16>
    %c5 = arith.constant 5 : index
    %c0_30 = arith.constant 0 : index
    %c0_31 = arith.constant 0 : index
    %33 = vector.load %arg2[%c5, %c0_30, %c0_31] : memref<9x64x32xbf16, #tpu.memory_space<vmem>>, vector<1x64x32xbf16>
    %34 = vector.shape_cast %33 : vector<1x64x32xbf16> to vector<64x32xbf16>
    %cst_32 = arith.constant dense<0.000000e+00> : vector<64x288xf32>
    %35 = tpu.matmul %34, %32, %cst_32 {dimension_numbers = #tpu.dot_dimension_numbers<[1], [0], [0], [1], [0, 0, 1, 1], [], []>} : vector<64x32xbf16>, vector<32x288xbf16>, vector<64x288xf32> -> vector<64x288xf32>
    %36 = arith.addf %30, %35 : vector<64x288xf32>
    %c0_33 = arith.constant 0 : index
    %c0_34 = arith.constant 0 : index
    %c36 = arith.constant 36 : index
    %37 = vector.load %arg1[%c0_33, %c0_34, %c36] : memref<1x32x342xbf16, #tpu.memory_space<vmem>>, vector<1x32x288xbf16>
    %38 = vector.shape_cast %37 : vector<1x32x288xbf16> to vector<32x288xbf16>
    %c6 = arith.constant 6 : index
    %c0_35 = arith.constant 0 : index
    %c0_36 = arith.constant 0 : index
    %39 = vector.load %arg2[%c6, %c0_35, %c0_36] : memref<9x64x32xbf16, #tpu.memory_space<vmem>>, vector<1x64x32xbf16>
    %40 = vector.shape_cast %39 : vector<1x64x32xbf16> to vector<64x32xbf16>
    %cst_37 = arith.constant dense<0.000000e+00> : vector<64x288xf32>
    %41 = tpu.matmul %40, %38, %cst_37 {dimension_numbers = #tpu.dot_dimension_numbers<[1], [0], [0], [1], [0, 0, 1, 1], [], []>} : vector<64x32xbf16>, vector<32x288xbf16>, vector<64x288xf32> -> vector<64x288xf32>
    %42 = arith.addf %36, %41 : vector<64x288xf32>
    %c0_38 = arith.constant 0 : index
    %c0_39 = arith.constant 0 : index
    %c37 = arith.constant 37 : index
    %43 = vector.load %arg1[%c0_38, %c0_39, %c37] : memref<1x32x342xbf16, #tpu.memory_space<vmem>>, vector<1x32x288xbf16>
    %44 = vector.shape_cast %43 : vector<1x32x288xbf16> to vector<32x288xbf16>
    %c7 = arith.constant 7 : index
    %c0_40 = arith.constant 0 : index
    %c0_41 = arith.constant 0 : index
    %45 = vector.load %arg2[%c7, %c0_40, %c0_41] : memref<9x64x32xbf16, #tpu.memory_space<vmem>>, vector<1x64x32xbf16>
    %46 = vector.shape_cast %45 : vector<1x64x32xbf16> to vector<64x32xbf16>
    %cst_42 = arith.constant dense<0.000000e+00> : vector<64x288xf32>
    %47 = tpu.matmul %46, %44, %cst_42 {dimension_numbers = #tpu.dot_dimension_numbers<[1], [0], [0], [1], [0, 0, 1, 1], [], []>} : vector<64x32xbf16>, vector<32x288xbf16>, vector<64x288xf32> -> vector<64x288xf32>
    %48 = arith.addf %42, %47 : vector<64x288xf32>
    %c0_43 = arith.constant 0 : index
    %c0_44 = arith.constant 0 : index
    %c38 = arith.constant 38 : index
    %49 = vector.load %arg1[%c0_43, %c0_44, %c38] : memref<1x32x342xbf16, #tpu.memory_space<vmem>>, vector<1x32x288xbf16>
    %50 = vector.shape_cast %49 : vector<1x32x288xbf16> to vector<32x288xbf16>
    %c8 = arith.constant 8 : index
    %c0_45 = arith.constant 0 : index
    %c0_46 = arith.constant 0 : index
    %51 = vector.load %arg2[%c8, %c0_45, %c0_46] : memref<9x64x32xbf16, #tpu.memory_space<vmem>>, vector<1x64x32xbf16>
    %52 = vector.shape_cast %51 : vector<1x64x32xbf16> to vector<64x32xbf16>
    %cst_47 = arith.constant dense<0.000000e+00> : vector<64x288xf32>
    %53 = tpu.matmul %52, %50, %cst_47 {dimension_numbers = #tpu.dot_dimension_numbers<[1], [0], [0], [1], [0, 0, 1, 1], [], []>} : vector<64x32xbf16>, vector<32x288xbf16>, vector<64x288xf32> -> vector<64x288xf32>
    %54 = arith.addf %48, %53 : vector<64x288xf32>
    %c0_48 = arith.constant 0 : index
    %c0_49 = arith.constant 0 : index
    %55 = vector.load %arg3[%c0_48, %c0_49] : memref<64x1xf32, #tpu.memory_space<vmem>>, vector<64x1xf32>
    %56 = vector.broadcast %55 : vector<64x1xf32> to vector<64x288xf32>
    %57 = arith.addf %54, %56 : vector<64x288xf32>
    %cst_50 = arith.constant 0.000000e+00 : f32
    %58 = vector.broadcast %cst_50 : f32 to vector<64x288xf32>
    %59 = arith.maximumf %57, %58 : vector<64x288xf32>
    %60 = arith.truncf %59 : vector<64x288xf32> to vector<64x288xbf16>
    %c0_51 = arith.constant 0 : index
    %c0_52 = arith.constant 0 : index
    %c0_53 = arith.constant 0 : index
    %61 = vector.load %arg4[%c0_51, %c0_52, %c0_53] : memref<1x64x288xbf16, #tpu.memory_space<vmem>>, vector<1x64x288xbf16>
    %62 = vector.shape_cast %61 : vector<1x64x288xbf16> to vector<64x288xbf16>
    %63 = vector.shape_cast %60 : vector<64x288xbf16> to vector<1x64x288xbf16>
    tpu.vector_store %arg4[%c0_51, %c0_52, %c0_53], %63 {strides = array<i32>} : memref<1x64x288xbf16, #tpu.memory_space<vmem>>, vector<1x64x288xbf16>,
    return
  }
  func.func @transform_0(%arg0: i32) -> (i32, i32, i32) {
    %c0_i32 = arith.constant 0 : i32
    %c0_i32_0 = arith.constant 0 : i32
    %c0_i32_1 = arith.constant 0 : i32
    return %arg0, %c0_i32, %c0_i32_0 : i32, i32, i32
  }
  func.func @transform_1(%arg0: i32) -> (i32, i32, i32) {
    %c0_i32 = arith.constant 0 : i32
    %c0_i32_0 = arith.constant 0 : i32
    %c0_i32_1 = arith.constant 0 : i32
    %c0_i32_2 = arith.constant 0 : i32
    return %c0_i32, %c0_i32_0, %c0_i32_1 : i32, i32, i32
  }
  func.func @transform_2(%arg0: i32) -> (i32, i32) {
    %c0_i32 = arith.constant 0 : i32
    %c0_i32_0 = arith.constant 0 : i32
    %c0_i32_1 = arith.constant 0 : i32
    return %c0_i32, %c0_i32_0 : i32, i32
  }
  func.func @transform_3(%arg0: i32) -> (i32, i32, i32) {
    %c0_i32 = arith.constant 0 : i32
    %c0_i32_0 = arith.constant 0 : i32
    %c0_i32_1 = arith.constant 0 : i32
    return %arg0, %c0_i32, %c0_i32_0 : i32, i32, i32
  }
}

module attributes {stable_mosaic.version = 11 : i64} {
  func.func @_mlp_kernel(%arg0: i32, %arg1: memref<8x512xbf16, #tpu.memory_space<vmem>>, %arg2: memref<512x256xbf16, #tpu.memory_space<vmem>>, %arg3: memref<1x256xf32, #tpu.memory_space<vmem>>, %arg4: memref<256x128xbf16, #tpu.memory_space<vmem>>, %arg5: memref<1x128xf32, #tpu.memory_space<vmem>>, %arg6: memref<8x128xf32, #tpu.memory_space<vmem>>, %arg7: memref<8x256xf32, #tpu.memory_space<vmem>>) attributes {dimension_semantics = [#tpu.dimension_semantics<arbitrary>], iteration_bounds = array<i64: 8>, scalar_prefetch = 0 : i64, scratch_operands = 1 : i64, tpu.core_type = #tpu.core_type<tc>, window_params = [{transform_indices = @transform_0, window_bounds = array<i64: 8, 512>}, {transform_indices = @transform_1, window_bounds = array<i64: 512, 256>}, {pipeline_mode = #tpu.pipeline_mode<synchronous>, transform_indices = @transform_2, window_bounds = array<i64: 1, 256>}, {pipeline_mode = #tpu.pipeline_mode<synchronous>, transform_indices = @transform_3, window_bounds = array<i64: 256, 128>}, {pipeline_mode = #tpu.pipeline_mode<synchronous>, transform_indices = @transform_4, window_bounds = array<i64: 1, 128>}, {pipeline_mode = #tpu.pipeline_mode<synchronous>, transform_indices = @transform_5, window_bounds = array<i64: 8, 128>}]} {
    %c0_i32 = arith.constant 0 : i32
    %0 = arith.cmpi eq, %arg0, %c0_i32 : i32
    %1 = arith.extui %0 : i1 to i32
    %c0_i32_0 = arith.constant 0 : i32
    %2 = arith.cmpi ne, %1, %c0_i32_0 : i32
    scf.if %2 {
      %cst_9 = arith.constant 0.000000e+00 : f32
      %12 = vector.broadcast %cst_9 : f32 to vector<8x256xf32>
      %c0_10 = arith.constant 0 : index
      %c0_11 = arith.constant 0 : index
      %13 = vector.load %arg7[%c0_10, %c0_11] : memref<8x256xf32, #tpu.memory_space<vmem>>, vector<8x256xf32>
      tpu.vector_store %arg7[%c0_10, %c0_11], %12 {strides = array<i32>} : memref<8x256xf32, #tpu.memory_space<vmem>>, vector<8x256xf32>,
    } else {
    }
    %c0 = arith.constant 0 : index
    %c0_1 = arith.constant 0 : index
    %3 = vector.load %arg7[%c0, %c0_1] : memref<8x256xf32, #tpu.memory_space<vmem>>, vector<8x256xf32>
    %c0_2 = arith.constant 0 : index
    %c0_3 = arith.constant 0 : index
    %4 = vector.load %arg1[%c0_2, %c0_3] : memref<8x512xbf16, #tpu.memory_space<vmem>>, vector<8x512xbf16>
    %c0_4 = arith.constant 0 : index
    %c0_5 = arith.constant 0 : index
    %5 = vector.load %arg2[%c0_4, %c0_5] : memref<512x256xbf16, #tpu.memory_space<vmem>>, vector<512x256xbf16>
    %cst = arith.constant dense<0.000000e+00> : vector<8x256xf32>
    %6 = tpu.matmul %4, %5, %cst {dimension_numbers = #tpu.dot_dimension_numbers<[1], [0], [0], [1], [0, 0, 1, 1], [], []>} : vector<8x512xbf16>, vector<512x256xbf16>, vector<8x256xf32> -> vector<8x256xf32>
    %7 = arith.addf %3, %6 : vector<8x256xf32>
    %c0_6 = arith.constant 0 : index
    %c0_7 = arith.constant 0 : index
    %8 = vector.load %arg7[%c0_6, %c0_7] : memref<8x256xf32, #tpu.memory_space<vmem>>, vector<8x256xf32>
    tpu.vector_store %arg7[%c0_6, %c0_7], %7 {strides = array<i32>} : memref<8x256xf32, #tpu.memory_space<vmem>>, vector<8x256xf32>,
    %c7_i32 = arith.constant 7 : i32
    %9 = arith.cmpi eq, %arg0, %c7_i32 : i32
    %10 = arith.extui %9 : i1 to i32
    %c0_i32_8 = arith.constant 0 : i32
    %11 = arith.cmpi ne, %10, %c0_i32_8 : i32
    scf.if %11 {
      %c0_9 = arith.constant 0 : index
      %c0_10 = arith.constant 0 : index
      %12 = vector.load %arg7[%c0_9, %c0_10] : memref<8x256xf32, #tpu.memory_space<vmem>>, vector<8x256xf32>
      %c0_11 = arith.constant 0 : index
      %c0_12 = arith.constant 0 : index
      %13 = vector.load %arg3[%c0_11, %c0_12] : memref<1x256xf32, #tpu.memory_space<vmem>>, vector<1x256xf32>
      %14 = vector.broadcast %13 : vector<1x256xf32> to vector<8x256xf32>
      %15 = arith.addf %12, %14 : vector<8x256xf32>
      %cst_13 = arith.constant 0.000000e+00 : f32
      %16 = vector.broadcast %cst_13 : f32 to vector<8x256xf32>
      %17 = arith.maximumf %15, %16 : vector<8x256xf32>
      %18 = arith.truncf %17 : vector<8x256xf32> to vector<8x256xbf16>
      %c0_14 = arith.constant 0 : index
      %c0_15 = arith.constant 0 : index
      %19 = vector.load %arg4[%c0_14, %c0_15] : memref<256x128xbf16, #tpu.memory_space<vmem>>, vector<256x128xbf16>
      %cst_16 = arith.constant dense<0.000000e+00> : vector<8x128xf32>
      %20 = tpu.matmul %18, %19, %cst_16 {dimension_numbers = #tpu.dot_dimension_numbers<[1], [0], [0], [1], [0, 0, 1, 1], [], []>} : vector<8x256xbf16>, vector<256x128xbf16>, vector<8x128xf32> -> vector<8x128xf32>
      %c0_17 = arith.constant 0 : index
      %c0_18 = arith.constant 0 : index
      %21 = vector.load %arg5[%c0_17, %c0_18] : memref<1x128xf32, #tpu.memory_space<vmem>>, vector<1x128xf32>
      %22 = vector.broadcast %21 : vector<1x128xf32> to vector<8x128xf32>
      %23 = arith.addf %20, %22 : vector<8x128xf32>
      %c0_19 = arith.constant 0 : index
      %c0_20 = arith.constant 0 : index
      %24 = vector.load %arg6[%c0_19, %c0_20] : memref<8x128xf32, #tpu.memory_space<vmem>>, vector<8x128xf32>
      tpu.vector_store %arg6[%c0_19, %c0_20], %23 {strides = array<i32>} : memref<8x128xf32, #tpu.memory_space<vmem>>, vector<8x128xf32>,
    } else {
    }
    return
  }
  func.func @transform_0(%arg0: i32) -> (i32, i32) {
    %c0_i32 = arith.constant 0 : i32
    %c0_i32_0 = arith.constant 0 : i32
    return %c0_i32, %arg0 : i32, i32
  }
  func.func @transform_1(%arg0: i32) -> (i32, i32) {
    %c0_i32 = arith.constant 0 : i32
    %c0_i32_0 = arith.constant 0 : i32
    return %arg0, %c0_i32 : i32, i32
  }
  func.func @transform_2(%arg0: i32) -> (i32, i32) {
    %c0_i32 = arith.constant 0 : i32
    %c0_i32_0 = arith.constant 0 : i32
    %c0_i32_1 = arith.constant 0 : i32
    return %c0_i32, %c0_i32_0 : i32, i32
  }
  func.func @transform_3(%arg0: i32) -> (i32, i32) {
    %c0_i32 = arith.constant 0 : i32
    %c0_i32_0 = arith.constant 0 : i32
    %c0_i32_1 = arith.constant 0 : i32
    return %c0_i32, %c0_i32_0 : i32, i32
  }
  func.func @transform_4(%arg0: i32) -> (i32, i32) {
    %c0_i32 = arith.constant 0 : i32
    %c0_i32_0 = arith.constant 0 : i32
    %c0_i32_1 = arith.constant 0 : i32
    return %c0_i32, %c0_i32_0 : i32, i32
  }
  func.func @transform_5(%arg0: i32) -> (i32, i32) {
    %c0_i32 = arith.constant 0 : i32
    %c0_i32_0 = arith.constant 0 : i32
    %c0_i32_1 = arith.constant 0 : i32
    return %c0_i32, %c0_i32_0 : i32, i32
  }
}

</mosaic_0001>

<llo_original>
// kernel: cnn_forward.3
$region0: #{cnn_forward.3}
  #allocation0 [shape = 'u32[]', space=smem, size = 0x4, offset = 0x4, fixed_abs, tag = 'smem constant byte address 0x4 - core index']
  #allocation1 [shape = 'u32[72,128]{1,0:T(1,128)}', space=vmem, size = 0x9000, scoped, tag = 'internal scratch']
  %s0 = inlined_call_operand.vmem [shape: bf16[2,8,1190], index: 0, kind: input, shape index: {}]
  %s1 = inlined_call_operand.vmem [shape: bf16[9,32,8], index: 1, kind: input, shape index: {}]
  %s2 = inlined_call_operand.vmem [shape: f32[32,1], index: 2, kind: input, shape index: {}]
  %s3 = inlined_call_operand.vmem [shape: bf16[2,32,1088], index: 3, kind: output, shape index: {}]
  %s4 = sld [smem:[#allocation0]]
  $region45: #{cnn_forward.3} parent=0
    _
  %s6 = ssub.s32 1, %s4
  %s7 = scalar_select 0, %s6, %s4
  loop: start=0, step=1, limit=4
  $region2: #{cnn_forward.3} parent=0 // loop_pre_header
    _
  $region3: #{cnn_forward.3} parent=0 // loop_header
    %s9 = sphi 0, %s13
    %p10 = scmp.ge.s32.totalorder %s9, 4
    %s19 = sphi 0, %s21
    %s22 = sphi 0, %s19
    %s23 = sphi 0, %s22
    %s39 = sphi 0, %s23
    %s43 = sphi 0, %s43
    %s45 = sphi 0, %s43
    %s46 = sphi 0, %s45
    %s60 = sphi 0, %s46
    %s64 = sphi 0, %s64
    %s66 = sphi 0, %s64
    %s67 = sphi 0, %s66
    %s81 = sphi 0, %s67
    %s87 = sphi 0, %s89
    %s90 = sphi 0, %s87
    %s91 = sphi 0, %s90
    %s107 = sphi 0, %s91
  $region4: #{cnn_forward.3} parent=0 // loop_header_branch
    %12 = sbr.rel (%p10) target = $region8
  $region5: #{cnn_forward.3} parent=0 // loop_body
    %s14 = ssub.s32 %s9, 1
    %s15 = ssub.s32 %s9, 2
    %s16 = sadd.s32 %s9, 1
    %s17 = ssub.s32 %s9, %s16
    %p18 = scmp.eq.s32.totalorder %s17, 0
    %s20 = sadd.s32 %s19, 1
    %s21 = scalar_select %p18, %s19, %s20
    %p24 = pneg %p18
    %p25 = scmp.eq.s32.totalorder %s9, 1
    %p26 = por %p24, %p25
    %p27 = scmp.ne.s32.totalorder %s19, %s22
    %p28 = scmp.eq.s32.totalorder %s9, 0
    %p29 = por %p27, %p28
    %p30 = scmp.ne.s32.totalorder %s19, %s22
    %p31 = scmp.eq.s32.totalorder %s14, 1
    %p32 = por %p30, %p31
    %p33 = scmp.ne.s32.totalorder %s22, %s23
    %p34 = scmp.eq.s32.totalorder %s14, 0
    %p35 = por %p33, %p34
    %p36 = scmp.ne.s32.totalorder %s22, %s23
    %p37 = scmp.eq.s32.totalorder %s15, 1
    %p38 = por %p36, %p37
    %p40 = scmp.ne.s32.totalorder %s23, %s39
    %p41 = scmp.eq.s32.totalorder %s15, 0
    %p42 = por %p40, %p41
    %s44 = sadd.s32 %s43, 1
    %p47 = scmp.eq.s32.totalorder %s9, 1
    %p48 = scmp.ne.s32.totalorder %s43, %s45
    %p49 = scmp.eq.s32.totalorder %s9, 0
    %p50 = por %p48, %p49
    %p51 = scmp.ne.s32.totalorder %s43, %s45
    %p52 = scmp.eq.s32.totalorder %s14, 1
    %p53 = por %p51, %p52
    %p54 = scmp.ne.s32.totalorder %s45, %s46
    %p55 = scmp.eq.s32.totalorder %s14, 0
    %p56 = por %p54, %p55
    %p57 = scmp.ne.s32.totalorder %s45, %s46
    %p58 = scmp.eq.s32.totalorder %s15, 1
    %p59 = por %p57, %p58
    %p61 = scmp.ne.s32.totalorder %s46, %s60
    %p62 = scmp.eq.s32.totalorder %s15, 0
    %p63 = por %p61, %p62
    %s65 = sadd.s32 %s64, 1
    %p68 = scmp.eq.s32.totalorder %s9, 1
    %p69 = scmp.ne.s32.totalorder %s64, %s66
    %p70 = scmp.eq.s32.totalorder %s9, 0
    %p71 = por %p69, %p70
    %p72 = scmp.ne.s32.totalorder %s64, %s66
    %p73 = scmp.eq.s32.totalorder %s14, 1
    %p74 = por %p72, %p73
    %p75 = scmp.ne.s32.totalorder %s66, %s67
    %p76 = scmp.eq.s32.totalorder %s14, 0
    %p77 = por %p75, %p76
    %p78 = scmp.ne.s32.totalorder %s66, %s67
    %p79 = scmp.eq.s32.totalorder %s15, 1
    %p80 = por %p78, %p79
    %p82 = scmp.ne.s32.totalorder %s67, %s81
    %p83 = scmp.eq.s32.totalorder %s15, 0
    %p84 = por %p82, %p83
    %s85 = ssub.s32 %s9, %s16
    %p86 = scmp.eq.s32.totalorder %s85, 0
    %s88 = sadd.s32 %s87, 1
    %s89 = scalar_select %p86, %s87, %s88
    %p92 = pneg %p86
    %p93 = scmp.eq.s32.totalorder %s9, 1
    %p94 = por %p92, %p93
    %p95 = scmp.ne.s32.totalorder %s87, %s90
    %p96 = scmp.eq.s32.totalorder %s9, 0
    %p97 = por %p95, %p96
    %p98 = scmp.ne.s32.totalorder %s87, %s90
    %p99 = scmp.eq.s32.totalorder %s14, 1
    %p100 = por %p98, %p99
    %p101 = scmp.ne.s32.totalorder %s90, %s91
    %p102 = scmp.eq.s32.totalorder %s14, 0
    %p103 = por %p101, %p102
    %p104 = scmp.ne.s32.totalorder %s90, %s91
    %p105 = scmp.eq.s32.totalorder %s15, 1
    %p106 = por %p104, %p105
    %p108 = scmp.ne.s32.totalorder %s91, %s107
    %p109 = scmp.eq.s32.totalorder %s15, 0
    %p110 = por %p108, %p109
    %p111 = scmp.le.s32.totalorder 1, %s9
    %p112 = scmp.lt.s32.totalorder %s9, 3
    %p113 = pnand %p111, %p112
    %p114 = pneg %p113
    // Predicated region
    $region9: #{cnn_forward.3} parent=5 // pred_check
      _
    $region10: #{cnn_forward.3} parent=5 // pred_check_branch
      %116 = sbr.rel (%p113) target = $region12
    $region11: #{cnn_forward.3} parent=5 // pred_region
      %s117 = ssub.s32 %s9, 1
      // Predicated region
      $region13: #{cnn_forward.3} parent=11 // pred_check
        %p118 = pneg %p56
      $region14: #{cnn_forward.3} parent=11 // pred_check_branch
        %120 = sbr.rel (%p118) target = $region16
      $region15: #{cnn_forward.3} parent=11 // pred_region
        _
      $region16: #{cnn_forward.3} parent=11 // pred_fallthru
        _
      // Predicated region
      $region17: #{cnn_forward.3} parent=11 // pred_check
        %p121 = pneg %p77
      $region18: #{cnn_forward.3} parent=11 // pred_check_branch
        %123 = sbr.rel (%p121) target = $region20
      $region19: #{cnn_forward.3} parent=11 // pred_region
        _
      $region20: #{cnn_forward.3} parent=11 // pred_fallthru
        _
    $region12: #{cnn_forward.3} parent=5 // pred_fallthru
      _
    %p124 = scmp.lt.s32.totalorder %s9, 2
    // Predicated region
    $region21: #{cnn_forward.3} parent=5 // pred_check
      %p125 = pneg %p124
    $region22: #{cnn_forward.3} parent=5 // pred_check_branch
      %127 = sbr.rel (%p125) target = $region24
    $region23: #{cnn_forward.3} parent=5 // pred_region
      // Predicated region
      $region25: #{cnn_forward.3} parent=23 // pred_check
        %p128 = pneg %p29
      $region26: #{cnn_forward.3} parent=23 // pred_check_branch
        %130 = sbr.rel (%p128) target = $region28
      $region27: #{cnn_forward.3} parent=23 // pred_region
        %p131 = scmp.lt.s32.totalorder %s9, 1
        %s132 = scalar_select %p131, %s9, 1
        %s133 = smul.addr %s132, 10
        %s134 = smul.addr %s133, 4
        %s135 = scalar_lea.vmem %s0, %s134
      $region28: #{cnn_forward.3} parent=23 // pred_fallthru
        _
    $region24: #{cnn_forward.3} parent=5 // pred_fallthru
      _
    %p136 = scmp.le.s32.totalorder 1, %s9
    %p137 = scmp.lt.s32.totalorder %s9, 3
    %p138 = pnand %p136, %p137
    %p139 = pneg %p138
    // Predicated region
    $region29: #{cnn_forward.3} parent=5 // pred_check
      _
    $region30: #{cnn_forward.3} parent=5 // pred_check_branch
      %141 = sbr.rel (%p138) target = $region32
    $region31: #{cnn_forward.3} parent=5 // pred_region
      %s142 = ssub.s32 %s9, 1
      %p143 = scmp.lt.s32.totalorder %s14, 1
      %s144 = scalar_select %p143, %s14, 1
      %s145 = smul.addr %s144, 10
      %s146 = smul.addr %s145, 4
      %s147 = scalar_lea.vmem %s0, %s146
      %p148 = pneg %p35
      %p149 = pneg %p32
      %p150 = pneg %p56
      %p151 = pneg %p53
      %p152 = pneg %p77
      %p153 = pneg %p74
      %p154 = pneg %p103
      %p155 = pneg %p100
      %p156 = scmp.lt.s32.totalorder %s14, 1
      %s157 = scalar_select %p156, %s14, 1
      %s158 = smul.addr %s157, 36
      %s159 = smul.addr %s158, 4
      %s160 = scalar_lea.vmem %s3, %s159
      %p161 = scmp.lt.s32.totalorder %s14, 1
      %s162 = scalar_select %p161, %s14, 1
      %s163 = smul.addr %s162, 10
      %s164 = smul.addr %s163, 4
      %s165 = scalar_lea.vmem %s0, %s164
      %p166 = scmp.lt.s32.totalorder %s14, 1
      %s167 = scalar_select %p166, %s14, 1
      %s168 = smul.addr %s167, 36
      %s169 = smul.addr %s168, 4
      %s170 = scalar_lea.vmem %s3, %s169
      %v172 = vld [vmem:[%s165] sm:$0xff]
      %v173 = vld [vmem:[%s165 + $0x8] sm:$0xf]
      %v174 = vld [vmem:[%s1] sm:$0xf]
      %v175 = vld [vmem:[%s1 + $0x4] sm:$0xf]
      %v176 = vld [vmem:[%s1 + $0x8] sm:$0xf]
      %v177 = vld [vmem:[%s1 + $0xc] sm:$0xf]
      %s178 = scalar_lea.vmem %s1, 16
      %v179 = vld [vmem:[%s178] sm:$0xf]
      %v180 = vld [vmem:[%s178 + $0x4] sm:$0xf]
      %v181 = vld [vmem:[%s178 + $0x8] sm:$0xf]
      %v182 = vld [vmem:[%s178 + $0xc] sm:$0xf]
      %v187 = vunpack.c.l.b16 %v179
      %v188 = vunpack.c.l.b16 %v180
      %v189 = vunpack.c.l.b16 %v181
      %v190 = vunpack.c.l.b16 %v182
      %v191 = vpack.c.b16 %v188, %v187
      %v192 = vpack.c.b16 %v190, %v189
      %v195 = vunpack.c.l.b16 %v172
      %v196 = vunpack.c.h.b16 %v172
      %v197 = vunpack.c.l.b16 %v173
      %v198 = vpack.c.b16 %v195, %v195
      %v199 = vpack.c.b16 %v196, %v196
      %v200 = vpack.c.b16 %v197, %v197
      %201 = vrot.lane.b32.xlu0 %v198, 127
      %v202 = vpop.permute.xlu0 %201
      %203 = vrot.lane.b32.xlu0 %v199, 127
      %v204 = vpop.permute.xlu0 %203
      %205 = vrot.lane.b32.xlu0 %v200, 127
      %v206 = vpop.permute.xlu0 %205
      %vm207 = vcmask 1039360
      %v208 = vsel %vm207, %v202, %v204
      %v209 = vsel %vm207, %v204, %v206
      %vm210 = vcmask 64512
      %v212 = vsel %vm210, %v191, 0
      %v215 = vsel %vm210, %v192, 0
      %vm217 = vcmask 1043456
      %v219 = vsel %vm217, %v208, 0
      %v222 = vsel %vm217, %v209, 0
      %v225 = vsel %vm217, %v206, 0
      %227 = vmatpush.bf16.msra.mxu0 0
      %228 = vmatpush.bf16.msra.mxu0 0
      %229 = vmatpush.bf16.msra.mxu0 0
      %230 = vmatpush.bf16.msra.mxu0 0
      %231 = vmatpush.bf16.msra.mxu0 0
      %232 = vmatpush.bf16.msra.mxu0 0
      %233 = vmatpush.bf16.msra.mxu0 0
      %234 = vmatpush.bf16.msra.mxu0 %v219
      %235 = vmatmul.bf16.gmra.mxu0 %v212
      %v236 = vpop.f32.mrf.mxu0
      %v237 = vadd.f32 0.0, %v236
      %v238 = vpop.f32.mrf.mxu0
      %v239 = vadd.f32 0.0, %v238
      %240 = vmatmul.bf16.gmra.mxu0 %v215
      %v241 = vpop.f32.mrf.mxu0
      %v242 = vadd.f32 0.0, %v241
      %v243 = vpop.f32.mrf.mxu0
      %v244 = vadd.f32 0.0, %v243
      %245 = vdwg.mxu0
      %246 = vmatpush.bf16.msra.mxu0 0
      %247 = vmatpush.bf16.msra.mxu0 0
      %248 = vmatpush.bf16.msra.mxu0 0
      %249 = vmatpush.bf16.msra.mxu0 0
      %250 = vmatpush.bf16.msra.mxu0 0
      %251 = vmatpush.bf16.msra.mxu0 0
      %252 = vmatpush.bf16.msra.mxu0 0
      %253 = vmatpush.bf16.msra.mxu0 %v222
      %254 = vmatmul.bf16.gmra.mxu0 %v212
      %v255 = vpop.f32.mrf.mxu0
      %v256 = vadd.f32 0.0, %v255
      %v257 = vpop.f32.mrf.mxu0
      %v258 = vadd.f32 0.0, %v257
      %259 = vmatmul.bf16.gmra.mxu0 %v215
      %v260 = vpop.f32.mrf.mxu0
      %v261 = vadd.f32 0.0, %v260
      %v262 = vpop.f32.mrf.mxu0
      %v263 = vadd.f32 0.0, %v262
      %264 = vdwg.mxu0
      %265 = vmatpush.bf16.msra.mxu0 0
      %266 = vmatpush.bf16.msra.mxu0 0
      %267 = vmatpush.bf16.msra.mxu0 0
      %268 = vmatpush.bf16.msra.mxu0 0
      %269 = vmatpush.bf16.msra.mxu0 0
      %270 = vmatpush.bf16.msra.mxu0 0
      %271 = vmatpush.bf16.msra.mxu0 0
      %272 = vmatpush.bf16.msra.mxu0 %v225
      %273 = vmatmul.bf16.gmra.mxu0 %v212
      %v274 = vpop.f32.mrf.mxu0
      %v275 = vadd.f32 0.0, %v274
      %v276 = vpop.f32.mrf.mxu0
      %v277 = vadd.f32 0.0, %v276
      %278 = vmatmul.bf16.gmra.mxu0 %v215
      %v279 = vpop.f32.mrf.mxu0
      %v280 = vadd.f32 0.0, %v279
      %v281 = vpop.f32.mrf.mxu0
      %v282 = vadd.f32 0.0, %v281
      %283 = vdwg.mxu0
      %v288 = vunpack.c.l.b16 %v174
      %v289 = vunpack.c.l.b16 %v175
      %v290 = vunpack.c.l.b16 %v176
      %v291 = vunpack.c.l.b16 %v177
      %v292 = vpack.c.b16 %v289, %v288
      %v293 = vpack.c.b16 %v291, %v290
      %v295 = vsel %vm210, %v292, 0
      %v298 = vsel %vm210, %v293, 0
      %v301 = vsel %vm217, %v198, 0
      %v304 = vsel %vm217, %v199, 0
      %v307 = vsel %vm217, %v200, 0
      %309 = vmatpush.bf16.msra.mxu0 0
      %310 = vmatpush.bf16.msra.mxu0 0
      %311 = vmatpush.bf16.msra.mxu0 0
      %312 = vmatpush.bf16.msra.mxu0 0
      %313 = vmatpush.bf16.msra.mxu0 0
      %314 = vmatpush.bf16.msra.mxu0 0
      %315 = vmatpush.bf16.msra.mxu0 0
      %316 = vmatpush.bf16.msra.mxu0 %v301
      %317 = vmatmul.bf16.gmra.mxu0 %v295
      %v318 = vpop.f32.mrf.mxu0
      %v319 = vadd.f32 %v237, %v318
      %v320 = vpop.f32.mrf.mxu0
      %v321 = vadd.f32 %v239, %v320
      %322 = vmatmul.bf16.gmra.mxu0 %v298
      %v323 = vpop.f32.mrf.mxu0
      %v324 = vadd.f32 %v242, %v323
      %v325 = vpop.f32.mrf.mxu0
      %v326 = vadd.f32 %v244, %v325
      %327 = vdwg.mxu0
      %328 = vmatpush.bf16.msra.mxu0 0
      %329 = vmatpush.bf16.msra.mxu0 0
      %330 = vmatpush.bf16.msra.mxu0 0
      %331 = vmatpush.bf16.msra.mxu0 0
      %332 = vmatpush.bf16.msra.mxu0 0
      %333 = vmatpush.bf16.msra.mxu0 0
      %334 = vmatpush.bf16.msra.mxu0 0
      %335 = vmatpush.bf16.msra.mxu0 %v304
      %336 = vmatmul.bf16.gmra.mxu0 %v295
      %v337 = vpop.f32.mrf.mxu0
      %v338 = vadd.f32 %v256, %v337
      %v339 = vpop.f32.mrf.mxu0
      %v340 = vadd.f32 %v258, %v339
      %341 = vmatmul.bf16.gmra.mxu0 %v298
      %v342 = vpop.f32.mrf.mxu0
      %v343 = vadd.f32 %v261, %v342
      %v344 = vpop.f32.mrf.mxu0
      %v345 = vadd.f32 %v263, %v344
      %346 = vdwg.mxu0
      %347 = vmatpush.bf16.msra.mxu0 0
      %348 = vmatpush.bf16.msra.mxu0 0
      %349 = vmatpush.bf16.msra.mxu0 0
      %350 = vmatpush.bf16.msra.mxu0 0
      %351 = vmatpush.bf16.msra.mxu0 0
      %352 = vmatpush.bf16.msra.mxu0 0
      %353 = vmatpush.bf16.msra.mxu0 0
      %354 = vmatpush.bf16.msra.mxu0 %v307
      %355 = vmatmul.bf16.gmra.mxu0 %v295
      %v356 = vpop.f32.mrf.mxu0
      %v357 = vadd.f32 %v275, %v356
      %v358 = vpop.f32.mrf.mxu0
      %v359 = vadd.f32 %v277, %v358
      %360 = vmatmul.bf16.gmra.mxu0 %v298
      %v361 = vpop.f32.mrf.mxu0
      %v362 = vadd.f32 %v280, %v361
      %v363 = vpop.f32.mrf.mxu0
      %v364 = vadd.f32 %v282, %v363
      %365 = vdwg.mxu0
      %s366 = scalar_lea.vmem %s1, 32
      %v367 = vld [vmem:[%s366] sm:$0xf]
      %v368 = vld [vmem:[%s366 + $0x4] sm:$0xf]
      %v369 = vld [vmem:[%s366 + $0x8] sm:$0xf]
      %v370 = vld [vmem:[%s366 + $0xc] sm:$0xf]
      %v375 = vunpack.c.l.b16 %v367
      %v376 = vunpack.c.l.b16 %v368
      %v377 = vunpack.c.l.b16 %v369
      %v378 = vunpack.c.l.b16 %v370
      %v379 = vpack.c.b16 %v376, %v375
      %v380 = vpack.c.b16 %v378, %v377
      %381 = vrot.lane.b32.xlu0 %v198, 126
      %v382 = vpop.permute.xlu0 %381
      %383 = vrot.lane.b32.xlu0 %v199, 126
      %v384 = vpop.permute.xlu0 %383
      %385 = vrot.lane.b32.xlu0 %v200, 126
      %v386 = vpop.permute.xlu0 %385
      %vm387 = vcmask 1031168
      %v388 = vsel %vm387, %v382, %v384
      %v389 = vsel %vm387, %v384, %v386
      %v391 = vsel %vm210, %v379, 0
      %v394 = vsel %vm210, %v380, 0
      %v397 = vsel %vm217, %v388, 0
      %v400 = vsel %vm217, %v389, 0
      %v403 = vsel %vm217, %v386, 0
      %405 = vmatpush.bf16.msra.mxu0 0
      %406 = vmatpush.bf16.msra.mxu0 0
      %407 = vmatpush.bf16.msra.mxu0 0
      %408 = vmatpush.bf16.msra.mxu0 0
      %409 = vmatpush.bf16.msra.mxu0 0
      %410 = vmatpush.bf16.msra.mxu0 0
      %411 = vmatpush.bf16.msra.mxu0 0
      %412 = vmatpush.bf16.msra.mxu0 %v397
      %413 = vmatmul.bf16.gmra.mxu0 %v391
      %v414 = vpop.f32.mrf.mxu0
      %v415 = vadd.f32 0.0, %v414
      %v416 = vpop.f32.mrf.mxu0
      %v417 = vadd.f32 0.0, %v416
      %418 = vmatmul.bf16.gmra.mxu0 %v394
      %v419 = vpop.f32.mrf.mxu0
      %v420 = vadd.f32 0.0, %v419
      %v421 = vpop.f32.mrf.mxu0
      %v422 = vadd.f32 0.0, %v421
      %423 = vdwg.mxu0
      %424 = vmatpush.bf16.msra.mxu0 0
      %425 = vmatpush.bf16.msra.mxu0 0
      %426 = vmatpush.bf16.msra.mxu0 0
      %427 = vmatpush.bf16.msra.mxu0 0
      %428 = vmatpush.bf16.msra.mxu0 0
      %429 = vmatpush.bf16.msra.mxu0 0
      %430 = vmatpush.bf16.msra.mxu0 0
      %431 = vmatpush.bf16.msra.mxu0 %v400
      %432 = vmatmul.bf16.gmra.mxu0 %v391
      %v433 = vpop.f32.mrf.mxu0
      %v434 = vadd.f32 0.0, %v433
      %v435 = vpop.f32.mrf.mxu0
      %v436 = vadd.f32 0.0, %v435
      %437 = vmatmul.bf16.gmra.mxu0 %v394
      %v438 = vpop.f32.mrf.mxu0
      %v439 = vadd.f32 0.0, %v438
      %v440 = vpop.f32.mrf.mxu0
      %v441 = vadd.f32 0.0, %v440
      %442 = vdwg.mxu0
      %443 = vmatpush.bf16.msra.mxu0 0
      %444 = vmatpush.bf16.msra.mxu0 0
      %445 = vmatpush.bf16.msra.mxu0 0
      %446 = vmatpush.bf16.msra.mxu0 0
      %447 = vmatpush.bf16.msra.mxu0 0
      %448 = vmatpush.bf16.msra.mxu0 0
      %449 = vmatpush.bf16.msra.mxu0 0
      %450 = vmatpush.bf16.msra.mxu0 %v403
      %451 = vmatmul.bf16.gmra.mxu0 %v391
      %v452 = vpop.f32.mrf.mxu0
      %v453 = vadd.f32 0.0, %v452
      %v454 = vpop.f32.mrf.mxu0
      %v455 = vadd.f32 0.0, %v454
      %456 = vmatmul.bf16.gmra.mxu0 %v394
      %v457 = vpop.f32.mrf.mxu0
      %v458 = vadd.f32 0.0, %v457
      %v459 = vpop.f32.mrf.mxu0
      %v460 = vadd.f32 0.0, %v459
      %461 = vdwg.mxu0
      %v462 = vadd.f32 %v319, %v415
      %v463 = vadd.f32 %v338, %v434
      %v464 = vadd.f32 %v357, %v453
      %v465 = vadd.f32 %v321, %v417
      %v466 = vadd.f32 %v340, %v436
      %v467 = vadd.f32 %v359, %v455
      %v468 = vadd.f32 %v324, %v420
      %v469 = vadd.f32 %v343, %v439
      %v470 = vadd.f32 %v362, %v458
      %v471 = vadd.f32 %v326, %v422
      %v472 = vadd.f32 %v345, %v441
      %v473 = vadd.f32 %v364, %v460
      %s474 = scalar_lea.vmem %s1, 48
      %v475 = vld [vmem:[%s474] sm:$0xf]
      %v476 = vld [vmem:[%s474 + $0x4] sm:$0xf]
      %v477 = vld [vmem:[%s474 + $0x8] sm:$0xf]
      %v478 = vld [vmem:[%s474 + $0xc] sm:$0xf]
      %v483 = vunpack.c.l.b16 %v475
      %v484 = vunpack.c.l.b16 %v476
      %v485 = vunpack.c.l.b16 %v477
      %v486 = vunpack.c.l.b16 %v478
      %v487 = vpack.c.b16 %v484, %v483
      %v488 = vpack.c.b16 %v486, %v485
      %489 = vrot.lane.b32.xlu0 %v198, 94
      %v490 = vpop.permute.xlu0 %489
      %491 = vrot.lane.b32.xlu0 %v199, 94
      %v492 = vpop.permute.xlu0 %491
      %493 = vrot.lane.b32.xlu0 %v200, 94
      %v494 = vpop.permute.xlu0 %493
      %vm495 = vcmask 769024
      %v496 = vsel %vm495, %v490, %v492
      %v497 = vsel %vm495, %v492, %v494
      %v499 = vsel %vm210, %v487, 0
      %v502 = vsel %vm210, %v488, 0
      %v505 = vsel %vm217, %v496, 0
      %v508 = vsel %vm217, %v497, 0
      %v511 = vsel %vm217, %v494, 0
      %513 = vmatpush.bf16.msra.mxu0 0
      %514 = vmatpush.bf16.msra.mxu0 0
      %515 = vmatpush.bf16.msra.mxu0 0
      %516 = vmatpush.bf16.msra.mxu0 0
      %517 = vmatpush.bf16.msra.mxu0 0
      %518 = vmatpush.bf16.msra.mxu0 0
      %519 = vmatpush.bf16.msra.mxu0 0
      %520 = vmatpush.bf16.msra.mxu0 %v505
      %521 = vmatmul.bf16.gmra.mxu0 %v499
      %v522 = vpop.f32.mrf.mxu0
      %v523 = vadd.f32 0.0, %v522
      %v524 = vpop.f32.mrf.mxu0
      %v525 = vadd.f32 0.0, %v524
      %526 = vmatmul.bf16.gmra.mxu0 %v502
      %v527 = vpop.f32.mrf.mxu0
      %v528 = vadd.f32 0.0, %v527
      %v529 = vpop.f32.mrf.mxu0
      %v530 = vadd.f32 0.0, %v529
      %531 = vdwg.mxu0
      %532 = vmatpush.bf16.msra.mxu0 0
      %533 = vmatpush.bf16.msra.mxu0 0
      %534 = vmatpush.bf16.msra.mxu0 0
      %535 = vmatpush.bf16.msra.mxu0 0
      %536 = vmatpush.bf16.msra.mxu0 0
      %537 = vmatpush.bf16.msra.mxu0 0
      %538 = vmatpush.bf16.msra.mxu0 0
      %539 = vmatpush.bf16.msra.mxu0 %v508
      %540 = vmatmul.bf16.gmra.mxu0 %v499
      %v541 = vpop.f32.mrf.mxu0
      %v542 = vadd.f32 0.0, %v541
      %v543 = vpop.f32.mrf.mxu0
      %v544 = vadd.f32 0.0, %v543
      %545 = vmatmul.bf16.gmra.mxu0 %v502
      %v546 = vpop.f32.mrf.mxu0
      %v547 = vadd.f32 0.0, %v546
      %v548 = vpop.f32.mrf.mxu0
      %v549 = vadd.f32 0.0, %v548
      %550 = vdwg.mxu0
      %551 = vmatpush.bf16.msra.mxu0 0
      %552 = vmatpush.bf16.msra.mxu0 0
      %553 = vmatpush.bf16.msra.mxu0 0
      %554 = vmatpush.bf16.msra.mxu0 0
      %555 = vmatpush.bf16.msra.mxu0 0
      %556 = vmatpush.bf16.msra.mxu0 0
      %557 = vmatpush.bf16.msra.mxu0 0
      %558 = vmatpush.bf16.msra.mxu0 %v511
      %559 = vmatmul.bf16.gmra.mxu0 %v499
      %v560 = vpop.f32.mrf.mxu0
      %v561 = vadd.f32 0.0, %v560
      %v562 = vpop.f32.mrf.mxu0
      %v563 = vadd.f32 0.0, %v562
      %564 = vmatmul.bf16.gmra.mxu0 %v502
      %v565 = vpop.f32.mrf.mxu0
      %v566 = vadd.f32 0.0, %v565
      %v567 = vpop.f32.mrf.mxu0
      %v568 = vadd.f32 0.0, %v567
      %569 = vdwg.mxu0
      %v570 = vadd.f32 %v462, %v523
      %v571 = vadd.f32 %v463, %v542
      %v572 = vadd.f32 %v464, %v561
      %v573 = vadd.f32 %v465, %v525
      %v574 = vadd.f32 %v466, %v544
      %v575 = vadd.f32 %v467, %v563
      %v576 = vadd.f32 %v468, %v528
      %v577 = vadd.f32 %v469, %v547
      %v578 = vadd.f32 %v470, %v566
      %v579 = vadd.f32 %v471, %v530
      %v580 = vadd.f32 %v472, %v549
      %v581 = vadd.f32 %v473, %v568
      %s582 = scalar_lea.vmem %s1, 64
      %v583 = vld [vmem:[%s582] sm:$0xf]
      %v584 = vld [vmem:[%s582 + $0x4] sm:$0xf]
      %v585 = vld [vmem:[%s582 + $0x8] sm:$0xf]
      %v586 = vld [vmem:[%s582 + $0xc] sm:$0xf]
      %v591 = vunpack.c.l.b16 %v583
      %v592 = vunpack.c.l.b16 %v584
      %v593 = vunpack.c.l.b16 %v585
      %v594 = vunpack.c.l.b16 %v586
      %v595 = vpack.c.b16 %v592, %v591
      %v596 = vpack.c.b16 %v594, %v593
      %597 = vrot.lane.b32.xlu0 %v198, 93
      %v598 = vpop.permute.xlu0 %597
      %599 = vrot.lane.b32.xlu0 %v199, 93
      %v600 = vpop.permute.xlu0 %599
      %601 = vrot.lane.b32.xlu0 %v200, 93
      %v602 = vpop.permute.xlu0 %601
      %vm603 = vcmask 760832
      %v604 = vsel %vm603, %v598, %v600
      %v605 = vsel %vm603, %v600, %v602
      %v607 = vsel %vm210, %v595, 0
      %v610 = vsel %vm210, %v596, 0
      %v613 = vsel %vm217, %v604, 0
      %v616 = vsel %vm217, %v605, 0
      %v619 = vsel %vm217, %v602, 0
      %621 = vmatpush.bf16.msra.mxu0 0
      %622 = vmatpush.bf16.msra.mxu0 0
      %623 = vmatpush.bf16.msra.mxu0 0
      %624 = vmatpush.bf16.msra.mxu0 0
      %625 = vmatpush.bf16.msra.mxu0 0
      %626 = vmatpush.bf16.msra.mxu0 0
      %627 = vmatpush.bf16.msra.mxu0 0
      %628 = vmatpush.bf16.msra.mxu0 %v613
      %629 = vmatmul.bf16.gmra.mxu0 %v607
      %v630 = vpop.f32.mrf.mxu0
      %v631 = vadd.f32 0.0, %v630
      %v632 = vpop.f32.mrf.mxu0
      %v633 = vadd.f32 0.0, %v632
      %634 = vmatmul.bf16.gmra.mxu0 %v610
      %v635 = vpop.f32.mrf.mxu0
      %v636 = vadd.f32 0.0, %v635
      %v637 = vpop.f32.mrf.mxu0
      %v638 = vadd.f32 0.0, %v637
      %639 = vdwg.mxu0
      %640 = vmatpush.bf16.msra.mxu0 0
      %641 = vmatpush.bf16.msra.mxu0 0
      %642 = vmatpush.bf16.msra.mxu0 0
      %643 = vmatpush.bf16.msra.mxu0 0
      %644 = vmatpush.bf16.msra.mxu0 0
      %645 = vmatpush.bf16.msra.mxu0 0
      %646 = vmatpush.bf16.msra.mxu0 0
      %647 = vmatpush.bf16.msra.mxu0 %v616
      %648 = vmatmul.bf16.gmra.mxu0 %v607
      %v649 = vpop.f32.mrf.mxu0
      %v650 = vadd.f32 0.0, %v649
      %v651 = vpop.f32.mrf.mxu0
      %v652 = vadd.f32 0.0, %v651
      %653 = vmatmul.bf16.gmra.mxu0 %v610
      %v654 = vpop.f32.mrf.mxu0
      %v655 = vadd.f32 0.0, %v654
      %v656 = vpop.f32.mrf.mxu0
      %v657 = vadd.f32 0.0, %v656
      %658 = vdwg.mxu0
      %659 = vmatpush.bf16.msra.mxu0 0
      %660 = vmatpush.bf16.msra.mxu0 0
      %661 = vmatpush.bf16.msra.mxu0 0
      %662 = vmatpush.bf16.msra.mxu0 0
      %663 = vmatpush.bf16.msra.mxu0 0
      %664 = vmatpush.bf16.msra.mxu0 0
      %665 = vmatpush.bf16.msra.mxu0 0
      %666 = vmatpush.bf16.msra.mxu0 %v619
      %667 = vmatmul.bf16.gmra.mxu0 %v607
      %v668 = vpop.f32.mrf.mxu0
      %v669 = vadd.f32 0.0, %v668
      %v670 = vpop.f32.mrf.mxu0
      %v671 = vadd.f32 0.0, %v670
      %672 = vmatmul.bf16.gmra.mxu0 %v610
      %v673 = vpop.f32.mrf.mxu0
      %v674 = vadd.f32 0.0, %v673
      %v675 = vpop.f32.mrf.mxu0
      %v676 = vadd.f32 0.0, %v675
      %677 = vdwg.mxu0
      %v678 = vadd.f32 %v570, %v631
      %v679 = vadd.f32 %v571, %v650
      %v680 = vadd.f32 %v572, %v669
      %v681 = vadd.f32 %v573, %v633
      %v682 = vadd.f32 %v574, %v652
      %v683 = vadd.f32 %v575, %v671
      %v684 = vadd.f32 %v576, %v636
      %v685 = vadd.f32 %v577, %v655
      %v686 = vadd.f32 %v578, %v674
      %v687 = vadd.f32 %v579, %v638
      %v688 = vadd.f32 %v580, %v657
      %v689 = vadd.f32 %v581, %v676
      %s690 = scalar_lea.vmem %s1, 80
      %v691 = vld [vmem:[%s690] sm:$0xf]
      %v692 = vld [vmem:[%s690 + $0x4] sm:$0xf]
      %v693 = vld [vmem:[%s690 + $0x8] sm:$0xf]
      %v694 = vld [vmem:[%s690 + $0xc] sm:$0xf]
      %v699 = vunpack.c.l.b16 %v691
      %v700 = vunpack.c.l.b16 %v692
      %v701 = vunpack.c.l.b16 %v693
      %v702 = vunpack.c.l.b16 %v694
      %v703 = vpack.c.b16 %v700, %v699
      %v704 = vpack.c.b16 %v702, %v701
      %705 = vrot.lane.b32.xlu0 %v198, 92
      %v706 = vpop.permute.xlu0 %705
      %707 = vrot.lane.b32.xlu0 %v199, 92
      %v708 = vpop.permute.xlu0 %707
      %709 = vrot.lane.b32.xlu0 %v200, 92
      %v710 = vpop.permute.xlu0 %709
      %vm711 = vcmask 752640
      %v712 = vsel %vm711, %v706, %v708
      %v713 = vsel %vm711, %v708, %v710
      %v715 = vsel %vm210, %v703, 0
      %v718 = vsel %vm210, %v704, 0
      %v721 = vsel %vm217, %v712, 0
      %v724 = vsel %vm217, %v713, 0
      %v727 = vsel %vm217, %v710, 0
      %729 = vmatpush.bf16.msra.mxu0 0
      %730 = vmatpush.bf16.msra.mxu0 0
      %731 = vmatpush.bf16.msra.mxu0 0
      %732 = vmatpush.bf16.msra.mxu0 0
      %733 = vmatpush.bf16.msra.mxu0 0
      %734 = vmatpush.bf16.msra.mxu0 0
      %735 = vmatpush.bf16.msra.mxu0 0
      %736 = vmatpush.bf16.msra.mxu0 %v721
      %737 = vmatmul.bf16.gmra.mxu0 %v715
      %v738 = vpop.f32.mrf.mxu0
      %v739 = vadd.f32 0.0, %v738
      %v740 = vpop.f32.mrf.mxu0
      %v741 = vadd.f32 0.0, %v740
      %742 = vmatmul.bf16.gmra.mxu0 %v718
      %v743 = vpop.f32.mrf.mxu0
      %v744 = vadd.f32 0.0, %v743
      %v745 = vpop.f32.mrf.mxu0
      %v746 = vadd.f32 0.0, %v745
      %747 = vdwg.mxu0
      %748 = vmatpush.bf16.msra.mxu0 0
      %749 = vmatpush.bf16.msra.mxu0 0
      %750 = vmatpush.bf16.msra.mxu0 0
      %751 = vmatpush.bf16.msra.mxu0 0
      %752 = vmatpush.bf16.msra.mxu0 0
      %753 = vmatpush.bf16.msra.mxu0 0
      %754 = vmatpush.bf16.msra.mxu0 0
      %755 = vmatpush.bf16.msra.mxu0 %v724
      %756 = vmatmul.bf16.gmra.mxu0 %v715
      %v757 = vpop.f32.mrf.mxu0
      %v758 = vadd.f32 0.0, %v757
      %v759 = vpop.f32.mrf.mxu0
      %v760 = vadd.f32 0.0, %v759
      %761 = vmatmul.bf16.gmra.mxu0 %v718
      %v762 = vpop.f32.mrf.mxu0
      %v763 = vadd.f32 0.0, %v762
      %v764 = vpop.f32.mrf.mxu0
      %v765 = vadd.f32 0.0, %v764
      %766 = vdwg.mxu0
      %767 = vmatpush.bf16.msra.mxu0 0
      %768 = vmatpush.bf16.msra.mxu0 0
      %769 = vmatpush.bf16.msra.mxu0 0
      %770 = vmatpush.bf16.msra.mxu0 0
      %771 = vmatpush.bf16.msra.mxu0 0
      %772 = vmatpush.bf16.msra.mxu0 0
      %773 = vmatpush.bf16.msra.mxu0 0
      %774 = vmatpush.bf16.msra.mxu0 %v727
      %775 = vmatmul.bf16.gmra.mxu0 %v715
      %v776 = vpop.f32.mrf.mxu0
      %v777 = vadd.f32 0.0, %v776
      %v778 = vpop.f32.mrf.mxu0
      %v779 = vadd.f32 0.0, %v778
      %780 = vmatmul.bf16.gmra.mxu0 %v718
      %v781 = vpop.f32.mrf.mxu0
      %v782 = vadd.f32 0.0, %v781
      %v783 = vpop.f32.mrf.mxu0
      %v784 = vadd.f32 0.0, %v783
      %785 = vdwg.mxu0
      %v786 = vadd.f32 %v678, %v739
      %v787 = vadd.f32 %v679, %v758
      %v788 = vadd.f32 %v680, %v777
      %v789 = vadd.f32 %v681, %v741
      %v790 = vadd.f32 %v682, %v760
      %v791 = vadd.f32 %v683, %v779
      %v792 = vadd.f32 %v684, %v744
      %v793 = vadd.f32 %v685, %v763
      %v794 = vadd.f32 %v686, %v782
      %v795 = vadd.f32 %v687, %v746
      %v796 = vadd.f32 %v688, %v765
      %v797 = vadd.f32 %v689, %v784
      %s798 = scalar_lea.vmem %s1, 96
      %v799 = vld [vmem:[%s798] sm:$0xf]
      %v800 = vld [vmem:[%s798 + $0x4] sm:$0xf]
      %v801 = vld [vmem:[%s798 + $0x8] sm:$0xf]
      %v802 = vld [vmem:[%s798 + $0xc] sm:$0xf]
      %v807 = vunpack.c.l.b16 %v799
      %v808 = vunpack.c.l.b16 %v800
      %v809 = vunpack.c.l.b16 %v801
      %v810 = vunpack.c.l.b16 %v802
      %v811 = vpack.c.b16 %v808, %v807
      %v812 = vpack.c.b16 %v810, %v809
      %813 = vrot.lane.b32.xlu0 %v198, 60
      %v814 = vpop.permute.xlu0 %813
      %815 = vrot.lane.b32.xlu0 %v199, 60
      %v816 = vpop.permute.xlu0 %815
      %817 = vrot.lane.b32.xlu0 %v200, 60
      %v818 = vpop.permute.xlu0 %817
      %vm819 = vcmask 490496
      %v820 = vsel %vm819, %v814, %v816
      %v821 = vsel %vm819, %v816, %v818
      %v823 = vsel %vm210, %v811, 0
      %v826 = vsel %vm210, %v812, 0
      %v829 = vsel %vm217, %v820, 0
      %v832 = vsel %vm217, %v821, 0
      %v835 = vsel %vm217, %v818, 0
      %837 = vmatpush.bf16.msra.mxu0 0
      %838 = vmatpush.bf16.msra.mxu0 0
      %839 = vmatpush.bf16.msra.mxu0 0
      %840 = vmatpush.bf16.msra.mxu0 0
      %841 = vmatpush.bf16.msra.mxu0 0
      %842 = vmatpush.bf16.msra.mxu0 0
      %843 = vmatpush.bf16.msra.mxu0 0
      %844 = vmatpush.bf16.msra.mxu0 %v829
      %845 = vmatmul.bf16.gmra.mxu0 %v823
      %v846 = vpop.f32.mrf.mxu0
      %v847 = vadd.f32 0.0, %v846
      %v848 = vpop.f32.mrf.mxu0
      %v849 = vadd.f32 0.0, %v848
      %850 = vmatmul.bf16.gmra.mxu0 %v826
      %v851 = vpop.f32.mrf.mxu0
      %v852 = vadd.f32 0.0, %v851
      %v853 = vpop.f32.mrf.mxu0
      %v854 = vadd.f32 0.0, %v853
      %855 = vdwg.mxu0
      %856 = vmatpush.bf16.msra.mxu0 0
      %857 = vmatpush.bf16.msra.mxu0 0
      %858 = vmatpush.bf16.msra.mxu0 0
      %859 = vmatpush.bf16.msra.mxu0 0
      %860 = vmatpush.bf16.msra.mxu0 0
      %861 = vmatpush.bf16.msra.mxu0 0
      %862 = vmatpush.bf16.msra.mxu0 0
      %863 = vmatpush.bf16.msra.mxu0 %v832
      %864 = vmatmul.bf16.gmra.mxu0 %v823
      %v865 = vpop.f32.mrf.mxu0
      %v866 = vadd.f32 0.0, %v865
      %v867 = vpop.f32.mrf.mxu0
      %v868 = vadd.f32 0.0, %v867
      %869 = vmatmul.bf16.gmra.mxu0 %v826
      %v870 = vpop.f32.mrf.mxu0
      %v871 = vadd.f32 0.0, %v870
      %v872 = vpop.f32.mrf.mxu0
      %v873 = vadd.f32 0.0, %v872
      %874 = vdwg.mxu0
      %875 = vmatpush.bf16.msra.mxu0 0
      %876 = vmatpush.bf16.msra.mxu0 0
      %877 = vmatpush.bf16.msra.mxu0 0
      %878 = vmatpush.bf16.msra.mxu0 0
      %879 = vmatpush.bf16.msra.mxu0 0
      %880 = vmatpush.bf16.msra.mxu0 0
      %881 = vmatpush.bf16.msra.mxu0 0
      %882 = vmatpush.bf16.msra.mxu0 %v835
      %883 = vmatmul.bf16.gmra.mxu0 %v823
      %v884 = vpop.f32.mrf.mxu0
      %v885 = vadd.f32 0.0, %v884
      %v886 = vpop.f32.mrf.mxu0
      %v887 = vadd.f32 0.0, %v886
      %888 = vmatmul.bf16.gmra.mxu0 %v826
      %v889 = vpop.f32.mrf.mxu0
      %v890 = vadd.f32 0.0, %v889
      %v891 = vpop.f32.mrf.mxu0
      %v892 = vadd.f32 0.0, %v891
      %893 = vdwg.mxu0
      %v894 = vadd.f32 %v786, %v847
      %v895 = vadd.f32 %v787, %v866
      %v896 = vadd.f32 %v788, %v885
      %v897 = vadd.f32 %v789, %v849
      %v898 = vadd.f32 %v790, %v868
      %v899 = vadd.f32 %v791, %v887
      %v900 = vadd.f32 %v792, %v852
      %v901 = vadd.f32 %v793, %v871
      %v902 = vadd.f32 %v794, %v890
      %v903 = vadd.f32 %v795, %v854
      %v904 = vadd.f32 %v796, %v873
      %v905 = vadd.f32 %v797, %v892
      %s906 = scalar_lea.vmem %s1, 112
      %v907 = vld [vmem:[%s906] sm:$0xf]
      %v908 = vld [vmem:[%s906 + $0x4] sm:$0xf]
      %v909 = vld [vmem:[%s906 + $0x8] sm:$0xf]
      %v910 = vld [vmem:[%s906 + $0xc] sm:$0xf]
      %v915 = vunpack.c.l.b16 %v907
      %v916 = vunpack.c.l.b16 %v908
      %v917 = vunpack.c.l.b16 %v909
      %v918 = vunpack.c.l.b16 %v910
      %v919 = vpack.c.b16 %v916, %v915
      %v920 = vpack.c.b16 %v918, %v917
      %921 = vrot.lane.b32.xlu0 %v198, 59
      %v922 = vpop.permute.xlu0 %921
      %923 = vrot.lane.b32.xlu0 %v199, 59
      %v924 = vpop.permute.xlu0 %923
      %925 = vrot.lane.b32.xlu0 %v200, 59
      %v926 = vpop.permute.xlu0 %925
      %vm927 = vcmask 482304
      %v928 = vsel %vm927, %v922, %v924
      %v929 = vsel %vm927, %v924, %v926
      %v931 = vsel %vm210, %v919, 0
      %v934 = vsel %vm210, %v920, 0
      %v937 = vsel %vm217, %v928, 0
      %v940 = vsel %vm217, %v929, 0
      %v943 = vsel %vm217, %v926, 0
      %945 = vmatpush.bf16.msra.mxu0 0
      %946 = vmatpush.bf16.msra.mxu0 0
      %947 = vmatpush.bf16.msra.mxu0 0
      %948 = vmatpush.bf16.msra.mxu0 0
      %949 = vmatpush.bf16.msra.mxu0 0
      %950 = vmatpush.bf16.msra.mxu0 0
      %951 = vmatpush.bf16.msra.mxu0 0
      %952 = vmatpush.bf16.msra.mxu0 %v937
      %953 = vmatmul.bf16.gmra.mxu0 %v931
      %v954 = vpop.f32.mrf.mxu0
      %v955 = vadd.f32 0.0, %v954
      %v956 = vpop.f32.mrf.mxu0
      %v957 = vadd.f32 0.0, %v956
      %958 = vmatmul.bf16.gmra.mxu0 %v934
      %v959 = vpop.f32.mrf.mxu0
      %v960 = vadd.f32 0.0, %v959
      %v961 = vpop.f32.mrf.mxu0
      %v962 = vadd.f32 0.0, %v961
      %963 = vdwg.mxu0
      %964 = vmatpush.bf16.msra.mxu0 0
      %965 = vmatpush.bf16.msra.mxu0 0
      %966 = vmatpush.bf16.msra.mxu0 0
      %967 = vmatpush.bf16.msra.mxu0 0
      %968 = vmatpush.bf16.msra.mxu0 0
      %969 = vmatpush.bf16.msra.mxu0 0
      %970 = vmatpush.bf16.msra.mxu0 0
      %971 = vmatpush.bf16.msra.mxu0 %v940
      %972 = vmatmul.bf16.gmra.mxu0 %v931
      %v973 = vpop.f32.mrf.mxu0
      %v974 = vadd.f32 0.0, %v973
      %v975 = vpop.f32.mrf.mxu0
      %v976 = vadd.f32 0.0, %v975
      %977 = vmatmul.bf16.gmra.mxu0 %v934
      %v978 = vpop.f32.mrf.mxu0
      %v979 = vadd.f32 0.0, %v978
      %v980 = vpop.f32.mrf.mxu0
      %v981 = vadd.f32 0.0, %v980
      %982 = vdwg.mxu0
      %983 = vmatpush.bf16.msra.mxu0 0
      %984 = vmatpush.bf16.msra.mxu0 0
      %985 = vmatpush.bf16.msra.mxu0 0
      %986 = vmatpush.bf16.msra.mxu0 0
      %987 = vmatpush.bf16.msra.mxu0 0
      %988 = vmatpush.bf16.msra.mxu0 0
      %989 = vmatpush.bf16.msra.mxu0 0
      %990 = vmatpush.bf16.msra.mxu0 %v943
      %991 = vmatmul.bf16.gmra.mxu0 %v931
      %v992 = vpop.f32.mrf.mxu0
      %v993 = vadd.f32 0.0, %v992
      %v994 = vpop.f32.mrf.mxu0
      %v995 = vadd.f32 0.0, %v994
      %996 = vmatmul.bf16.gmra.mxu0 %v934
      %v997 = vpop.f32.mrf.mxu0
      %v998 = vadd.f32 0.0, %v997
      %v999 = vpop.f32.mrf.mxu0
      %v1000 = vadd.f32 0.0, %v999
      %1001 = vdwg.mxu0
      %v1002 = vadd.f32 %v894, %v955
      %v1003 = vadd.f32 %v895, %v974
      %v1004 = vadd.f32 %v896, %v993
      %v1005 = vadd.f32 %v897, %v957
      %v1006 = vadd.f32 %v898, %v976
      %v1007 = vadd.f32 %v899, %v995
      %v1008 = vadd.f32 %v900, %v960
      %v1009 = vadd.f32 %v901, %v979
      %v1010 = vadd.f32 %v902, %v998
      %v1011 = vadd.f32 %v903, %v962
      %v1012 = vadd.f32 %v904, %v981
      %v1013 = vadd.f32 %v905, %v1000
      %s1014 = scalar_lea.vmem %s1, 128
      %v1015 = vld [vmem:[%s1014] sm:$0xf]
      %v1016 = vld [vmem:[%s1014 + $0x4] sm:$0xf]
      %v1017 = vld [vmem:[%s1014 + $0x8] sm:$0xf]
      %v1018 = vld [vmem:[%s1014 + $0xc] sm:$0xf]
      %v1023 = vunpack.c.l.b16 %v1015
      %v1024 = vunpack.c.l.b16 %v1016
      %v1025 = vunpack.c.l.b16 %v1017
      %v1026 = vunpack.c.l.b16 %v1018
      %v1027 = vpack.c.b16 %v1024, %v1023
      %v1028 = vpack.c.b16 %v1026, %v1025
      %1029 = vrot.lane.b32.xlu0 %v198, 58
      %v1030 = vpop.permute.xlu0 %1029
      %1031 = vrot.lane.b32.xlu0 %v199, 58
      %v1032 = vpop.permute.xlu0 %1031
      %1033 = vrot.lane.b32.xlu0 %v200, 58
      %v1034 = vpop.permute.xlu0 %1033
      %vm1035 = vcmask 474112
      %v1036 = vsel %vm1035, %v1030, %v1032
      %v1037 = vsel %vm1035, %v1032, %v1034
      %v1039 = vsel %vm210, %v1027, 0
      %v1042 = vsel %vm210, %v1028, 0
      %v1045 = vsel %vm217, %v1036, 0
      %v1048 = vsel %vm217, %v1037, 0
      %v1051 = vsel %vm217, %v1034, 0
      %1053 = vmatpush.bf16.msra.mxu0 0
      %1054 = vmatpush.bf16.msra.mxu0 0
      %1055 = vmatpush.bf16.msra.mxu0 0
      %1056 = vmatpush.bf16.msra.mxu0 0
      %1057 = vmatpush.bf16.msra.mxu0 0
      %1058 = vmatpush.bf16.msra.mxu0 0
      %1059 = vmatpush.bf16.msra.mxu0 0
      %1060 = vmatpush.bf16.msra.mxu0 %v1045
      %1061 = vmatmul.bf16.gmra.mxu0 %v1039
      %v1062 = vpop.f32.mrf.mxu0
      %v1063 = vadd.f32 0.0, %v1062
      %v1064 = vpop.f32.mrf.mxu0
      %v1065 = vadd.f32 0.0, %v1064
      %1066 = vmatmul.bf16.gmra.mxu0 %v1042
      %v1067 = vpop.f32.mrf.mxu0
      %v1068 = vadd.f32 0.0, %v1067
      %v1069 = vpop.f32.mrf.mxu0
      %v1070 = vadd.f32 0.0, %v1069
      %1071 = vdwg.mxu0
      %1072 = vmatpush.bf16.msra.mxu0 0
      %1073 = vmatpush.bf16.msra.mxu0 0
      %1074 = vmatpush.bf16.msra.mxu0 0
      %1075 = vmatpush.bf16.msra.mxu0 0
      %1076 = vmatpush.bf16.msra.mxu0 0
      %1077 = vmatpush.bf16.msra.mxu0 0
      %1078 = vmatpush.bf16.msra.mxu0 0
      %1079 = vmatpush.bf16.msra.mxu0 %v1048
      %1080 = vmatmul.bf16.gmra.mxu0 %v1039
      %v1081 = vpop.f32.mrf.mxu0
      %v1082 = vadd.f32 0.0, %v1081
      %v1083 = vpop.f32.mrf.mxu0
      %v1084 = vadd.f32 0.0, %v1083
      %1085 = vmatmul.bf16.gmra.mxu0 %v1042
      %v1086 = vpop.f32.mrf.mxu0
      %v1087 = vadd.f32 0.0, %v1086
      %v1088 = vpop.f32.mrf.mxu0
      %v1089 = vadd.f32 0.0, %v1088
      %1090 = vdwg.mxu0
      %1091 = vmatpush.bf16.msra.mxu0 0
      %1092 = vmatpush.bf16.msra.mxu0 0
      %1093 = vmatpush.bf16.msra.mxu0 0
      %1094 = vmatpush.bf16.msra.mxu0 0
      %1095 = vmatpush.bf16.msra.mxu0 0
      %1096 = vmatpush.bf16.msra.mxu0 0
      %1097 = vmatpush.bf16.msra.mxu0 0
      %1098 = vmatpush.bf16.msra.mxu0 %v1051
      %1099 = vmatmul.bf16.gmra.mxu0 %v1039
      %v1100 = vpop.f32.mrf.mxu0
      %v1101 = vadd.f32 0.0, %v1100
      %v1102 = vpop.f32.mrf.mxu0
      %v1103 = vadd.f32 0.0, %v1102
      %1104 = vmatmul.bf16.gmra.mxu0 %v1042
      %v1105 = vpop.f32.mrf.mxu0
      %v1106 = vadd.f32 0.0, %v1105
      %v1107 = vpop.f32.mrf.mxu0
      %v1108 = vadd.f32 0.0, %v1107
      %1109 = vdwg.mxu0
      %v1110 = vadd.f32 %v1002, %v1063
      %v1111 = vadd.f32 %v1003, %v1082
      %v1112 = vadd.f32 %v1004, %v1101
      %v1113 = vadd.f32 %v1005, %v1065
      %v1114 = vadd.f32 %v1006, %v1084
      %v1115 = vadd.f32 %v1007, %v1103
      %v1116 = vadd.f32 %v1008, %v1068
      %v1117 = vadd.f32 %v1009, %v1087
      %v1118 = vadd.f32 %v1010, %v1106
      %v1119 = vadd.f32 %v1011, %v1070
      %v1120 = vadd.f32 %v1012, %v1089
      %v1121 = vadd.f32 %v1013, %v1108
      %v1122 = vld [vmem:[%s2] sm:$0xff]
      %v1123 = vld [vmem:[%s2 + $0x8] sm:$0xff]
      %v1124 = vld [vmem:[%s2 + $0x10] sm:$0xff]
      %v1125 = vld [vmem:[%s2 + $0x18] sm:$0xff]
      %1127 = vset.pattern.permute.xlu0 0
      %1128 = vperm.xlu0 %1127, %v1122
      %v1129 = vpop.permute.xlu0 %1128
      %1132 = vset.pattern.permute.xlu0 0
      %1133 = vperm.xlu0 %1132, %v1123
      %v1134 = vpop.permute.xlu0 %1133
      %1137 = vset.pattern.permute.xlu0 0
      %1138 = vperm.xlu0 %1137, %v1124
      %v1139 = vpop.permute.xlu0 %1138
      %1142 = vset.pattern.permute.xlu0 0
      %1143 = vperm.xlu0 %1142, %v1125
      %v1144 = vpop.permute.xlu0 %1143
      %v1146 = vadd.f32 %v1110, %v1129
      %v1147 = vadd.f32 %v1111, %v1129
      %v1148 = vadd.f32 %v1112, %v1129
      %v1149 = vadd.f32 %v1113, %v1134
      %v1150 = vadd.f32 %v1114, %v1134
      %v1151 = vadd.f32 %v1115, %v1134
      %v1152 = vadd.f32 %v1116, %v1139
      %v1153 = vadd.f32 %v1117, %v1139
      %v1154 = vadd.f32 %v1118, %v1139
      %v1155 = vadd.f32 %v1119, %v1144
      %v1156 = vadd.f32 %v1120, %v1144
      %v1157 = vadd.f32 %v1121, %v1144
      %v1158 = vmax.f32 %v1146, 0.0
      %v1159 = vmax.f32 %v1147, 0.0
      %v1160 = vmax.f32 %v1148, 0.0
      %v1161 = vmax.f32 %v1149, 0.0
      %v1162 = vmax.f32 %v1150, 0.0
      %v1163 = vmax.f32 %v1151, 0.0
      %v1164 = vmax.f32 %v1152, 0.0
      %v1165 = vmax.f32 %v1153, 0.0
      %v1166 = vmax.f32 %v1154, 0.0
      %v1167 = vmax.f32 %v1155, 0.0
      %v1168 = vmax.f32 %v1156, 0.0
      %v1169 = vmax.f32 %v1157, 0.0
      %v1170 = vpack.c.bf16 %v1159, %v1158
      %v1171 = vpack.c.bf16 %v1160, %v1160
      %v1172 = vpack.c.bf16 %v1162, %v1161
      %v1173 = vpack.c.bf16 %v1163, %v1163
      %v1174 = vpack.c.bf16 %v1165, %v1164
      %v1175 = vpack.c.bf16 %v1166, %v1166
      %v1176 = vpack.c.bf16 %v1168, %v1167
      %v1177 = vpack.c.bf16 %v1169, %v1169
      %1178 = vst [vmem:[%s170] sm:$0xff] %v1170
      %vm1179 = vcmask 125952
      %1180 = vst.msk [vmem:[%s170 + $0x8] sm:$0xf] %vm1179, %v1171
      %1181 = vst [vmem:[%s170 + $0x24] sm:$0xff] %v1172
      %1182 = vst.msk [vmem:[%s170 + $0x2c] sm:$0xf] %vm1179, %v1173
      %1183 = vst [vmem:[%s170 + $0x48] sm:$0xff] %v1174
      %1184 = vst.msk [vmem:[%s170 + $0x50] sm:$0xf] %vm1179, %v1175
      %1185 = vst [vmem:[%s170 + $0x6c] sm:$0xff] %v1176
      %1186 = vst.msk [vmem:[%s170 + $0x74] sm:$0xf] %vm1179, %v1177
      %v1187 = vld [vmem:[%s165 + $0x8] sm:$0xff]
      %v1188 = vld [vmem:[%s165 + $0x10] sm:$0xf]
      %v1189 = vld [vmem:[%s1] sm:$0xf]
      %v1190 = vld [vmem:[%s1 + $0x4] sm:$0xf]
      %v1191 = vld [vmem:[%s1 + $0x8] sm:$0xf]
      %v1192 = vld [vmem:[%s1 + $0xc] sm:$0xf]
      %v1193 = vld [vmem:[%s178] sm:$0xf]
      %v1194 = vld [vmem:[%s178 + $0x4] sm:$0xf]
      %v1195 = vld [vmem:[%s178 + $0x8] sm:$0xf]
      %v1196 = vld [vmem:[%s178 + $0xc] sm:$0xf]
      %v1201 = vunpack.c.l.b16 %v1193
      %v1202 = vunpack.c.l.b16 %v1194
      %v1203 = vunpack.c.l.b16 %v1195
      %v1204 = vunpack.c.l.b16 %v1196
      %v1205 = vpack.c.b16 %v1202, %v1201
      %v1206 = vpack.c.b16 %v1204, %v1203
      %v1209 = vunpack.c.l.b16 %v1187
      %v1210 = vunpack.c.h.b16 %v1187
      %v1211 = vunpack.c.l.b16 %v1188
      %v1212 = vpack.c.b16 %v1209, %v1209
      %v1213 = vpack.c.b16 %v1210, %v1210
      %v1214 = vpack.c.b16 %v1211, %v1211
      %1215 = vrot.lane.b32.xlu0 %v1212, 111
      %v1216 = vpop.permute.xlu0 %1215
      %1217 = vrot.lane.b32.xlu0 %v1213, 111
      %v1218 = vpop.permute.xlu0 %1217
      %1219 = vrot.lane.b32.xlu0 %v1214, 111
      %v1220 = vpop.permute.xlu0 %1219
      %vm1221 = vcmask 908288
      %v1222 = vsel %vm1221, %v1216, %v1218
      %v1223 = vsel %vm1221, %v1218, %v1220
      %v1225 = vsel %vm210, %v1205, 0
      %v1228 = vsel %vm210, %v1206, 0
      %v1231 = vsel %vm217, %v1222, 0
      %v1234 = vsel %vm217, %v1223, 0
      %v1237 = vsel %vm217, %v1220, 0
      %1239 = vmatpush.bf16.msra.mxu0 0
      %1240 = vmatpush.bf16.msra.mxu0 0
      %1241 = vmatpush.bf16.msra.mxu0 0
      %1242 = vmatpush.bf16.msra.mxu0 0
      %1243 = vmatpush.bf16.msra.mxu0 0
      %1244 = vmatpush.bf16.msra.mxu0 0
      %1245 = vmatpush.bf16.msra.mxu0 0
      %1246 = vmatpush.bf16.msra.mxu0 %v1231
      %1247 = vmatmul.bf16.gmra.mxu0 %v1225
      %v1248 = vpop.f32.mrf.mxu0
      %v1249 = vadd.f32 0.0, %v1248
      %v1250 = vpop.f32.mrf.mxu0
      %v1251 = vadd.f32 0.0, %v1250
      %1252 = vmatmul.bf16.gmra.mxu0 %v1228
      %v1253 = vpop.f32.mrf.mxu0
      %v1254 = vadd.f32 0.0, %v1253
      %v1255 = vpop.f32.mrf.mxu0
      %v1256 = vadd.f32 0.0, %v1255
      %1257 = vdwg.mxu0
      %1258 = vmatpush.bf16.msra.mxu0 0
      %1259 = vmatpush.bf16.msra.mxu0 0
      %1260 = vmatpush.bf16.msra.mxu0 0
      %1261 = vmatpush.bf16.msra.mxu0 0
      %1262 = vmatpush.bf16.msra.mxu0 0
      %1263 = vmatpush.bf16.msra.mxu0 0
      %1264 = vmatpush.bf16.msra.mxu0 0
      %1265 = vmatpush.bf16.msra.mxu0 %v1234
      %1266 = vmatmul.bf16.gmra.mxu0 %v1225
      %v1267 = vpop.f32.mrf.mxu0
      %v1268 = vadd.f32 0.0, %v1267
      %v1269 = vpop.f32.mrf.mxu0
      %v1270 = vadd.f32 0.0, %v1269
      %1271 = vmatmul.bf16.gmra.mxu0 %v1228
      %v1272 = vpop.f32.mrf.mxu0
      %v1273 = vadd.f32 0.0, %v1272
      %v1274 = vpop.f32.mrf.mxu0
      %v1275 = vadd.f32 0.0, %v1274
      %1276 = vdwg.mxu0
      %1277 = vmatpush.bf16.msra.mxu0 0
      %1278 = vmatpush.bf16.msra.mxu0 0
      %1279 = vmatpush.bf16.msra.mxu0 0
      %1280 = vmatpush.bf16.msra.mxu0 0
      %1281 = vmatpush.bf16.msra.mxu0 0
      %1282 = vmatpush.bf16.msra.mxu0 0
      %1283 = vmatpush.bf16.msra.mxu0 0
      %1284 = vmatpush.bf16.msra.mxu0 %v1237
      %1285 = vmatmul.bf16.gmra.mxu0 %v1225
      %v1286 = vpop.f32.mrf.mxu0
      %v1287 = vadd.f32 0.0, %v1286
      %v1288 = vpop.f32.mrf.mxu0
      %v1289 = vadd.f32 0.0, %v1288
      %1290 = vmatmul.bf16.gmra.mxu0 %v1228
      %v1291 = vpop.f32.mrf.mxu0
      %v1292 = vadd.f32 0.0, %v1291
      %v1293 = vpop.f32.mrf.mxu0
      %v1294 = vadd.f32 0.0, %v1293
      %1295 = vdwg.mxu0
      %v1300 = vunpack.c.l.b16 %v1189
      %v1301 = vunpack.c.l.b16 %v1190
      %v1302 = vunpack.c.l.b16 %v1191
      %v1303 = vunpack.c.l.b16 %v1192
      %v1304 = vpack.c.b16 %v1301, %v1300
      %v1305 = vpack.c.b16 %v1303, %v1302
      %1306 = vrot.lane.b32.xlu0 %v1212, 112
      %v1307 = vpop.permute.xlu0 %1306
      %1308 = vrot.lane.b32.xlu0 %v1213, 112
      %v1309 = vpop.permute.xlu0 %1308
      %1310 = vrot.lane.b32.xlu0 %v1214, 112
      %v1311 = vpop.permute.xlu0 %1310
      %vm1312 = vcmask 916480
      %v1313 = vsel %vm1312, %v1307, %v1309
      %v1314 = vsel %vm1312, %v1309, %v1311
      %v1316 = vsel %vm210, %v1304, 0
      %v1319 = vsel %vm210, %v1305, 0
      %v1322 = vsel %vm217, %v1313, 0
      %v1325 = vsel %vm217, %v1314, 0
      %v1328 = vsel %vm217, %v1311, 0
      %1330 = vmatpush.bf16.msra.mxu0 0
      %1331 = vmatpush.bf16.msra.mxu0 0
      %1332 = vmatpush.bf16.msra.mxu0 0
      %1333 = vmatpush.bf16.msra.mxu0 0
      %1334 = vmatpush.bf16.msra.mxu0 0
      %1335 = vmatpush.bf16.msra.mxu0 0
      %1336 = vmatpush.bf16.msra.mxu0 0
      %1337 = vmatpush.bf16.msra.mxu0 %v1322
      %1338 = vmatmul.bf16.gmra.mxu0 %v1316
      %v1339 = vpop.f32.mrf.mxu0
      %v1340 = vadd.f32 %v1249, %v1339
      %v1341 = vpop.f32.mrf.mxu0
      %v1342 = vadd.f32 %v1251, %v1341
      %1343 = vmatmul.bf16.gmra.mxu0 %v1319
      %v1344 = vpop.f32.mrf.mxu0
      %v1345 = vadd.f32 %v1254, %v1344
      %v1346 = vpop.f32.mrf.mxu0
      %v1347 = vadd.f32 %v1256, %v1346
      %1348 = vdwg.mxu0
      %1349 = vmatpush.bf16.msra.mxu0 0
      %1350 = vmatpush.bf16.msra.mxu0 0
      %1351 = vmatpush.bf16.msra.mxu0 0
      %1352 = vmatpush.bf16.msra.mxu0 0
      %1353 = vmatpush.bf16.msra.mxu0 0
      %1354 = vmatpush.bf16.msra.mxu0 0
      %1355 = vmatpush.bf16.msra.mxu0 0
      %1356 = vmatpush.bf16.msra.mxu0 %v1325
      %1357 = vmatmul.bf16.gmra.mxu0 %v1316
      %v1358 = vpop.f32.mrf.mxu0
      %v1359 = vadd.f32 %v1268, %v1358
      %v1360 = vpop.f32.mrf.mxu0
      %v1361 = vadd.f32 %v1270, %v1360
      %1362 = vmatmul.bf16.gmra.mxu0 %v1319
      %v1363 = vpop.f32.mrf.mxu0
      %v1364 = vadd.f32 %v1273, %v1363
      %v1365 = vpop.f32.mrf.mxu0
      %v1366 = vadd.f32 %v1275, %v1365
      %1367 = vdwg.mxu0
      %1368 = vmatpush.bf16.msra.mxu0 0
      %1369 = vmatpush.bf16.msra.mxu0 0
      %1370 = vmatpush.bf16.msra.mxu0 0
      %1371 = vmatpush.bf16.msra.mxu0 0
      %1372 = vmatpush.bf16.msra.mxu0 0
      %1373 = vmatpush.bf16.msra.mxu0 0
      %1374 = vmatpush.bf16.msra.mxu0 0
      %1375 = vmatpush.bf16.msra.mxu0 %v1328
      %1376 = vmatmul.bf16.gmra.mxu0 %v1316
      %v1377 = vpop.f32.mrf.mxu0
      %v1378 = vadd.f32 %v1287, %v1377
      %v1379 = vpop.f32.mrf.mxu0
      %v1380 = vadd.f32 %v1289, %v1379
      %1381 = vmatmul.bf16.gmra.mxu0 %v1319
      %v1382 = vpop.f32.mrf.mxu0
      %v1383 = vadd.f32 %v1292, %v1382
      %v1384 = vpop.f32.mrf.mxu0
      %v1385 = vadd.f32 %v1294, %v1384
      %1386 = vdwg.mxu0
      %v1387 = vld [vmem:[%s366] sm:$0xf]
      %v1388 = vld [vmem:[%s366 + $0x4] sm:$0xf]
      %v1389 = vld [vmem:[%s366 + $0x8] sm:$0xf]
      %v1390 = vld [vmem:[%s366 + $0xc] sm:$0xf]
      %v1395 = vunpack.c.l.b16 %v1387
      %v1396 = vunpack.c.l.b16 %v1388
      %v1397 = vunpack.c.l.b16 %v1389
      %v1398 = vunpack.c.l.b16 %v1390
      %v1399 = vpack.c.b16 %v1396, %v1395
      %v1400 = vpack.c.b16 %v1398, %v1397
      %1401 = vrot.lane.b32.xlu0 %v1212, 110
      %v1402 = vpop.permute.xlu0 %1401
      %1403 = vrot.lane.b32.xlu0 %v1213, 110
      %v1404 = vpop.permute.xlu0 %1403
      %1405 = vrot.lane.b32.xlu0 %v1214, 110
      %v1406 = vpop.permute.xlu0 %1405
      %vm1407 = vcmask 900096
      %v1408 = vsel %vm1407, %v1402, %v1404
      %v1409 = vsel %vm1407, %v1404, %v1406
      %v1411 = vsel %vm210, %v1399, 0
      %v1414 = vsel %vm210, %v1400, 0
      %v1417 = vsel %vm217, %v1408, 0
      %v1420 = vsel %vm217, %v1409, 0
      %v1423 = vsel %vm217, %v1406, 0
      %1425 = vmatpush.bf16.msra.mxu0 0
      %1426 = vmatpush.bf16.msra.mxu0 0
      %1427 = vmatpush.bf16.msra.mxu0 0
      %1428 = vmatpush.bf16.msra.mxu0 0
      %1429 = vmatpush.bf16.msra.mxu0 0
      %1430 = vmatpush.bf16.msra.mxu0 0
      %1431 = vmatpush.bf16.msra.mxu0 0
      %1432 = vmatpush.bf16.msra.mxu0 %v1417
      %1433 = vmatmul.bf16.gmra.mxu0 %v1411
      %v1434 = vpop.f32.mrf.mxu0
      %v1435 = vadd.f32 0.0, %v1434
      %v1436 = vpop.f32.mrf.mxu0
      %v1437 = vadd.f32 0.0, %v1436
      %1438 = vmatmul.bf16.gmra.mxu0 %v1414
      %v1439 = vpop.f32.mrf.mxu0
      %v1440 = vadd.f32 0.0, %v1439
      %v1441 = vpop.f32.mrf.mxu0
      %v1442 = vadd.f32 0.0, %v1441
      %1443 = vdwg.mxu0
      %1444 = vmatpush.bf16.msra.mxu0 0
      %1445 = vmatpush.bf16.msra.mxu0 0
      %1446 = vmatpush.bf16.msra.mxu0 0
      %1447 = vmatpush.bf16.msra.mxu0 0
      %1448 = vmatpush.bf16.msra.mxu0 0
      %1449 = vmatpush.bf16.msra.mxu0 0
      %1450 = vmatpush.bf16.msra.mxu0 0
      %1451 = vmatpush.bf16.msra.mxu0 %v1420
      %1452 = vmatmul.bf16.gmra.mxu0 %v1411
      %v1453 = vpop.f32.mrf.mxu0
      %v1454 = vadd.f32 0.0, %v1453
      %v1455 = vpop.f32.mrf.mxu0
      %v1456 = vadd.f32 0.0, %v1455
      %1457 = vmatmul.bf16.gmra.mxu0 %v1414
      %v1458 = vpop.f32.mrf.mxu0
      %v1459 = vadd.f32 0.0, %v1458
      %v1460 = vpop.f32.mrf.mxu0
      %v1461 = vadd.f32 0.0, %v1460
      %1462 = vdwg.mxu0
      %1463 = vmatpush.bf16.msra.mxu0 0
      %1464 = vmatpush.bf16.msra.mxu0 0
      %1465 = vmatpush.bf16.msra.mxu0 0
      %1466 = vmatpush.bf16.msra.mxu0 0
      %1467 = vmatpush.bf16.msra.mxu0 0
      %1468 = vmatpush.bf16.msra.mxu0 0
      %1469 = vmatpush.bf16.msra.mxu0 0
      %1470 = vmatpush.bf16.msra.mxu0 %v1423
      %1471 = vmatmul.bf16.gmra.mxu0 %v1411
      %v1472 = vpop.f32.mrf.mxu0
      %v1473 = vadd.f32 0.0, %v1472
      %v1474 = vpop.f32.mrf.mxu0
      %v1475 = vadd.f32 0.0, %v1474
      %1476 = vmatmul.bf16.gmra.mxu0 %v1414
      %v1477 = vpop.f32.mrf.mxu0
      %v1478 = vadd.f32 0.0, %v1477
      %v1479 = vpop.f32.mrf.mxu0
      %v1480 = vadd.f32 0.0, %v1479
      %1481 = vdwg.mxu0
      %v1482 = vadd.f32 %v1340, %v1435
      %v1483 = vadd.f32 %v1359, %v1454
      %v1484 = vadd.f32 %v1378, %v1473
      %v1485 = vadd.f32 %v1342, %v1437
      %v1486 = vadd.f32 %v1361, %v1456
      %v1487 = vadd.f32 %v1380, %v1475
      %v1488 = vadd.f32 %v1345, %v1440
      %v1489 = vadd.f32 %v1364, %v1459
      %v1490 = vadd.f32 %v1383, %v1478
      %v1491 = vadd.f32 %v1347, %v1442
      %v1492 = vadd.f32 %v1366, %v1461
      %v1493 = vadd.f32 %v1385, %v1480
      %v1494 = vld [vmem:[%s474] sm:$0xf]
      %v1495 = vld [vmem:[%s474 + $0x4] sm:$0xf]
      %v1496 = vld [vmem:[%s474 + $0x8] sm:$0xf]
      %v1497 = vld [vmem:[%s474 + $0xc] sm:$0xf]
      %v1502 = vunpack.c.l.b16 %v1494
      %v1503 = vunpack.c.l.b16 %v1495
      %v1504 = vunpack.c.l.b16 %v1496
      %v1505 = vunpack.c.l.b16 %v1497
      %v1506 = vpack.c.b16 %v1503, %v1502
      %v1507 = vpack.c.b16 %v1505, %v1504
      %1508 = vrot.lane.b32.xlu0 %v1212, 78
      %v1509 = vpop.permute.xlu0 %1508
      %1510 = vrot.lane.b32.xlu0 %v1213, 78
      %v1511 = vpop.permute.xlu0 %1510
      %1512 = vrot.lane.b32.xlu0 %v1214, 78
      %v1513 = vpop.permute.xlu0 %1512
      %vm1514 = vcmask 637952
      %v1515 = vsel %vm1514, %v1509, %v1511
      %v1516 = vsel %vm1514, %v1511, %v1513
      %v1518 = vsel %vm210, %v1506, 0
      %v1521 = vsel %vm210, %v1507, 0
      %v1524 = vsel %vm217, %v1515, 0
      %v1527 = vsel %vm217, %v1516, 0
      %v1530 = vsel %vm217, %v1513, 0
      %1532 = vmatpush.bf16.msra.mxu0 0
      %1533 = vmatpush.bf16.msra.mxu0 0
      %1534 = vmatpush.bf16.msra.mxu0 0
      %1535 = vmatpush.bf16.msra.mxu0 0
      %1536 = vmatpush.bf16.msra.mxu0 0
      %1537 = vmatpush.bf16.msra.mxu0 0
      %1538 = vmatpush.bf16.msra.mxu0 0
      %1539 = vmatpush.bf16.msra.mxu0 %v1524
      %1540 = vmatmul.bf16.gmra.mxu0 %v1518
      %v1541 = vpop.f32.mrf.mxu0
      %v1542 = vadd.f32 0.0, %v1541
      %v1543 = vpop.f32.mrf.mxu0
      %v1544 = vadd.f32 0.0, %v1543
      %1545 = vmatmul.bf16.gmra.mxu0 %v1521
      %v1546 = vpop.f32.mrf.mxu0
      %v1547 = vadd.f32 0.0, %v1546
      %v1548 = vpop.f32.mrf.mxu0
      %v1549 = vadd.f32 0.0, %v1548
      %1550 = vdwg.mxu0
      %1551 = vmatpush.bf16.msra.mxu0 0
      %1552 = vmatpush.bf16.msra.mxu0 0
      %1553 = vmatpush.bf16.msra.mxu0 0
      %1554 = vmatpush.bf16.msra.mxu0 0
      %1555 = vmatpush.bf16.msra.mxu0 0
      %1556 = vmatpush.bf16.msra.mxu0 0
      %1557 = vmatpush.bf16.msra.mxu0 0
      %1558 = vmatpush.bf16.msra.mxu0 %v1527
      %1559 = vmatmul.bf16.gmra.mxu0 %v1518
      %v1560 = vpop.f32.mrf.mxu0
      %v1561 = vadd.f32 0.0, %v1560
      %v1562 = vpop.f32.mrf.mxu0
      %v1563 = vadd.f32 0.0, %v1562
      %1564 = vmatmul.bf16.gmra.mxu0 %v1521
      %v1565 = vpop.f32.mrf.mxu0
      %v1566 = vadd.f32 0.0, %v1565
      %v1567 = vpop.f32.mrf.mxu0
      %v1568 = vadd.f32 0.0, %v1567
      %1569 = vdwg.mxu0
      %1570 = vmatpush.bf16.msra.mxu0 0
      %1571 = vmatpush.bf16.msra.mxu0 0
      %1572 = vmatpush.bf16.msra.mxu0 0
      %1573 = vmatpush.bf16.msra.mxu0 0
      %1574 = vmatpush.bf16.msra.mxu0 0
      %1575 = vmatpush.bf16.msra.mxu0 0
      %1576 = vmatpush.bf16.msra.mxu0 0
      %1577 = vmatpush.bf16.msra.mxu0 %v1530
      %1578 = vmatmul.bf16.gmra.mxu0 %v1518
      %v1579 = vpop.f32.mrf.mxu0
      %v1580 = vadd.f32 0.0, %v1579
      %v1581 = vpop.f32.mrf.mxu0
      %v1582 = vadd.f32 0.0, %v1581
      %1583 = vmatmul.bf16.gmra.mxu0 %v1521
      %v1584 = vpop.f32.mrf.mxu0
      %v1585 = vadd.f32 0.0, %v1584
      %v1586 = vpop.f32.mrf.mxu0
      %v1587 = vadd.f32 0.0, %v1586
      %1588 = vdwg.mxu0
      %v1589 = vadd.f32 %v1482, %v1542
      %v1590 = vadd.f32 %v1483, %v1561
      %v1591 = vadd.f32 %v1484, %v1580
      %v1592 = vadd.f32 %v1485, %v1544
      %v1593 = vadd.f32 %v1486, %v1563
      %v1594 = vadd.f32 %v1487, %v1582
      %v1595 = vadd.f32 %v1488, %v1547
      %v1596 = vadd.f32 %v1489, %v1566
      %v1597 = vadd.f32 %v1490, %v1585
      %v1598 = vadd.f32 %v1491, %v1549
      %v1599 = vadd.f32 %v1492, %v1568
      %v1600 = vadd.f32 %v1493, %v1587
      %v1601 = vld [vmem:[%s582] sm:$0xf]
      %v1602 = vld [vmem:[%s582 + $0x4] sm:$0xf]
      %v1603 = vld [vmem:[%s582 + $0x8] sm:$0xf]
      %v1604 = vld [vmem:[%s582 + $0xc] sm:$0xf]
      %v1609 = vunpack.c.l.b16 %v1601
      %v1610 = vunpack.c.l.b16 %v1602
      %v1611 = vunpack.c.l.b16 %v1603
      %v1612 = vunpack.c.l.b16 %v1604
      %v1613 = vpack.c.b16 %v1610, %v1609
      %v1614 = vpack.c.b16 %v1612, %v1611
      %1615 = vrot.lane.b32.xlu0 %v1212, 77
      %v1616 = vpop.permute.xlu0 %1615
      %1617 = vrot.lane.b32.xlu0 %v1213, 77
      %v1618 = vpop.permute.xlu0 %1617
      %1619 = vrot.lane.b32.xlu0 %v1214, 77
      %v1620 = vpop.permute.xlu0 %1619
      %vm1621 = vcmask 629760
      %v1622 = vsel %vm1621, %v1616, %v1618
      %v1623 = vsel %vm1621, %v1618, %v1620
      %v1625 = vsel %vm210, %v1613, 0
      %v1628 = vsel %vm210, %v1614, 0
      %v1631 = vsel %vm217, %v1622, 0
      %v1634 = vsel %vm217, %v1623, 0
      %v1637 = vsel %vm217, %v1620, 0
      %1639 = vmatpush.bf16.msra.mxu0 0
      %1640 = vmatpush.bf16.msra.mxu0 0
      %1641 = vmatpush.bf16.msra.mxu0 0
      %1642 = vmatpush.bf16.msra.mxu0 0
      %1643 = vmatpush.bf16.msra.mxu0 0
      %1644 = vmatpush.bf16.msra.mxu0 0
      %1645 = vmatpush.bf16.msra.mxu0 0
      %1646 = vmatpush.bf16.msra.mxu0 %v1631
      %1647 = vmatmul.bf16.gmra.mxu0 %v1625
      %v1648 = vpop.f32.mrf.mxu0
      %v1649 = vadd.f32 0.0, %v1648
      %v1650 = vpop.f32.mrf.mxu0
      %v1651 = vadd.f32 0.0, %v1650
      %1652 = vmatmul.bf16.gmra.mxu0 %v1628
      %v1653 = vpop.f32.mrf.mxu0
      %v1654 = vadd.f32 0.0, %v1653
      %v1655 = vpop.f32.mrf.mxu0
      %v1656 = vadd.f32 0.0, %v1655
      %1657 = vdwg.mxu0
      %1658 = vmatpush.bf16.msra.mxu0 0
      %1659 = vmatpush.bf16.msra.mxu0 0
      %1660 = vmatpush.bf16.msra.mxu0 0
      %1661 = vmatpush.bf16.msra.mxu0 0
      %1662 = vmatpush.bf16.msra.mxu0 0
      %1663 = vmatpush.bf16.msra.mxu0 0
      %1664 = vmatpush.bf16.msra.mxu0 0
      %1665 = vmatpush.bf16.msra.mxu0 %v1634
      %1666 = vmatmul.bf16.gmra.mxu0 %v1625
      %v1667 = vpop.f32.mrf.mxu0
      %v1668 = vadd.f32 0.0, %v1667
      %v1669 = vpop.f32.mrf.mxu0
      %v1670 = vadd.f32 0.0, %v1669
      %1671 = vmatmul.bf16.gmra.mxu0 %v1628
      %v1672 = vpop.f32.mrf.mxu0
      %v1673 = vadd.f32 0.0, %v1672
      %v1674 = vpop.f32.mrf.mxu0
      %v1675 = vadd.f32 0.0, %v1674
      %1676 = vdwg.mxu0
      %1677 = vmatpush.bf16.msra.mxu0 0
      %1678 = vmatpush.bf16.msra.mxu0 0
      %1679 = vmatpush.bf16.msra.mxu0 0
      %1680 = vmatpush.bf16.msra.mxu0 0
      %1681 = vmatpush.bf16.msra.mxu0 0
      %1682 = vmatpush.bf16.msra.mxu0 0
      %1683 = vmatpush.bf16.msra.mxu0 0
      %1684 = vmatpush.bf16.msra.mxu0 %v1637
      %1685 = vmatmul.bf16.gmra.mxu0 %v1625
      %v1686 = vpop.f32.mrf.mxu0
      %v1687 = vadd.f32 0.0, %v1686
      %v1688 = vpop.f32.mrf.mxu0
      %v1689 = vadd.f32 0.0, %v1688
      %1690 = vmatmul.bf16.gmra.mxu0 %v1628
      %v1691 = vpop.f32.mrf.mxu0
      %v1692 = vadd.f32 0.0, %v1691
      %v1693 = vpop.f32.mrf.mxu0
      %v1694 = vadd.f32 0.0, %v1693
      %1695 = vdwg.mxu0
      %v1696 = vadd.f32 %v1589, %v1649
      %v1697 = vadd.f32 %v1590, %v1668
      %v1698 = vadd.f32 %v1591, %v1687
      %v1699 = vadd.f32 %v1592, %v1651
      %v1700 = vadd.f32 %v1593, %v1670
      %v1701 = vadd.f32 %v1594, %v1689
      %v1702 = vadd.f32 %v1595, %v1654
      %v1703 = vadd.f32 %v1596, %v1673
      %v1704 = vadd.f32 %v1597, %v1692
      %v1705 = vadd.f32 %v1598, %v1656
      %v1706 = vadd.f32 %v1599, %v1675
      %v1707 = vadd.f32 %v1600, %v1694
      %v1708 = vld [vmem:[%s690] sm:$0xf]
      %v1709 = vld [vmem:[%s690 + $0x4] sm:$0xf]
      %v1710 = vld [vmem:[%s690 + $0x8] sm:$0xf]
      %v1711 = vld [vmem:[%s690 + $0xc] sm:$0xf]
      %v1716 = vunpack.c.l.b16 %v1708
      %v1717 = vunpack.c.l.b16 %v1709
      %v1718 = vunpack.c.l.b16 %v1710
      %v1719 = vunpack.c.l.b16 %v1711
      %v1720 = vpack.c.b16 %v1717, %v1716
      %v1721 = vpack.c.b16 %v1719, %v1718
      %1722 = vrot.lane.b32.xlu0 %v1212, 76
      %v1723 = vpop.permute.xlu0 %1722
      %1724 = vrot.lane.b32.xlu0 %v1213, 76
      %v1725 = vpop.permute.xlu0 %1724
      %1726 = vrot.lane.b32.xlu0 %v1214, 76
      %v1727 = vpop.permute.xlu0 %1726
      %vm1728 = vcmask 621568
      %v1729 = vsel %vm1728, %v1723, %v1725
      %v1730 = vsel %vm1728, %v1725, %v1727
      %v1732 = vsel %vm210, %v1720, 0
      %v1735 = vsel %vm210, %v1721, 0
      %v1738 = vsel %vm217, %v1729, 0
      %v1741 = vsel %vm217, %v1730, 0
      %v1744 = vsel %vm217, %v1727, 0
      %1746 = vmatpush.bf16.msra.mxu0 0
      %1747 = vmatpush.bf16.msra.mxu0 0
      %1748 = vmatpush.bf16.msra.mxu0 0
      %1749 = vmatpush.bf16.msra.mxu0 0
      %1750 = vmatpush.bf16.msra.mxu0 0
      %1751 = vmatpush.bf16.msra.mxu0 0
      %1752 = vmatpush.bf16.msra.mxu0 0
      %1753 = vmatpush.bf16.msra.mxu0 %v1738
      %1754 = vmatmul.bf16.gmra.mxu0 %v1732
      %v1755 = vpop.f32.mrf.mxu0
      %v1756 = vadd.f32 0.0, %v1755
      %v1757 = vpop.f32.mrf.mxu0
      %v1758 = vadd.f32 0.0, %v1757
      %1759 = vmatmul.bf16.gmra.mxu0 %v1735
      %v1760 = vpop.f32.mrf.mxu0
      %v1761 = vadd.f32 0.0, %v1760
      %v1762 = vpop.f32.mrf.mxu0
      %v1763 = vadd.f32 0.0, %v1762
      %1764 = vdwg.mxu0
      %1765 = vmatpush.bf16.msra.mxu0 0
      %1766 = vmatpush.bf16.msra.mxu0 0
      %1767 = vmatpush.bf16.msra.mxu0 0
      %1768 = vmatpush.bf16.msra.mxu0 0
      %1769 = vmatpush.bf16.msra.mxu0 0
      %1770 = vmatpush.bf16.msra.mxu0 0
      %1771 = vmatpush.bf16.msra.mxu0 0
      %1772 = vmatpush.bf16.msra.mxu0 %v1741
      %1773 = vmatmul.bf16.gmra.mxu0 %v1732
      %v1774 = vpop.f32.mrf.mxu0
      %v1775 = vadd.f32 0.0, %v1774
      %v1776 = vpop.f32.mrf.mxu0
      %v1777 = vadd.f32 0.0, %v1776
      %1778 = vmatmul.bf16.gmra.mxu0 %v1735
      %v1779 = vpop.f32.mrf.mxu0
      %v1780 = vadd.f32 0.0, %v1779
      %v1781 = vpop.f32.mrf.mxu0
      %v1782 = vadd.f32 0.0, %v1781
      %1783 = vdwg.mxu0
      %1784 = vmatpush.bf16.msra.mxu0 0
      %1785 = vmatpush.bf16.msra.mxu0 0
      %1786 = vmatpush.bf16.msra.mxu0 0
      %1787 = vmatpush.bf16.msra.mxu0 0
      %1788 = vmatpush.bf16.msra.mxu0 0
      %1789 = vmatpush.bf16.msra.mxu0 0
      %1790 = vmatpush.bf16.msra.mxu0 0
      %1791 = vmatpush.bf16.msra.mxu0 %v1744
      %1792 = vmatmul.bf16.gmra.mxu0 %v1732
      %v1793 = vpop.f32.mrf.mxu0
      %v1794 = vadd.f32 0.0, %v1793
      %v1795 = vpop.f32.mrf.mxu0
      %v1796 = vadd.f32 0.0, %v1795
      %1797 = vmatmul.bf16.gmra.mxu0 %v1735
      %v1798 = vpop.f32.mrf.mxu0
      %v1799 = vadd.f32 0.0, %v1798
      %v1800 = vpop.f32.mrf.mxu0
      %v1801 = vadd.f32 0.0, %v1800
      %1802 = vdwg.mxu0
      %v1803 = vadd.f32 %v1696, %v1756
      %v1804 = vadd.f32 %v1697, %v1775
      %v1805 = vadd.f32 %v1698, %v1794
      %v1806 = vadd.f32 %v1699, %v1758
      %v1807 = vadd.f32 %v1700, %v1777
      %v1808 = vadd.f32 %v1701, %v1796
      %v1809 = vadd.f32 %v1702, %v1761
      %v1810 = vadd.f32 %v1703, %v1780
      %v1811 = vadd.f32 %v1704, %v1799
      %v1812 = vadd.f32 %v1705, %v1763
      %v1813 = vadd.f32 %v1706, %v1782
      %v1814 = vadd.f32 %v1707, %v1801
      %v1815 = vld [vmem:[%s798] sm:$0xf]
      %v1816 = vld [vmem:[%s798 + $0x4] sm:$0xf]
      %v1817 = vld [vmem:[%s798 + $0x8] sm:$0xf]
      %v1818 = vld [vmem:[%s798 + $0xc] sm:$0xf]
      %v1823 = vunpack.c.l.b16 %v1815
      %v1824 = vunpack.c.l.b16 %v1816
      %v1825 = vunpack.c.l.b16 %v1817
      %v1826 = vunpack.c.l.b16 %v1818
      %v1827 = vpack.c.b16 %v1824, %v1823
      %v1828 = vpack.c.b16 %v1826, %v1825
      %1829 = vrot.lane.b32.xlu0 %v1212, 44
      %v1830 = vpop.permute.xlu0 %1829
      %1831 = vrot.lane.b32.xlu0 %v1213, 44
      %v1832 = vpop.permute.xlu0 %1831
      %1833 = vrot.lane.b32.xlu0 %v1214, 44
      %v1834 = vpop.permute.xlu0 %1833
      %vm1835 = vcmask 359424
      %v1836 = vsel %vm1835, %v1830, %v1832
      %v1837 = vsel %vm1835, %v1832, %v1834
      %v1839 = vsel %vm210, %v1827, 0
      %v1842 = vsel %vm210, %v1828, 0
      %v1845 = vsel %vm217, %v1836, 0
      %v1848 = vsel %vm217, %v1837, 0
      %v1851 = vsel %vm217, %v1834, 0
      %1853 = vmatpush.bf16.msra.mxu0 0
      %1854 = vmatpush.bf16.msra.mxu0 0
      %1855 = vmatpush.bf16.msra.mxu0 0
      %1856 = vmatpush.bf16.msra.mxu0 0
      %1857 = vmatpush.bf16.msra.mxu0 0
      %1858 = vmatpush.bf16.msra.mxu0 0
      %1859 = vmatpush.bf16.msra.mxu0 0
      %1860 = vmatpush.bf16.msra.mxu0 %v1845
      %1861 = vmatmul.bf16.gmra.mxu0 %v1839
      %v1862 = vpop.f32.mrf.mxu0
      %v1863 = vadd.f32 0.0, %v1862
      %v1864 = vpop.f32.mrf.mxu0
      %v1865 = vadd.f32 0.0, %v1864
      %1866 = vmatmul.bf16.gmra.mxu0 %v1842
      %v1867 = vpop.f32.mrf.mxu0
      %v1868 = vadd.f32 0.0, %v1867
      %v1869 = vpop.f32.mrf.mxu0
      %v1870 = vadd.f32 0.0, %v1869
      %1871 = vdwg.mxu0
      %1872 = vmatpush.bf16.msra.mxu0 0
      %1873 = vmatpush.bf16.msra.mxu0 0
      %1874 = vmatpush.bf16.msra.mxu0 0
      %1875 = vmatpush.bf16.msra.mxu0 0
      %1876 = vmatpush.bf16.msra.mxu0 0
      %1877 = vmatpush.bf16.msra.mxu0 0
      %1878 = vmatpush.bf16.msra.mxu0 0
      %1879 = vmatpush.bf16.msra.mxu0 %v1848
      %1880 = vmatmul.bf16.gmra.mxu0 %v1839
      %v1881 = vpop.f32.mrf.mxu0
      %v1882 = vadd.f32 0.0, %v1881
      %v1883 = vpop.f32.mrf.mxu0
      %v1884 = vadd.f32 0.0, %v1883
      %1885 = vmatmul.bf16.gmra.mxu0 %v1842
      %v1886 = vpop.f32.mrf.mxu0
      %v1887 = vadd.f32 0.0, %v1886
      %v1888 = vpop.f32.mrf.mxu0
      %v1889 = vadd.f32 0.0, %v1888
      %1890 = vdwg.mxu0
      %1891 = vmatpush.bf16.msra.mxu0 0
      %1892 = vmatpush.bf16.msra.mxu0 0
      %1893 = vmatpush.bf16.msra.mxu0 0
      %1894 = vmatpush.bf16.msra.mxu0 0
      %1895 = vmatpush.bf16.msra.mxu0 0
      %1896 = vmatpush.bf16.msra.mxu0 0
      %1897 = vmatpush.bf16.msra.mxu0 0
      %1898 = vmatpush.bf16.msra.mxu0 %v1851
      %1899 = vmatmul.bf16.gmra.mxu0 %v1839
      %v1900 = vpop.f32.mrf.mxu0
      %v1901 = vadd.f32 0.0, %v1900
      %v1902 = vpop.f32.mrf.mxu0
      %v1903 = vadd.f32 0.0, %v1902
      %1904 = vmatmul.bf16.gmra.mxu0 %v1842
      %v1905 = vpop.f32.mrf.mxu0
      %v1906 = vadd.f32 0.0, %v1905
      %v1907 = vpop.f32.mrf.mxu0
      %v1908 = vadd.f32 0.0, %v1907
      %1909 = vdwg.mxu0
      %v1910 = vadd.f32 %v1803, %v1863
      %v1911 = vadd.f32 %v1804, %v1882
      %v1912 = vadd.f32 %v1805, %v1901
      %v1913 = vadd.f32 %v1806, %v1865
      %v1914 = vadd.f32 %v1807, %v1884
      %v1915 = vadd.f32 %v1808, %v1903
      %v1916 = vadd.f32 %v1809, %v1868
      %v1917 = vadd.f32 %v1810, %v1887
      %v1918 = vadd.f32 %v1811, %v1906
      %v1919 = vadd.f32 %v1812, %v1870
      %v1920 = vadd.f32 %v1813, %v1889
      %v1921 = vadd.f32 %v1814, %v1908
      %v1922 = vld [vmem:[%s906] sm:$0xf]
      %v1923 = vld [vmem:[%s906 + $0x4] sm:$0xf]
      %v1924 = vld [vmem:[%s906 + $0x8] sm:$0xf]
      %v1925 = vld [vmem:[%s906 + $0xc] sm:$0xf]
      %v1930 = vunpack.c.l.b16 %v1922
      %v1931 = vunpack.c.l.b16 %v1923
      %v1932 = vunpack.c.l.b16 %v1924
      %v1933 = vunpack.c.l.b16 %v1925
      %v1934 = vpack.c.b16 %v1931, %v1930
      %v1935 = vpack.c.b16 %v1933, %v1932
      %1936 = vrot.lane.b32.xlu0 %v1212, 43
      %v1937 = vpop.permute.xlu0 %1936
      %1938 = vrot.lane.b32.xlu0 %v1213, 43
      %v1939 = vpop.permute.xlu0 %1938
      %1940 = vrot.lane.b32.xlu0 %v1214, 43
      %v1941 = vpop.permute.xlu0 %1940
      %vm1942 = vcmask 351232
      %v1943 = vsel %vm1942, %v1937, %v1939
      %v1944 = vsel %vm1942, %v1939, %v1941
      %v1946 = vsel %vm210, %v1934, 0
      %v1949 = vsel %vm210, %v1935, 0
      %v1952 = vsel %vm217, %v1943, 0
      %v1955 = vsel %vm217, %v1944, 0
      %v1958 = vsel %vm217, %v1941, 0
      %1960 = vmatpush.bf16.msra.mxu0 0
      %1961 = vmatpush.bf16.msra.mxu0 0
      %1962 = vmatpush.bf16.msra.mxu0 0
      %1963 = vmatpush.bf16.msra.mxu0 0
      %1964 = vmatpush.bf16.msra.mxu0 0
      %1965 = vmatpush.bf16.msra.mxu0 0
      %1966 = vmatpush.bf16.msra.mxu0 0
      %1967 = vmatpush.bf16.msra.mxu0 %v1952
      %1968 = vmatmul.bf16.gmra.mxu0 %v1946
      %v1969 = vpop.f32.mrf.mxu0
      %v1970 = vadd.f32 0.0, %v1969
      %v1971 = vpop.f32.mrf.mxu0
      %v1972 = vadd.f32 0.0, %v1971
      %1973 = vmatmul.bf16.gmra.mxu0 %v1949
      %v1974 = vpop.f32.mrf.mxu0
      %v1975 = vadd.f32 0.0, %v1974
      %v1976 = vpop.f32.mrf.mxu0
      %v1977 = vadd.f32 0.0, %v1976
      %1978 = vdwg.mxu0
      %1979 = vmatpush.bf16.msra.mxu0 0
      %1980 = vmatpush.bf16.msra.mxu0 0
      %1981 = vmatpush.bf16.msra.mxu0 0
      %1982 = vmatpush.bf16.msra.mxu0 0
      %1983 = vmatpush.bf16.msra.mxu0 0
      %1984 = vmatpush.bf16.msra.mxu0 0
      %1985 = vmatpush.bf16.msra.mxu0 0
      %1986 = vmatpush.bf16.msra.mxu0 %v1955
      %1987 = vmatmul.bf16.gmra.mxu0 %v1946
      %v1988 = vpop.f32.mrf.mxu0
      %v1989 = vadd.f32 0.0, %v1988
      %v1990 = vpop.f32.mrf.mxu0
      %v1991 = vadd.f32 0.0, %v1990
      %1992 = vmatmul.bf16.gmra.mxu0 %v1949
      %v1993 = vpop.f32.mrf.mxu0
      %v1994 = vadd.f32 0.0, %v1993
      %v1995 = vpop.f32.mrf.mxu0
      %v1996 = vadd.f32 0.0, %v1995
      %1997 = vdwg.mxu0
      %1998 = vmatpush.bf16.msra.mxu0 0
      %1999 = vmatpush.bf16.msra.mxu0 0
      %2000 = vmatpush.bf16.msra.mxu0 0
      %2001 = vmatpush.bf16.msra.mxu0 0
      %2002 = vmatpush.bf16.msra.mxu0 0
      %2003 = vmatpush.bf16.msra.mxu0 0
      %2004 = vmatpush.bf16.msra.mxu0 0
      %2005 = vmatpush.bf16.msra.mxu0 %v1958
      %2006 = vmatmul.bf16.gmra.mxu0 %v1946
      %v2007 = vpop.f32.mrf.mxu0
      %v2008 = vadd.f32 0.0, %v2007
      %v2009 = vpop.f32.mrf.mxu0
      %v2010 = vadd.f32 0.0, %v2009
      %2011 = vmatmul.bf16.gmra.mxu0 %v1949
      %v2012 = vpop.f32.mrf.mxu0
      %v2013 = vadd.f32 0.0, %v2012
      %v2014 = vpop.f32.mrf.mxu0
      %v2015 = vadd.f32 0.0, %v2014
      %2016 = vdwg.mxu0
      %v2017 = vadd.f32 %v1910, %v1970
      %v2018 = vadd.f32 %v1911, %v1989
      %v2019 = vadd.f32 %v1912, %v2008
      %v2020 = vadd.f32 %v1913, %v1972
      %v2021 = vadd.f32 %v1914, %v1991
      %v2022 = vadd.f32 %v1915, %v2010
      %v2023 = vadd.f32 %v1916, %v1975
      %v2024 = vadd.f32 %v1917, %v1994
      %v2025 = vadd.f32 %v1918, %v2013
      %v2026 = vadd.f32 %v1919, %v1977
      %v2027 = vadd.f32 %v1920, %v1996
      %v2028 = vadd.f32 %v1921, %v2015
      %v2029 = vld [vmem:[%s1014] sm:$0xf]
      %v2030 = vld [vmem:[%s1014 + $0x4] sm:$0xf]
      %v2031 = vld [vmem:[%s1014 + $0x8] sm:$0xf]
      %v2032 = vld [vmem:[%s1014 + $0xc] sm:$0xf]
      %v2037 = vunpack.c.l.b16 %v2029
      %v2038 = vunpack.c.l.b16 %v2030
      %v2039 = vunpack.c.l.b16 %v2031
      %v2040 = vunpack.c.l.b16 %v2032
      %v2041 = vpack.c.b16 %v2038, %v2037
      %v2042 = vpack.c.b16 %v2040, %v2039
      %2043 = vrot.lane.b32.xlu0 %v1212, 42
      %v2044 = vpop.permute.xlu0 %2043
      %2045 = vrot.lane.b32.xlu0 %v1213, 42
      %v2046 = vpop.permute.xlu0 %2045
      %2047 = vrot.lane.b32.xlu0 %v1214, 42
      %v2048 = vpop.permute.xlu0 %2047
      %vm2049 = vcmask 343040
      %v2050 = vsel %vm2049, %v2044, %v2046
      %v2051 = vsel %vm2049, %v2046, %v2048
      %v2053 = vsel %vm210, %v2041, 0
      %v2056 = vsel %vm210, %v2042, 0
      %v2059 = vsel %vm217, %v2050, 0
      %v2062 = vsel %vm217, %v2051, 0
      %v2065 = vsel %vm217, %v2048, 0
      %2067 = vmatpush.bf16.msra.mxu0 0
      %2068 = vmatpush.bf16.msra.mxu0 0
      %2069 = vmatpush.bf16.msra.mxu0 0
      %2070 = vmatpush.bf16.msra.mxu0 0
      %2071 = vmatpush.bf16.msra.mxu0 0
      %2072 = vmatpush.bf16.msra.mxu0 0
      %2073 = vmatpush.bf16.msra.mxu0 0
      %2074 = vmatpush.bf16.msra.mxu0 %v2059
      %2075 = vmatmul.bf16.gmra.mxu0 %v2053
      %v2076 = vpop.f32.mrf.mxu0
      %v2077 = vadd.f32 0.0, %v2076
      %v2078 = vpop.f32.mrf.mxu0
      %v2079 = vadd.f32 0.0, %v2078
      %2080 = vmatmul.bf16.gmra.mxu0 %v2056
      %v2081 = vpop.f32.mrf.mxu0
      %v2082 = vadd.f32 0.0, %v2081
      %v2083 = vpop.f32.mrf.mxu0
      %v2084 = vadd.f32 0.0, %v2083
      %2085 = vdwg.mxu0
      %2086 = vmatpush.bf16.msra.mxu0 0
      %2087 = vmatpush.bf16.msra.mxu0 0
      %2088 = vmatpush.bf16.msra.mxu0 0
      %2089 = vmatpush.bf16.msra.mxu0 0
      %2090 = vmatpush.bf16.msra.mxu0 0
      %2091 = vmatpush.bf16.msra.mxu0 0
      %2092 = vmatpush.bf16.msra.mxu0 0
      %2093 = vmatpush.bf16.msra.mxu0 %v2062
      %2094 = vmatmul.bf16.gmra.mxu0 %v2053
      %v2095 = vpop.f32.mrf.mxu0
      %v2096 = vadd.f32 0.0, %v2095
      %v2097 = vpop.f32.mrf.mxu0
      %v2098 = vadd.f32 0.0, %v2097
      %2099 = vmatmul.bf16.gmra.mxu0 %v2056
      %v2100 = vpop.f32.mrf.mxu0
      %v2101 = vadd.f32 0.0, %v2100
      %v2102 = vpop.f32.mrf.mxu0
      %v2103 = vadd.f32 0.0, %v2102
      %2104 = vdwg.mxu0
      %2105 = vmatpush.bf16.msra.mxu0 0
      %2106 = vmatpush.bf16.msra.mxu0 0
      %2107 = vmatpush.bf16.msra.mxu0 0
      %2108 = vmatpush.bf16.msra.mxu0 0
      %2109 = vmatpush.bf16.msra.mxu0 0
      %2110 = vmatpush.bf16.msra.mxu0 0
      %2111 = vmatpush.bf16.msra.mxu0 0
      %2112 = vmatpush.bf16.msra.mxu0 %v2065
      %2113 = vmatmul.bf16.gmra.mxu0 %v2053
      %v2114 = vpop.f32.mrf.mxu0
      %v2115 = vadd.f32 0.0, %v2114
      %v2116 = vpop.f32.mrf.mxu0
      %v2117 = vadd.f32 0.0, %v2116
      %2118 = vmatmul.bf16.gmra.mxu0 %v2056
      %v2119 = vpop.f32.mrf.mxu0
      %v2120 = vadd.f32 0.0, %v2119
      %v2121 = vpop.f32.mrf.mxu0
      %v2122 = vadd.f32 0.0, %v2121
      %2123 = vdwg.mxu0
      %v2124 = vadd.f32 %v2017, %v2077
      %v2125 = vadd.f32 %v2018, %v2096
      %v2126 = vadd.f32 %v2019, %v2115
      %v2127 = vadd.f32 %v2020, %v2079
      %v2128 = vadd.f32 %v2021, %v2098
      %v2129 = vadd.f32 %v2022, %v2117
      %v2130 = vadd.f32 %v2023, %v2082
      %v2131 = vadd.f32 %v2024, %v2101
      %v2132 = vadd.f32 %v2025, %v2120
      %v2133 = vadd.f32 %v2026, %v2084
      %v2134 = vadd.f32 %v2027, %v2103
      %v2135 = vadd.f32 %v2028, %v2122
      %v2136 = vld [vmem:[%s2] sm:$0xff]
      %v2137 = vld [vmem:[%s2 + $0x8] sm:$0xff]
      %v2138 = vld [vmem:[%s2 + $0x10] sm:$0xff]
      %v2139 = vld [vmem:[%s2 + $0x18] sm:$0xff]
      %2141 = vset.pattern.permute.xlu0 0
      %2142 = vperm.xlu0 %2141, %v2136
      %v2143 = vpop.permute.xlu0 %2142
      %2146 = vset.pattern.permute.xlu0 0
      %2147 = vperm.xlu0 %2146, %v2137
      %v2148 = vpop.permute.xlu0 %2147
      %2151 = vset.pattern.permute.xlu0 0
      %2152 = vperm.xlu0 %2151, %v2138
      %v2153 = vpop.permute.xlu0 %2152
      %2156 = vset.pattern.permute.xlu0 0
      %2157 = vperm.xlu0 %2156, %v2139
      %v2158 = vpop.permute.xlu0 %2157
      %v2160 = vadd.f32 %v2124, %v2143
      %v2161 = vadd.f32 %v2125, %v2143
      %v2162 = vadd.f32 %v2126, %v2143
      %v2163 = vadd.f32 %v2127, %v2148
      %v2164 = vadd.f32 %v2128, %v2148
      %v2165 = vadd.f32 %v2129, %v2148
      %v2166 = vadd.f32 %v2130, %v2153
      %v2167 = vadd.f32 %v2131, %v2153
      %v2168 = vadd.f32 %v2132, %v2153
      %v2169 = vadd.f32 %v2133, %v2158
      %v2170 = vadd.f32 %v2134, %v2158
      %v2171 = vadd.f32 %v2135, %v2158
      %v2172 = vmax.f32 %v2160, 0.0
      %v2173 = vmax.f32 %v2161, 0.0
      %v2174 = vmax.f32 %v2162, 0.0
      %v2175 = vmax.f32 %v2163, 0.0
      %v2176 = vmax.f32 %v2164, 0.0
      %v2177 = vmax.f32 %v2165, 0.0
      %v2178 = vmax.f32 %v2166, 0.0
      %v2179 = vmax.f32 %v2167, 0.0
      %v2180 = vmax.f32 %v2168, 0.0
      %v2181 = vmax.f32 %v2169, 0.0
      %v2182 = vmax.f32 %v2170, 0.0
      %v2183 = vmax.f32 %v2171, 0.0
      %v2184 = vpack.c.bf16 %v2173, %v2172
      %v2185 = vpack.c.bf16 %v2174, %v2174
      %v2186 = vpack.c.bf16 %v2176, %v2175
      %v2187 = vpack.c.bf16 %v2177, %v2177
      %v2188 = vpack.c.bf16 %v2179, %v2178
      %v2189 = vpack.c.bf16 %v2180, %v2180
      %v2190 = vpack.c.bf16 %v2182, %v2181
      %v2191 = vpack.c.bf16 %v2183, %v2183
      %2200 = vrot.lane.b32.xlu0 %v2184, 16
      %v2201 = vpop.permute.xlu0 %2200
      %2202 = vrot.lane.b32.xlu0 %v2185, 16
      %v2203 = vpop.permute.xlu0 %2202
      %2204 = vrot.lane.b32.xlu0 %v2186, 16
      %v2205 = vpop.permute.xlu0 %2204
      %2206 = vrot.lane.b32.xlu0 %v2187, 16
      %v2207 = vpop.permute.xlu0 %2206
      %2208 = vrot.lane.b32.xlu0 %v2188, 16
      %v2209 = vpop.permute.xlu0 %2208
      %2210 = vrot.lane.b32.xlu0 %v2189, 16
      %v2211 = vpop.permute.xlu0 %2210
      %2212 = vrot.lane.b32.xlu0 %v2190, 16
      %v2213 = vpop.permute.xlu0 %2212
      %2214 = vrot.lane.b32.xlu0 %v2191, 16
      %v2215 = vpop.permute.xlu0 %2214
      %v2216 = vrot.slane %v2201, 4
      %v2217 = vrot.slane %v2205, 4
      %v2218 = vrot.slane %v2209, 4
      %v2219 = vrot.slane %v2213, 4
      %vm2220 = vcmask 130048
      %v2221 = vsel %vm2220, %v2216, %v2201
      %v2222 = vsel %vm2220, %v2216, %v2203
      %v2223 = vsel %vm2220, %v2217, %v2205
      %v2224 = vsel %vm2220, %v2217, %v2207
      %v2225 = vsel %vm2220, %v2218, %v2209
      %v2226 = vsel %vm2220, %v2218, %v2211
      %v2227 = vsel %vm2220, %v2219, %v2213
      %v2228 = vsel %vm2220, %v2219, %v2215
      %vm2237 = vcmask 1043584
      %vm2238 = vcmask 1047556
      %vm2239 = vmor %vm2238, %vm2237
      %2240 = vst.msk [vmem:[%s170 + $0x8] sm:$0xff] %vm2239, %v2221
      %vm2241 = vcmask 257024
      %2242 = vst.msk [vmem:[%s170 + $0x10] sm:$0xf] %vm2241, %v2222
      %2243 = vst.msk [vmem:[%s170 + $0x2c] sm:$0xff] %vm2239, %v2223
      %2244 = vst.msk [vmem:[%s170 + $0x34] sm:$0xf] %vm2241, %v2224
      %2245 = vst.msk [vmem:[%s170 + $0x50] sm:$0xff] %vm2239, %v2225
      %2246 = vst.msk [vmem:[%s170 + $0x58] sm:$0xf] %vm2241, %v2226
      %2247 = vst.msk [vmem:[%s170 + $0x74] sm:$0xff] %vm2239, %v2227
      %2248 = vst.msk [vmem:[%s170 + $0x7c] sm:$0xf] %vm2241, %v2228
      %v2249 = vld [vmem:[%s165 + $0x10] sm:$0xff]
      %v2250 = vld [vmem:[%s165 + $0x18] sm:$0xf]
      %v2251 = vld [vmem:[%s1] sm:$0xf]
      %v2252 = vld [vmem:[%s1 + $0x4] sm:$0xf]
      %v2253 = vld [vmem:[%s1 + $0x8] sm:$0xf]
      %v2254 = vld [vmem:[%s1 + $0xc] sm:$0xf]
      %v2255 = vld [vmem:[%s178] sm:$0xf]
      %v2256 = vld [vmem:[%s178 + $0x4] sm:$0xf]
      %v2257 = vld [vmem:[%s178 + $0x8] sm:$0xf]
      %v2258 = vld [vmem:[%s178 + $0xc] sm:$0xf]
      %v2263 = vunpack.c.l.b16 %v2255
      %v2264 = vunpack.c.l.b16 %v2256
      %v2265 = vunpack.c.l.b16 %v2257
      %v2266 = vunpack.c.l.b16 %v2258
      %v2267 = vpack.c.b16 %v2264, %v2263
      %v2268 = vpack.c.b16 %v2266, %v2265
      %v2271 = vunpack.c.l.b16 %v2249
      %v2272 = vunpack.c.h.b16 %v2249
      %v2273 = vunpack.c.l.b16 %v2250
      %v2274 = vpack.c.b16 %v2271, %v2271
      %v2275 = vpack.c.b16 %v2272, %v2272
      %v2276 = vpack.c.b16 %v2273, %v2273
      %2277 = vrot.lane.b32.xlu0 %v2274, 95
      %v2278 = vpop.permute.xlu0 %2277
      %2279 = vrot.lane.b32.xlu0 %v2275, 95
      %v2280 = vpop.permute.xlu0 %2279
      %2281 = vrot.lane.b32.xlu0 %v2276, 95
      %v2282 = vpop.permute.xlu0 %2281
      %vm2283 = vcmask 777216
      %v2284 = vsel %vm2283, %v2278, %v2280
      %v2285 = vsel %vm2283, %v2280, %v2282
      %v2287 = vsel %vm210, %v2267, 0
      %v2290 = vsel %vm210, %v2268, 0
      %v2293 = vsel %vm217, %v2284, 0
      %v2296 = vsel %vm217, %v2285, 0
      %v2299 = vsel %vm217, %v2282, 0
      %2301 = vmatpush.bf16.msra.mxu0 0
      %2302 = vmatpush.bf16.msra.mxu0 0
      %2303 = vmatpush.bf16.msra.mxu0 0
      %2304 = vmatpush.bf16.msra.mxu0 0
      %2305 = vmatpush.bf16.msra.mxu0 0
      %2306 = vmatpush.bf16.msra.mxu0 0
      %2307 = vmatpush.bf16.msra.mxu0 0
      %2308 = vmatpush.bf16.msra.mxu0 %v2293
      %2309 = vmatmul.bf16.gmra.mxu0 %v2287
      %v2310 = vpop.f32.mrf.mxu0
      %v2311 = vadd.f32 0.0, %v2310
      %v2312 = vpop.f32.mrf.mxu0
      %v2313 = vadd.f32 0.0, %v2312
      %2314 = vmatmul.bf16.gmra.mxu0 %v2290
      %v2315 = vpop.f32.mrf.mxu0
      %v2316 = vadd.f32 0.0, %v2315
      %v2317 = vpop.f32.mrf.mxu0
      %v2318 = vadd.f32 0.0, %v2317
      %2319 = vdwg.mxu0
      %2320 = vmatpush.bf16.msra.mxu0 0
      %2321 = vmatpush.bf16.msra.mxu0 0
      %2322 = vmatpush.bf16.msra.mxu0 0
      %2323 = vmatpush.bf16.msra.mxu0 0
      %2324 = vmatpush.bf16.msra.mxu0 0
      %2325 = vmatpush.bf16.msra.mxu0 0
      %2326 = vmatpush.bf16.msra.mxu0 0
      %2327 = vmatpush.bf16.msra.mxu0 %v2296
      %2328 = vmatmul.bf16.gmra.mxu0 %v2287
      %v2329 = vpop.f32.mrf.mxu0
      %v2330 = vadd.f32 0.0, %v2329
      %v2331 = vpop.f32.mrf.mxu0
      %v2332 = vadd.f32 0.0, %v2331
      %2333 = vmatmul.bf16.gmra.mxu0 %v2290
      %v2334 = vpop.f32.mrf.mxu0
      %v2335 = vadd.f32 0.0, %v2334
      %v2336 = vpop.f32.mrf.mxu0
      %v2337 = vadd.f32 0.0, %v2336
      %2338 = vdwg.mxu0
      %2339 = vmatpush.bf16.msra.mxu0 0
      %2340 = vmatpush.bf16.msra.mxu0 0
      %2341 = vmatpush.bf16.msra.mxu0 0
      %2342 = vmatpush.bf16.msra.mxu0 0
      %2343 = vmatpush.bf16.msra.mxu0 0
      %2344 = vmatpush.bf16.msra.mxu0 0
      %2345 = vmatpush.bf16.msra.mxu0 0
      %2346 = vmatpush.bf16.msra.mxu0 %v2299
      %2347 = vmatmul.bf16.gmra.mxu0 %v2287
      %v2348 = vpop.f32.mrf.mxu0
      %v2349 = vadd.f32 0.0, %v2348
      %v2350 = vpop.f32.mrf.mxu0
      %v2351 = vadd.f32 0.0, %v2350
      %2352 = vmatmul.bf16.gmra.mxu0 %v2290
      %v2353 = vpop.f32.mrf.mxu0
      %v2354 = vadd.f32 0.0, %v2353
      %v2355 = vpop.f32.mrf.mxu0
      %v2356 = vadd.f32 0.0, %v2355
      %2357 = vdwg.mxu0
      %v2362 = vunpack.c.l.b16 %v2251
      %v2363 = vunpack.c.l.b16 %v2252
      %v2364 = vunpack.c.l.b16 %v2253
      %v2365 = vunpack.c.l.b16 %v2254
      %v2366 = vpack.c.b16 %v2363, %v2362
      %v2367 = vpack.c.b16 %v2365, %v2364
      %2368 = vrot.lane.b32.xlu0 %v2274, 96
      %v2369 = vpop.permute.xlu0 %2368
      %2370 = vrot.lane.b32.xlu0 %v2275, 96
      %v2371 = vpop.permute.xlu0 %2370
      %2372 = vrot.lane.b32.xlu0 %v2276, 96
      %v2373 = vpop.permute.xlu0 %2372
      %vm2374 = vcmask 785408
      %v2375 = vsel %vm2374, %v2369, %v2371
      %v2376 = vsel %vm2374, %v2371, %v2373
      %v2378 = vsel %vm210, %v2366, 0
      %v2381 = vsel %vm210, %v2367, 0
      %v2384 = vsel %vm217, %v2375, 0
      %v2387 = vsel %vm217, %v2376, 0
      %v2390 = vsel %vm217, %v2373, 0
      %2392 = vmatpush.bf16.msra.mxu0 0
      %2393 = vmatpush.bf16.msra.mxu0 0
      %2394 = vmatpush.bf16.msra.mxu0 0
      %2395 = vmatpush.bf16.msra.mxu0 0
      %2396 = vmatpush.bf16.msra.mxu0 0
      %2397 = vmatpush.bf16.msra.mxu0 0
      %2398 = vmatpush.bf16.msra.mxu0 0
      %2399 = vmatpush.bf16.msra.mxu0 %v2384
      %2400 = vmatmul.bf16.gmra.mxu0 %v2378
      %v2401 = vpop.f32.mrf.mxu0
      %v2402 = vadd.f32 %v2311, %v2401
      %v2403 = vpop.f32.mrf.mxu0
      %v2404 = vadd.f32 %v2313, %v2403
      %2405 = vmatmul.bf16.gmra.mxu0 %v2381
      %v2406 = vpop.f32.mrf.mxu0
      %v2407 = vadd.f32 %v2316, %v2406
      %v2408 = vpop.f32.mrf.mxu0
      %v2409 = vadd.f32 %v2318, %v2408
      %2410 = vdwg.mxu0
      %2411 = vmatpush.bf16.msra.mxu0 0
      %2412 = vmatpush.bf16.msra.mxu0 0
      %2413 = vmatpush.bf16.msra.mxu0 0
      %2414 = vmatpush.bf16.msra.mxu0 0
      %2415 = vmatpush.bf16.msra.mxu0 0
      %2416 = vmatpush.bf16.msra.mxu0 0
      %2417 = vmatpush.bf16.msra.mxu0 0
      %2418 = vmatpush.bf16.msra.mxu0 %v2387
      %2419 = vmatmul.bf16.gmra.mxu0 %v2378
      %v2420 = vpop.f32.mrf.mxu0
      %v2421 = vadd.f32 %v2330, %v2420
      %v2422 = vpop.f32.mrf.mxu0
      %v2423 = vadd.f32 %v2332, %v2422
      %2424 = vmatmul.bf16.gmra.mxu0 %v2381
      %v2425 = vpop.f32.mrf.mxu0
      %v2426 = vadd.f32 %v2335, %v2425
      %v2427 = vpop.f32.mrf.mxu0
      %v2428 = vadd.f32 %v2337, %v2427
      %2429 = vdwg.mxu0
      %2430 = vmatpush.bf16.msra.mxu0 0
      %2431 = vmatpush.bf16.msra.mxu0 0
      %2432 = vmatpush.bf16.msra.mxu0 0
      %2433 = vmatpush.bf16.msra.mxu0 0
      %2434 = vmatpush.bf16.msra.mxu0 0
      %2435 = vmatpush.bf16.msra.mxu0 0
      %2436 = vmatpush.bf16.msra.mxu0 0
      %2437 = vmatpush.bf16.msra.mxu0 %v2390
      %2438 = vmatmul.bf16.gmra.mxu0 %v2378
      %v2439 = vpop.f32.mrf.mxu0
      %v2440 = vadd.f32 %v2349, %v2439
      %v2441 = vpop.f32.mrf.mxu0
      %v2442 = vadd.f32 %v2351, %v2441
      %2443 = vmatmul.bf16.gmra.mxu0 %v2381
      %v2444 = vpop.f32.mrf.mxu0
      %v2445 = vadd.f32 %v2354, %v2444
      %v2446 = vpop.f32.mrf.mxu0
      %v2447 = vadd.f32 %v2356, %v2446
      %2448 = vdwg.mxu0
      %v2449 = vld [vmem:[%s366] sm:$0xf]
      %v2450 = vld [vmem:[%s366 + $0x4] sm:$0xf]
      %v2451 = vld [vmem:[%s366 + $0x8] sm:$0xf]
      %v2452 = vld [vmem:[%s366 + $0xc] sm:$0xf]
      %v2457 = vunpack.c.l.b16 %v2449
      %v2458 = vunpack.c.l.b16 %v2450
      %v2459 = vunpack.c.l.b16 %v2451
      %v2460 = vunpack.c.l.b16 %v2452
      %v2461 = vpack.c.b16 %v2458, %v2457
      %v2462 = vpack.c.b16 %v2460, %v2459
      %2463 = vrot.lane.b32.xlu0 %v2274, 94
      %v2464 = vpop.permute.xlu0 %2463
      %2465 = vrot.lane.b32.xlu0 %v2275, 94
      %v2466 = vpop.permute.xlu0 %2465
      %2467 = vrot.lane.b32.xlu0 %v2276, 94
      %v2468 = vpop.permute.xlu0 %2467
      %v2469 = vsel %vm495, %v2464, %v2466
      %v2470 = vsel %vm495, %v2466, %v2468
      %v2472 = vsel %vm210, %v2461, 0
      %v2475 = vsel %vm210, %v2462, 0
      %v2478 = vsel %vm217, %v2469, 0
      %v2481 = vsel %vm217, %v2470, 0
      %v2484 = vsel %vm217, %v2468, 0
      %2486 = vmatpush.bf16.msra.mxu0 0
      %2487 = vmatpush.bf16.msra.mxu0 0
      %2488 = vmatpush.bf16.msra.mxu0 0
      %2489 = vmatpush.bf16.msra.mxu0 0
      %2490 = vmatpush.bf16.msra.mxu0 0
      %2491 = vmatpush.bf16.msra.mxu0 0
      %2492 = vmatpush.bf16.msra.mxu0 0
      %2493 = vmatpush.bf16.msra.mxu0 %v2478
      %2494 = vmatmul.bf16.gmra.mxu0 %v2472
      %v2495 = vpop.f32.mrf.mxu0
      %v2496 = vadd.f32 0.0, %v2495
      %v2497 = vpop.f32.mrf.mxu0
      %v2498 = vadd.f32 0.0, %v2497
      %2499 = vmatmul.bf16.gmra.mxu0 %v2475
      %v2500 = vpop.f32.mrf.mxu0
      %v2501 = vadd.f32 0.0, %v2500
      %v2502 = vpop.f32.mrf.mxu0
      %v2503 = vadd.f32 0.0, %v2502
      %2504 = vdwg.mxu0
      %2505 = vmatpush.bf16.msra.mxu0 0
      %2506 = vmatpush.bf16.msra.mxu0 0
      %2507 = vmatpush.bf16.msra.mxu0 0
      %2508 = vmatpush.bf16.msra.mxu0 0
      %2509 = vmatpush.bf16.msra.mxu0 0
      %2510 = vmatpush.bf16.msra.mxu0 0
      %2511 = vmatpush.bf16.msra.mxu0 0
      %2512 = vmatpush.bf16.msra.mxu0 %v2481
      %2513 = vmatmul.bf16.gmra.mxu0 %v2472
      %v2514 = vpop.f32.mrf.mxu0
      %v2515 = vadd.f32 0.0, %v2514
      %v2516 = vpop.f32.mrf.mxu0
      %v2517 = vadd.f32 0.0, %v2516
      %2518 = vmatmul.bf16.gmra.mxu0 %v2475
      %v2519 = vpop.f32.mrf.mxu0
      %v2520 = vadd.f32 0.0, %v2519
      %v2521 = vpop.f32.mrf.mxu0
      %v2522 = vadd.f32 0.0, %v2521
      %2523 = vdwg.mxu0
      %2524 = vmatpush.bf16.msra.mxu0 0
      %2525 = vmatpush.bf16.msra.mxu0 0
      %2526 = vmatpush.bf16.msra.mxu0 0
      %2527 = vmatpush.bf16.msra.mxu0 0
      %2528 = vmatpush.bf16.msra.mxu0 0
      %2529 = vmatpush.bf16.msra.mxu0 0
      %2530 = vmatpush.bf16.msra.mxu0 0
      %2531 = vmatpush.bf16.msra.mxu0 %v2484
      %2532 = vmatmul.bf16.gmra.mxu0 %v2472
      %v2533 = vpop.f32.mrf.mxu0
      %v2534 = vadd.f32 0.0, %v2533
      %v2535 = vpop.f32.mrf.mxu0
      %v2536 = vadd.f32 0.0, %v2535
      %2537 = vmatmul.bf16.gmra.mxu0 %v2475
      %v2538 = vpop.f32.mrf.mxu0
      %v2539 = vadd.f32 0.0, %v2538
      %v2540 = vpop.f32.mrf.mxu0
      %v2541 = vadd.f32 0.0, %v2540
      %2542 = vdwg.mxu0
      %v2543 = vadd.f32 %v2402, %v2496
      %v2544 = vadd.f32 %v2421, %v2515
      %v2545 = vadd.f32 %v2440, %v2534
      %v2546 = vadd.f32 %v2404, %v2498
      %v2547 = vadd.f32 %v2423, %v2517
      %v2548 = vadd.f32 %v2442, %v2536
      %v2549 = vadd.f32 %v2407, %v2501
      %v2550 = vadd.f32 %v2426, %v2520
      %v2551 = vadd.f32 %v2445, %v2539
      %v2552 = vadd.f32 %v2409, %v2503
      %v2553 = vadd.f32 %v2428, %v2522
      %v2554 = vadd.f32 %v2447, %v2541
      %v2555 = vld [vmem:[%s474] sm:$0xf]
      %v2556 = vld [vmem:[%s474 + $0x4] sm:$0xf]
      %v2557 = vld [vmem:[%s474 + $0x8] sm:$0xf]
      %v2558 = vld [vmem:[%s474 + $0xc] sm:$0xf]
      %v2563 = vunpack.c.l.b16 %v2555
      %v2564 = vunpack.c.l.b16 %v2556
      %v2565 = vunpack.c.l.b16 %v2557
      %v2566 = vunpack.c.l.b16 %v2558
      %v2567 = vpack.c.b16 %v2564, %v2563
      %v2568 = vpack.c.b16 %v2566, %v2565
      %2569 = vrot.lane.b32.xlu0 %v2274, 62
      %v2570 = vpop.permute.xlu0 %2569
      %2571 = vrot.lane.b32.xlu0 %v2275, 62
      %v2572 = vpop.permute.xlu0 %2571
      %2573 = vrot.lane.b32.xlu0 %v2276, 62
      %v2574 = vpop.permute.xlu0 %2573
      %vm2575 = vcmask 506880
      %v2576 = vsel %vm2575, %v2570, %v2572
      %v2577 = vsel %vm2575, %v2572, %v2574
      %v2579 = vsel %vm210, %v2567, 0
      %v2582 = vsel %vm210, %v2568, 0
      %v2585 = vsel %vm217, %v2576, 0
      %v2588 = vsel %vm217, %v2577, 0
      %v2591 = vsel %vm217, %v2574, 0
      %2593 = vmatpush.bf16.msra.mxu0 0
      %2594 = vmatpush.bf16.msra.mxu0 0
      %2595 = vmatpush.bf16.msra.mxu0 0
      %2596 = vmatpush.bf16.msra.mxu0 0
      %2597 = vmatpush.bf16.msra.mxu0 0
      %2598 = vmatpush.bf16.msra.mxu0 0
      %2599 = vmatpush.bf16.msra.mxu0 0
      %2600 = vmatpush.bf16.msra.mxu0 %v2585
      %2601 = vmatmul.bf16.gmra.mxu0 %v2579
      %v2602 = vpop.f32.mrf.mxu0
      %v2603 = vadd.f32 0.0, %v2602
      %v2604 = vpop.f32.mrf.mxu0
      %v2605 = vadd.f32 0.0, %v2604
      %2606 = vmatmul.bf16.gmra.mxu0 %v2582
      %v2607 = vpop.f32.mrf.mxu0
      %v2608 = vadd.f32 0.0, %v2607
      %v2609 = vpop.f32.mrf.mxu0
      %v2610 = vadd.f32 0.0, %v2609
      %2611 = vdwg.mxu0
      %2612 = vmatpush.bf16.msra.mxu0 0
      %2613 = vmatpush.bf16.msra.mxu0 0
      %2614 = vmatpush.bf16.msra.mxu0 0
      %2615 = vmatpush.bf16.msra.mxu0 0
      %2616 = vmatpush.bf16.msra.mxu0 0
      %2617 = vmatpush.bf16.msra.mxu0 0
      %2618 = vmatpush.bf16.msra.mxu0 0
      %2619 = vmatpush.bf16.msra.mxu0 %v2588
      %2620 = vmatmul.bf16.gmra.mxu0 %v2579
      %v2621 = vpop.f32.mrf.mxu0
      %v2622 = vadd.f32 0.0, %v2621
      %v2623 = vpop.f32.mrf.mxu0
      %v2624 = vadd.f32 0.0, %v2623
      %2625 = vmatmul.bf16.gmra.mxu0 %v2582
      %v2626 = vpop.f32.mrf.mxu0
      %v2627 = vadd.f32 0.0, %v2626
      %v2628 = vpop.f32.mrf.mxu0
      %v2629 = vadd.f32 0.0, %v2628
      %2630 = vdwg.mxu0
      %2631 = vmatpush.bf16.msra.mxu0 0
      %2632 = vmatpush.bf16.msra.mxu0 0
      %2633 = vmatpush.bf16.msra.mxu0 0
      %2634 = vmatpush.bf16.msra.mxu0 0
      %2635 = vmatpush.bf16.msra.mxu0 0
      %2636 = vmatpush.bf16.msra.mxu0 0
      %2637 = vmatpush.bf16.msra.mxu0 0
      %2638 = vmatpush.bf16.msra.mxu0 %v2591
      %2639 = vmatmul.bf16.gmra.mxu0 %v2579
      %v2640 = vpop.f32.mrf.mxu0
      %v2641 = vadd.f32 0.0, %v2640
      %v2642 = vpop.f32.mrf.mxu0
      %v2643 = vadd.f32 0.0, %v2642
      %2644 = vmatmul.bf16.gmra.mxu0 %v2582
      %v2645 = vpop.f32.mrf.mxu0
      %v2646 = vadd.f32 0.0, %v2645
      %v2647 = vpop.f32.mrf.mxu0
      %v2648 = vadd.f32 0.0, %v2647
      %2649 = vdwg.mxu0
      %v2650 = vadd.f32 %v2543, %v2603
      %v2651 = vadd.f32 %v2544, %v2622
      %v2652 = vadd.f32 %v2545, %v2641
      %v2653 = vadd.f32 %v2546, %v2605
      %v2654 = vadd.f32 %v2547, %v2624
      %v2655 = vadd.f32 %v2548, %v2643
      %v2656 = vadd.f32 %v2549, %v2608
      %v2657 = vadd.f32 %v2550, %v2627
      %v2658 = vadd.f32 %v2551, %v2646
      %v2659 = vadd.f32 %v2552, %v2610
      %v2660 = vadd.f32 %v2553, %v2629
      %v2661 = vadd.f32 %v2554, %v2648
      %v2662 = vld [vmem:[%s582] sm:$0xf]
      %v2663 = vld [vmem:[%s582 + $0x4] sm:$0xf]
      %v2664 = vld [vmem:[%s582 + $0x8] sm:$0xf]
      %v2665 = vld [vmem:[%s582 + $0xc] sm:$0xf]
      %v2670 = vunpack.c.l.b16 %v2662
      %v2671 = vunpack.c.l.b16 %v2663
      %v2672 = vunpack.c.l.b16 %v2664
      %v2673 = vunpack.c.l.b16 %v2665
      %v2674 = vpack.c.b16 %v2671, %v2670
      %v2675 = vpack.c.b16 %v2673, %v2672
      %2676 = vrot.lane.b32.xlu0 %v2274, 61
      %v2677 = vpop.permute.xlu0 %2676
      %2678 = vrot.lane.b32.xlu0 %v2275, 61
      %v2679 = vpop.permute.xlu0 %2678
      %2680 = vrot.lane.b32.xlu0 %v2276, 61
      %v2681 = vpop.permute.xlu0 %2680
      %vm2682 = vcmask 498688
      %v2683 = vsel %vm2682, %v2677, %v2679
      %v2684 = vsel %vm2682, %v2679, %v2681
      %v2686 = vsel %vm210, %v2674, 0
      %v2689 = vsel %vm210, %v2675, 0
      %v2692 = vsel %vm217, %v2683, 0
      %v2695 = vsel %vm217, %v2684, 0
      %v2698 = vsel %vm217, %v2681, 0
      %2700 = vmatpush.bf16.msra.mxu0 0
      %2701 = vmatpush.bf16.msra.mxu0 0
      %2702 = vmatpush.bf16.msra.mxu0 0
      %2703 = vmatpush.bf16.msra.mxu0 0
      %2704 = vmatpush.bf16.msra.mxu0 0
      %2705 = vmatpush.bf16.msra.mxu0 0
      %2706 = vmatpush.bf16.msra.mxu0 0
      %2707 = vmatpush.bf16.msra.mxu0 %v2692
      %2708 = vmatmul.bf16.gmra.mxu0 %v2686
      %v2709 = vpop.f32.mrf.mxu0
      %v2710 = vadd.f32 0.0, %v2709
      %v2711 = vpop.f32.mrf.mxu0
      %v2712 = vadd.f32 0.0, %v2711
      %2713 = vmatmul.bf16.gmra.mxu0 %v2689
      %v2714 = vpop.f32.mrf.mxu0
      %v2715 = vadd.f32 0.0, %v2714
      %v2716 = vpop.f32.mrf.mxu0
      %v2717 = vadd.f32 0.0, %v2716
      %2718 = vdwg.mxu0
      %2719 = vmatpush.bf16.msra.mxu0 0
      %2720 = vmatpush.bf16.msra.mxu0 0
      %2721 = vmatpush.bf16.msra.mxu0 0
      %2722 = vmatpush.bf16.msra.mxu0 0
      %2723 = vmatpush.bf16.msra.mxu0 0
      %2724 = vmatpush.bf16.msra.mxu0 0
      %2725 = vmatpush.bf16.msra.mxu0 0
      %2726 = vmatpush.bf16.msra.mxu0 %v2695
      %2727 = vmatmul.bf16.gmra.mxu0 %v2686
      %v2728 = vpop.f32.mrf.mxu0
      %v2729 = vadd.f32 0.0, %v2728
      %v2730 = vpop.f32.mrf.mxu0
      %v2731 = vadd.f32 0.0, %v2730
      %2732 = vmatmul.bf16.gmra.mxu0 %v2689
      %v2733 = vpop.f32.mrf.mxu0
      %v2734 = vadd.f32 0.0, %v2733
      %v2735 = vpop.f32.mrf.mxu0
      %v2736 = vadd.f32 0.0, %v2735
      %2737 = vdwg.mxu0
      %2738 = vmatpush.bf16.msra.mxu0 0
      %2739 = vmatpush.bf16.msra.mxu0 0
      %2740 = vmatpush.bf16.msra.mxu0 0
      %2741 = vmatpush.bf16.msra.mxu0 0
      %2742 = vmatpush.bf16.msra.mxu0 0
      %2743 = vmatpush.bf16.msra.mxu0 0
      %2744 = vmatpush.bf16.msra.mxu0 0
      %2745 = vmatpush.bf16.msra.mxu0 %v2698
      %2746 = vmatmul.bf16.gmra.mxu0 %v2686
      %v2747 = vpop.f32.mrf.mxu0
      %v2748 = vadd.f32 0.0, %v2747
      %v2749 = vpop.f32.mrf.mxu0
      %v2750 = vadd.f32 0.0, %v2749
      %2751 = vmatmul.bf16.gmra.mxu0 %v2689
      %v2752 = vpop.f32.mrf.mxu0
      %v2753 = vadd.f32 0.0, %v2752
      %v2754 = vpop.f32.mrf.mxu0
      %v2755 = vadd.f32 0.0, %v2754
      %2756 = vdwg.mxu0
      %v2757 = vadd.f32 %v2650, %v2710
      %v2758 = vadd.f32 %v2651, %v2729
      %v2759 = vadd.f32 %v2652, %v2748
      %v2760 = vadd.f32 %v2653, %v2712
      %v2761 = vadd.f32 %v2654, %v2731
      %v2762 = vadd.f32 %v2655, %v2750
      %v2763 = vadd.f32 %v2656, %v2715
      %v2764 = vadd.f32 %v2657, %v2734
      %v2765 = vadd.f32 %v2658, %v2753
      %v2766 = vadd.f32 %v2659, %v2717
      %v2767 = vadd.f32 %v2660, %v2736
      %v2768 = vadd.f32 %v2661, %v2755
      %v2769 = vld [vmem:[%s690] sm:$0xf]
      %v2770 = vld [vmem:[%s690 + $0x4] sm:$0xf]
      %v2771 = vld [vmem:[%s690 + $0x8] sm:$0xf]
      %v2772 = vld [vmem:[%s690 + $0xc] sm:$0xf]
      %v2777 = vunpack.c.l.b16 %v2769
      %v2778 = vunpack.c.l.b16 %v2770
      %v2779 = vunpack.c.l.b16 %v2771
      %v2780 = vunpack.c.l.b16 %v2772
      %v2781 = vpack.c.b16 %v2778, %v2777
      %v2782 = vpack.c.b16 %v2780, %v2779
      %2783 = vrot.lane.b32.xlu0 %v2274, 60
      %v2784 = vpop.permute.xlu0 %2783
      %2785 = vrot.lane.b32.xlu0 %v2275, 60
      %v2786 = vpop.permute.xlu0 %2785
      %2787 = vrot.lane.b32.xlu0 %v2276, 60
      %v2788 = vpop.permute.xlu0 %2787
      %v2789 = vsel %vm819, %v2784, %v2786
      %v2790 = vsel %vm819, %v2786, %v2788
      %v2792 = vsel %vm210, %v2781, 0
      %v2795 = vsel %vm210, %v2782, 0
      %v2798 = vsel %vm217, %v2789, 0
      %v2801 = vsel %vm217, %v2790, 0
      %v2804 = vsel %vm217, %v2788, 0
      %2806 = vmatpush.bf16.msra.mxu0 0
      %2807 = vmatpush.bf16.msra.mxu0 0
      %2808 = vmatpush.bf16.msra.mxu0 0
      %2809 = vmatpush.bf16.msra.mxu0 0
      %2810 = vmatpush.bf16.msra.mxu0 0
      %2811 = vmatpush.bf16.msra.mxu0 0
      %2812 = vmatpush.bf16.msra.mxu0 0
      %2813 = vmatpush.bf16.msra.mxu0 %v2798
      %2814 = vmatmul.bf16.gmra.mxu0 %v2792
      %v2815 = vpop.f32.mrf.mxu0
      %v2816 = vadd.f32 0.0, %v2815
      %v2817 = vpop.f32.mrf.mxu0
      %v2818 = vadd.f32 0.0, %v2817
      %2819 = vmatmul.bf16.gmra.mxu0 %v2795
      %v2820 = vpop.f32.mrf.mxu0
      %v2821 = vadd.f32 0.0, %v2820
      %v2822 = vpop.f32.mrf.mxu0
      %v2823 = vadd.f32 0.0, %v2822
      %2824 = vdwg.mxu0
      %2825 = vmatpush.bf16.msra.mxu0 0
      %2826 = vmatpush.bf16.msra.mxu0 0
      %2827 = vmatpush.bf16.msra.mxu0 0
      %2828 = vmatpush.bf16.msra.mxu0 0
      %2829 = vmatpush.bf16.msra.mxu0 0
      %2830 = vmatpush.bf16.msra.mxu0 0
      %2831 = vmatpush.bf16.msra.mxu0 0
      %2832 = vmatpush.bf16.msra.mxu0 %v2801
      %2833 = vmatmul.bf16.gmra.mxu0 %v2792
      %v2834 = vpop.f32.mrf.mxu0
      %v2835 = vadd.f32 0.0, %v2834
      %v2836 = vpop.f32.mrf.mxu0
      %v2837 = vadd.f32 0.0, %v2836
      %2838 = vmatmul.bf16.gmra.mxu0 %v2795
      %v2839 = vpop.f32.mrf.mxu0
      %v2840 = vadd.f32 0.0, %v2839
      %v2841 = vpop.f32.mrf.mxu0
      %v2842 = vadd.f32 0.0, %v2841
      %2843 = vdwg.mxu0
      %2844 = vmatpush.bf16.msra.mxu0 0
      %2845 = vmatpush.bf16.msra.mxu0 0
      %2846 = vmatpush.bf16.msra.mxu0 0
      %2847 = vmatpush.bf16.msra.mxu0 0
      %2848 = vmatpush.bf16.msra.mxu0 0
      %2849 = vmatpush.bf16.msra.mxu0 0
      %2850 = vmatpush.bf16.msra.mxu0 0
      %2851 = vmatpush.bf16.msra.mxu0 %v2804
      %2852 = vmatmul.bf16.gmra.mxu0 %v2792
      %v2853 = vpop.f32.mrf.mxu0
      %v2854 = vadd.f32 0.0, %v2853
      %v2855 = vpop.f32.mrf.mxu0
      %v2856 = vadd.f32 0.0, %v2855
      %2857 = vmatmul.bf16.gmra.mxu0 %v2795
      %v2858 = vpop.f32.mrf.mxu0
      %v2859 = vadd.f32 0.0, %v2858
      %v2860 = vpop.f32.mrf.mxu0
      %v2861 = vadd.f32 0.0, %v2860
      %2862 = vdwg.mxu0
      %v2863 = vadd.f32 %v2757, %v2816
      %v2864 = vadd.f32 %v2758, %v2835
      %v2865 = vadd.f32 %v2759, %v2854
      %v2866 = vadd.f32 %v2760, %v2818
      %v2867 = vadd.f32 %v2761, %v2837
      %v2868 = vadd.f32 %v2762, %v2856
      %v2869 = vadd.f32 %v2763, %v2821
      %v2870 = vadd.f32 %v2764, %v2840
      %v2871 = vadd.f32 %v2765, %v2859
      %v2872 = vadd.f32 %v2766, %v2823
      %v2873 = vadd.f32 %v2767, %v2842
      %v2874 = vadd.f32 %v2768, %v2861
      %v2875 = vld [vmem:[%s798] sm:$0xf]
      %v2876 = vld [vmem:[%s798 + $0x4] sm:$0xf]
      %v2877 = vld [vmem:[%s798 + $0x8] sm:$0xf]
      %v2878 = vld [vmem:[%s798 + $0xc] sm:$0xf]
      %v2883 = vunpack.c.l.b16 %v2875
      %v2884 = vunpack.c.l.b16 %v2876
      %v2885 = vunpack.c.l.b16 %v2877
      %v2886 = vunpack.c.l.b16 %v2878
      %v2887 = vpack.c.b16 %v2884, %v2883
      %v2888 = vpack.c.b16 %v2886, %v2885
      %2889 = vrot.lane.b32.xlu0 %v2274, 28
      %v2890 = vpop.permute.xlu0 %2889
      %2891 = vrot.lane.b32.xlu0 %v2275, 28
      %v2892 = vpop.permute.xlu0 %2891
      %2893 = vrot.lane.b32.xlu0 %v2276, 28
      %v2894 = vpop.permute.xlu0 %2893
      %vm2895 = vcmask 228352
      %v2896 = vsel %vm2895, %v2890, %v2892
      %v2897 = vsel %vm2895, %v2892, %v2894
      %v2899 = vsel %vm210, %v2887, 0
      %v2902 = vsel %vm210, %v2888, 0
      %v2905 = vsel %vm217, %v2896, 0
      %v2908 = vsel %vm217, %v2897, 0
      %v2911 = vsel %vm217, %v2894, 0
      %2913 = vmatpush.bf16.msra.mxu0 0
      %2914 = vmatpush.bf16.msra.mxu0 0
      %2915 = vmatpush.bf16.msra.mxu0 0
      %2916 = vmatpush.bf16.msra.mxu0 0
      %2917 = vmatpush.bf16.msra.mxu0 0
      %2918 = vmatpush.bf16.msra.mxu0 0
      %2919 = vmatpush.bf16.msra.mxu0 0
      %2920 = vmatpush.bf16.msra.mxu0 %v2905
      %2921 = vmatmul.bf16.gmra.mxu0 %v2899
      %v2922 = vpop.f32.mrf.mxu0
      %v2923 = vadd.f32 0.0, %v2922
      %v2924 = vpop.f32.mrf.mxu0
      %v2925 = vadd.f32 0.0, %v2924
      %2926 = vmatmul.bf16.gmra.mxu0 %v2902
      %v2927 = vpop.f32.mrf.mxu0
      %v2928 = vadd.f32 0.0, %v2927
      %v2929 = vpop.f32.mrf.mxu0
      %v2930 = vadd.f32 0.0, %v2929
      %2931 = vdwg.mxu0
      %2932 = vmatpush.bf16.msra.mxu0 0
      %2933 = vmatpush.bf16.msra.mxu0 0
      %2934 = vmatpush.bf16.msra.mxu0 0
      %2935 = vmatpush.bf16.msra.mxu0 0
      %2936 = vmatpush.bf16.msra.mxu0 0
      %2937 = vmatpush.bf16.msra.mxu0 0
      %2938 = vmatpush.bf16.msra.mxu0 0
      %2939 = vmatpush.bf16.msra.mxu0 %v2908
      %2940 = vmatmul.bf16.gmra.mxu0 %v2899
      %v2941 = vpop.f32.mrf.mxu0
      %v2942 = vadd.f32 0.0, %v2941
      %v2943 = vpop.f32.mrf.mxu0
      %v2944 = vadd.f32 0.0, %v2943
      %2945 = vmatmul.bf16.gmra.mxu0 %v2902
      %v2946 = vpop.f32.mrf.mxu0
      %v2947 = vadd.f32 0.0, %v2946
      %v2948 = vpop.f32.mrf.mxu0
      %v2949 = vadd.f32 0.0, %v2948
      %2950 = vdwg.mxu0
      %2951 = vmatpush.bf16.msra.mxu0 0
      %2952 = vmatpush.bf16.msra.mxu0 0
      %2953 = vmatpush.bf16.msra.mxu0 0
      %2954 = vmatpush.bf16.msra.mxu0 0
      %2955 = vmatpush.bf16.msra.mxu0 0
      %2956 = vmatpush.bf16.msra.mxu0 0
      %2957 = vmatpush.bf16.msra.mxu0 0
      %2958 = vmatpush.bf16.msra.mxu0 %v2911
      %2959 = vmatmul.bf16.gmra.mxu0 %v2899
      %v2960 = vpop.f32.mrf.mxu0
      %v2961 = vadd.f32 0.0, %v2960
      %v2962 = vpop.f32.mrf.mxu0
      %v2963 = vadd.f32 0.0, %v2962
      %2964 = vmatmul.bf16.gmra.mxu0 %v2902
      %v2965 = vpop.f32.mrf.mxu0
      %v2966 = vadd.f32 0.0, %v2965
      %v2967 = vpop.f32.mrf.mxu0
      %v2968 = vadd.f32 0.0, %v2967
      %2969 = vdwg.mxu0
      %v2970 = vadd.f32 %v2863, %v2923
      %v2971 = vadd.f32 %v2864, %v2942
      %v2972 = vadd.f32 %v2865, %v2961
      %v2973 = vadd.f32 %v2866, %v2925
      %v2974 = vadd.f32 %v2867, %v2944
      %v2975 = vadd.f32 %v2868, %v2963
      %v2976 = vadd.f32 %v2869, %v2928
      %v2977 = vadd.f32 %v2870, %v2947
      %v2978 = vadd.f32 %v2871, %v2966
      %v2979 = vadd.f32 %v2872, %v2930
      %v2980 = vadd.f32 %v2873, %v2949
      %v2981 = vadd.f32 %v2874, %v2968
      %v2982 = vld [vmem:[%s906] sm:$0xf]
      %v2983 = vld [vmem:[%s906 + $0x4] sm:$0xf]
      %v2984 = vld [vmem:[%s906 + $0x8] sm:$0xf]
      %v2985 = vld [vmem:[%s906 + $0xc] sm:$0xf]
      %v2990 = vunpack.c.l.b16 %v2982
      %v2991 = vunpack.c.l.b16 %v2983
      %v2992 = vunpack.c.l.b16 %v2984
      %v2993 = vunpack.c.l.b16 %v2985
      %v2994 = vpack.c.b16 %v2991, %v2990
      %v2995 = vpack.c.b16 %v2993, %v2992
      %2996 = vrot.lane.b32.xlu0 %v2274, 27
      %v2997 = vpop.permute.xlu0 %2996
      %2998 = vrot.lane.b32.xlu0 %v2275, 27
      %v2999 = vpop.permute.xlu0 %2998
      %3000 = vrot.lane.b32.xlu0 %v2276, 27
      %v3001 = vpop.permute.xlu0 %3000
      %vm3002 = vcmask 220160
      %v3003 = vsel %vm3002, %v2997, %v2999
      %v3004 = vsel %vm3002, %v2999, %v3001
      %v3006 = vsel %vm210, %v2994, 0
      %v3009 = vsel %vm210, %v2995, 0
      %v3012 = vsel %vm217, %v3003, 0
      %v3015 = vsel %vm217, %v3004, 0
      %v3018 = vsel %vm217, %v3001, 0
      %3020 = vmatpush.bf16.msra.mxu0 0
      %3021 = vmatpush.bf16.msra.mxu0 0
      %3022 = vmatpush.bf16.msra.mxu0 0
      %3023 = vmatpush.bf16.msra.mxu0 0
      %3024 = vmatpush.bf16.msra.mxu0 0
      %3025 = vmatpush.bf16.msra.mxu0 0
      %3026 = vmatpush.bf16.msra.mxu0 0
      %3027 = vmatpush.bf16.msra.mxu0 %v3012
      %3028 = vmatmul.bf16.gmra.mxu0 %v3006
      %v3029 = vpop.f32.mrf.mxu0
      %v3030 = vadd.f32 0.0, %v3029
      %v3031 = vpop.f32.mrf.mxu0
      %v3032 = vadd.f32 0.0, %v3031
      %3033 = vmatmul.bf16.gmra.mxu0 %v3009
      %v3034 = vpop.f32.mrf.mxu0
      %v3035 = vadd.f32 0.0, %v3034
      %v3036 = vpop.f32.mrf.mxu0
      %v3037 = vadd.f32 0.0, %v3036
      %3038 = vdwg.mxu0
      %3039 = vmatpush.bf16.msra.mxu0 0
      %3040 = vmatpush.bf16.msra.mxu0 0
      %3041 = vmatpush.bf16.msra.mxu0 0
      %3042 = vmatpush.bf16.msra.mxu0 0
      %3043 = vmatpush.bf16.msra.mxu0 0
      %3044 = vmatpush.bf16.msra.mxu0 0
      %3045 = vmatpush.bf16.msra.mxu0 0
      %3046 = vmatpush.bf16.msra.mxu0 %v3015
      %3047 = vmatmul.bf16.gmra.mxu0 %v3006
      %v3048 = vpop.f32.mrf.mxu0
      %v3049 = vadd.f32 0.0, %v3048
      %v3050 = vpop.f32.mrf.mxu0
      %v3051 = vadd.f32 0.0, %v3050
      %3052 = vmatmul.bf16.gmra.mxu0 %v3009
      %v3053 = vpop.f32.mrf.mxu0
      %v3054 = vadd.f32 0.0, %v3053
      %v3055 = vpop.f32.mrf.mxu0
      %v3056 = vadd.f32 0.0, %v3055
      %3057 = vdwg.mxu0
      %3058 = vmatpush.bf16.msra.mxu0 0
      %3059 = vmatpush.bf16.msra.mxu0 0
      %3060 = vmatpush.bf16.msra.mxu0 0
      %3061 = vmatpush.bf16.msra.mxu0 0
      %3062 = vmatpush.bf16.msra.mxu0 0
      %3063 = vmatpush.bf16.msra.mxu0 0
      %3064 = vmatpush.bf16.msra.mxu0 0
      %3065 = vmatpush.bf16.msra.mxu0 %v3018
      %3066 = vmatmul.bf16.gmra.mxu0 %v3006
      %v3067 = vpop.f32.mrf.mxu0
      %v3068 = vadd.f32 0.0, %v3067
      %v3069 = vpop.f32.mrf.mxu0
      %v3070 = vadd.f32 0.0, %v3069
      %3071 = vmatmul.bf16.gmra.mxu0 %v3009
      %v3072 = vpop.f32.mrf.mxu0
      %v3073 = vadd.f32 0.0, %v3072
      %v3074 = vpop.f32.mrf.mxu0
      %v3075 = vadd.f32 0.0, %v3074
      %3076 = vdwg.mxu0
      %v3077 = vadd.f32 %v2970, %v3030
      %v3078 = vadd.f32 %v2971, %v3049
      %v3079 = vadd.f32 %v2972, %v3068
      %v3080 = vadd.f32 %v2973, %v3032
      %v3081 = vadd.f32 %v2974, %v3051
      %v3082 = vadd.f32 %v2975, %v3070
      %v3083 = vadd.f32 %v2976, %v3035
      %v3084 = vadd.f32 %v2977, %v3054
      %v3085 = vadd.f32 %v2978, %v3073
      %v3086 = vadd.f32 %v2979, %v3037
      %v3087 = vadd.f32 %v2980, %v3056
      %v3088 = vadd.f32 %v2981, %v3075
      %v3089 = vld [vmem:[%s1014] sm:$0xf]
      %v3090 = vld [vmem:[%s1014 + $0x4] sm:$0xf]
      %v3091 = vld [vmem:[%s1014 + $0x8] sm:$0xf]
      %v3092 = vld [vmem:[%s1014 + $0xc] sm:$0xf]
      %v3097 = vunpack.c.l.b16 %v3089
      %v3098 = vunpack.c.l.b16 %v3090
      %v3099 = vunpack.c.l.b16 %v3091
      %v3100 = vunpack.c.l.b16 %v3092
      %v3101 = vpack.c.b16 %v3098, %v3097
      %v3102 = vpack.c.b16 %v3100, %v3099
      %3103 = vrot.lane.b32.xlu0 %v2274, 26
      %v3104 = vpop.permute.xlu0 %3103
      %3105 = vrot.lane.b32.xlu0 %v2275, 26
      %v3106 = vpop.permute.xlu0 %3105
      %3107 = vrot.lane.b32.xlu0 %v2276, 26
      %v3108 = vpop.permute.xlu0 %3107
      %vm3109 = vcmask 211968
      %v3110 = vsel %vm3109, %v3104, %v3106
      %v3111 = vsel %vm3109, %v3106, %v3108
      %v3113 = vsel %vm210, %v3101, 0
      %v3116 = vsel %vm210, %v3102, 0
      %v3119 = vsel %vm217, %v3110, 0
      %v3122 = vsel %vm217, %v3111, 0
      %v3125 = vsel %vm217, %v3108, 0
      %3127 = vmatpush.bf16.msra.mxu0 0
      %3128 = vmatpush.bf16.msra.mxu0 0
      %3129 = vmatpush.bf16.msra.mxu0 0
      %3130 = vmatpush.bf16.msra.mxu0 0
      %3131 = vmatpush.bf16.msra.mxu0 0
      %3132 = vmatpush.bf16.msra.mxu0 0
      %3133 = vmatpush.bf16.msra.mxu0 0
      %3134 = vmatpush.bf16.msra.mxu0 %v3119
      %3135 = vmatmul.bf16.gmra.mxu0 %v3113
      %v3136 = vpop.f32.mrf.mxu0
      %v3137 = vadd.f32 0.0, %v3136
      %v3138 = vpop.f32.mrf.mxu0
      %v3139 = vadd.f32 0.0, %v3138
      %3140 = vmatmul.bf16.gmra.mxu0 %v3116
      %v3141 = vpop.f32.mrf.mxu0
      %v3142 = vadd.f32 0.0, %v3141
      %v3143 = vpop.f32.mrf.mxu0
      %v3144 = vadd.f32 0.0, %v3143
      %3145 = vdwg.mxu0
      %3146 = vmatpush.bf16.msra.mxu0 0
      %3147 = vmatpush.bf16.msra.mxu0 0
      %3148 = vmatpush.bf16.msra.mxu0 0
      %3149 = vmatpush.bf16.msra.mxu0 0
      %3150 = vmatpush.bf16.msra.mxu0 0
      %3151 = vmatpush.bf16.msra.mxu0 0
      %3152 = vmatpush.bf16.msra.mxu0 0
      %3153 = vmatpush.bf16.msra.mxu0 %v3122
      %3154 = vmatmul.bf16.gmra.mxu0 %v3113
      %v3155 = vpop.f32.mrf.mxu0
      %v3156 = vadd.f32 0.0, %v3155
      %v3157 = vpop.f32.mrf.mxu0
      %v3158 = vadd.f32 0.0, %v3157
      %3159 = vmatmul.bf16.gmra.mxu0 %v3116
      %v3160 = vpop.f32.mrf.mxu0
      %v3161 = vadd.f32 0.0, %v3160
      %v3162 = vpop.f32.mrf.mxu0
      %v3163 = vadd.f32 0.0, %v3162
      %3164 = vdwg.mxu0
      %3165 = vmatpush.bf16.msra.mxu0 0
      %3166 = vmatpush.bf16.msra.mxu0 0
      %3167 = vmatpush.bf16.msra.mxu0 0
      %3168 = vmatpush.bf16.msra.mxu0 0
      %3169 = vmatpush.bf16.msra.mxu0 0
      %3170 = vmatpush.bf16.msra.mxu0 0
      %3171 = vmatpush.bf16.msra.mxu0 0
      %3172 = vmatpush.bf16.msra.mxu0 %v3125
      %3173 = vmatmul.bf16.gmra.mxu0 %v3113
      %v3174 = vpop.f32.mrf.mxu0
      %v3175 = vadd.f32 0.0, %v3174
      %v3176 = vpop.f32.mrf.mxu0
      %v3177 = vadd.f32 0.0, %v3176
      %3178 = vmatmul.bf16.gmra.mxu0 %v3116
      %v3179 = vpop.f32.mrf.mxu0
      %v3180 = vadd.f32 0.0, %v3179
      %v3181 = vpop.f32.mrf.mxu0
      %v3182 = vadd.f32 0.0, %v3181
      %3183 = vdwg.mxu0
      %v3184 = vadd.f32 %v3077, %v3137
      %v3185 = vadd.f32 %v3078, %v3156
      %v3186 = vadd.f32 %v3079, %v3175
      %v3187 = vadd.f32 %v3080, %v3139
      %v3188 = vadd.f32 %v3081, %v3158
      %v3189 = vadd.f32 %v3082, %v3177
      %v3190 = vadd.f32 %v3083, %v3142
      %v3191 = vadd.f32 %v3084, %v3161
      %v3192 = vadd.f32 %v3085, %v3180
      %v3193 = vadd.f32 %v3086, %v3144
      %v3194 = vadd.f32 %v3087, %v3163
      %v3195 = vadd.f32 %v3088, %v3182
      %v3196 = vld [vmem:[%s2] sm:$0xff]
      %v3197 = vld [vmem:[%s2 + $0x8] sm:$0xff]
      %v3198 = vld [vmem:[%s2 + $0x10] sm:$0xff]
      %v3199 = vld [vmem:[%s2 + $0x18] sm:$0xff]
      %3201 = vset.pattern.permute.xlu0 0
      %3202 = vperm.xlu0 %3201, %v3196
      %v3203 = vpop.permute.xlu0 %3202
      %3206 = vset.pattern.permute.xlu0 0
      %3207 = vperm.xlu0 %3206, %v3197
      %v3208 = vpop.permute.xlu0 %3207
      %3211 = vset.pattern.permute.xlu0 0
      %3212 = vperm.xlu0 %3211, %v3198
      %v3213 = vpop.permute.xlu0 %3212
      %3216 = vset.pattern.permute.xlu0 0
      %3217 = vperm.xlu0 %3216, %v3199
      %v3218 = vpop.permute.xlu0 %3217
      %v3220 = vadd.f32 %v3184, %v3203
      %v3221 = vadd.f32 %v3185, %v3203
      %v3222 = vadd.f32 %v3186, %v3203
      %v3223 = vadd.f32 %v3187, %v3208
      %v3224 = vadd.f32 %v3188, %v3208
      %v3225 = vadd.f32 %v3189, %v3208
      %v3226 = vadd.f32 %v3190, %v3213
      %v3227 = vadd.f32 %v3191, %v3213
      %v3228 = vadd.f32 %v3192, %v3213
      %v3229 = vadd.f32 %v3193, %v3218
      %v3230 = vadd.f32 %v3194, %v3218
      %v3231 = vadd.f32 %v3195, %v3218
      %v3232 = vmax.f32 %v3220, 0.0
      %v3233 = vmax.f32 %v3221, 0.0
      %v3234 = vmax.f32 %v3222, 0.0
      %v3235 = vmax.f32 %v3223, 0.0
      %v3236 = vmax.f32 %v3224, 0.0
      %v3237 = vmax.f32 %v3225, 0.0
      %v3238 = vmax.f32 %v3226, 0.0
      %v3239 = vmax.f32 %v3227, 0.0
      %v3240 = vmax.f32 %v3228, 0.0
      %v3241 = vmax.f32 %v3229, 0.0
      %v3242 = vmax.f32 %v3230, 0.0
      %v3243 = vmax.f32 %v3231, 0.0
      %v3244 = vpack.c.bf16 %v3233, %v3232
      %v3245 = vpack.c.bf16 %v3234, %v3234
      %v3246 = vpack.c.bf16 %v3236, %v3235
      %v3247 = vpack.c.bf16 %v3237, %v3237
      %v3248 = vpack.c.bf16 %v3239, %v3238
      %v3249 = vpack.c.bf16 %v3240, %v3240
      %v3250 = vpack.c.bf16 %v3242, %v3241
      %v3251 = vpack.c.bf16 %v3243, %v3243
      %3260 = vrot.lane.b32.xlu0 %v3244, 32
      %v3261 = vpop.permute.xlu0 %3260
      %3262 = vrot.lane.b32.xlu0 %v3245, 32
      %v3263 = vpop.permute.xlu0 %3262
      %3264 = vrot.lane.b32.xlu0 %v3246, 32
      %v3265 = vpop.permute.xlu0 %3264
      %3266 = vrot.lane.b32.xlu0 %v3247, 32
      %v3267 = vpop.permute.xlu0 %3266
      %3268 = vrot.lane.b32.xlu0 %v3248, 32
      %v3269 = vpop.permute.xlu0 %3268
      %3270 = vrot.lane.b32.xlu0 %v3249, 32
      %v3271 = vpop.permute.xlu0 %3270
      %3272 = vrot.lane.b32.xlu0 %v3250, 32
      %v3273 = vpop.permute.xlu0 %3272
      %3274 = vrot.lane.b32.xlu0 %v3251, 32
      %v3275 = vpop.permute.xlu0 %3274
      %v3276 = vrot.slane %v3261, 4
      %v3277 = vrot.slane %v3265, 4
      %v3278 = vrot.slane %v3269, 4
      %v3279 = vrot.slane %v3273, 4
      %vm3280 = vcmask 261120
      %v3281 = vsel %vm3280, %v3276, %v3261
      %v3282 = vsel %vm3280, %v3276, %v3263
      %v3283 = vsel %vm3280, %v3277, %v3265
      %v3284 = vsel %vm3280, %v3277, %v3267
      %v3285 = vsel %vm3280, %v3278, %v3269
      %v3286 = vsel %vm3280, %v3278, %v3271
      %v3287 = vsel %vm3280, %v3279, %v3273
      %v3288 = vsel %vm3280, %v3279, %v3275
      %vm3297 = vcmask 1043712
      %vm3298 = vmor %vm2238, %vm3297
      %3299 = vst.msk [vmem:[%s170 + $0x10] sm:$0xff] %vm3298, %v3281
      %vm3300 = vcmask 388096
      %3301 = vst.msk [vmem:[%s170 + $0x18] sm:$0xf] %vm3300, %v3282
      %3302 = vst.msk [vmem:[%s170 + $0x34] sm:$0xff] %vm3298, %v3283
      %3303 = vst.msk [vmem:[%s170 + $0x3c] sm:$0xf] %vm3300, %v3284
      %3304 = vst.msk [vmem:[%s170 + $0x58] sm:$0xff] %vm3298, %v3285
      %3305 = vst.msk [vmem:[%s170 + $0x60] sm:$0xf] %vm3300, %v3286
      %3306 = vst.msk [vmem:[%s170 + $0x7c] sm:$0xff] %vm3298, %v3287
      %3307 = vst.msk [vmem:[%s170 + $0x84] sm:$0xf] %vm3300, %v3288
      %v3308 = vld [vmem:[%s165 + $0x18] sm:$0xff]
      %v3309 = vld [vmem:[%s165 + $0x20] sm:$0xf]
      %v3310 = vld [vmem:[%s1] sm:$0xf]
      %v3311 = vld [vmem:[%s1 + $0x4] sm:$0xf]
      %v3312 = vld [vmem:[%s1 + $0x8] sm:$0xf]
      %v3313 = vld [vmem:[%s1 + $0xc] sm:$0xf]
      %v3314 = vld [vmem:[%s178] sm:$0xf]
      %v3315 = vld [vmem:[%s178 + $0x4] sm:$0xf]
      %v3316 = vld [vmem:[%s178 + $0x8] sm:$0xf]
      %v3317 = vld [vmem:[%s178 + $0xc] sm:$0xf]
      %v3322 = vunpack.c.l.b16 %v3314
      %v3323 = vunpack.c.l.b16 %v3315
      %v3324 = vunpack.c.l.b16 %v3316
      %v3325 = vunpack.c.l.b16 %v3317
      %v3326 = vpack.c.b16 %v3323, %v3322
      %v3327 = vpack.c.b16 %v3325, %v3324
      %v3330 = vunpack.c.l.b16 %v3308
      %v3331 = vunpack.c.h.b16 %v3308
      %v3332 = vunpack.c.l.b16 %v3309
      %v3333 = vpack.c.b16 %v3330, %v3330
      %v3334 = vpack.c.b16 %v3331, %v3331
      %v3335 = vpack.c.b16 %v3332, %v3332
      %3336 = vrot.lane.b32.xlu0 %v3333, 79
      %v3337 = vpop.permute.xlu0 %3336
      %3338 = vrot.lane.b32.xlu0 %v3334, 79
      %v3339 = vpop.permute.xlu0 %3338
      %3340 = vrot.lane.b32.xlu0 %v3335, 79
      %v3341 = vpop.permute.xlu0 %3340
      %vm3342 = vcmask 646144
      %v3343 = vsel %vm3342, %v3337, %v3339
      %v3344 = vsel %vm3342, %v3339, %v3341
      %v3346 = vsel %vm210, %v3326, 0
      %v3349 = vsel %vm210, %v3327, 0
      %v3352 = vsel %vm217, %v3343, 0
      %v3355 = vsel %vm217, %v3344, 0
      %v3358 = vsel %vm217, %v3341, 0
      %3360 = vmatpush.bf16.msra.mxu0 0
      %3361 = vmatpush.bf16.msra.mxu0 0
      %3362 = vmatpush.bf16.msra.mxu0 0
      %3363 = vmatpush.bf16.msra.mxu0 0
      %3364 = vmatpush.bf16.msra.mxu0 0
      %3365 = vmatpush.bf16.msra.mxu0 0
      %3366 = vmatpush.bf16.msra.mxu0 0
      %3367 = vmatpush.bf16.msra.mxu0 %v3352
      %3368 = vmatmul.bf16.gmra.mxu0 %v3346
      %v3369 = vpop.f32.mrf.mxu0
      %v3370 = vadd.f32 0.0, %v3369
      %v3371 = vpop.f32.mrf.mxu0
      %v3372 = vadd.f32 0.0, %v3371
      %3373 = vmatmul.bf16.gmra.mxu0 %v3349
      %v3374 = vpop.f32.mrf.mxu0
      %v3375 = vadd.f32 0.0, %v3374
      %v3376 = vpop.f32.mrf.mxu0
      %v3377 = vadd.f32 0.0, %v3376
      %3378 = vdwg.mxu0
      %3379 = vmatpush.bf16.msra.mxu0 0
      %3380 = vmatpush.bf16.msra.mxu0 0
      %3381 = vmatpush.bf16.msra.mxu0 0
      %3382 = vmatpush.bf16.msra.mxu0 0
      %3383 = vmatpush.bf16.msra.mxu0 0
      %3384 = vmatpush.bf16.msra.mxu0 0
      %3385 = vmatpush.bf16.msra.mxu0 0
      %3386 = vmatpush.bf16.msra.mxu0 %v3355
      %3387 = vmatmul.bf16.gmra.mxu0 %v3346
      %v3388 = vpop.f32.mrf.mxu0
      %v3389 = vadd.f32 0.0, %v3388
      %v3390 = vpop.f32.mrf.mxu0
      %v3391 = vadd.f32 0.0, %v3390
      %3392 = vmatmul.bf16.gmra.mxu0 %v3349
      %v3393 = vpop.f32.mrf.mxu0
      %v3394 = vadd.f32 0.0, %v3393
      %v3395 = vpop.f32.mrf.mxu0
      %v3396 = vadd.f32 0.0, %v3395
      %3397 = vdwg.mxu0
      %3398 = vmatpush.bf16.msra.mxu0 0
      %3399 = vmatpush.bf16.msra.mxu0 0
      %3400 = vmatpush.bf16.msra.mxu0 0
      %3401 = vmatpush.bf16.msra.mxu0 0
      %3402 = vmatpush.bf16.msra.mxu0 0
      %3403 = vmatpush.bf16.msra.mxu0 0
      %3404 = vmatpush.bf16.msra.mxu0 0
      %3405 = vmatpush.bf16.msra.mxu0 %v3358
      %3406 = vmatmul.bf16.gmra.mxu0 %v3346
      %v3407 = vpop.f32.mrf.mxu0
      %v3408 = vadd.f32 0.0, %v3407
      %v3409 = vpop.f32.mrf.mxu0
      %v3410 = vadd.f32 0.0, %v3409
      %3411 = vmatmul.bf16.gmra.mxu0 %v3349
      %v3412 = vpop.f32.mrf.mxu0
      %v3413 = vadd.f32 0.0, %v3412
      %v3414 = vpop.f32.mrf.mxu0
      %v3415 = vadd.f32 0.0, %v3414
      %3416 = vdwg.mxu0
      %v3421 = vunpack.c.l.b16 %v3310
      %v3422 = vunpack.c.l.b16 %v3311
      %v3423 = vunpack.c.l.b16 %v3312
      %v3424 = vunpack.c.l.b16 %v3313
      %v3425 = vpack.c.b16 %v3422, %v3421
      %v3426 = vpack.c.b16 %v3424, %v3423
      %3427 = vrot.lane.b32.xlu0 %v3333, 80
      %v3428 = vpop.permute.xlu0 %3427
      %3429 = vrot.lane.b32.xlu0 %v3334, 80
      %v3430 = vpop.permute.xlu0 %3429
      %3431 = vrot.lane.b32.xlu0 %v3335, 80
      %v3432 = vpop.permute.xlu0 %3431
      %vm3433 = vcmask 654336
      %v3434 = vsel %vm3433, %v3428, %v3430
      %v3435 = vsel %vm3433, %v3430, %v3432
      %v3437 = vsel %vm210, %v3425, 0
      %v3440 = vsel %vm210, %v3426, 0
      %v3443 = vsel %vm217, %v3434, 0
      %v3446 = vsel %vm217, %v3435, 0
      %v3449 = vsel %vm217, %v3432, 0
      %3451 = vmatpush.bf16.msra.mxu0 0
      %3452 = vmatpush.bf16.msra.mxu0 0
      %3453 = vmatpush.bf16.msra.mxu0 0
      %3454 = vmatpush.bf16.msra.mxu0 0
      %3455 = vmatpush.bf16.msra.mxu0 0
      %3456 = vmatpush.bf16.msra.mxu0 0
      %3457 = vmatpush.bf16.msra.mxu0 0
      %3458 = vmatpush.bf16.msra.mxu0 %v3443
      %3459 = vmatmul.bf16.gmra.mxu0 %v3437
      %v3460 = vpop.f32.mrf.mxu0
      %v3461 = vadd.f32 %v3370, %v3460
      %v3462 = vpop.f32.mrf.mxu0
      %v3463 = vadd.f32 %v3372, %v3462
      %3464 = vmatmul.bf16.gmra.mxu0 %v3440
      %v3465 = vpop.f32.mrf.mxu0
      %v3466 = vadd.f32 %v3375, %v3465
      %v3467 = vpop.f32.mrf.mxu0
      %v3468 = vadd.f32 %v3377, %v3467
      %3469 = vdwg.mxu0
      %3470 = vmatpush.bf16.msra.mxu0 0
      %3471 = vmatpush.bf16.msra.mxu0 0
      %3472 = vmatpush.bf16.msra.mxu0 0
      %3473 = vmatpush.bf16.msra.mxu0 0
      %3474 = vmatpush.bf16.msra.mxu0 0
      %3475 = vmatpush.bf16.msra.mxu0 0
      %3476 = vmatpush.bf16.msra.mxu0 0
      %3477 = vmatpush.bf16.msra.mxu0 %v3446
      %3478 = vmatmul.bf16.gmra.mxu0 %v3437
      %v3479 = vpop.f32.mrf.mxu0
      %v3480 = vadd.f32 %v3389, %v3479
      %v3481 = vpop.f32.mrf.mxu0
      %v3482 = vadd.f32 %v3391, %v3481
      %3483 = vmatmul.bf16.gmra.mxu0 %v3440
      %v3484 = vpop.f32.mrf.mxu0
      %v3485 = vadd.f32 %v3394, %v3484
      %v3486 = vpop.f32.mrf.mxu0
      %v3487 = vadd.f32 %v3396, %v3486
      %3488 = vdwg.mxu0
      %3489 = vmatpush.bf16.msra.mxu0 0
      %3490 = vmatpush.bf16.msra.mxu0 0
      %3491 = vmatpush.bf16.msra.mxu0 0
      %3492 = vmatpush.bf16.msra.mxu0 0
      %3493 = vmatpush.bf16.msra.mxu0 0
      %3494 = vmatpush.bf16.msra.mxu0 0
      %3495 = vmatpush.bf16.msra.mxu0 0
      %3496 = vmatpush.bf16.msra.mxu0 %v3449
      %3497 = vmatmul.bf16.gmra.mxu0 %v3437
      %v3498 = vpop.f32.mrf.mxu0
      %v3499 = vadd.f32 %v3408, %v3498
      %v3500 = vpop.f32.mrf.mxu0
      %v3501 = vadd.f32 %v3410, %v3500
      %3502 = vmatmul.bf16.gmra.mxu0 %v3440
      %v3503 = vpop.f32.mrf.mxu0
      %v3504 = vadd.f32 %v3413, %v3503
      %v3505 = vpop.f32.mrf.mxu0
      %v3506 = vadd.f32 %v3415, %v3505
      %3507 = vdwg.mxu0
      %v3508 = vld [vmem:[%s366] sm:$0xf]
      %v3509 = vld [vmem:[%s366 + $0x4] sm:$0xf]
      %v3510 = vld [vmem:[%s366 + $0x8] sm:$0xf]
      %v3511 = vld [vmem:[%s366 + $0xc] sm:$0xf]
      %v3516 = vunpack.c.l.b16 %v3508
      %v3517 = vunpack.c.l.b16 %v3509
      %v3518 = vunpack.c.l.b16 %v3510
      %v3519 = vunpack.c.l.b16 %v3511
      %v3520 = vpack.c.b16 %v3517, %v3516
      %v3521 = vpack.c.b16 %v3519, %v3518
      %3522 = vrot.lane.b32.xlu0 %v3333, 78
      %v3523 = vpop.permute.xlu0 %3522
      %3524 = vrot.lane.b32.xlu0 %v3334, 78
      %v3525 = vpop.permute.xlu0 %3524
      %3526 = vrot.lane.b32.xlu0 %v3335, 78
      %v3527 = vpop.permute.xlu0 %3526
      %v3528 = vsel %vm1514, %v3523, %v3525
      %v3529 = vsel %vm1514, %v3525, %v3527
      %v3531 = vsel %vm210, %v3520, 0
      %v3534 = vsel %vm210, %v3521, 0
      %v3537 = vsel %vm217, %v3528, 0
      %v3540 = vsel %vm217, %v3529, 0
      %v3543 = vsel %vm217, %v3527, 0
      %3545 = vmatpush.bf16.msra.mxu0 0
      %3546 = vmatpush.bf16.msra.mxu0 0
      %3547 = vmatpush.bf16.msra.mxu0 0
      %3548 = vmatpush.bf16.msra.mxu0 0
      %3549 = vmatpush.bf16.msra.mxu0 0
      %3550 = vmatpush.bf16.msra.mxu0 0
      %3551 = vmatpush.bf16.msra.mxu0 0
      %3552 = vmatpush.bf16.msra.mxu0 %v3537
      %3553 = vmatmul.bf16.gmra.mxu0 %v3531
      %v3554 = vpop.f32.mrf.mxu0
      %v3555 = vadd.f32 0.0, %v3554
      %v3556 = vpop.f32.mrf.mxu0
      %v3557 = vadd.f32 0.0, %v3556
      %3558 = vmatmul.bf16.gmra.mxu0 %v3534
      %v3559 = vpop.f32.mrf.mxu0
      %v3560 = vadd.f32 0.0, %v3559
      %v3561 = vpop.f32.mrf.mxu0
      %v3562 = vadd.f32 0.0, %v3561
      %3563 = vdwg.mxu0
      %3564 = vmatpush.bf16.msra.mxu0 0
      %3565 = vmatpush.bf16.msra.mxu0 0
      %3566 = vmatpush.bf16.msra.mxu0 0
      %3567 = vmatpush.bf16.msra.mxu0 0
      %3568 = vmatpush.bf16.msra.mxu0 0
      %3569 = vmatpush.bf16.msra.mxu0 0
      %3570 = vmatpush.bf16.msra.mxu0 0
      %3571 = vmatpush.bf16.msra.mxu0 %v3540
      %3572 = vmatmul.bf16.gmra.mxu0 %v3531
      %v3573 = vpop.f32.mrf.mxu0
      %v3574 = vadd.f32 0.0, %v3573
      %v3575 = vpop.f32.mrf.mxu0
      %v3576 = vadd.f32 0.0, %v3575
      %3577 = vmatmul.bf16.gmra.mxu0 %v3534
      %v3578 = vpop.f32.mrf.mxu0
      %v3579 = vadd.f32 0.0, %v3578
      %v3580 = vpop.f32.mrf.mxu0
      %v3581 = vadd.f32 0.0, %v3580
      %3582 = vdwg.mxu0
      %3583 = vmatpush.bf16.msra.mxu0 0
      %3584 = vmatpush.bf16.msra.mxu0 0
      %3585 = vmatpush.bf16.msra.mxu0 0
      %3586 = vmatpush.bf16.msra.mxu0 0
      %3587 = vmatpush.bf16.msra.mxu0 0
      %3588 = vmatpush.bf16.msra.mxu0 0
      %3589 = vmatpush.bf16.msra.mxu0 0
      %3590 = vmatpush.bf16.msra.mxu0 %v3543
      %3591 = vmatmul.bf16.gmra.mxu0 %v3531
      %v3592 = vpop.f32.mrf.mxu0
      %v3593 = vadd.f32 0.0, %v3592
      %v3594 = vpop.f32.mrf.mxu0
      %v3595 = vadd.f32 0.0, %v3594
      %3596 = vmatmul.bf16.gmra.mxu0 %v3534
      %v3597 = vpop.f32.mrf.mxu0
      %v3598 = vadd.f32 0.0, %v3597
      %v3599 = vpop.f32.mrf.mxu0
      %v3600 = vadd.f32 0.0, %v3599
      %3601 = vdwg.mxu0
      %v3602 = vadd.f32 %v3461, %v3555
      %v3603 = vadd.f32 %v3480, %v3574
      %v3604 = vadd.f32 %v3499, %v3593
      %v3605 = vadd.f32 %v3463, %v3557
      %v3606 = vadd.f32 %v3482, %v3576
      %v3607 = vadd.f32 %v3501, %v3595
      %v3608 = vadd.f32 %v3466, %v3560
      %v3609 = vadd.f32 %v3485, %v3579
      %v3610 = vadd.f32 %v3504, %v3598
      %v3611 = vadd.f32 %v3468, %v3562
      %v3612 = vadd.f32 %v3487, %v3581
      %v3613 = vadd.f32 %v3506, %v3600
      %v3614 = vld [vmem:[%s474] sm:$0xf]
      %v3615 = vld [vmem:[%s474 + $0x4] sm:$0xf]
      %v3616 = vld [vmem:[%s474 + $0x8] sm:$0xf]
      %v3617 = vld [vmem:[%s474 + $0xc] sm:$0xf]
      %v3622 = vunpack.c.l.b16 %v3614
      %v3623 = vunpack.c.l.b16 %v3615
      %v3624 = vunpack.c.l.b16 %v3616
      %v3625 = vunpack.c.l.b16 %v3617
      %v3626 = vpack.c.b16 %v3623, %v3622
      %v3627 = vpack.c.b16 %v3625, %v3624
      %3628 = vrot.lane.b32.xlu0 %v3333, 46
      %v3629 = vpop.permute.xlu0 %3628
      %3630 = vrot.lane.b32.xlu0 %v3334, 46
      %v3631 = vpop.permute.xlu0 %3630
      %3632 = vrot.lane.b32.xlu0 %v3335, 46
      %v3633 = vpop.permute.xlu0 %3632
      %vm3634 = vcmask 375808
      %v3635 = vsel %vm3634, %v3629, %v3631
      %v3636 = vsel %vm3634, %v3631, %v3633
      %v3638 = vsel %vm210, %v3626, 0
      %v3641 = vsel %vm210, %v3627, 0
      %v3644 = vsel %vm217, %v3635, 0
      %v3647 = vsel %vm217, %v3636, 0
      %v3650 = vsel %vm217, %v3633, 0
      %3652 = vmatpush.bf16.msra.mxu0 0
      %3653 = vmatpush.bf16.msra.mxu0 0
      %3654 = vmatpush.bf16.msra.mxu0 0
      %3655 = vmatpush.bf16.msra.mxu0 0
      %3656 = vmatpush.bf16.msra.mxu0 0
      %3657 = vmatpush.bf16.msra.mxu0 0
      %3658 = vmatpush.bf16.msra.mxu0 0
      %3659 = vmatpush.bf16.msra.mxu0 %v3644
      %3660 = vmatmul.bf16.gmra.mxu0 %v3638
      %v3661 = vpop.f32.mrf.mxu0
      %v3662 = vadd.f32 0.0, %v3661
      %v3663 = vpop.f32.mrf.mxu0
      %v3664 = vadd.f32 0.0, %v3663
      %3665 = vmatmul.bf16.gmra.mxu0 %v3641
      %v3666 = vpop.f32.mrf.mxu0
      %v3667 = vadd.f32 0.0, %v3666
      %v3668 = vpop.f32.mrf.mxu0
      %v3669 = vadd.f32 0.0, %v3668
      %3670 = vdwg.mxu0
      %3671 = vmatpush.bf16.msra.mxu0 0
      %3672 = vmatpush.bf16.msra.mxu0 0
      %3673 = vmatpush.bf16.msra.mxu0 0
      %3674 = vmatpush.bf16.msra.mxu0 0
      %3675 = vmatpush.bf16.msra.mxu0 0
      %3676 = vmatpush.bf16.msra.mxu0 0
      %3677 = vmatpush.bf16.msra.mxu0 0
      %3678 = vmatpush.bf16.msra.mxu0 %v3647
      %3679 = vmatmul.bf16.gmra.mxu0 %v3638
      %v3680 = vpop.f32.mrf.mxu0
      %v3681 = vadd.f32 0.0, %v3680
      %v3682 = vpop.f32.mrf.mxu0
      %v3683 = vadd.f32 0.0, %v3682
      %3684 = vmatmul.bf16.gmra.mxu0 %v3641
      %v3685 = vpop.f32.mrf.mxu0
      %v3686 = vadd.f32 0.0, %v3685
      %v3687 = vpop.f32.mrf.mxu0
      %v3688 = vadd.f32 0.0, %v3687
      %3689 = vdwg.mxu0
      %3690 = vmatpush.bf16.msra.mxu0 0
      %3691 = vmatpush.bf16.msra.mxu0 0
      %3692 = vmatpush.bf16.msra.mxu0 0
      %3693 = vmatpush.bf16.msra.mxu0 0
      %3694 = vmatpush.bf16.msra.mxu0 0
      %3695 = vmatpush.bf16.msra.mxu0 0
      %3696 = vmatpush.bf16.msra.mxu0 0
      %3697 = vmatpush.bf16.msra.mxu0 %v3650
      %3698 = vmatmul.bf16.gmra.mxu0 %v3638
      %v3699 = vpop.f32.mrf.mxu0
      %v3700 = vadd.f32 0.0, %v3699
      %v3701 = vpop.f32.mrf.mxu0
      %v3702 = vadd.f32 0.0, %v3701
      %3703 = vmatmul.bf16.gmra.mxu0 %v3641
      %v3704 = vpop.f32.mrf.mxu0
      %v3705 = vadd.f32 0.0, %v3704
      %v3706 = vpop.f32.mrf.mxu0
      %v3707 = vadd.f32 0.0, %v3706
      %3708 = vdwg.mxu0
      %v3709 = vadd.f32 %v3602, %v3662
      %v3710 = vadd.f32 %v3603, %v3681
      %v3711 = vadd.f32 %v3604, %v3700
      %v3712 = vadd.f32 %v3605, %v3664
      %v3713 = vadd.f32 %v3606, %v3683
      %v3714 = vadd.f32 %v3607, %v3702
      %v3715 = vadd.f32 %v3608, %v3667
      %v3716 = vadd.f32 %v3609, %v3686
      %v3717 = vadd.f32 %v3610, %v3705
      %v3718 = vadd.f32 %v3611, %v3669
      %v3719 = vadd.f32 %v3612, %v3688
      %v3720 = vadd.f32 %v3613, %v3707
      %v3721 = vld [vmem:[%s582] sm:$0xf]
      %v3722 = vld [vmem:[%s582 + $0x4] sm:$0xf]
      %v3723 = vld [vmem:[%s582 + $0x8] sm:$0xf]
      %v3724 = vld [vmem:[%s582 + $0xc] sm:$0xf]
      %v3729 = vunpack.c.l.b16 %v3721
      %v3730 = vunpack.c.l.b16 %v3722
      %v3731 = vunpack.c.l.b16 %v3723
      %v3732 = vunpack.c.l.b16 %v3724
      %v3733 = vpack.c.b16 %v3730, %v3729
      %v3734 = vpack.c.b16 %v3732, %v3731
      %3735 = vrot.lane.b32.xlu0 %v3333, 45
      %v3736 = vpop.permute.xlu0 %3735
      %3737 = vrot.lane.b32.xlu0 %v3334, 45
      %v3738 = vpop.permute.xlu0 %3737
      %3739 = vrot.lane.b32.xlu0 %v3335, 45
      %v3740 = vpop.permute.xlu0 %3739
      %vm3741 = vcmask 367616
      %v3742 = vsel %vm3741, %v3736, %v3738
      %v3743 = vsel %vm3741, %v3738, %v3740
      %v3745 = vsel %vm210, %v3733, 0
      %v3748 = vsel %vm210, %v3734, 0
      %v3751 = vsel %vm217, %v3742, 0
      %v3754 = vsel %vm217, %v3743, 0
      %v3757 = vsel %vm217, %v3740, 0
      %3759 = vmatpush.bf16.msra.mxu0 0
      %3760 = vmatpush.bf16.msra.mxu0 0
      %3761 = vmatpush.bf16.msra.mxu0 0
      %3762 = vmatpush.bf16.msra.mxu0 0
      %3763 = vmatpush.bf16.msra.mxu0 0
      %3764 = vmatpush.bf16.msra.mxu0 0
      %3765 = vmatpush.bf16.msra.mxu0 0
      %3766 = vmatpush.bf16.msra.mxu0 %v3751
      %3767 = vmatmul.bf16.gmra.mxu0 %v3745
      %v3768 = vpop.f32.mrf.mxu0
      %v3769 = vadd.f32 0.0, %v3768
      %v3770 = vpop.f32.mrf.mxu0
      %v3771 = vadd.f32 0.0, %v3770
      %3772 = vmatmul.bf16.gmra.mxu0 %v3748
      %v3773 = vpop.f32.mrf.mxu0
      %v3774 = vadd.f32 0.0, %v3773
      %v3775 = vpop.f32.mrf.mxu0
      %v3776 = vadd.f32 0.0, %v3775
      %3777 = vdwg.mxu0
      %3778 = vmatpush.bf16.msra.mxu0 0
      %3779 = vmatpush.bf16.msra.mxu0 0
      %3780 = vmatpush.bf16.msra.mxu0 0
      %3781 = vmatpush.bf16.msra.mxu0 0
      %3782 = vmatpush.bf16.msra.mxu0 0
      %3783 = vmatpush.bf16.msra.mxu0 0
      %3784 = vmatpush.bf16.msra.mxu0 0
      %3785 = vmatpush.bf16.msra.mxu0 %v3754
      %3786 = vmatmul.bf16.gmra.mxu0 %v3745
      %v3787 = vpop.f32.mrf.mxu0
      %v3788 = vadd.f32 0.0, %v3787
      %v3789 = vpop.f32.mrf.mxu0
      %v3790 = vadd.f32 0.0, %v3789
      %3791 = vmatmul.bf16.gmra.mxu0 %v3748
      %v3792 = vpop.f32.mrf.mxu0
      %v3793 = vadd.f32 0.0, %v3792
      %v3794 = vpop.f32.mrf.mxu0
      %v3795 = vadd.f32 0.0, %v3794
      %3796 = vdwg.mxu0
      %3797 = vmatpush.bf16.msra.mxu0 0
      %3798 = vmatpush.bf16.msra.mxu0 0
      %3799 = vmatpush.bf16.msra.mxu0 0
      %3800 = vmatpush.bf16.msra.mxu0 0
      %3801 = vmatpush.bf16.msra.mxu0 0
      %3802 = vmatpush.bf16.msra.mxu0 0
      %3803 = vmatpush.bf16.msra.mxu0 0
      %3804 = vmatpush.bf16.msra.mxu0 %v3757
      %3805 = vmatmul.bf16.gmra.mxu0 %v3745
      %v3806 = vpop.f32.mrf.mxu0
      %v3807 = vadd.f32 0.0, %v3806
      %v3808 = vpop.f32.mrf.mxu0
      %v3809 = vadd.f32 0.0, %v3808
      %3810 = vmatmul.bf16.gmra.mxu0 %v3748
      %v3811 = vpop.f32.mrf.mxu0
      %v3812 = vadd.f32 0.0, %v3811
      %v3813 = vpop.f32.mrf.mxu0
      %v3814 = vadd.f32 0.0, %v3813
      %3815 = vdwg.mxu0
      %v3816 = vadd.f32 %v3709, %v3769
      %v3817 = vadd.f32 %v3710, %v3788
      %v3818 = vadd.f32 %v3711, %v3807
      %v3819 = vadd.f32 %v3712, %v3771
      %v3820 = vadd.f32 %v3713, %v3790
      %v3821 = vadd.f32 %v3714, %v3809
      %v3822 = vadd.f32 %v3715, %v3774
      %v3823 = vadd.f32 %v3716, %v3793
      %v3824 = vadd.f32 %v3717, %v3812
      %v3825 = vadd.f32 %v3718, %v3776
      %v3826 = vadd.f32 %v3719, %v3795
      %v3827 = vadd.f32 %v3720, %v3814
      %v3828 = vld [vmem:[%s690] sm:$0xf]
      %v3829 = vld [vmem:[%s690 + $0x4] sm:$0xf]
      %v3830 = vld [vmem:[%s690 + $0x8] sm:$0xf]
      %v3831 = vld [vmem:[%s690 + $0xc] sm:$0xf]
      %v3836 = vunpack.c.l.b16 %v3828
      %v3837 = vunpack.c.l.b16 %v3829
      %v3838 = vunpack.c.l.b16 %v3830
      %v3839 = vunpack.c.l.b16 %v3831
      %v3840 = vpack.c.b16 %v3837, %v3836
      %v3841 = vpack.c.b16 %v3839, %v3838
      %3842 = vrot.lane.b32.xlu0 %v3333, 44
      %v3843 = vpop.permute.xlu0 %3842
      %3844 = vrot.lane.b32.xlu0 %v3334, 44
      %v3845 = vpop.permute.xlu0 %3844
      %3846 = vrot.lane.b32.xlu0 %v3335, 44
      %v3847 = vpop.permute.xlu0 %3846
      %v3848 = vsel %vm1835, %v3843, %v3845
      %v3849 = vsel %vm1835, %v3845, %v3847
      %v3851 = vsel %vm210, %v3840, 0
      %v3854 = vsel %vm210, %v3841, 0
      %v3857 = vsel %vm217, %v3848, 0
      %v3860 = vsel %vm217, %v3849, 0
      %v3863 = vsel %vm217, %v3847, 0
      %3865 = vmatpush.bf16.msra.mxu0 0
      %3866 = vmatpush.bf16.msra.mxu0 0
      %3867 = vmatpush.bf16.msra.mxu0 0
      %3868 = vmatpush.bf16.msra.mxu0 0
      %3869 = vmatpush.bf16.msra.mxu0 0
      %3870 = vmatpush.bf16.msra.mxu0 0
      %3871 = vmatpush.bf16.msra.mxu0 0
      %3872 = vmatpush.bf16.msra.mxu0 %v3857
      %3873 = vmatmul.bf16.gmra.mxu0 %v3851
      %v3874 = vpop.f32.mrf.mxu0
      %v3875 = vadd.f32 0.0, %v3874
      %v3876 = vpop.f32.mrf.mxu0
      %v3877 = vadd.f32 0.0, %v3876
      %3878 = vmatmul.bf16.gmra.mxu0 %v3854
      %v3879 = vpop.f32.mrf.mxu0
      %v3880 = vadd.f32 0.0, %v3879
      %v3881 = vpop.f32.mrf.mxu0
      %v3882 = vadd.f32 0.0, %v3881
      %3883 = vdwg.mxu0
      %3884 = vmatpush.bf16.msra.mxu0 0
      %3885 = vmatpush.bf16.msra.mxu0 0
      %3886 = vmatpush.bf16.msra.mxu0 0
      %3887 = vmatpush.bf16.msra.mxu0 0
      %3888 = vmatpush.bf16.msra.mxu0 0
      %3889 = vmatpush.bf16.msra.mxu0 0
      %3890 = vmatpush.bf16.msra.mxu0 0
      %3891 = vmatpush.bf16.msra.mxu0 %v3860
      %3892 = vmatmul.bf16.gmra.mxu0 %v3851
      %v3893 = vpop.f32.mrf.mxu0
      %v3894 = vadd.f32 0.0, %v3893
      %v3895 = vpop.f32.mrf.mxu0
      %v3896 = vadd.f32 0.0, %v3895
      %3897 = vmatmul.bf16.gmra.mxu0 %v3854
      %v3898 = vpop.f32.mrf.mxu0
      %v3899 = vadd.f32 0.0, %v3898
      %v3900 = vpop.f32.mrf.mxu0
      %v3901 = vadd.f32 0.0, %v3900
      %3902 = vdwg.mxu0
      %3903 = vmatpush.bf16.msra.mxu0 0
      %3904 = vmatpush.bf16.msra.mxu0 0
      %3905 = vmatpush.bf16.msra.mxu0 0
      %3906 = vmatpush.bf16.msra.mxu0 0
      %3907 = vmatpush.bf16.msra.mxu0 0
      %3908 = vmatpush.bf16.msra.mxu0 0
      %3909 = vmatpush.bf16.msra.mxu0 0
      %3910 = vmatpush.bf16.msra.mxu0 %v3863
      %3911 = vmatmul.bf16.gmra.mxu0 %v3851
      %v3912 = vpop.f32.mrf.mxu0
      %v3913 = vadd.f32 0.0, %v3912
      %v3914 = vpop.f32.mrf.mxu0
      %v3915 = vadd.f32 0.0, %v3914
      %3916 = vmatmul.bf16.gmra.mxu0 %v3854
      %v3917 = vpop.f32.mrf.mxu0
      %v3918 = vadd.f32 0.0, %v3917
      %v3919 = vpop.f32.mrf.mxu0
      %v3920 = vadd.f32 0.0, %v3919
      %3921 = vdwg.mxu0
      %v3922 = vadd.f32 %v3816, %v3875
      %v3923 = vadd.f32 %v3817, %v3894
      %v3924 = vadd.f32 %v3818, %v3913
      %v3925 = vadd.f32 %v3819, %v3877
      %v3926 = vadd.f32 %v3820, %v3896
      %v3927 = vadd.f32 %v3821, %v3915
      %v3928 = vadd.f32 %v3822, %v3880
      %v3929 = vadd.f32 %v3823, %v3899
      %v3930 = vadd.f32 %v3824, %v3918
      %v3931 = vadd.f32 %v3825, %v3882
      %v3932 = vadd.f32 %v3826, %v3901
      %v3933 = vadd.f32 %v3827, %v3920
      %v3934 = vld [vmem:[%s165 + $0x18] sm:$0xff]
      %v3935 = vld [vmem:[%s165 + $0x20] sm:$0xff]
      %v3936 = vld [vmem:[%s798] sm:$0xf]
      %v3937 = vld [vmem:[%s798 + $0x4] sm:$0xf]
      %v3938 = vld [vmem:[%s798 + $0x8] sm:$0xf]
      %v3939 = vld [vmem:[%s798 + $0xc] sm:$0xf]
      %v3944 = vunpack.c.l.b16 %v3936
      %v3945 = vunpack.c.l.b16 %v3937
      %v3946 = vunpack.c.l.b16 %v3938
      %v3947 = vunpack.c.l.b16 %v3939
      %v3948 = vpack.c.b16 %v3945, %v3944
      %v3949 = vpack.c.b16 %v3947, %v3946
      %v3952 = vunpack.c.l.b16 %v3934
      %v3953 = vunpack.c.h.b16 %v3934
      %v3954 = vunpack.c.l.b16 %v3935
      %v3955 = vunpack.c.h.b16 %v3935
      %v3956 = vpack.c.b16 %v3952, %v3952
      %v3957 = vpack.c.b16 %v3953, %v3953
      %v3958 = vpack.c.b16 %v3954, %v3954
      %v3959 = vpack.c.b16 %v3955, %v3955
      %3960 = vrot.lane.b32.xlu0 %v3956, 12
      %v3961 = vpop.permute.xlu0 %3960
      %3962 = vrot.lane.b32.xlu0 %v3957, 12
      %v3963 = vpop.permute.xlu0 %3962
      %3964 = vrot.lane.b32.xlu0 %v3958, 12
      %v3965 = vpop.permute.xlu0 %3964
      %3966 = vrot.lane.b32.xlu0 %v3959, 12
      %v3967 = vpop.permute.xlu0 %3966
      %vm3968 = vcmask 97280
      %v3969 = vsel %vm3968, %v3961, %v3963
      %v3970 = vsel %vm3968, %v3963, %v3965
      %v3971 = vsel %vm3968, %v3965, %v3967
      %v3973 = vsel %vm210, %v3948, 0
      %v3976 = vsel %vm210, %v3949, 0
      %v3979 = vsel %vm217, %v3969, 0
      %v3982 = vsel %vm217, %v3970, 0
      %v3985 = vsel %vm217, %v3971, 0
      %3987 = vmatpush.bf16.msra.mxu0 0
      %3988 = vmatpush.bf16.msra.mxu0 0
      %3989 = vmatpush.bf16.msra.mxu0 0
      %3990 = vmatpush.bf16.msra.mxu0 0
      %3991 = vmatpush.bf16.msra.mxu0 0
      %3992 = vmatpush.bf16.msra.mxu0 0
      %3993 = vmatpush.bf16.msra.mxu0 0
      %3994 = vmatpush.bf16.msra.mxu0 %v3979
      %3995 = vmatmul.bf16.gmra.mxu0 %v3973
      %v3996 = vpop.f32.mrf.mxu0
      %v3997 = vadd.f32 0.0, %v3996
      %v3998 = vpop.f32.mrf.mxu0
      %v3999 = vadd.f32 0.0, %v3998
      %4000 = vmatmul.bf16.gmra.mxu0 %v3976
      %v4001 = vpop.f32.mrf.mxu0
      %v4002 = vadd.f32 0.0, %v4001
      %v4003 = vpop.f32.mrf.mxu0
      %v4004 = vadd.f32 0.0, %v4003
      %4005 = vdwg.mxu0
      %4006 = vmatpush.bf16.msra.mxu0 0
      %4007 = vmatpush.bf16.msra.mxu0 0
      %4008 = vmatpush.bf16.msra.mxu0 0
      %4009 = vmatpush.bf16.msra.mxu0 0
      %4010 = vmatpush.bf16.msra.mxu0 0
      %4011 = vmatpush.bf16.msra.mxu0 0
      %4012 = vmatpush.bf16.msra.mxu0 0
      %4013 = vmatpush.bf16.msra.mxu0 %v3982
      %4014 = vmatmul.bf16.gmra.mxu0 %v3973
      %v4015 = vpop.f32.mrf.mxu0
      %v4016 = vadd.f32 0.0, %v4015
      %v4017 = vpop.f32.mrf.mxu0
      %v4018 = vadd.f32 0.0, %v4017
      %4019 = vmatmul.bf16.gmra.mxu0 %v3976
      %v4020 = vpop.f32.mrf.mxu0
      %v4021 = vadd.f32 0.0, %v4020
      %v4022 = vpop.f32.mrf.mxu0
      %v4023 = vadd.f32 0.0, %v4022
      %4024 = vdwg.mxu0
      %4025 = vmatpush.bf16.msra.mxu0 0
      %4026 = vmatpush.bf16.msra.mxu0 0
      %4027 = vmatpush.bf16.msra.mxu0 0
      %4028 = vmatpush.bf16.msra.mxu0 0
      %4029 = vmatpush.bf16.msra.mxu0 0
      %4030 = vmatpush.bf16.msra.mxu0 0
      %4031 = vmatpush.bf16.msra.mxu0 0
      %4032 = vmatpush.bf16.msra.mxu0 %v3985
      %4033 = vmatmul.bf16.gmra.mxu0 %v3973
      %v4034 = vpop.f32.mrf.mxu0
      %v4035 = vadd.f32 0.0, %v4034
      %v4036 = vpop.f32.mrf.mxu0
      %v4037 = vadd.f32 0.0, %v4036
      %4038 = vmatmul.bf16.gmra.mxu0 %v3976
      %v4039 = vpop.f32.mrf.mxu0
      %v4040 = vadd.f32 0.0, %v4039
      %v4041 = vpop.f32.mrf.mxu0
      %v4042 = vadd.f32 0.0, %v4041
      %4043 = vdwg.mxu0
      %v4044 = vadd.f32 %v3922, %v3997
      %v4045 = vadd.f32 %v3923, %v4016
      %v4046 = vadd.f32 %v3924, %v4035
      %v4047 = vadd.f32 %v3925, %v3999
      %v4048 = vadd.f32 %v3926, %v4018
      %v4049 = vadd.f32 %v3927, %v4037
      %v4050 = vadd.f32 %v3928, %v4002
      %v4051 = vadd.f32 %v3929, %v4021
      %v4052 = vadd.f32 %v3930, %v4040
      %v4053 = vadd.f32 %v3931, %v4004
      %v4054 = vadd.f32 %v3932, %v4023
      %v4055 = vadd.f32 %v3933, %v4042
      %v4056 = vld [vmem:[%s906] sm:$0xf]
      %v4057 = vld [vmem:[%s906 + $0x4] sm:$0xf]
      %v4058 = vld [vmem:[%s906 + $0x8] sm:$0xf]
      %v4059 = vld [vmem:[%s906 + $0xc] sm:$0xf]
      %v4064 = vunpack.c.l.b16 %v4056
      %v4065 = vunpack.c.l.b16 %v4057
      %v4066 = vunpack.c.l.b16 %v4058
      %v4067 = vunpack.c.l.b16 %v4059
      %v4068 = vpack.c.b16 %v4065, %v4064
      %v4069 = vpack.c.b16 %v4067, %v4066
      %4070 = vrot.lane.b32.xlu0 %v3956, 11
      %v4071 = vpop.permute.xlu0 %4070
      %4072 = vrot.lane.b32.xlu0 %v3957, 11
      %v4073 = vpop.permute.xlu0 %4072
      %4074 = vrot.lane.b32.xlu0 %v3958, 11
      %v4075 = vpop.permute.xlu0 %4074
      %4076 = vrot.lane.b32.xlu0 %v3959, 11
      %v4077 = vpop.permute.xlu0 %4076
      %vm4078 = vcmask 89088
      %v4079 = vsel %vm4078, %v4071, %v4073
      %v4080 = vsel %vm4078, %v4073, %v4075
      %v4081 = vsel %vm4078, %v4075, %v4077
      %v4083 = vsel %vm210, %v4068, 0
      %v4086 = vsel %vm210, %v4069, 0
      %v4089 = vsel %vm217, %v4079, 0
      %v4092 = vsel %vm217, %v4080, 0
      %v4095 = vsel %vm217, %v4081, 0
      %4097 = vmatpush.bf16.msra.mxu0 0
      %4098 = vmatpush.bf16.msra.mxu0 0
      %4099 = vmatpush.bf16.msra.mxu0 0
      %4100 = vmatpush.bf16.msra.mxu0 0
      %4101 = vmatpush.bf16.msra.mxu0 0
      %4102 = vmatpush.bf16.msra.mxu0 0
      %4103 = vmatpush.bf16.msra.mxu0 0
      %4104 = vmatpush.bf16.msra.mxu0 %v4089
      %4105 = vmatmul.bf16.gmra.mxu0 %v4083
      %v4106 = vpop.f32.mrf.mxu0
      %v4107 = vadd.f32 0.0, %v4106
      %v4108 = vpop.f32.mrf.mxu0
      %v4109 = vadd.f32 0.0, %v4108
      %4110 = vmatmul.bf16.gmra.mxu0 %v4086
      %v4111 = vpop.f32.mrf.mxu0
      %v4112 = vadd.f32 0.0, %v4111
      %v4113 = vpop.f32.mrf.mxu0
      %v4114 = vadd.f32 0.0, %v4113
      %4115 = vdwg.mxu0
      %4116 = vmatpush.bf16.msra.mxu0 0
      %4117 = vmatpush.bf16.msra.mxu0 0
      %4118 = vmatpush.bf16.msra.mxu0 0
      %4119 = vmatpush.bf16.msra.mxu0 0
      %4120 = vmatpush.bf16.msra.mxu0 0
      %4121 = vmatpush.bf16.msra.mxu0 0
      %4122 = vmatpush.bf16.msra.mxu0 0
      %4123 = vmatpush.bf16.msra.mxu0 %v4092
      %4124 = vmatmul.bf16.gmra.mxu0 %v4083
      %v4125 = vpop.f32.mrf.mxu0
      %v4126 = vadd.f32 0.0, %v4125
      %v4127 = vpop.f32.mrf.mxu0
      %v4128 = vadd.f32 0.0, %v4127
      %4129 = vmatmul.bf16.gmra.mxu0 %v4086
      %v4130 = vpop.f32.mrf.mxu0
      %v4131 = vadd.f32 0.0, %v4130
      %v4132 = vpop.f32.mrf.mxu0
      %v4133 = vadd.f32 0.0, %v4132
      %4134 = vdwg.mxu0
      %4135 = vmatpush.bf16.msra.mxu0 0
      %4136 = vmatpush.bf16.msra.mxu0 0
      %4137 = vmatpush.bf16.msra.mxu0 0
      %4138 = vmatpush.bf16.msra.mxu0 0
      %4139 = vmatpush.bf16.msra.mxu0 0
      %4140 = vmatpush.bf16.msra.mxu0 0
      %4141 = vmatpush.bf16.msra.mxu0 0
      %4142 = vmatpush.bf16.msra.mxu0 %v4095
      %4143 = vmatmul.bf16.gmra.mxu0 %v4083
      %v4144 = vpop.f32.mrf.mxu0
      %v4145 = vadd.f32 0.0, %v4144
      %v4146 = vpop.f32.mrf.mxu0
      %v4147 = vadd.f32 0.0, %v4146
      %4148 = vmatmul.bf16.gmra.mxu0 %v4086
      %v4149 = vpop.f32.mrf.mxu0
      %v4150 = vadd.f32 0.0, %v4149
      %v4151 = vpop.f32.mrf.mxu0
      %v4152 = vadd.f32 0.0, %v4151
      %4153 = vdwg.mxu0
      %v4154 = vadd.f32 %v4044, %v4107
      %v4155 = vadd.f32 %v4045, %v4126
      %v4156 = vadd.f32 %v4046, %v4145
      %v4157 = vadd.f32 %v4047, %v4109
      %v4158 = vadd.f32 %v4048, %v4128
      %v4159 = vadd.f32 %v4049, %v4147
      %v4160 = vadd.f32 %v4050, %v4112
      %v4161 = vadd.f32 %v4051, %v4131
      %v4162 = vadd.f32 %v4052, %v4150
      %v4163 = vadd.f32 %v4053, %v4114
      %v4164 = vadd.f32 %v4054, %v4133
      %v4165 = vadd.f32 %v4055, %v4152
      %v4166 = vld [vmem:[%s1014] sm:$0xf]
      %v4167 = vld [vmem:[%s1014 + $0x4] sm:$0xf]
      %v4168 = vld [vmem:[%s1014 + $0x8] sm:$0xf]
      %v4169 = vld [vmem:[%s1014 + $0xc] sm:$0xf]
      %v4174 = vunpack.c.l.b16 %v4166
      %v4175 = vunpack.c.l.b16 %v4167
      %v4176 = vunpack.c.l.b16 %v4168
      %v4177 = vunpack.c.l.b16 %v4169
      %v4178 = vpack.c.b16 %v4175, %v4174
      %v4179 = vpack.c.b16 %v4177, %v4176
      %4180 = vrot.lane.b32.xlu0 %v3956, 10
      %v4181 = vpop.permute.xlu0 %4180
      %4182 = vrot.lane.b32.xlu0 %v3957, 10
      %v4183 = vpop.permute.xlu0 %4182
      %4184 = vrot.lane.b32.xlu0 %v3958, 10
      %v4185 = vpop.permute.xlu0 %4184
      %4186 = vrot.lane.b32.xlu0 %v3959, 10
      %v4187 = vpop.permute.xlu0 %4186
      %vm4188 = vcmask 80896
      %v4189 = vsel %vm4188, %v4181, %v4183
      %v4190 = vsel %vm4188, %v4183, %v4185
      %v4191 = vsel %vm4188, %v4185, %v4187
      %v4193 = vsel %vm210, %v4178, 0
      %v4196 = vsel %vm210, %v4179, 0
      %v4199 = vsel %vm217, %v4189, 0
      %v4202 = vsel %vm217, %v4190, 0
      %v4205 = vsel %vm217, %v4191, 0
      %4207 = vmatpush.bf16.msra.mxu0 0
      %4208 = vmatpush.bf16.msra.mxu0 0
      %4209 = vmatpush.bf16.msra.mxu0 0
      %4210 = vmatpush.bf16.msra.mxu0 0
      %4211 = vmatpush.bf16.msra.mxu0 0
      %4212 = vmatpush.bf16.msra.mxu0 0
      %4213 = vmatpush.bf16.msra.mxu0 0
      %4214 = vmatpush.bf16.msra.mxu0 %v4199
      %4215 = vmatmul.bf16.gmra.mxu0 %v4193
      %v4216 = vpop.f32.mrf.mxu0
      %v4217 = vadd.f32 0.0, %v4216
      %v4218 = vpop.f32.mrf.mxu0
      %v4219 = vadd.f32 0.0, %v4218
      %4220 = vmatmul.bf16.gmra.mxu0 %v4196
      %v4221 = vpop.f32.mrf.mxu0
      %v4222 = vadd.f32 0.0, %v4221
      %v4223 = vpop.f32.mrf.mxu0
      %v4224 = vadd.f32 0.0, %v4223
      %4225 = vdwg.mxu0
      %4226 = vmatpush.bf16.msra.mxu0 0
      %4227 = vmatpush.bf16.msra.mxu0 0
      %4228 = vmatpush.bf16.msra.mxu0 0
      %4229 = vmatpush.bf16.msra.mxu0 0
      %4230 = vmatpush.bf16.msra.mxu0 0
      %4231 = vmatpush.bf16.msra.mxu0 0
      %4232 = vmatpush.bf16.msra.mxu0 0
      %4233 = vmatpush.bf16.msra.mxu0 %v4202
      %4234 = vmatmul.bf16.gmra.mxu0 %v4193
      %v4235 = vpop.f32.mrf.mxu0
      %v4236 = vadd.f32 0.0, %v4235
      %v4237 = vpop.f32.mrf.mxu0
      %v4238 = vadd.f32 0.0, %v4237
      %4239 = vmatmul.bf16.gmra.mxu0 %v4196
      %v4240 = vpop.f32.mrf.mxu0
      %v4241 = vadd.f32 0.0, %v4240
      %v4242 = vpop.f32.mrf.mxu0
      %v4243 = vadd.f32 0.0, %v4242
      %4244 = vdwg.mxu0
      %4245 = vmatpush.bf16.msra.mxu0 0
      %4246 = vmatpush.bf16.msra.mxu0 0
      %4247 = vmatpush.bf16.msra.mxu0 0
      %4248 = vmatpush.bf16.msra.mxu0 0
      %4249 = vmatpush.bf16.msra.mxu0 0
      %4250 = vmatpush.bf16.msra.mxu0 0
      %4251 = vmatpush.bf16.msra.mxu0 0
      %4252 = vmatpush.bf16.msra.mxu0 %v4205
      %4253 = vmatmul.bf16.gmra.mxu0 %v4193
      %v4254 = vpop.f32.mrf.mxu0
      %v4255 = vadd.f32 0.0, %v4254
      %v4256 = vpop.f32.mrf.mxu0
      %v4257 = vadd.f32 0.0, %v4256
      %4258 = vmatmul.bf16.gmra.mxu0 %v4196
      %v4259 = vpop.f32.mrf.mxu0
      %v4260 = vadd.f32 0.0, %v4259
      %v4261 = vpop.f32.mrf.mxu0
      %v4262 = vadd.f32 0.0, %v4261
      %4263 = vdwg.mxu0
      %v4264 = vadd.f32 %v4154, %v4217
      %v4265 = vadd.f32 %v4155, %v4236
      %v4266 = vadd.f32 %v4156, %v4255
      %v4267 = vadd.f32 %v4157, %v4219
      %v4268 = vadd.f32 %v4158, %v4238
      %v4269 = vadd.f32 %v4159, %v4257
      %v4270 = vadd.f32 %v4160, %v4222
      %v4271 = vadd.f32 %v4161, %v4241
      %v4272 = vadd.f32 %v4162, %v4260
      %v4273 = vadd.f32 %v4163, %v4224
      %v4274 = vadd.f32 %v4164, %v4243
      %v4275 = vadd.f32 %v4165, %v4262
      %v4276 = vld [vmem:[%s2] sm:$0xff]
      %v4277 = vld [vmem:[%s2 + $0x8] sm:$0xff]
      %v4278 = vld [vmem:[%s2 + $0x10] sm:$0xff]
      %v4279 = vld [vmem:[%s2 + $0x18] sm:$0xff]
      %4281 = vset.pattern.permute.xlu0 0
      %4282 = vperm.xlu0 %4281, %v4276
      %v4283 = vpop.permute.xlu0 %4282
      %4286 = vset.pattern.permute.xlu0 0
      %4287 = vperm.xlu0 %4286, %v4277
      %v4288 = vpop.permute.xlu0 %4287
      %4291 = vset.pattern.permute.xlu0 0
      %4292 = vperm.xlu0 %4291, %v4278
      %v4293 = vpop.permute.xlu0 %4292
      %4296 = vset.pattern.permute.xlu0 0
      %4297 = vperm.xlu0 %4296, %v4279
      %v4298 = vpop.permute.xlu0 %4297
      %v4300 = vadd.f32 %v4264, %v4283
      %v4301 = vadd.f32 %v4265, %v4283
      %v4302 = vadd.f32 %v4266, %v4283
      %v4303 = vadd.f32 %v4267, %v4288
      %v4304 = vadd.f32 %v4268, %v4288
      %v4305 = vadd.f32 %v4269, %v4288
      %v4306 = vadd.f32 %v4270, %v4293
      %v4307 = vadd.f32 %v4271, %v4293
      %v4308 = vadd.f32 %v4272, %v4293
      %v4309 = vadd.f32 %v4273, %v4298
      %v4310 = vadd.f32 %v4274, %v4298
      %v4311 = vadd.f32 %v4275, %v4298
      %v4312 = vmax.f32 %v4300, 0.0
      %v4313 = vmax.f32 %v4301, 0.0
      %v4314 = vmax.f32 %v4302, 0.0
      %v4315 = vmax.f32 %v4303, 0.0
      %v4316 = vmax.f32 %v4304, 0.0
      %v4317 = vmax.f32 %v4305, 0.0
      %v4318 = vmax.f32 %v4306, 0.0
      %v4319 = vmax.f32 %v4307, 0.0
      %v4320 = vmax.f32 %v4308, 0.0
      %v4321 = vmax.f32 %v4309, 0.0
      %v4322 = vmax.f32 %v4310, 0.0
      %v4323 = vmax.f32 %v4311, 0.0
      %v4324 = vpack.c.bf16 %v4313, %v4312
      %v4325 = vpack.c.bf16 %v4314, %v4314
      %v4326 = vpack.c.bf16 %v4316, %v4315
      %v4327 = vpack.c.bf16 %v4317, %v4317
      %v4328 = vpack.c.bf16 %v4319, %v4318
      %v4329 = vpack.c.bf16 %v4320, %v4320
      %v4330 = vpack.c.bf16 %v4322, %v4321
      %v4331 = vpack.c.bf16 %v4323, %v4323
      %4340 = vrot.lane.b32.xlu0 %v4324, 48
      %v4341 = vpop.permute.xlu0 %4340
      %4342 = vrot.lane.b32.xlu0 %v4325, 48
      %v4343 = vpop.permute.xlu0 %4342
      %4344 = vrot.lane.b32.xlu0 %v4326, 48
      %v4345 = vpop.permute.xlu0 %4344
      %4346 = vrot.lane.b32.xlu0 %v4327, 48
      %v4347 = vpop.permute.xlu0 %4346
      %4348 = vrot.lane.b32.xlu0 %v4328, 48
      %v4349 = vpop.permute.xlu0 %4348
      %4350 = vrot.lane.b32.xlu0 %v4329, 48
      %v4351 = vpop.permute.xlu0 %4350
      %4352 = vrot.lane.b32.xlu0 %v4330, 48
      %v4353 = vpop.permute.xlu0 %4352
      %4354 = vrot.lane.b32.xlu0 %v4331, 48
      %v4355 = vpop.permute.xlu0 %4354
      %v4356 = vrot.slane %v4341, 4
      %v4357 = vrot.slane %v4345, 4
      %v4358 = vrot.slane %v4349, 4
      %v4359 = vrot.slane %v4353, 4
      %vm4360 = vcmask 392192
      %v4361 = vsel %vm4360, %v4356, %v4341
      %v4362 = vsel %vm4360, %v4356, %v4343
      %v4363 = vsel %vm4360, %v4357, %v4345
      %v4364 = vsel %vm4360, %v4357, %v4347
      %v4365 = vsel %vm4360, %v4358, %v4349
      %v4366 = vsel %vm4360, %v4358, %v4351
      %v4367 = vsel %vm4360, %v4359, %v4353
      %v4368 = vsel %vm4360, %v4359, %v4355
      %vm4377 = vcmask 1043840
      %vm4378 = vmor %vm2238, %vm4377
      %4379 = vst.msk [vmem:[%s170 + $0x18] sm:$0xff] %vm4378, %v4361
      %vm4380 = vcmask 519168
      %4381 = vst.msk [vmem:[%s170 + $0x20] sm:$0xf] %vm4380, %v4362
      %4382 = vst.msk [vmem:[%s170 + $0x3c] sm:$0xff] %vm4378, %v4363
      %4383 = vst.msk [vmem:[%s170 + $0x44] sm:$0xf] %vm4380, %v4364
      %4384 = vst.msk [vmem:[%s170 + $0x60] sm:$0xff] %vm4378, %v4365
      %4385 = vst.msk [vmem:[%s170 + $0x68] sm:$0xf] %vm4380, %v4366
      %4386 = vst.msk [vmem:[%s170 + $0x84] sm:$0xff] %vm4378, %v4367
      %4387 = vst.msk [vmem:[%s170 + $0x8c] sm:$0xf] %vm4380, %v4368
      %p4388 = scmp.lt.s32.totalorder %s14, 1
      %s4389 = scalar_select %p4388, %s14, 1
      %s4390 = smul.addr %s4389, 36
      %s4391 = smul.addr %s4390, 4
      %s4392 = scalar_lea.vmem %s3, %s4391
      // Predicated region
      $region33: #{cnn_forward.3} parent=31 // pred_check
        %p4393 = pneg %p100
      $region34: #{cnn_forward.3} parent=31 // pred_check_branch
        %4395 = sbr.rel (%p4393) target = $region36
      $region35: #{cnn_forward.3} parent=31 // pred_region
        _
      $region36: #{cnn_forward.3} parent=31 // pred_fallthru
        _
    $region32: #{cnn_forward.3} parent=5 // pred_fallthru
      _
    %p4396 = scmp.le.s32.totalorder 2, %s9
    // Predicated region
    $region37: #{cnn_forward.3} parent=5 // pred_check
      %p4397 = pneg %p4396
    $region38: #{cnn_forward.3} parent=5 // pred_check_branch
      %4399 = sbr.rel (%p4397) target = $region40
    $region39: #{cnn_forward.3} parent=5 // pred_region
      %s4400 = ssub.s32 %s9, 2
      // Predicated region
      $region41: #{cnn_forward.3} parent=39 // pred_check
        %p4401 = pneg %p106
      $region42: #{cnn_forward.3} parent=39 // pred_check_branch
        %4403 = sbr.rel (%p4401) target = $region44
      $region43: #{cnn_forward.3} parent=39 // pred_region
        %p4404 = scmp.lt.s32.totalorder %s15, 1
        %s4405 = scalar_select %p4404, %s15, 1
        %s4406 = smul.addr %s4405, 36
        %s4407 = smul.addr %s4406, 4
        %s4408 = scalar_lea.vmem %s3, %s4407
      $region44: #{cnn_forward.3} parent=39 // pred_fallthru
        _
    $region40: #{cnn_forward.3} parent=5 // pred_fallthru
      _
  $region6: #{cnn_forward.3} parent=0 // loop_footer
    %s13 = sadd.s32 1, %s9
  $region7: #{cnn_forward.3} parent=0 // loop_footer_branch
    %8 = sbr.rel target = $region3
  $region8: #{cnn_forward.3} parent=0 // loop_exit
    _

// kernel: cnn_forward.4
$region0: #{cnn_forward.4}
  #allocation0 [shape = 'u32[]', space=smem, size = 0x4, offset = 0x4, fixed_abs, tag = 'smem constant byte address 0x4 - core index']
  #allocation1 [shape = 'u32[72,128]{1,0:T(1,128)}', space=vmem, size = 0x9000, scoped, tag = 'internal scratch']
  %s0 = inlined_call_operand.vmem [shape: bf16[2,32,342], index: 0, kind: input, shape index: {}]
  %s1 = inlined_call_operand.vmem [shape: bf16[9,64,32], index: 1, kind: input, shape index: {}]
  %s2 = inlined_call_operand.vmem [shape: f32[64,1], index: 2, kind: input, shape index: {}]
  %s3 = inlined_call_operand.vmem [shape: bf16[2,64,288], index: 3, kind: output, shape index: {}]
  %s4 = sld [smem:[#allocation0]]
  $region45: #{cnn_forward.4} parent=0
    _
  %s6 = ssub.s32 1, %s4
  %s7 = scalar_select 0, %s6, %s4
  loop: start=0, step=1, limit=4
  $region2: #{cnn_forward.4} parent=0 // loop_pre_header
    _
  $region3: #{cnn_forward.4} parent=0 // loop_header
    %s9 = sphi 0, %s13
    %p10 = scmp.ge.s32.totalorder %s9, 4
    %s19 = sphi 0, %s21
    %s22 = sphi 0, %s19
    %s23 = sphi 0, %s22
    %s39 = sphi 0, %s23
    %s43 = sphi 0, %s43
    %s45 = sphi 0, %s43
    %s46 = sphi 0, %s45
    %s60 = sphi 0, %s46
    %s64 = sphi 0, %s64
    %s66 = sphi 0, %s64
    %s67 = sphi 0, %s66
    %s81 = sphi 0, %s67
    %s87 = sphi 0, %s89
    %s90 = sphi 0, %s87
    %s91 = sphi 0, %s90
    %s107 = sphi 0, %s91
  $region4: #{cnn_forward.4} parent=0 // loop_header_branch
    %12 = sbr.rel (%p10) target = $region8
  $region5: #{cnn_forward.4} parent=0 // loop_body
    %s14 = ssub.s32 %s9, 1
    %s15 = ssub.s32 %s9, 2
    %s16 = sadd.s32 %s9, 1
    %s17 = ssub.s32 %s9, %s16
    %p18 = scmp.eq.s32.totalorder %s17, 0
    %s20 = sadd.s32 %s19, 1
    %s21 = scalar_select %p18, %s19, %s20
    %p24 = pneg %p18
    %p25 = scmp.eq.s32.totalorder %s9, 1
    %p26 = por %p24, %p25
    %p27 = scmp.ne.s32.totalorder %s19, %s22
    %p28 = scmp.eq.s32.totalorder %s9, 0
    %p29 = por %p27, %p28
    %p30 = scmp.ne.s32.totalorder %s19, %s22
    %p31 = scmp.eq.s32.totalorder %s14, 1
    %p32 = por %p30, %p31
    %p33 = scmp.ne.s32.totalorder %s22, %s23
    %p34 = scmp.eq.s32.totalorder %s14, 0
    %p35 = por %p33, %p34
    %p36 = scmp.ne.s32.totalorder %s22, %s23
    %p37 = scmp.eq.s32.totalorder %s15, 1
    %p38 = por %p36, %p37
    %p40 = scmp.ne.s32.totalorder %s23, %s39
    %p41 = scmp.eq.s32.totalorder %s15, 0
    %p42 = por %p40, %p41
    %s44 = sadd.s32 %s43, 1
    %p47 = scmp.eq.s32.totalorder %s9, 1
    %p48 = scmp.ne.s32.totalorder %s43, %s45
    %p49 = scmp.eq.s32.totalorder %s9, 0
    %p50 = por %p48, %p49
    %p51 = scmp.ne.s32.totalorder %s43, %s45
    %p52 = scmp.eq.s32.totalorder %s14, 1
    %p53 = por %p51, %p52
    %p54 = scmp.ne.s32.totalorder %s45, %s46
    %p55 = scmp.eq.s32.totalorder %s14, 0
    %p56 = por %p54, %p55
    %p57 = scmp.ne.s32.totalorder %s45, %s46
    %p58 = scmp.eq.s32.totalorder %s15, 1
    %p59 = por %p57, %p58
    %p61 = scmp.ne.s32.totalorder %s46, %s60
    %p62 = scmp.eq.s32.totalorder %s15, 0
    %p63 = por %p61, %p62
    %s65 = sadd.s32 %s64, 1
    %p68 = scmp.eq.s32.totalorder %s9, 1
    %p69 = scmp.ne.s32.totalorder %s64, %s66
    %p70 = scmp.eq.s32.totalorder %s9, 0
    %p71 = por %p69, %p70
    %p72 = scmp.ne.s32.totalorder %s64, %s66
    %p73 = scmp.eq.s32.totalorder %s14, 1
    %p74 = por %p72, %p73
    %p75 = scmp.ne.s32.totalorder %s66, %s67
    %p76 = scmp.eq.s32.totalorder %s14, 0
    %p77 = por %p75, %p76
    %p78 = scmp.ne.s32.totalorder %s66, %s67
    %p79 = scmp.eq.s32.totalorder %s15, 1
    %p80 = por %p78, %p79
    %p82 = scmp.ne.s32.totalorder %s67, %s81
    %p83 = scmp.eq.s32.totalorder %s15, 0
    %p84 = por %p82, %p83
    %s85 = ssub.s32 %s9, %s16
    %p86 = scmp.eq.s32.totalorder %s85, 0
    %s88 = sadd.s32 %s87, 1
    %s89 = scalar_select %p86, %s87, %s88
    %p92 = pneg %p86
    %p93 = scmp.eq.s32.totalorder %s9, 1
    %p94 = por %p92, %p93
    %p95 = scmp.ne.s32.totalorder %s87, %s90
    %p96 = scmp.eq.s32.totalorder %s9, 0
    %p97 = por %p95, %p96
    %p98 = scmp.ne.s32.totalorder %s87, %s90
    %p99 = scmp.eq.s32.totalorder %s14, 1
    %p100 = por %p98, %p99
    %p101 = scmp.ne.s32.totalorder %s90, %s91
    %p102 = scmp.eq.s32.totalorder %s14, 0
    %p103 = por %p101, %p102
    %p104 = scmp.ne.s32.totalorder %s90, %s91
    %p105 = scmp.eq.s32.totalorder %s15, 1
    %p106 = por %p104, %p105
    %p108 = scmp.ne.s32.totalorder %s91, %s107
    %p109 = scmp.eq.s32.totalorder %s15, 0
    %p110 = por %p108, %p109
    %p111 = scmp.le.s32.totalorder 1, %s9
    %p112 = scmp.lt.s32.totalorder %s9, 3
    %p113 = pnand %p111, %p112
    %p114 = pneg %p113
    // Predicated region
    $region9: #{cnn_forward.4} parent=5 // pred_check
      _
    $region10: #{cnn_forward.4} parent=5 // pred_check_branch
      %116 = sbr.rel (%p113) target = $region12
    $region11: #{cnn_forward.4} parent=5 // pred_region
      %s117 = ssub.s32 %s9, 1
      // Predicated region
      $region13: #{cnn_forward.4} parent=11 // pred_check
        %p118 = pneg %p56
      $region14: #{cnn_forward.4} parent=11 // pred_check_branch
        %120 = sbr.rel (%p118) target = $region16
      $region15: #{cnn_forward.4} parent=11 // pred_region
        _
      $region16: #{cnn_forward.4} parent=11 // pred_fallthru
        _
      // Predicated region
      $region17: #{cnn_forward.4} parent=11 // pred_check
        %p121 = pneg %p77
      $region18: #{cnn_forward.4} parent=11 // pred_check_branch
        %123 = sbr.rel (%p121) target = $region20
      $region19: #{cnn_forward.4} parent=11 // pred_region
        _
      $region20: #{cnn_forward.4} parent=11 // pred_fallthru
        _
    $region12: #{cnn_forward.4} parent=5 // pred_fallthru
      _
    %p124 = scmp.lt.s32.totalorder %s9, 2
    // Predicated region
    $region21: #{cnn_forward.4} parent=5 // pred_check
      %p125 = pneg %p124
    $region22: #{cnn_forward.4} parent=5 // pred_check_branch
      %127 = sbr.rel (%p125) target = $region24
    $region23: #{cnn_forward.4} parent=5 // pred_region
      // Predicated region
      $region25: #{cnn_forward.4} parent=23 // pred_check
        %p128 = pneg %p29
      $region26: #{cnn_forward.4} parent=23 // pred_check_branch
        %130 = sbr.rel (%p128) target = $region28
      $region27: #{cnn_forward.4} parent=23 // pred_region
        %p131 = scmp.lt.s32.totalorder %s9, 1
        %s132 = scalar_select %p131, %s9, 1
        %s133 = smul.addr %s132, 12
        %s134 = smul.addr %s133, 4
        %s135 = scalar_lea.vmem %s0, %s134
      $region28: #{cnn_forward.4} parent=23 // pred_fallthru
        _
    $region24: #{cnn_forward.4} parent=5 // pred_fallthru
      _
    %p136 = scmp.le.s32.totalorder 1, %s9
    %p137 = scmp.lt.s32.totalorder %s9, 3
    %p138 = pnand %p136, %p137
    %p139 = pneg %p138
    // Predicated region
    $region29: #{cnn_forward.4} parent=5 // pred_check
      _
    $region30: #{cnn_forward.4} parent=5 // pred_check_branch
      %141 = sbr.rel (%p138) target = $region32
    $region31: #{cnn_forward.4} parent=5 // pred_region
      %s142 = ssub.s32 %s9, 1
      %p143 = scmp.lt.s32.totalorder %s14, 1
      %s144 = scalar_select %p143, %s14, 1
      %s145 = smul.addr %s144, 12
      %s146 = smul.addr %s145, 4
      %s147 = scalar_lea.vmem %s0, %s146
      %p148 = pneg %p35
      %p149 = pneg %p32
      %p150 = pneg %p56
      %p151 = pneg %p53
      %p152 = pneg %p77
      %p153 = pneg %p74
      %p154 = pneg %p103
      %p155 = pneg %p100
      %p156 = scmp.lt.s32.totalorder %s14, 1
      %s157 = scalar_select %p156, %s14, 1
      %s158 = smul.addr %s157, 24
      %s159 = smul.addr %s158, 4
      %s160 = scalar_lea.vmem %s3, %s159
      %p161 = scmp.lt.s32.totalorder %s14, 1
      %s162 = scalar_select %p161, %s14, 1
      %s163 = smul.addr %s162, 12
      %s164 = smul.addr %s163, 4
      %s165 = scalar_lea.vmem %s0, %s164
      %p166 = scmp.lt.s32.totalorder %s14, 1
      %s167 = scalar_select %p166, %s14, 1
      %s168 = smul.addr %s167, 24
      %s169 = smul.addr %s168, 4
      %s170 = scalar_lea.vmem %s3, %s169
      %v172 = vld [vmem:[%s165] sm:$0xff]
      %v173 = vld [vmem:[%s165 + $0x8] sm:$0xf]
      %v174 = vld [vmem:[%s165 + $0xc] sm:$0xff]
      %v175 = vld [vmem:[%s165 + $0x14] sm:$0xf]
      %v176 = vld [vmem:[%s165 + $0x18] sm:$0xff]
      %v177 = vld [vmem:[%s165 + $0x20] sm:$0xf]
      %v178 = vld [vmem:[%s165 + $0x24] sm:$0xff]
      %v179 = vld [vmem:[%s165 + $0x2c] sm:$0xf]
      %v180 = vld [vmem:[%s1] sm:$0xf]
      %v181 = vld [vmem:[%s1 + $0x4] sm:$0xf]
      %v182 = vld [vmem:[%s1 + $0x8] sm:$0xf]
      %v183 = vld [vmem:[%s1 + $0xc] sm:$0xf]
      %v184 = vld [vmem:[%s1 + $0x10] sm:$0xf]
      %v185 = vld [vmem:[%s1 + $0x14] sm:$0xf]
      %v186 = vld [vmem:[%s1 + $0x18] sm:$0xf]
      %v187 = vld [vmem:[%s1 + $0x1c] sm:$0xf]
      %s188 = scalar_lea.vmem %s1, 32
      %v189 = vld [vmem:[%s188] sm:$0xf]
      %v190 = vld [vmem:[%s188 + $0x4] sm:$0xf]
      %v191 = vld [vmem:[%s188 + $0x8] sm:$0xf]
      %v192 = vld [vmem:[%s188 + $0xc] sm:$0xf]
      %v193 = vld [vmem:[%s188 + $0x10] sm:$0xf]
      %v194 = vld [vmem:[%s188 + $0x14] sm:$0xf]
      %v195 = vld [vmem:[%s188 + $0x18] sm:$0xf]
      %v196 = vld [vmem:[%s188 + $0x1c] sm:$0xf]
      %v205 = vunpack.c.l.b16 %v189
      %v206 = vunpack.c.l.b16 %v190
      %v207 = vunpack.c.l.b16 %v191
      %v208 = vunpack.c.l.b16 %v192
      %v209 = vunpack.c.l.b16 %v193
      %v210 = vunpack.c.l.b16 %v194
      %v211 = vunpack.c.l.b16 %v195
      %v212 = vunpack.c.l.b16 %v196
      %v213 = vpack.c.b16 %v206, %v205
      %v214 = vpack.c.b16 %v208, %v207
      %v215 = vpack.c.b16 %v210, %v209
      %v216 = vpack.c.b16 %v212, %v211
      %v225 = vunpack.c.l.b16 %v172
      %v226 = vunpack.c.h.b16 %v172
      %v227 = vunpack.c.l.b16 %v173
      %v228 = vunpack.c.l.b16 %v174
      %v229 = vunpack.c.h.b16 %v174
      %v230 = vunpack.c.l.b16 %v175
      %v231 = vunpack.c.l.b16 %v176
      %v232 = vunpack.c.h.b16 %v176
      %v233 = vunpack.c.l.b16 %v177
      %v234 = vunpack.c.l.b16 %v178
      %v235 = vunpack.c.h.b16 %v178
      %v236 = vunpack.c.l.b16 %v179
      %v237 = vpack.c.b16 %v228, %v225
      %v238 = vpack.c.b16 %v229, %v226
      %v239 = vpack.c.b16 %v230, %v227
      %v240 = vpack.c.b16 %v234, %v231
      %v241 = vpack.c.b16 %v235, %v232
      %v242 = vpack.c.b16 %v236, %v233
      %243 = vrot.lane.b32.xlu0 %v237, 127
      %v244 = vpop.permute.xlu0 %243
      %245 = vrot.lane.b32.xlu0 %v238, 127
      %v246 = vpop.permute.xlu0 %245
      %247 = vrot.lane.b32.xlu0 %v239, 127
      %v248 = vpop.permute.xlu0 %247
      %249 = vrot.lane.b32.xlu0 %v240, 127
      %v250 = vpop.permute.xlu0 %249
      %251 = vrot.lane.b32.xlu0 %v241, 127
      %v252 = vpop.permute.xlu0 %251
      %253 = vrot.lane.b32.xlu0 %v242, 127
      %v254 = vpop.permute.xlu0 %253
      %vm255 = vcmask 1039360
      %v256 = vsel %vm255, %v244, %v246
      %v257 = vsel %vm255, %v246, %v248
      %v258 = vsel %vm255, %v250, %v252
      %v259 = vsel %vm255, %v252, %v254
      %vm266 = vcmask 261120
      %v268 = vsel %vm266, %v213, 0
      %v271 = vsel %vm266, %v214, 0
      %v274 = vsel %vm266, %v215, 0
      %v277 = vsel %vm266, %v216, 0
      %279 = vmatpush.bf16.msra.mxu0 0
      %280 = vmatpush.bf16.msra.mxu0 0
      %281 = vmatpush.bf16.msra.mxu0 0
      %282 = vmatpush.bf16.msra.mxu0 0
      %283 = vmatpush.bf16.msra.mxu0 0
      %284 = vmatpush.bf16.msra.mxu0 0
      %285 = vmatpush.bf16.msra.mxu0 %v258
      %286 = vmatpush.bf16.msra.mxu0 %v256
      %287 = vmatmul.bf16.gmra.mxu0 %v268
      %v288 = vpop.f32.mrf.mxu0
      %v289 = vadd.f32 0.0, %v288
      %v290 = vpop.f32.mrf.mxu0
      %v291 = vadd.f32 0.0, %v290
      %292 = vmatmul.bf16.gmra.mxu0 %v271
      %v293 = vpop.f32.mrf.mxu0
      %v294 = vadd.f32 0.0, %v293
      %v295 = vpop.f32.mrf.mxu0
      %v296 = vadd.f32 0.0, %v295
      %297 = vmatmul.bf16.gmra.mxu0 %v274
      %v298 = vpop.f32.mrf.mxu0
      %v299 = vadd.f32 0.0, %v298
      %v300 = vpop.f32.mrf.mxu0
      %v301 = vadd.f32 0.0, %v300
      %302 = vmatmul.bf16.gmra.mxu0 %v277
      %v303 = vpop.f32.mrf.mxu0
      %v304 = vadd.f32 0.0, %v303
      %v305 = vpop.f32.mrf.mxu0
      %v306 = vadd.f32 0.0, %v305
      %307 = vdwg.mxu0
      %308 = vmatpush.bf16.msra.mxu0 0
      %309 = vmatpush.bf16.msra.mxu0 0
      %310 = vmatpush.bf16.msra.mxu0 0
      %311 = vmatpush.bf16.msra.mxu0 0
      %312 = vmatpush.bf16.msra.mxu0 0
      %313 = vmatpush.bf16.msra.mxu0 0
      %314 = vmatpush.bf16.msra.mxu0 %v259
      %315 = vmatpush.bf16.msra.mxu0 %v257
      %316 = vmatmul.bf16.gmra.mxu0 %v268
      %v317 = vpop.f32.mrf.mxu0
      %v318 = vadd.f32 0.0, %v317
      %v319 = vpop.f32.mrf.mxu0
      %v320 = vadd.f32 0.0, %v319
      %321 = vmatmul.bf16.gmra.mxu0 %v271
      %v322 = vpop.f32.mrf.mxu0
      %v323 = vadd.f32 0.0, %v322
      %v324 = vpop.f32.mrf.mxu0
      %v325 = vadd.f32 0.0, %v324
      %326 = vmatmul.bf16.gmra.mxu0 %v274
      %v327 = vpop.f32.mrf.mxu0
      %v328 = vadd.f32 0.0, %v327
      %v329 = vpop.f32.mrf.mxu0
      %v330 = vadd.f32 0.0, %v329
      %331 = vmatmul.bf16.gmra.mxu0 %v277
      %v332 = vpop.f32.mrf.mxu0
      %v333 = vadd.f32 0.0, %v332
      %v334 = vpop.f32.mrf.mxu0
      %v335 = vadd.f32 0.0, %v334
      %336 = vdwg.mxu0
      %337 = vmatpush.bf16.msra.mxu0 0
      %338 = vmatpush.bf16.msra.mxu0 0
      %339 = vmatpush.bf16.msra.mxu0 0
      %340 = vmatpush.bf16.msra.mxu0 0
      %341 = vmatpush.bf16.msra.mxu0 0
      %342 = vmatpush.bf16.msra.mxu0 0
      %343 = vmatpush.bf16.msra.mxu0 %v254
      %344 = vmatpush.bf16.msra.mxu0 %v248
      %345 = vmatmul.bf16.gmra.mxu0 %v268
      %v346 = vpop.f32.mrf.mxu0
      %v347 = vadd.f32 0.0, %v346
      %v348 = vpop.f32.mrf.mxu0
      %v349 = vadd.f32 0.0, %v348
      %350 = vmatmul.bf16.gmra.mxu0 %v271
      %v351 = vpop.f32.mrf.mxu0
      %v352 = vadd.f32 0.0, %v351
      %v353 = vpop.f32.mrf.mxu0
      %v354 = vadd.f32 0.0, %v353
      %355 = vmatmul.bf16.gmra.mxu0 %v274
      %v356 = vpop.f32.mrf.mxu0
      %v357 = vadd.f32 0.0, %v356
      %v358 = vpop.f32.mrf.mxu0
      %v359 = vadd.f32 0.0, %v358
      %360 = vmatmul.bf16.gmra.mxu0 %v277
      %v361 = vpop.f32.mrf.mxu0
      %v362 = vadd.f32 0.0, %v361
      %v363 = vpop.f32.mrf.mxu0
      %v364 = vadd.f32 0.0, %v363
      %365 = vdwg.mxu0
      %v374 = vunpack.c.l.b16 %v180
      %v375 = vunpack.c.l.b16 %v181
      %v376 = vunpack.c.l.b16 %v182
      %v377 = vunpack.c.l.b16 %v183
      %v378 = vunpack.c.l.b16 %v184
      %v379 = vunpack.c.l.b16 %v185
      %v380 = vunpack.c.l.b16 %v186
      %v381 = vunpack.c.l.b16 %v187
      %v382 = vpack.c.b16 %v375, %v374
      %v383 = vpack.c.b16 %v377, %v376
      %v384 = vpack.c.b16 %v379, %v378
      %v385 = vpack.c.b16 %v381, %v380
      %v393 = vsel %vm266, %v382, 0
      %v396 = vsel %vm266, %v383, 0
      %v399 = vsel %vm266, %v384, 0
      %v402 = vsel %vm266, %v385, 0
      %404 = vmatpush.bf16.msra.mxu0 0
      %405 = vmatpush.bf16.msra.mxu0 0
      %406 = vmatpush.bf16.msra.mxu0 0
      %407 = vmatpush.bf16.msra.mxu0 0
      %408 = vmatpush.bf16.msra.mxu0 0
      %409 = vmatpush.bf16.msra.mxu0 0
      %410 = vmatpush.bf16.msra.mxu0 %v240
      %411 = vmatpush.bf16.msra.mxu0 %v237
      %412 = vmatmul.bf16.gmra.mxu0 %v393
      %v413 = vpop.f32.mrf.mxu0
      %v414 = vadd.f32 %v289, %v413
      %v415 = vpop.f32.mrf.mxu0
      %v416 = vadd.f32 %v291, %v415
      %417 = vmatmul.bf16.gmra.mxu0 %v396
      %v418 = vpop.f32.mrf.mxu0
      %v419 = vadd.f32 %v294, %v418
      %v420 = vpop.f32.mrf.mxu0
      %v421 = vadd.f32 %v296, %v420
      %422 = vmatmul.bf16.gmra.mxu0 %v399
      %v423 = vpop.f32.mrf.mxu0
      %v424 = vadd.f32 %v299, %v423
      %v425 = vpop.f32.mrf.mxu0
      %v426 = vadd.f32 %v301, %v425
      %427 = vmatmul.bf16.gmra.mxu0 %v402
      %v428 = vpop.f32.mrf.mxu0
      %v429 = vadd.f32 %v304, %v428
      %v430 = vpop.f32.mrf.mxu0
      %v431 = vadd.f32 %v306, %v430
      %432 = vdwg.mxu0
      %433 = vmatpush.bf16.msra.mxu0 0
      %434 = vmatpush.bf16.msra.mxu0 0
      %435 = vmatpush.bf16.msra.mxu0 0
      %436 = vmatpush.bf16.msra.mxu0 0
      %437 = vmatpush.bf16.msra.mxu0 0
      %438 = vmatpush.bf16.msra.mxu0 0
      %439 = vmatpush.bf16.msra.mxu0 %v241
      %440 = vmatpush.bf16.msra.mxu0 %v238
      %441 = vmatmul.bf16.gmra.mxu0 %v393
      %v442 = vpop.f32.mrf.mxu0
      %v443 = vadd.f32 %v318, %v442
      %v444 = vpop.f32.mrf.mxu0
      %v445 = vadd.f32 %v320, %v444
      %446 = vmatmul.bf16.gmra.mxu0 %v396
      %v447 = vpop.f32.mrf.mxu0
      %v448 = vadd.f32 %v323, %v447
      %v449 = vpop.f32.mrf.mxu0
      %v450 = vadd.f32 %v325, %v449
      %451 = vmatmul.bf16.gmra.mxu0 %v399
      %v452 = vpop.f32.mrf.mxu0
      %v453 = vadd.f32 %v328, %v452
      %v454 = vpop.f32.mrf.mxu0
      %v455 = vadd.f32 %v330, %v454
      %456 = vmatmul.bf16.gmra.mxu0 %v402
      %v457 = vpop.f32.mrf.mxu0
      %v458 = vadd.f32 %v333, %v457
      %v459 = vpop.f32.mrf.mxu0
      %v460 = vadd.f32 %v335, %v459
      %461 = vdwg.mxu0
      %462 = vmatpush.bf16.msra.mxu0 0
      %463 = vmatpush.bf16.msra.mxu0 0
      %464 = vmatpush.bf16.msra.mxu0 0
      %465 = vmatpush.bf16.msra.mxu0 0
      %466 = vmatpush.bf16.msra.mxu0 0
      %467 = vmatpush.bf16.msra.mxu0 0
      %468 = vmatpush.bf16.msra.mxu0 %v242
      %469 = vmatpush.bf16.msra.mxu0 %v239
      %470 = vmatmul.bf16.gmra.mxu0 %v393
      %v471 = vpop.f32.mrf.mxu0
      %v472 = vadd.f32 %v347, %v471
      %v473 = vpop.f32.mrf.mxu0
      %v474 = vadd.f32 %v349, %v473
      %475 = vmatmul.bf16.gmra.mxu0 %v396
      %v476 = vpop.f32.mrf.mxu0
      %v477 = vadd.f32 %v352, %v476
      %v478 = vpop.f32.mrf.mxu0
      %v479 = vadd.f32 %v354, %v478
      %480 = vmatmul.bf16.gmra.mxu0 %v399
      %v481 = vpop.f32.mrf.mxu0
      %v482 = vadd.f32 %v357, %v481
      %v483 = vpop.f32.mrf.mxu0
      %v484 = vadd.f32 %v359, %v483
      %485 = vmatmul.bf16.gmra.mxu0 %v402
      %v486 = vpop.f32.mrf.mxu0
      %v487 = vadd.f32 %v362, %v486
      %v488 = vpop.f32.mrf.mxu0
      %v489 = vadd.f32 %v364, %v488
      %490 = vdwg.mxu0
      %s491 = scalar_lea.vmem %s1, 64
      %v492 = vld [vmem:[%s491] sm:$0xf]
      %v493 = vld [vmem:[%s491 + $0x4] sm:$0xf]
      %v494 = vld [vmem:[%s491 + $0x8] sm:$0xf]
      %v495 = vld [vmem:[%s491 + $0xc] sm:$0xf]
      %v496 = vld [vmem:[%s491 + $0x10] sm:$0xf]
      %v497 = vld [vmem:[%s491 + $0x14] sm:$0xf]
      %v498 = vld [vmem:[%s491 + $0x18] sm:$0xf]
      %v499 = vld [vmem:[%s491 + $0x1c] sm:$0xf]
      %v508 = vunpack.c.l.b16 %v492
      %v509 = vunpack.c.l.b16 %v493
      %v510 = vunpack.c.l.b16 %v494
      %v511 = vunpack.c.l.b16 %v495
      %v512 = vunpack.c.l.b16 %v496
      %v513 = vunpack.c.l.b16 %v497
      %v514 = vunpack.c.l.b16 %v498
      %v515 = vunpack.c.l.b16 %v499
      %v516 = vpack.c.b16 %v509, %v508
      %v517 = vpack.c.b16 %v511, %v510
      %v518 = vpack.c.b16 %v513, %v512
      %v519 = vpack.c.b16 %v515, %v514
      %520 = vrot.lane.b32.xlu0 %v237, 126
      %v521 = vpop.permute.xlu0 %520
      %522 = vrot.lane.b32.xlu0 %v238, 126
      %v523 = vpop.permute.xlu0 %522
      %524 = vrot.lane.b32.xlu0 %v239, 126
      %v525 = vpop.permute.xlu0 %524
      %526 = vrot.lane.b32.xlu0 %v240, 126
      %v527 = vpop.permute.xlu0 %526
      %528 = vrot.lane.b32.xlu0 %v241, 126
      %v529 = vpop.permute.xlu0 %528
      %530 = vrot.lane.b32.xlu0 %v242, 126
      %v531 = vpop.permute.xlu0 %530
      %vm532 = vcmask 1031168
      %v533 = vsel %vm532, %v521, %v523
      %v534 = vsel %vm532, %v523, %v525
      %v535 = vsel %vm532, %v527, %v529
      %v536 = vsel %vm532, %v529, %v531
      %v544 = vsel %vm266, %v516, 0
      %v547 = vsel %vm266, %v517, 0
      %v550 = vsel %vm266, %v518, 0
      %v553 = vsel %vm266, %v519, 0
      %555 = vmatpush.bf16.msra.mxu0 0
      %556 = vmatpush.bf16.msra.mxu0 0
      %557 = vmatpush.bf16.msra.mxu0 0
      %558 = vmatpush.bf16.msra.mxu0 0
      %559 = vmatpush.bf16.msra.mxu0 0
      %560 = vmatpush.bf16.msra.mxu0 0
      %561 = vmatpush.bf16.msra.mxu0 %v535
      %562 = vmatpush.bf16.msra.mxu0 %v533
      %563 = vmatmul.bf16.gmra.mxu0 %v544
      %v564 = vpop.f32.mrf.mxu0
      %v565 = vadd.f32 0.0, %v564
      %v566 = vpop.f32.mrf.mxu0
      %v567 = vadd.f32 0.0, %v566
      %568 = vmatmul.bf16.gmra.mxu0 %v547
      %v569 = vpop.f32.mrf.mxu0
      %v570 = vadd.f32 0.0, %v569
      %v571 = vpop.f32.mrf.mxu0
      %v572 = vadd.f32 0.0, %v571
      %573 = vmatmul.bf16.gmra.mxu0 %v550
      %v574 = vpop.f32.mrf.mxu0
      %v575 = vadd.f32 0.0, %v574
      %v576 = vpop.f32.mrf.mxu0
      %v577 = vadd.f32 0.0, %v576
      %578 = vmatmul.bf16.gmra.mxu0 %v553
      %v579 = vpop.f32.mrf.mxu0
      %v580 = vadd.f32 0.0, %v579
      %v581 = vpop.f32.mrf.mxu0
      %v582 = vadd.f32 0.0, %v581
      %583 = vdwg.mxu0
      %584 = vmatpush.bf16.msra.mxu0 0
      %585 = vmatpush.bf16.msra.mxu0 0
      %586 = vmatpush.bf16.msra.mxu0 0
      %587 = vmatpush.bf16.msra.mxu0 0
      %588 = vmatpush.bf16.msra.mxu0 0
      %589 = vmatpush.bf16.msra.mxu0 0
      %590 = vmatpush.bf16.msra.mxu0 %v536
      %591 = vmatpush.bf16.msra.mxu0 %v534
      %592 = vmatmul.bf16.gmra.mxu0 %v544
      %v593 = vpop.f32.mrf.mxu0
      %v594 = vadd.f32 0.0, %v593
      %v595 = vpop.f32.mrf.mxu0
      %v596 = vadd.f32 0.0, %v595
      %597 = vmatmul.bf16.gmra.mxu0 %v547
      %v598 = vpop.f32.mrf.mxu0
      %v599 = vadd.f32 0.0, %v598
      %v600 = vpop.f32.mrf.mxu0
      %v601 = vadd.f32 0.0, %v600
      %602 = vmatmul.bf16.gmra.mxu0 %v550
      %v603 = vpop.f32.mrf.mxu0
      %v604 = vadd.f32 0.0, %v603
      %v605 = vpop.f32.mrf.mxu0
      %v606 = vadd.f32 0.0, %v605
      %607 = vmatmul.bf16.gmra.mxu0 %v553
      %v608 = vpop.f32.mrf.mxu0
      %v609 = vadd.f32 0.0, %v608
      %v610 = vpop.f32.mrf.mxu0
      %v611 = vadd.f32 0.0, %v610
      %612 = vdwg.mxu0
      %613 = vmatpush.bf16.msra.mxu0 0
      %614 = vmatpush.bf16.msra.mxu0 0
      %615 = vmatpush.bf16.msra.mxu0 0
      %616 = vmatpush.bf16.msra.mxu0 0
      %617 = vmatpush.bf16.msra.mxu0 0
      %618 = vmatpush.bf16.msra.mxu0 0
      %619 = vmatpush.bf16.msra.mxu0 %v531
      %620 = vmatpush.bf16.msra.mxu0 %v525
      %621 = vmatmul.bf16.gmra.mxu0 %v544
      %v622 = vpop.f32.mrf.mxu0
      %v623 = vadd.f32 0.0, %v622
      %v624 = vpop.f32.mrf.mxu0
      %v625 = vadd.f32 0.0, %v624
      %626 = vmatmul.bf16.gmra.mxu0 %v547
      %v627 = vpop.f32.mrf.mxu0
      %v628 = vadd.f32 0.0, %v627
      %v629 = vpop.f32.mrf.mxu0
      %v630 = vadd.f32 0.0, %v629
      %631 = vmatmul.bf16.gmra.mxu0 %v550
      %v632 = vpop.f32.mrf.mxu0
      %v633 = vadd.f32 0.0, %v632
      %v634 = vpop.f32.mrf.mxu0
      %v635 = vadd.f32 0.0, %v634
      %636 = vmatmul.bf16.gmra.mxu0 %v553
      %v637 = vpop.f32.mrf.mxu0
      %v638 = vadd.f32 0.0, %v637
      %v639 = vpop.f32.mrf.mxu0
      %v640 = vadd.f32 0.0, %v639
      %641 = vdwg.mxu0
      %v642 = vadd.f32 %v414, %v565
      %v643 = vadd.f32 %v443, %v594
      %v644 = vadd.f32 %v472, %v623
      %v645 = vadd.f32 %v416, %v567
      %v646 = vadd.f32 %v445, %v596
      %v647 = vadd.f32 %v474, %v625
      %v648 = vadd.f32 %v419, %v570
      %v649 = vadd.f32 %v448, %v599
      %v650 = vadd.f32 %v477, %v628
      %v651 = vadd.f32 %v421, %v572
      %v652 = vadd.f32 %v450, %v601
      %v653 = vadd.f32 %v479, %v630
      %v654 = vadd.f32 %v424, %v575
      %v655 = vadd.f32 %v453, %v604
      %v656 = vadd.f32 %v482, %v633
      %v657 = vadd.f32 %v426, %v577
      %v658 = vadd.f32 %v455, %v606
      %v659 = vadd.f32 %v484, %v635
      %v660 = vadd.f32 %v429, %v580
      %v661 = vadd.f32 %v458, %v609
      %v662 = vadd.f32 %v487, %v638
      %v663 = vadd.f32 %v431, %v582
      %v664 = vadd.f32 %v460, %v611
      %v665 = vadd.f32 %v489, %v640
      %s666 = scalar_lea.vmem %s1, 96
      %v667 = vld [vmem:[%s666] sm:$0xf]
      %v668 = vld [vmem:[%s666 + $0x4] sm:$0xf]
      %v669 = vld [vmem:[%s666 + $0x8] sm:$0xf]
      %v670 = vld [vmem:[%s666 + $0xc] sm:$0xf]
      %v671 = vld [vmem:[%s666 + $0x10] sm:$0xf]
      %v672 = vld [vmem:[%s666 + $0x14] sm:$0xf]
      %v673 = vld [vmem:[%s666 + $0x18] sm:$0xf]
      %v674 = vld [vmem:[%s666 + $0x1c] sm:$0xf]
      %v683 = vunpack.c.l.b16 %v667
      %v684 = vunpack.c.l.b16 %v668
      %v685 = vunpack.c.l.b16 %v669
      %v686 = vunpack.c.l.b16 %v670
      %v687 = vunpack.c.l.b16 %v671
      %v688 = vunpack.c.l.b16 %v672
      %v689 = vunpack.c.l.b16 %v673
      %v690 = vunpack.c.l.b16 %v674
      %v691 = vpack.c.b16 %v684, %v683
      %v692 = vpack.c.b16 %v686, %v685
      %v693 = vpack.c.b16 %v688, %v687
      %v694 = vpack.c.b16 %v690, %v689
      %695 = vrot.lane.b32.xlu0 %v237, 110
      %v696 = vpop.permute.xlu0 %695
      %697 = vrot.lane.b32.xlu0 %v238, 110
      %v698 = vpop.permute.xlu0 %697
      %699 = vrot.lane.b32.xlu0 %v239, 110
      %v700 = vpop.permute.xlu0 %699
      %701 = vrot.lane.b32.xlu0 %v240, 110
      %v702 = vpop.permute.xlu0 %701
      %703 = vrot.lane.b32.xlu0 %v241, 110
      %v704 = vpop.permute.xlu0 %703
      %705 = vrot.lane.b32.xlu0 %v242, 110
      %v706 = vpop.permute.xlu0 %705
      %vm707 = vcmask 900096
      %v708 = vsel %vm707, %v696, %v698
      %v709 = vsel %vm707, %v698, %v700
      %v710 = vsel %vm707, %v702, %v704
      %v711 = vsel %vm707, %v704, %v706
      %v719 = vsel %vm266, %v691, 0
      %v722 = vsel %vm266, %v692, 0
      %v725 = vsel %vm266, %v693, 0
      %v728 = vsel %vm266, %v694, 0
      %730 = vmatpush.bf16.msra.mxu0 0
      %731 = vmatpush.bf16.msra.mxu0 0
      %732 = vmatpush.bf16.msra.mxu0 0
      %733 = vmatpush.bf16.msra.mxu0 0
      %734 = vmatpush.bf16.msra.mxu0 0
      %735 = vmatpush.bf16.msra.mxu0 0
      %736 = vmatpush.bf16.msra.mxu0 %v710
      %737 = vmatpush.bf16.msra.mxu0 %v708
      %738 = vmatmul.bf16.gmra.mxu0 %v719
      %v739 = vpop.f32.mrf.mxu0
      %v740 = vadd.f32 0.0, %v739
      %v741 = vpop.f32.mrf.mxu0
      %v742 = vadd.f32 0.0, %v741
      %743 = vmatmul.bf16.gmra.mxu0 %v722
      %v744 = vpop.f32.mrf.mxu0
      %v745 = vadd.f32 0.0, %v744
      %v746 = vpop.f32.mrf.mxu0
      %v747 = vadd.f32 0.0, %v746
      %748 = vmatmul.bf16.gmra.mxu0 %v725
      %v749 = vpop.f32.mrf.mxu0
      %v750 = vadd.f32 0.0, %v749
      %v751 = vpop.f32.mrf.mxu0
      %v752 = vadd.f32 0.0, %v751
      %753 = vmatmul.bf16.gmra.mxu0 %v728
      %v754 = vpop.f32.mrf.mxu0
      %v755 = vadd.f32 0.0, %v754
      %v756 = vpop.f32.mrf.mxu0
      %v757 = vadd.f32 0.0, %v756
      %758 = vdwg.mxu0
      %759 = vmatpush.bf16.msra.mxu0 0
      %760 = vmatpush.bf16.msra.mxu0 0
      %761 = vmatpush.bf16.msra.mxu0 0
      %762 = vmatpush.bf16.msra.mxu0 0
      %763 = vmatpush.bf16.msra.mxu0 0
      %764 = vmatpush.bf16.msra.mxu0 0
      %765 = vmatpush.bf16.msra.mxu0 %v711
      %766 = vmatpush.bf16.msra.mxu0 %v709
      %767 = vmatmul.bf16.gmra.mxu0 %v719
      %v768 = vpop.f32.mrf.mxu0
      %v769 = vadd.f32 0.0, %v768
      %v770 = vpop.f32.mrf.mxu0
      %v771 = vadd.f32 0.0, %v770
      %772 = vmatmul.bf16.gmra.mxu0 %v722
      %v773 = vpop.f32.mrf.mxu0
      %v774 = vadd.f32 0.0, %v773
      %v775 = vpop.f32.mrf.mxu0
      %v776 = vadd.f32 0.0, %v775
      %777 = vmatmul.bf16.gmra.mxu0 %v725
      %v778 = vpop.f32.mrf.mxu0
      %v779 = vadd.f32 0.0, %v778
      %v780 = vpop.f32.mrf.mxu0
      %v781 = vadd.f32 0.0, %v780
      %782 = vmatmul.bf16.gmra.mxu0 %v728
      %v783 = vpop.f32.mrf.mxu0
      %v784 = vadd.f32 0.0, %v783
      %v785 = vpop.f32.mrf.mxu0
      %v786 = vadd.f32 0.0, %v785
      %787 = vdwg.mxu0
      %788 = vmatpush.bf16.msra.mxu0 0
      %789 = vmatpush.bf16.msra.mxu0 0
      %790 = vmatpush.bf16.msra.mxu0 0
      %791 = vmatpush.bf16.msra.mxu0 0
      %792 = vmatpush.bf16.msra.mxu0 0
      %793 = vmatpush.bf16.msra.mxu0 0
      %794 = vmatpush.bf16.msra.mxu0 %v706
      %795 = vmatpush.bf16.msra.mxu0 %v700
      %796 = vmatmul.bf16.gmra.mxu0 %v719
      %v797 = vpop.f32.mrf.mxu0
      %v798 = vadd.f32 0.0, %v797
      %v799 = vpop.f32.mrf.mxu0
      %v800 = vadd.f32 0.0, %v799
      %801 = vmatmul.bf16.gmra.mxu0 %v722
      %v802 = vpop.f32.mrf.mxu0
      %v803 = vadd.f32 0.0, %v802
      %v804 = vpop.f32.mrf.mxu0
      %v805 = vadd.f32 0.0, %v804
      %806 = vmatmul.bf16.gmra.mxu0 %v725
      %v807 = vpop.f32.mrf.mxu0
      %v808 = vadd.f32 0.0, %v807
      %v809 = vpop.f32.mrf.mxu0
      %v810 = vadd.f32 0.0, %v809
      %811 = vmatmul.bf16.gmra.mxu0 %v728
      %v812 = vpop.f32.mrf.mxu0
      %v813 = vadd.f32 0.0, %v812
      %v814 = vpop.f32.mrf.mxu0
      %v815 = vadd.f32 0.0, %v814
      %816 = vdwg.mxu0
      %v817 = vadd.f32 %v642, %v740
      %v818 = vadd.f32 %v643, %v769
      %v819 = vadd.f32 %v644, %v798
      %v820 = vadd.f32 %v645, %v742
      %v821 = vadd.f32 %v646, %v771
      %v822 = vadd.f32 %v647, %v800
      %v823 = vadd.f32 %v648, %v745
      %v824 = vadd.f32 %v649, %v774
      %v825 = vadd.f32 %v650, %v803
      %v826 = vadd.f32 %v651, %v747
      %v827 = vadd.f32 %v652, %v776
      %v828 = vadd.f32 %v653, %v805
      %v829 = vadd.f32 %v654, %v750
      %v830 = vadd.f32 %v655, %v779
      %v831 = vadd.f32 %v656, %v808
      %v832 = vadd.f32 %v657, %v752
      %v833 = vadd.f32 %v658, %v781
      %v834 = vadd.f32 %v659, %v810
      %v835 = vadd.f32 %v660, %v755
      %v836 = vadd.f32 %v661, %v784
      %v837 = vadd.f32 %v662, %v813
      %v838 = vadd.f32 %v663, %v757
      %v839 = vadd.f32 %v664, %v786
      %v840 = vadd.f32 %v665, %v815
      %s841 = scalar_lea.vmem %s1, 128
      %v842 = vld [vmem:[%s841] sm:$0xf]
      %v843 = vld [vmem:[%s841 + $0x4] sm:$0xf]
      %v844 = vld [vmem:[%s841 + $0x8] sm:$0xf]
      %v845 = vld [vmem:[%s841 + $0xc] sm:$0xf]
      %v846 = vld [vmem:[%s841 + $0x10] sm:$0xf]
      %v847 = vld [vmem:[%s841 + $0x14] sm:$0xf]
      %v848 = vld [vmem:[%s841 + $0x18] sm:$0xf]
      %v849 = vld [vmem:[%s841 + $0x1c] sm:$0xf]
      %v858 = vunpack.c.l.b16 %v842
      %v859 = vunpack.c.l.b16 %v843
      %v860 = vunpack.c.l.b16 %v844
      %v861 = vunpack.c.l.b16 %v845
      %v862 = vunpack.c.l.b16 %v846
      %v863 = vunpack.c.l.b16 %v847
      %v864 = vunpack.c.l.b16 %v848
      %v865 = vunpack.c.l.b16 %v849
      %v866 = vpack.c.b16 %v859, %v858
      %v867 = vpack.c.b16 %v861, %v860
      %v868 = vpack.c.b16 %v863, %v862
      %v869 = vpack.c.b16 %v865, %v864
      %870 = vrot.lane.b32.xlu0 %v237, 109
      %v871 = vpop.permute.xlu0 %870
      %872 = vrot.lane.b32.xlu0 %v238, 109
      %v873 = vpop.permute.xlu0 %872
      %874 = vrot.lane.b32.xlu0 %v239, 109
      %v875 = vpop.permute.xlu0 %874
      %876 = vrot.lane.b32.xlu0 %v240, 109
      %v877 = vpop.permute.xlu0 %876
      %878 = vrot.lane.b32.xlu0 %v241, 109
      %v879 = vpop.permute.xlu0 %878
      %880 = vrot.lane.b32.xlu0 %v242, 109
      %v881 = vpop.permute.xlu0 %880
      %vm882 = vcmask 891904
      %v883 = vsel %vm882, %v871, %v873
      %v884 = vsel %vm882, %v873, %v875
      %v885 = vsel %vm882, %v877, %v879
      %v886 = vsel %vm882, %v879, %v881
      %v894 = vsel %vm266, %v866, 0
      %v897 = vsel %vm266, %v867, 0
      %v900 = vsel %vm266, %v868, 0
      %v903 = vsel %vm266, %v869, 0
      %905 = vmatpush.bf16.msra.mxu0 0
      %906 = vmatpush.bf16.msra.mxu0 0
      %907 = vmatpush.bf16.msra.mxu0 0
      %908 = vmatpush.bf16.msra.mxu0 0
      %909 = vmatpush.bf16.msra.mxu0 0
      %910 = vmatpush.bf16.msra.mxu0 0
      %911 = vmatpush.bf16.msra.mxu0 %v885
      %912 = vmatpush.bf16.msra.mxu0 %v883
      %913 = vmatmul.bf16.gmra.mxu0 %v894
      %v914 = vpop.f32.mrf.mxu0
      %v915 = vadd.f32 0.0, %v914
      %v916 = vpop.f32.mrf.mxu0
      %v917 = vadd.f32 0.0, %v916
      %918 = vmatmul.bf16.gmra.mxu0 %v897
      %v919 = vpop.f32.mrf.mxu0
      %v920 = vadd.f32 0.0, %v919
      %v921 = vpop.f32.mrf.mxu0
      %v922 = vadd.f32 0.0, %v921
      %923 = vmatmul.bf16.gmra.mxu0 %v900
      %v924 = vpop.f32.mrf.mxu0
      %v925 = vadd.f32 0.0, %v924
      %v926 = vpop.f32.mrf.mxu0
      %v927 = vadd.f32 0.0, %v926
      %928 = vmatmul.bf16.gmra.mxu0 %v903
      %v929 = vpop.f32.mrf.mxu0
      %v930 = vadd.f32 0.0, %v929
      %v931 = vpop.f32.mrf.mxu0
      %v932 = vadd.f32 0.0, %v931
      %933 = vdwg.mxu0
      %934 = vmatpush.bf16.msra.mxu0 0
      %935 = vmatpush.bf16.msra.mxu0 0
      %936 = vmatpush.bf16.msra.mxu0 0
      %937 = vmatpush.bf16.msra.mxu0 0
      %938 = vmatpush.bf16.msra.mxu0 0
      %939 = vmatpush.bf16.msra.mxu0 0
      %940 = vmatpush.bf16.msra.mxu0 %v886
      %941 = vmatpush.bf16.msra.mxu0 %v884
      %942 = vmatmul.bf16.gmra.mxu0 %v894
      %v943 = vpop.f32.mrf.mxu0
      %v944 = vadd.f32 0.0, %v943
      %v945 = vpop.f32.mrf.mxu0
      %v946 = vadd.f32 0.0, %v945
      %947 = vmatmul.bf16.gmra.mxu0 %v897
      %v948 = vpop.f32.mrf.mxu0
      %v949 = vadd.f32 0.0, %v948
      %v950 = vpop.f32.mrf.mxu0
      %v951 = vadd.f32 0.0, %v950
      %952 = vmatmul.bf16.gmra.mxu0 %v900
      %v953 = vpop.f32.mrf.mxu0
      %v954 = vadd.f32 0.0, %v953
      %v955 = vpop.f32.mrf.mxu0
      %v956 = vadd.f32 0.0, %v955
      %957 = vmatmul.bf16.gmra.mxu0 %v903
      %v958 = vpop.f32.mrf.mxu0
      %v959 = vadd.f32 0.0, %v958
      %v960 = vpop.f32.mrf.mxu0
      %v961 = vadd.f32 0.0, %v960
      %962 = vdwg.mxu0
      %963 = vmatpush.bf16.msra.mxu0 0
      %964 = vmatpush.bf16.msra.mxu0 0
      %965 = vmatpush.bf16.msra.mxu0 0
      %966 = vmatpush.bf16.msra.mxu0 0
      %967 = vmatpush.bf16.msra.mxu0 0
      %968 = vmatpush.bf16.msra.mxu0 0
      %969 = vmatpush.bf16.msra.mxu0 %v881
      %970 = vmatpush.bf16.msra.mxu0 %v875
      %971 = vmatmul.bf16.gmra.mxu0 %v894
      %v972 = vpop.f32.mrf.mxu0
      %v973 = vadd.f32 0.0, %v972
      %v974 = vpop.f32.mrf.mxu0
      %v975 = vadd.f32 0.0, %v974
      %976 = vmatmul.bf16.gmra.mxu0 %v897
      %v977 = vpop.f32.mrf.mxu0
      %v978 = vadd.f32 0.0, %v977
      %v979 = vpop.f32.mrf.mxu0
      %v980 = vadd.f32 0.0, %v979
      %981 = vmatmul.bf16.gmra.mxu0 %v900
      %v982 = vpop.f32.mrf.mxu0
      %v983 = vadd.f32 0.0, %v982
      %v984 = vpop.f32.mrf.mxu0
      %v985 = vadd.f32 0.0, %v984
      %986 = vmatmul.bf16.gmra.mxu0 %v903
      %v987 = vpop.f32.mrf.mxu0
      %v988 = vadd.f32 0.0, %v987
      %v989 = vpop.f32.mrf.mxu0
      %v990 = vadd.f32 0.0, %v989
      %991 = vdwg.mxu0
      %v992 = vadd.f32 %v817, %v915
      %v993 = vadd.f32 %v818, %v944
      %v994 = vadd.f32 %v819, %v973
      %v995 = vadd.f32 %v820, %v917
      %v996 = vadd.f32 %v821, %v946
      %v997 = vadd.f32 %v822, %v975
      %v998 = vadd.f32 %v823, %v920
      %v999 = vadd.f32 %v824, %v949
      %v1000 = vadd.f32 %v825, %v978
      %v1001 = vadd.f32 %v826, %v922
      %v1002 = vadd.f32 %v827, %v951
      %v1003 = vadd.f32 %v828, %v980
      %v1004 = vadd.f32 %v829, %v925
      %v1005 = vadd.f32 %v830, %v954
      %v1006 = vadd.f32 %v831, %v983
      %v1007 = vadd.f32 %v832, %v927
      %v1008 = vadd.f32 %v833, %v956
      %v1009 = vadd.f32 %v834, %v985
      %v1010 = vadd.f32 %v835, %v930
      %v1011 = vadd.f32 %v836, %v959
      %v1012 = vadd.f32 %v837, %v988
      %v1013 = vadd.f32 %v838, %v932
      %v1014 = vadd.f32 %v839, %v961
      %v1015 = vadd.f32 %v840, %v990
      %s1016 = scalar_lea.vmem %s1, 160
      %v1017 = vld [vmem:[%s1016] sm:$0xf]
      %v1018 = vld [vmem:[%s1016 + $0x4] sm:$0xf]
      %v1019 = vld [vmem:[%s1016 + $0x8] sm:$0xf]
      %v1020 = vld [vmem:[%s1016 + $0xc] sm:$0xf]
      %v1021 = vld [vmem:[%s1016 + $0x10] sm:$0xf]
      %v1022 = vld [vmem:[%s1016 + $0x14] sm:$0xf]
      %v1023 = vld [vmem:[%s1016 + $0x18] sm:$0xf]
      %v1024 = vld [vmem:[%s1016 + $0x1c] sm:$0xf]
      %v1033 = vunpack.c.l.b16 %v1017
      %v1034 = vunpack.c.l.b16 %v1018
      %v1035 = vunpack.c.l.b16 %v1019
      %v1036 = vunpack.c.l.b16 %v1020
      %v1037 = vunpack.c.l.b16 %v1021
      %v1038 = vunpack.c.l.b16 %v1022
      %v1039 = vunpack.c.l.b16 %v1023
      %v1040 = vunpack.c.l.b16 %v1024
      %v1041 = vpack.c.b16 %v1034, %v1033
      %v1042 = vpack.c.b16 %v1036, %v1035
      %v1043 = vpack.c.b16 %v1038, %v1037
      %v1044 = vpack.c.b16 %v1040, %v1039
      %1045 = vrot.lane.b32.xlu0 %v237, 108
      %v1046 = vpop.permute.xlu0 %1045
      %1047 = vrot.lane.b32.xlu0 %v238, 108
      %v1048 = vpop.permute.xlu0 %1047
      %1049 = vrot.lane.b32.xlu0 %v239, 108
      %v1050 = vpop.permute.xlu0 %1049
      %1051 = vrot.lane.b32.xlu0 %v240, 108
      %v1052 = vpop.permute.xlu0 %1051
      %1053 = vrot.lane.b32.xlu0 %v241, 108
      %v1054 = vpop.permute.xlu0 %1053
      %1055 = vrot.lane.b32.xlu0 %v242, 108
      %v1056 = vpop.permute.xlu0 %1055
      %vm1057 = vcmask 883712
      %v1058 = vsel %vm1057, %v1046, %v1048
      %v1059 = vsel %vm1057, %v1048, %v1050
      %v1060 = vsel %vm1057, %v1052, %v1054
      %v1061 = vsel %vm1057, %v1054, %v1056
      %v1069 = vsel %vm266, %v1041, 0
      %v1072 = vsel %vm266, %v1042, 0
      %v1075 = vsel %vm266, %v1043, 0
      %v1078 = vsel %vm266, %v1044, 0
      %1080 = vmatpush.bf16.msra.mxu0 0
      %1081 = vmatpush.bf16.msra.mxu0 0
      %1082 = vmatpush.bf16.msra.mxu0 0
      %1083 = vmatpush.bf16.msra.mxu0 0
      %1084 = vmatpush.bf16.msra.mxu0 0
      %1085 = vmatpush.bf16.msra.mxu0 0
      %1086 = vmatpush.bf16.msra.mxu0 %v1060
      %1087 = vmatpush.bf16.msra.mxu0 %v1058
      %1088 = vmatmul.bf16.gmra.mxu0 %v1069
      %v1089 = vpop.f32.mrf.mxu0
      %v1090 = vadd.f32 0.0, %v1089
      %v1091 = vpop.f32.mrf.mxu0
      %v1092 = vadd.f32 0.0, %v1091
      %1093 = vmatmul.bf16.gmra.mxu0 %v1072
      %v1094 = vpop.f32.mrf.mxu0
      %v1095 = vadd.f32 0.0, %v1094
      %v1096 = vpop.f32.mrf.mxu0
      %v1097 = vadd.f32 0.0, %v1096
      %1098 = vmatmul.bf16.gmra.mxu0 %v1075
      %v1099 = vpop.f32.mrf.mxu0
      %v1100 = vadd.f32 0.0, %v1099
      %v1101 = vpop.f32.mrf.mxu0
      %v1102 = vadd.f32 0.0, %v1101
      %1103 = vmatmul.bf16.gmra.mxu0 %v1078
      %v1104 = vpop.f32.mrf.mxu0
      %v1105 = vadd.f32 0.0, %v1104
      %v1106 = vpop.f32.mrf.mxu0
      %v1107 = vadd.f32 0.0, %v1106
      %1108 = vdwg.mxu0
      %1109 = vmatpush.bf16.msra.mxu0 0
      %1110 = vmatpush.bf16.msra.mxu0 0
      %1111 = vmatpush.bf16.msra.mxu0 0
      %1112 = vmatpush.bf16.msra.mxu0 0
      %1113 = vmatpush.bf16.msra.mxu0 0
      %1114 = vmatpush.bf16.msra.mxu0 0
      %1115 = vmatpush.bf16.msra.mxu0 %v1061
      %1116 = vmatpush.bf16.msra.mxu0 %v1059
      %1117 = vmatmul.bf16.gmra.mxu0 %v1069
      %v1118 = vpop.f32.mrf.mxu0
      %v1119 = vadd.f32 0.0, %v1118
      %v1120 = vpop.f32.mrf.mxu0
      %v1121 = vadd.f32 0.0, %v1120
      %1122 = vmatmul.bf16.gmra.mxu0 %v1072
      %v1123 = vpop.f32.mrf.mxu0
      %v1124 = vadd.f32 0.0, %v1123
      %v1125 = vpop.f32.mrf.mxu0
      %v1126 = vadd.f32 0.0, %v1125
      %1127 = vmatmul.bf16.gmra.mxu0 %v1075
      %v1128 = vpop.f32.mrf.mxu0
      %v1129 = vadd.f32 0.0, %v1128
      %v1130 = vpop.f32.mrf.mxu0
      %v1131 = vadd.f32 0.0, %v1130
      %1132 = vmatmul.bf16.gmra.mxu0 %v1078
      %v1133 = vpop.f32.mrf.mxu0
      %v1134 = vadd.f32 0.0, %v1133
      %v1135 = vpop.f32.mrf.mxu0
      %v1136 = vadd.f32 0.0, %v1135
      %1137 = vdwg.mxu0
      %1138 = vmatpush.bf16.msra.mxu0 0
      %1139 = vmatpush.bf16.msra.mxu0 0
      %1140 = vmatpush.bf16.msra.mxu0 0
      %1141 = vmatpush.bf16.msra.mxu0 0
      %1142 = vmatpush.bf16.msra.mxu0 0
      %1143 = vmatpush.bf16.msra.mxu0 0
      %1144 = vmatpush.bf16.msra.mxu0 %v1056
      %1145 = vmatpush.bf16.msra.mxu0 %v1050
      %1146 = vmatmul.bf16.gmra.mxu0 %v1069
      %v1147 = vpop.f32.mrf.mxu0
      %v1148 = vadd.f32 0.0, %v1147
      %v1149 = vpop.f32.mrf.mxu0
      %v1150 = vadd.f32 0.0, %v1149
      %1151 = vmatmul.bf16.gmra.mxu0 %v1072
      %v1152 = vpop.f32.mrf.mxu0
      %v1153 = vadd.f32 0.0, %v1152
      %v1154 = vpop.f32.mrf.mxu0
      %v1155 = vadd.f32 0.0, %v1154
      %1156 = vmatmul.bf16.gmra.mxu0 %v1075
      %v1157 = vpop.f32.mrf.mxu0
      %v1158 = vadd.f32 0.0, %v1157
      %v1159 = vpop.f32.mrf.mxu0
      %v1160 = vadd.f32 0.0, %v1159
      %1161 = vmatmul.bf16.gmra.mxu0 %v1078
      %v1162 = vpop.f32.mrf.mxu0
      %v1163 = vadd.f32 0.0, %v1162
      %v1164 = vpop.f32.mrf.mxu0
      %v1165 = vadd.f32 0.0, %v1164
      %1166 = vdwg.mxu0
      %v1167 = vadd.f32 %v992, %v1090
      %v1168 = vadd.f32 %v993, %v1119
      %v1169 = vadd.f32 %v994, %v1148
      %v1170 = vadd.f32 %v995, %v1092
      %v1171 = vadd.f32 %v996, %v1121
      %v1172 = vadd.f32 %v997, %v1150
      %v1173 = vadd.f32 %v998, %v1095
      %v1174 = vadd.f32 %v999, %v1124
      %v1175 = vadd.f32 %v1000, %v1153
      %v1176 = vadd.f32 %v1001, %v1097
      %v1177 = vadd.f32 %v1002, %v1126
      %v1178 = vadd.f32 %v1003, %v1155
      %v1179 = vadd.f32 %v1004, %v1100
      %v1180 = vadd.f32 %v1005, %v1129
      %v1181 = vadd.f32 %v1006, %v1158
      %v1182 = vadd.f32 %v1007, %v1102
      %v1183 = vadd.f32 %v1008, %v1131
      %v1184 = vadd.f32 %v1009, %v1160
      %v1185 = vadd.f32 %v1010, %v1105
      %v1186 = vadd.f32 %v1011, %v1134
      %v1187 = vadd.f32 %v1012, %v1163
      %v1188 = vadd.f32 %v1013, %v1107
      %v1189 = vadd.f32 %v1014, %v1136
      %v1190 = vadd.f32 %v1015, %v1165
      %s1191 = scalar_lea.vmem %s1, 192
      %v1192 = vld [vmem:[%s1191] sm:$0xf]
      %v1193 = vld [vmem:[%s1191 + $0x4] sm:$0xf]
      %v1194 = vld [vmem:[%s1191 + $0x8] sm:$0xf]
      %v1195 = vld [vmem:[%s1191 + $0xc] sm:$0xf]
      %v1196 = vld [vmem:[%s1191 + $0x10] sm:$0xf]
      %v1197 = vld [vmem:[%s1191 + $0x14] sm:$0xf]
      %v1198 = vld [vmem:[%s1191 + $0x18] sm:$0xf]
      %v1199 = vld [vmem:[%s1191 + $0x1c] sm:$0xf]
      %v1208 = vunpack.c.l.b16 %v1192
      %v1209 = vunpack.c.l.b16 %v1193
      %v1210 = vunpack.c.l.b16 %v1194
      %v1211 = vunpack.c.l.b16 %v1195
      %v1212 = vunpack.c.l.b16 %v1196
      %v1213 = vunpack.c.l.b16 %v1197
      %v1214 = vunpack.c.l.b16 %v1198
      %v1215 = vunpack.c.l.b16 %v1199
      %v1216 = vpack.c.b16 %v1209, %v1208
      %v1217 = vpack.c.b16 %v1211, %v1210
      %v1218 = vpack.c.b16 %v1213, %v1212
      %v1219 = vpack.c.b16 %v1215, %v1214
      %1220 = vrot.lane.b32.xlu0 %v237, 92
      %v1221 = vpop.permute.xlu0 %1220
      %1222 = vrot.lane.b32.xlu0 %v238, 92
      %v1223 = vpop.permute.xlu0 %1222
      %1224 = vrot.lane.b32.xlu0 %v239, 92
      %v1225 = vpop.permute.xlu0 %1224
      %1226 = vrot.lane.b32.xlu0 %v240, 92
      %v1227 = vpop.permute.xlu0 %1226
      %1228 = vrot.lane.b32.xlu0 %v241, 92
      %v1229 = vpop.permute.xlu0 %1228
      %1230 = vrot.lane.b32.xlu0 %v242, 92
      %v1231 = vpop.permute.xlu0 %1230
      %vm1232 = vcmask 752640
      %v1233 = vsel %vm1232, %v1221, %v1223
      %v1234 = vsel %vm1232, %v1223, %v1225
      %v1235 = vsel %vm1232, %v1227, %v1229
      %v1236 = vsel %vm1232, %v1229, %v1231
      %v1244 = vsel %vm266, %v1216, 0
      %v1247 = vsel %vm266, %v1217, 0
      %v1250 = vsel %vm266, %v1218, 0
      %v1253 = vsel %vm266, %v1219, 0
      %1255 = vmatpush.bf16.msra.mxu0 0
      %1256 = vmatpush.bf16.msra.mxu0 0
      %1257 = vmatpush.bf16.msra.mxu0 0
      %1258 = vmatpush.bf16.msra.mxu0 0
      %1259 = vmatpush.bf16.msra.mxu0 0
      %1260 = vmatpush.bf16.msra.mxu0 0
      %1261 = vmatpush.bf16.msra.mxu0 %v1235
      %1262 = vmatpush.bf16.msra.mxu0 %v1233
      %1263 = vmatmul.bf16.gmra.mxu0 %v1244
      %v1264 = vpop.f32.mrf.mxu0
      %v1265 = vadd.f32 0.0, %v1264
      %v1266 = vpop.f32.mrf.mxu0
      %v1267 = vadd.f32 0.0, %v1266
      %1268 = vmatmul.bf16.gmra.mxu0 %v1247
      %v1269 = vpop.f32.mrf.mxu0
      %v1270 = vadd.f32 0.0, %v1269
      %v1271 = vpop.f32.mrf.mxu0
      %v1272 = vadd.f32 0.0, %v1271
      %1273 = vmatmul.bf16.gmra.mxu0 %v1250
      %v1274 = vpop.f32.mrf.mxu0
      %v1275 = vadd.f32 0.0, %v1274
      %v1276 = vpop.f32.mrf.mxu0
      %v1277 = vadd.f32 0.0, %v1276
      %1278 = vmatmul.bf16.gmra.mxu0 %v1253
      %v1279 = vpop.f32.mrf.mxu0
      %v1280 = vadd.f32 0.0, %v1279
      %v1281 = vpop.f32.mrf.mxu0
      %v1282 = vadd.f32 0.0, %v1281
      %1283 = vdwg.mxu0
      %1284 = vmatpush.bf16.msra.mxu0 0
      %1285 = vmatpush.bf16.msra.mxu0 0
      %1286 = vmatpush.bf16.msra.mxu0 0
      %1287 = vmatpush.bf16.msra.mxu0 0
      %1288 = vmatpush.bf16.msra.mxu0 0
      %1289 = vmatpush.bf16.msra.mxu0 0
      %1290 = vmatpush.bf16.msra.mxu0 %v1236
      %1291 = vmatpush.bf16.msra.mxu0 %v1234
      %1292 = vmatmul.bf16.gmra.mxu0 %v1244
      %v1293 = vpop.f32.mrf.mxu0
      %v1294 = vadd.f32 0.0, %v1293
      %v1295 = vpop.f32.mrf.mxu0
      %v1296 = vadd.f32 0.0, %v1295
      %1297 = vmatmul.bf16.gmra.mxu0 %v1247
      %v1298 = vpop.f32.mrf.mxu0
      %v1299 = vadd.f32 0.0, %v1298
      %v1300 = vpop.f32.mrf.mxu0
      %v1301 = vadd.f32 0.0, %v1300
      %1302 = vmatmul.bf16.gmra.mxu0 %v1250
      %v1303 = vpop.f32.mrf.mxu0
      %v1304 = vadd.f32 0.0, %v1303
      %v1305 = vpop.f32.mrf.mxu0
      %v1306 = vadd.f32 0.0, %v1305
      %1307 = vmatmul.bf16.gmra.mxu0 %v1253
      %v1308 = vpop.f32.mrf.mxu0
      %v1309 = vadd.f32 0.0, %v1308
      %v1310 = vpop.f32.mrf.mxu0
      %v1311 = vadd.f32 0.0, %v1310
      %1312 = vdwg.mxu0
      %1313 = vmatpush.bf16.msra.mxu0 0
      %1314 = vmatpush.bf16.msra.mxu0 0
      %1315 = vmatpush.bf16.msra.mxu0 0
      %1316 = vmatpush.bf16.msra.mxu0 0
      %1317 = vmatpush.bf16.msra.mxu0 0
      %1318 = vmatpush.bf16.msra.mxu0 0
      %1319 = vmatpush.bf16.msra.mxu0 %v1231
      %1320 = vmatpush.bf16.msra.mxu0 %v1225
      %1321 = vmatmul.bf16.gmra.mxu0 %v1244
      %v1322 = vpop.f32.mrf.mxu0
      %v1323 = vadd.f32 0.0, %v1322
      %v1324 = vpop.f32.mrf.mxu0
      %v1325 = vadd.f32 0.0, %v1324
      %1326 = vmatmul.bf16.gmra.mxu0 %v1247
      %v1327 = vpop.f32.mrf.mxu0
      %v1328 = vadd.f32 0.0, %v1327
      %v1329 = vpop.f32.mrf.mxu0
      %v1330 = vadd.f32 0.0, %v1329
      %1331 = vmatmul.bf16.gmra.mxu0 %v1250
      %v1332 = vpop.f32.mrf.mxu0
      %v1333 = vadd.f32 0.0, %v1332
      %v1334 = vpop.f32.mrf.mxu0
      %v1335 = vadd.f32 0.0, %v1334
      %1336 = vmatmul.bf16.gmra.mxu0 %v1253
      %v1337 = vpop.f32.mrf.mxu0
      %v1338 = vadd.f32 0.0, %v1337
      %v1339 = vpop.f32.mrf.mxu0
      %v1340 = vadd.f32 0.0, %v1339
      %1341 = vdwg.mxu0
      %v1342 = vadd.f32 %v1167, %v1265
      %v1343 = vadd.f32 %v1168, %v1294
      %v1344 = vadd.f32 %v1169, %v1323
      %v1345 = vadd.f32 %v1170, %v1267
      %v1346 = vadd.f32 %v1171, %v1296
      %v1347 = vadd.f32 %v1172, %v1325
      %v1348 = vadd.f32 %v1173, %v1270
      %v1349 = vadd.f32 %v1174, %v1299
      %v1350 = vadd.f32 %v1175, %v1328
      %v1351 = vadd.f32 %v1176, %v1272
      %v1352 = vadd.f32 %v1177, %v1301
      %v1353 = vadd.f32 %v1178, %v1330
      %v1354 = vadd.f32 %v1179, %v1275
      %v1355 = vadd.f32 %v1180, %v1304
      %v1356 = vadd.f32 %v1181, %v1333
      %v1357 = vadd.f32 %v1182, %v1277
      %v1358 = vadd.f32 %v1183, %v1306
      %v1359 = vadd.f32 %v1184, %v1335
      %v1360 = vadd.f32 %v1185, %v1280
      %v1361 = vadd.f32 %v1186, %v1309
      %v1362 = vadd.f32 %v1187, %v1338
      %v1363 = vadd.f32 %v1188, %v1282
      %v1364 = vadd.f32 %v1189, %v1311
      %v1365 = vadd.f32 %v1190, %v1340
      %s1366 = scalar_lea.vmem %s1, 224
      %v1367 = vld [vmem:[%s1366] sm:$0xf]
      %v1368 = vld [vmem:[%s1366 + $0x4] sm:$0xf]
      %v1369 = vld [vmem:[%s1366 + $0x8] sm:$0xf]
      %v1370 = vld [vmem:[%s1366 + $0xc] sm:$0xf]
      %v1371 = vld [vmem:[%s1366 + $0x10] sm:$0xf]
      %v1372 = vld [vmem:[%s1366 + $0x14] sm:$0xf]
      %v1373 = vld [vmem:[%s1366 + $0x18] sm:$0xf]
      %v1374 = vld [vmem:[%s1366 + $0x1c] sm:$0xf]
      %v1383 = vunpack.c.l.b16 %v1367
      %v1384 = vunpack.c.l.b16 %v1368
      %v1385 = vunpack.c.l.b16 %v1369
      %v1386 = vunpack.c.l.b16 %v1370
      %v1387 = vunpack.c.l.b16 %v1371
      %v1388 = vunpack.c.l.b16 %v1372
      %v1389 = vunpack.c.l.b16 %v1373
      %v1390 = vunpack.c.l.b16 %v1374
      %v1391 = vpack.c.b16 %v1384, %v1383
      %v1392 = vpack.c.b16 %v1386, %v1385
      %v1393 = vpack.c.b16 %v1388, %v1387
      %v1394 = vpack.c.b16 %v1390, %v1389
      %1395 = vrot.lane.b32.xlu0 %v237, 91
      %v1396 = vpop.permute.xlu0 %1395
      %1397 = vrot.lane.b32.xlu0 %v238, 91
      %v1398 = vpop.permute.xlu0 %1397
      %1399 = vrot.lane.b32.xlu0 %v239, 91
      %v1400 = vpop.permute.xlu0 %1399
      %1401 = vrot.lane.b32.xlu0 %v240, 91
      %v1402 = vpop.permute.xlu0 %1401
      %1403 = vrot.lane.b32.xlu0 %v241, 91
      %v1404 = vpop.permute.xlu0 %1403
      %1405 = vrot.lane.b32.xlu0 %v242, 91
      %v1406 = vpop.permute.xlu0 %1405
      %vm1407 = vcmask 744448
      %v1408 = vsel %vm1407, %v1396, %v1398
      %v1409 = vsel %vm1407, %v1398, %v1400
      %v1410 = vsel %vm1407, %v1402, %v1404
      %v1411 = vsel %vm1407, %v1404, %v1406
      %v1419 = vsel %vm266, %v1391, 0
      %v1422 = vsel %vm266, %v1392, 0
      %v1425 = vsel %vm266, %v1393, 0
      %v1428 = vsel %vm266, %v1394, 0
      %1430 = vmatpush.bf16.msra.mxu0 0
      %1431 = vmatpush.bf16.msra.mxu0 0
      %1432 = vmatpush.bf16.msra.mxu0 0
      %1433 = vmatpush.bf16.msra.mxu0 0
      %1434 = vmatpush.bf16.msra.mxu0 0
      %1435 = vmatpush.bf16.msra.mxu0 0
      %1436 = vmatpush.bf16.msra.mxu0 %v1410
      %1437 = vmatpush.bf16.msra.mxu0 %v1408
      %1438 = vmatmul.bf16.gmra.mxu0 %v1419
      %v1439 = vpop.f32.mrf.mxu0
      %v1440 = vadd.f32 0.0, %v1439
      %v1441 = vpop.f32.mrf.mxu0
      %v1442 = vadd.f32 0.0, %v1441
      %1443 = vmatmul.bf16.gmra.mxu0 %v1422
      %v1444 = vpop.f32.mrf.mxu0
      %v1445 = vadd.f32 0.0, %v1444
      %v1446 = vpop.f32.mrf.mxu0
      %v1447 = vadd.f32 0.0, %v1446
      %1448 = vmatmul.bf16.gmra.mxu0 %v1425
      %v1449 = vpop.f32.mrf.mxu0
      %v1450 = vadd.f32 0.0, %v1449
      %v1451 = vpop.f32.mrf.mxu0
      %v1452 = vadd.f32 0.0, %v1451
      %1453 = vmatmul.bf16.gmra.mxu0 %v1428
      %v1454 = vpop.f32.mrf.mxu0
      %v1455 = vadd.f32 0.0, %v1454
      %v1456 = vpop.f32.mrf.mxu0
      %v1457 = vadd.f32 0.0, %v1456
      %1458 = vdwg.mxu0
      %1459 = vmatpush.bf16.msra.mxu0 0
      %1460 = vmatpush.bf16.msra.mxu0 0
      %1461 = vmatpush.bf16.msra.mxu0 0
      %1462 = vmatpush.bf16.msra.mxu0 0
      %1463 = vmatpush.bf16.msra.mxu0 0
      %1464 = vmatpush.bf16.msra.mxu0 0
      %1465 = vmatpush.bf16.msra.mxu0 %v1411
      %1466 = vmatpush.bf16.msra.mxu0 %v1409
      %1467 = vmatmul.bf16.gmra.mxu0 %v1419
      %v1468 = vpop.f32.mrf.mxu0
      %v1469 = vadd.f32 0.0, %v1468
      %v1470 = vpop.f32.mrf.mxu0
      %v1471 = vadd.f32 0.0, %v1470
      %1472 = vmatmul.bf16.gmra.mxu0 %v1422
      %v1473 = vpop.f32.mrf.mxu0
      %v1474 = vadd.f32 0.0, %v1473
      %v1475 = vpop.f32.mrf.mxu0
      %v1476 = vadd.f32 0.0, %v1475
      %1477 = vmatmul.bf16.gmra.mxu0 %v1425
      %v1478 = vpop.f32.mrf.mxu0
      %v1479 = vadd.f32 0.0, %v1478
      %v1480 = vpop.f32.mrf.mxu0
      %v1481 = vadd.f32 0.0, %v1480
      %1482 = vmatmul.bf16.gmra.mxu0 %v1428
      %v1483 = vpop.f32.mrf.mxu0
      %v1484 = vadd.f32 0.0, %v1483
      %v1485 = vpop.f32.mrf.mxu0
      %v1486 = vadd.f32 0.0, %v1485
      %1487 = vdwg.mxu0
      %1488 = vmatpush.bf16.msra.mxu0 0
      %1489 = vmatpush.bf16.msra.mxu0 0
      %1490 = vmatpush.bf16.msra.mxu0 0
      %1491 = vmatpush.bf16.msra.mxu0 0
      %1492 = vmatpush.bf16.msra.mxu0 0
      %1493 = vmatpush.bf16.msra.mxu0 0
      %1494 = vmatpush.bf16.msra.mxu0 %v1406
      %1495 = vmatpush.bf16.msra.mxu0 %v1400
      %1496 = vmatmul.bf16.gmra.mxu0 %v1419
      %v1497 = vpop.f32.mrf.mxu0
      %v1498 = vadd.f32 0.0, %v1497
      %v1499 = vpop.f32.mrf.mxu0
      %v1500 = vadd.f32 0.0, %v1499
      %1501 = vmatmul.bf16.gmra.mxu0 %v1422
      %v1502 = vpop.f32.mrf.mxu0
      %v1503 = vadd.f32 0.0, %v1502
      %v1504 = vpop.f32.mrf.mxu0
      %v1505 = vadd.f32 0.0, %v1504
      %1506 = vmatmul.bf16.gmra.mxu0 %v1425
      %v1507 = vpop.f32.mrf.mxu0
      %v1508 = vadd.f32 0.0, %v1507
      %v1509 = vpop.f32.mrf.mxu0
      %v1510 = vadd.f32 0.0, %v1509
      %1511 = vmatmul.bf16.gmra.mxu0 %v1428
      %v1512 = vpop.f32.mrf.mxu0
      %v1513 = vadd.f32 0.0, %v1512
      %v1514 = vpop.f32.mrf.mxu0
      %v1515 = vadd.f32 0.0, %v1514
      %1516 = vdwg.mxu0
      %v1517 = vadd.f32 %v1342, %v1440
      %v1518 = vadd.f32 %v1343, %v1469
      %v1519 = vadd.f32 %v1344, %v1498
      %v1520 = vadd.f32 %v1345, %v1442
      %v1521 = vadd.f32 %v1346, %v1471
      %v1522 = vadd.f32 %v1347, %v1500
      %v1523 = vadd.f32 %v1348, %v1445
      %v1524 = vadd.f32 %v1349, %v1474
      %v1525 = vadd.f32 %v1350, %v1503
      %v1526 = vadd.f32 %v1351, %v1447
      %v1527 = vadd.f32 %v1352, %v1476
      %v1528 = vadd.f32 %v1353, %v1505
      %v1529 = vadd.f32 %v1354, %v1450
      %v1530 = vadd.f32 %v1355, %v1479
      %v1531 = vadd.f32 %v1356, %v1508
      %v1532 = vadd.f32 %v1357, %v1452
      %v1533 = vadd.f32 %v1358, %v1481
      %v1534 = vadd.f32 %v1359, %v1510
      %v1535 = vadd.f32 %v1360, %v1455
      %v1536 = vadd.f32 %v1361, %v1484
      %v1537 = vadd.f32 %v1362, %v1513
      %v1538 = vadd.f32 %v1363, %v1457
      %v1539 = vadd.f32 %v1364, %v1486
      %v1540 = vadd.f32 %v1365, %v1515
      %s1541 = scalar_lea.vmem %s1, 256
      %v1542 = vld [vmem:[%s1541] sm:$0xf]
      %v1543 = vld [vmem:[%s1541 + $0x4] sm:$0xf]
      %v1544 = vld [vmem:[%s1541 + $0x8] sm:$0xf]
      %v1545 = vld [vmem:[%s1541 + $0xc] sm:$0xf]
      %v1546 = vld [vmem:[%s1541 + $0x10] sm:$0xf]
      %v1547 = vld [vmem:[%s1541 + $0x14] sm:$0xf]
      %v1548 = vld [vmem:[%s1541 + $0x18] sm:$0xf]
      %v1549 = vld [vmem:[%s1541 + $0x1c] sm:$0xf]
      %v1558 = vunpack.c.l.b16 %v1542
      %v1559 = vunpack.c.l.b16 %v1543
      %v1560 = vunpack.c.l.b16 %v1544
      %v1561 = vunpack.c.l.b16 %v1545
      %v1562 = vunpack.c.l.b16 %v1546
      %v1563 = vunpack.c.l.b16 %v1547
      %v1564 = vunpack.c.l.b16 %v1548
      %v1565 = vunpack.c.l.b16 %v1549
      %v1566 = vpack.c.b16 %v1559, %v1558
      %v1567 = vpack.c.b16 %v1561, %v1560
      %v1568 = vpack.c.b16 %v1563, %v1562
      %v1569 = vpack.c.b16 %v1565, %v1564
      %1570 = vrot.lane.b32.xlu0 %v237, 90
      %v1571 = vpop.permute.xlu0 %1570
      %1572 = vrot.lane.b32.xlu0 %v238, 90
      %v1573 = vpop.permute.xlu0 %1572
      %1574 = vrot.lane.b32.xlu0 %v239, 90
      %v1575 = vpop.permute.xlu0 %1574
      %1576 = vrot.lane.b32.xlu0 %v240, 90
      %v1577 = vpop.permute.xlu0 %1576
      %1578 = vrot.lane.b32.xlu0 %v241, 90
      %v1579 = vpop.permute.xlu0 %1578
      %1580 = vrot.lane.b32.xlu0 %v242, 90
      %v1581 = vpop.permute.xlu0 %1580
      %vm1582 = vcmask 736256
      %v1583 = vsel %vm1582, %v1571, %v1573
      %v1584 = vsel %vm1582, %v1573, %v1575
      %v1585 = vsel %vm1582, %v1577, %v1579
      %v1586 = vsel %vm1582, %v1579, %v1581
      %v1594 = vsel %vm266, %v1566, 0
      %v1597 = vsel %vm266, %v1567, 0
      %v1600 = vsel %vm266, %v1568, 0
      %v1603 = vsel %vm266, %v1569, 0
      %1605 = vmatpush.bf16.msra.mxu0 0
      %1606 = vmatpush.bf16.msra.mxu0 0
      %1607 = vmatpush.bf16.msra.mxu0 0
      %1608 = vmatpush.bf16.msra.mxu0 0
      %1609 = vmatpush.bf16.msra.mxu0 0
      %1610 = vmatpush.bf16.msra.mxu0 0
      %1611 = vmatpush.bf16.msra.mxu0 %v1585
      %1612 = vmatpush.bf16.msra.mxu0 %v1583
      %1613 = vmatmul.bf16.gmra.mxu0 %v1594
      %v1614 = vpop.f32.mrf.mxu0
      %v1615 = vadd.f32 0.0, %v1614
      %v1616 = vpop.f32.mrf.mxu0
      %v1617 = vadd.f32 0.0, %v1616
      %1618 = vmatmul.bf16.gmra.mxu0 %v1597
      %v1619 = vpop.f32.mrf.mxu0
      %v1620 = vadd.f32 0.0, %v1619
      %v1621 = vpop.f32.mrf.mxu0
      %v1622 = vadd.f32 0.0, %v1621
      %1623 = vmatmul.bf16.gmra.mxu0 %v1600
      %v1624 = vpop.f32.mrf.mxu0
      %v1625 = vadd.f32 0.0, %v1624
      %v1626 = vpop.f32.mrf.mxu0
      %v1627 = vadd.f32 0.0, %v1626
      %1628 = vmatmul.bf16.gmra.mxu0 %v1603
      %v1629 = vpop.f32.mrf.mxu0
      %v1630 = vadd.f32 0.0, %v1629
      %v1631 = vpop.f32.mrf.mxu0
      %v1632 = vadd.f32 0.0, %v1631
      %1633 = vdwg.mxu0
      %1634 = vmatpush.bf16.msra.mxu0 0
      %1635 = vmatpush.bf16.msra.mxu0 0
      %1636 = vmatpush.bf16.msra.mxu0 0
      %1637 = vmatpush.bf16.msra.mxu0 0
      %1638 = vmatpush.bf16.msra.mxu0 0
      %1639 = vmatpush.bf16.msra.mxu0 0
      %1640 = vmatpush.bf16.msra.mxu0 %v1586
      %1641 = vmatpush.bf16.msra.mxu0 %v1584
      %1642 = vmatmul.bf16.gmra.mxu0 %v1594
      %v1643 = vpop.f32.mrf.mxu0
      %v1644 = vadd.f32 0.0, %v1643
      %v1645 = vpop.f32.mrf.mxu0
      %v1646 = vadd.f32 0.0, %v1645
      %1647 = vmatmul.bf16.gmra.mxu0 %v1597
      %v1648 = vpop.f32.mrf.mxu0
      %v1649 = vadd.f32 0.0, %v1648
      %v1650 = vpop.f32.mrf.mxu0
      %v1651 = vadd.f32 0.0, %v1650
      %1652 = vmatmul.bf16.gmra.mxu0 %v1600
      %v1653 = vpop.f32.mrf.mxu0
      %v1654 = vadd.f32 0.0, %v1653
      %v1655 = vpop.f32.mrf.mxu0
      %v1656 = vadd.f32 0.0, %v1655
      %1657 = vmatmul.bf16.gmra.mxu0 %v1603
      %v1658 = vpop.f32.mrf.mxu0
      %v1659 = vadd.f32 0.0, %v1658
      %v1660 = vpop.f32.mrf.mxu0
      %v1661 = vadd.f32 0.0, %v1660
      %1662 = vdwg.mxu0
      %1663 = vmatpush.bf16.msra.mxu0 0
      %1664 = vmatpush.bf16.msra.mxu0 0
      %1665 = vmatpush.bf16.msra.mxu0 0
      %1666 = vmatpush.bf16.msra.mxu0 0
      %1667 = vmatpush.bf16.msra.mxu0 0
      %1668 = vmatpush.bf16.msra.mxu0 0
      %1669 = vmatpush.bf16.msra.mxu0 %v1581
      %1670 = vmatpush.bf16.msra.mxu0 %v1575
      %1671 = vmatmul.bf16.gmra.mxu0 %v1594
      %v1672 = vpop.f32.mrf.mxu0
      %v1673 = vadd.f32 0.0, %v1672
      %v1674 = vpop.f32.mrf.mxu0
      %v1675 = vadd.f32 0.0, %v1674
      %1676 = vmatmul.bf16.gmra.mxu0 %v1597
      %v1677 = vpop.f32.mrf.mxu0
      %v1678 = vadd.f32 0.0, %v1677
      %v1679 = vpop.f32.mrf.mxu0
      %v1680 = vadd.f32 0.0, %v1679
      %1681 = vmatmul.bf16.gmra.mxu0 %v1600
      %v1682 = vpop.f32.mrf.mxu0
      %v1683 = vadd.f32 0.0, %v1682
      %v1684 = vpop.f32.mrf.mxu0
      %v1685 = vadd.f32 0.0, %v1684
      %1686 = vmatmul.bf16.gmra.mxu0 %v1603
      %v1687 = vpop.f32.mrf.mxu0
      %v1688 = vadd.f32 0.0, %v1687
      %v1689 = vpop.f32.mrf.mxu0
      %v1690 = vadd.f32 0.0, %v1689
      %1691 = vdwg.mxu0
      %v1692 = vadd.f32 %v1517, %v1615
      %v1693 = vadd.f32 %v1518, %v1644
      %v1694 = vadd.f32 %v1519, %v1673
      %v1695 = vadd.f32 %v1520, %v1617
      %v1696 = vadd.f32 %v1521, %v1646
      %v1697 = vadd.f32 %v1522, %v1675
      %v1698 = vadd.f32 %v1523, %v1620
      %v1699 = vadd.f32 %v1524, %v1649
      %v1700 = vadd.f32 %v1525, %v1678
      %v1701 = vadd.f32 %v1526, %v1622
      %v1702 = vadd.f32 %v1527, %v1651
      %v1703 = vadd.f32 %v1528, %v1680
      %v1704 = vadd.f32 %v1529, %v1625
      %v1705 = vadd.f32 %v1530, %v1654
      %v1706 = vadd.f32 %v1531, %v1683
      %v1707 = vadd.f32 %v1532, %v1627
      %v1708 = vadd.f32 %v1533, %v1656
      %v1709 = vadd.f32 %v1534, %v1685
      %v1710 = vadd.f32 %v1535, %v1630
      %v1711 = vadd.f32 %v1536, %v1659
      %v1712 = vadd.f32 %v1537, %v1688
      %v1713 = vadd.f32 %v1538, %v1632
      %v1714 = vadd.f32 %v1539, %v1661
      %v1715 = vadd.f32 %v1540, %v1690
      %v1716 = vld [vmem:[%s2] sm:$0xff]
      %v1717 = vld [vmem:[%s2 + $0x8] sm:$0xff]
      %v1718 = vld [vmem:[%s2 + $0x10] sm:$0xff]
      %v1719 = vld [vmem:[%s2 + $0x18] sm:$0xff]
      %v1720 = vld [vmem:[%s2 + $0x20] sm:$0xff]
      %v1721 = vld [vmem:[%s2 + $0x28] sm:$0xff]
      %v1722 = vld [vmem:[%s2 + $0x30] sm:$0xff]
      %v1723 = vld [vmem:[%s2 + $0x38] sm:$0xff]
      %1725 = vset.pattern.permute.xlu0 0
      %1726 = vperm.xlu0 %1725, %v1716
      %v1727 = vpop.permute.xlu0 %1726
      %1730 = vset.pattern.permute.xlu0 0
      %1731 = vperm.xlu0 %1730, %v1717
      %v1732 = vpop.permute.xlu0 %1731
      %1735 = vset.pattern.permute.xlu0 0
      %1736 = vperm.xlu0 %1735, %v1718
      %v1737 = vpop.permute.xlu0 %1736
      %1740 = vset.pattern.permute.xlu0 0
      %1741 = vperm.xlu0 %1740, %v1719
      %v1742 = vpop.permute.xlu0 %1741
      %1745 = vset.pattern.permute.xlu0 0
      %1746 = vperm.xlu0 %1745, %v1720
      %v1747 = vpop.permute.xlu0 %1746
      %1750 = vset.pattern.permute.xlu0 0
      %1751 = vperm.xlu0 %1750, %v1721
      %v1752 = vpop.permute.xlu0 %1751
      %1755 = vset.pattern.permute.xlu0 0
      %1756 = vperm.xlu0 %1755, %v1722
      %v1757 = vpop.permute.xlu0 %1756
      %1760 = vset.pattern.permute.xlu0 0
      %1761 = vperm.xlu0 %1760, %v1723
      %v1762 = vpop.permute.xlu0 %1761
      %v1764 = vadd.f32 %v1692, %v1727
      %v1765 = vadd.f32 %v1693, %v1727
      %v1766 = vadd.f32 %v1694, %v1727
      %v1767 = vadd.f32 %v1695, %v1732
      %v1768 = vadd.f32 %v1696, %v1732
      %v1769 = vadd.f32 %v1697, %v1732
      %v1770 = vadd.f32 %v1698, %v1737
      %v1771 = vadd.f32 %v1699, %v1737
      %v1772 = vadd.f32 %v1700, %v1737
      %v1773 = vadd.f32 %v1701, %v1742
      %v1774 = vadd.f32 %v1702, %v1742
      %v1775 = vadd.f32 %v1703, %v1742
      %v1776 = vadd.f32 %v1704, %v1747
      %v1777 = vadd.f32 %v1705, %v1747
      %v1778 = vadd.f32 %v1706, %v1747
      %v1779 = vadd.f32 %v1707, %v1752
      %v1780 = vadd.f32 %v1708, %v1752
      %v1781 = vadd.f32 %v1709, %v1752
      %v1782 = vadd.f32 %v1710, %v1757
      %v1783 = vadd.f32 %v1711, %v1757
      %v1784 = vadd.f32 %v1712, %v1757
      %v1785 = vadd.f32 %v1713, %v1762
      %v1786 = vadd.f32 %v1714, %v1762
      %v1787 = vadd.f32 %v1715, %v1762
      %v1788 = vmax.f32 %v1764, 0.0
      %v1789 = vmax.f32 %v1765, 0.0
      %v1790 = vmax.f32 %v1766, 0.0
      %v1791 = vmax.f32 %v1767, 0.0
      %v1792 = vmax.f32 %v1768, 0.0
      %v1793 = vmax.f32 %v1769, 0.0
      %v1794 = vmax.f32 %v1770, 0.0
      %v1795 = vmax.f32 %v1771, 0.0
      %v1796 = vmax.f32 %v1772, 0.0
      %v1797 = vmax.f32 %v1773, 0.0
      %v1798 = vmax.f32 %v1774, 0.0
      %v1799 = vmax.f32 %v1775, 0.0
      %v1800 = vmax.f32 %v1776, 0.0
      %v1801 = vmax.f32 %v1777, 0.0
      %v1802 = vmax.f32 %v1778, 0.0
      %v1803 = vmax.f32 %v1779, 0.0
      %v1804 = vmax.f32 %v1780, 0.0
      %v1805 = vmax.f32 %v1781, 0.0
      %v1806 = vmax.f32 %v1782, 0.0
      %v1807 = vmax.f32 %v1783, 0.0
      %v1808 = vmax.f32 %v1784, 0.0
      %v1809 = vmax.f32 %v1785, 0.0
      %v1810 = vmax.f32 %v1786, 0.0
      %v1811 = vmax.f32 %v1787, 0.0
      %v1812 = vpack.c.bf16 %v1789, %v1788
      %v1813 = vpack.c.bf16 %v1790, %v1790
      %v1814 = vpack.c.bf16 %v1792, %v1791
      %v1815 = vpack.c.bf16 %v1793, %v1793
      %v1816 = vpack.c.bf16 %v1795, %v1794
      %v1817 = vpack.c.bf16 %v1796, %v1796
      %v1818 = vpack.c.bf16 %v1798, %v1797
      %v1819 = vpack.c.bf16 %v1799, %v1799
      %v1820 = vpack.c.bf16 %v1801, %v1800
      %v1821 = vpack.c.bf16 %v1802, %v1802
      %v1822 = vpack.c.bf16 %v1804, %v1803
      %v1823 = vpack.c.bf16 %v1805, %v1805
      %v1824 = vpack.c.bf16 %v1807, %v1806
      %v1825 = vpack.c.bf16 %v1808, %v1808
      %v1826 = vpack.c.bf16 %v1810, %v1809
      %v1827 = vpack.c.bf16 %v1811, %v1811
      %1828 = vst [vmem:[%s170] sm:$0xff] %v1812
      %vm1829 = vcmask 257024
      %1830 = vst.msk [vmem:[%s170 + $0x8] sm:$0xf] %vm1829, %v1813
      %1831 = vst [vmem:[%s170 + $0xc] sm:$0xff] %v1814
      %1832 = vst.msk [vmem:[%s170 + $0x14] sm:$0xf] %vm1829, %v1815
      %1833 = vst [vmem:[%s170 + $0x18] sm:$0xff] %v1816
      %1834 = vst.msk [vmem:[%s170 + $0x20] sm:$0xf] %vm1829, %v1817
      %1835 = vst [vmem:[%s170 + $0x24] sm:$0xff] %v1818
      %1836 = vst.msk [vmem:[%s170 + $0x2c] sm:$0xf] %vm1829, %v1819
      %1837 = vst [vmem:[%s170 + $0x30] sm:$0xff] %v1820
      %1838 = vst.msk [vmem:[%s170 + $0x38] sm:$0xf] %vm1829, %v1821
      %1839 = vst [vmem:[%s170 + $0x3c] sm:$0xff] %v1822
      %1840 = vst.msk [vmem:[%s170 + $0x44] sm:$0xf] %vm1829, %v1823
      %1841 = vst [vmem:[%s170 + $0x48] sm:$0xff] %v1824
      %1842 = vst.msk [vmem:[%s170 + $0x50] sm:$0xf] %vm1829, %v1825
      %1843 = vst [vmem:[%s170 + $0x54] sm:$0xff] %v1826
      %1844 = vst.msk [vmem:[%s170 + $0x5c] sm:$0xf] %vm1829, %v1827
      %p1845 = scmp.lt.s32.totalorder %s14, 1
      %s1846 = scalar_select %p1845, %s14, 1
      %s1847 = smul.addr %s1846, 24
      %s1848 = smul.addr %s1847, 4
      %s1849 = scalar_lea.vmem %s3, %s1848
      // Predicated region
      $region33: #{cnn_forward.4} parent=31 // pred_check
        %p1850 = pneg %p100
      $region34: #{cnn_forward.4} parent=31 // pred_check_branch
        %1852 = sbr.rel (%p1850) target = $region36
      $region35: #{cnn_forward.4} parent=31 // pred_region
        _
      $region36: #{cnn_forward.4} parent=31 // pred_fallthru
        _
    $region32: #{cnn_forward.4} parent=5 // pred_fallthru
      _
    %p1853 = scmp.le.s32.totalorder 2, %s9
    // Predicated region
    $region37: #{cnn_forward.4} parent=5 // pred_check
      %p1854 = pneg %p1853
    $region38: #{cnn_forward.4} parent=5 // pred_check_branch
      %1856 = sbr.rel (%p1854) target = $region40
    $region39: #{cnn_forward.4} parent=5 // pred_region
      %s1857 = ssub.s32 %s9, 2
      // Predicated region
      $region41: #{cnn_forward.4} parent=39 // pred_check
        %p1858 = pneg %p106
      $region42: #{cnn_forward.4} parent=39 // pred_check_branch
        %1860 = sbr.rel (%p1858) target = $region44
      $region43: #{cnn_forward.4} parent=39 // pred_region
        %p1861 = scmp.lt.s32.totalorder %s15, 1
        %s1862 = scalar_select %p1861, %s15, 1
        %s1863 = smul.addr %s1862, 24
        %s1864 = smul.addr %s1863, 4
        %s1865 = scalar_lea.vmem %s3, %s1864
      $region44: #{cnn_forward.4} parent=39 // pred_fallthru
        _
    $region40: #{cnn_forward.4} parent=5 // pred_fallthru
      _
  $region6: #{cnn_forward.4} parent=0 // loop_footer
    %s13 = sadd.s32 1, %s9
  $region7: #{cnn_forward.4} parent=0 // loop_footer_branch
    %8 = sbr.rel target = $region3
  $region8: #{cnn_forward.4} parent=0 // loop_exit
    _

// kernel: cnn_forward.5
$region0: #{cnn_forward.5}
  #allocation0 [shape = 'u32[]', space=smem, size = 0x4, offset = 0x4, fixed_abs, tag = 'smem constant byte address 0x4 - core index']
  #allocation1 [shape = 'u32[72,128]{1,0:T(1,128)}', space=vmem, size = 0x9000, scoped, tag = 'internal scratch']
  #allocation2 [shape = 'f32[8,256]{1,0:T(8,128)}', space=vmem, size = 0x2000, scoped, tag = 'scratch operand']
  %s0 = inlined_call_operand.vmem [shape: bf16[8,4096], index: 0, kind: input, shape index: {}]
  %s1 = inlined_call_operand.vmem [shape: bf16[4096,256], index: 1, kind: input, shape index: {}]
  %s2 = inlined_call_operand.vmem [shape: f32[1,256], index: 2, kind: input, shape index: {}]
  %s3 = inlined_call_operand.vmem [shape: bf16[256,128], index: 3, kind: input, shape index: {}]
  %s4 = inlined_call_operand.vmem [shape: f32[1,128], index: 4, kind: input, shape index: {}]
  %s5 = inlined_call_operand.vmem [shape: f32[8,128], index: 5, kind: output, shape index: {}]
  %s6 = sld [smem:[#allocation0]]
  $region61: #{cnn_forward.5} parent=0
    _
  %s8 = ssub.s32 1, %s6
  %s9 = scalar_select 0, %s8, %s6
  loop: start=0, step=1, limit=10
  $region2: #{cnn_forward.5} parent=0 // loop_pre_header
    _
  $region3: #{cnn_forward.5} parent=0 // loop_header
    %s11 = sphi 0, %s15
    %p12 = scmp.ge.s32.totalorder %s11, 10
    %s21 = sphi 0, %s23
    %s24 = sphi 0, %s21
    %s25 = sphi 0, %s24
    %s41 = sphi 0, %s25
    %s47 = sphi 0, %s49
    %s50 = sphi 0, %s47
    %s51 = sphi 0, %s50
    %s67 = sphi 0, %s51
    %s71 = sphi 0, %s71
    %s73 = sphi 0, %s71
    %s74 = sphi 0, %s73
    %s88 = sphi 0, %s74
    %s92 = sphi 0, %s92
    %s94 = sphi 0, %s92
    %s95 = sphi 0, %s94
    %s109 = sphi 0, %s95
    %s113 = sphi 0, %s113
    %s115 = sphi 0, %s113
    %s116 = sphi 0, %s115
    %s130 = sphi 0, %s116
    %s134 = sphi 0, %s134
    %s136 = sphi 0, %s134
    %s137 = sphi 0, %s136
    %s151 = sphi 0, %s137
  $region4: #{cnn_forward.5} parent=0 // loop_header_branch
    %14 = sbr.rel (%p12) target = $region8
  $region5: #{cnn_forward.5} parent=0 // loop_body
    %s16 = ssub.s32 %s11, 1
    %s17 = ssub.s32 %s11, 2
    %s18 = sadd.s32 %s11, 1
    %s19 = ssub.s32 %s11, %s18
    %p20 = scmp.eq.s32.totalorder %s19, 0
    %s22 = sadd.s32 %s21, 1
    %s23 = scalar_select %p20, %s21, %s22
    %p26 = pneg %p20
    %p27 = scmp.eq.s32.totalorder %s11, 7
    %p28 = por %p26, %p27
    %p29 = scmp.ne.s32.totalorder %s21, %s24
    %p30 = scmp.eq.s32.totalorder %s11, 0
    %p31 = por %p29, %p30
    %p32 = scmp.ne.s32.totalorder %s21, %s24
    %p33 = scmp.eq.s32.totalorder %s16, 7
    %p34 = por %p32, %p33
    %p35 = scmp.ne.s32.totalorder %s24, %s25
    %p36 = scmp.eq.s32.totalorder %s16, 0
    %p37 = por %p35, %p36
    %p38 = scmp.ne.s32.totalorder %s24, %s25
    %p39 = scmp.eq.s32.totalorder %s17, 7
    %p40 = por %p38, %p39
    %p42 = scmp.ne.s32.totalorder %s25, %s41
    %p43 = scmp.eq.s32.totalorder %s17, 0
    %p44 = por %p42, %p43
    %s45 = ssub.s32 %s11, %s18
    %p46 = scmp.eq.s32.totalorder %s45, 0
    %s48 = sadd.s32 %s47, 1
    %s49 = scalar_select %p46, %s47, %s48
    %p52 = pneg %p46
    %p53 = scmp.eq.s32.totalorder %s11, 7
    %p54 = por %p52, %p53
    %p55 = scmp.ne.s32.totalorder %s47, %s50
    %p56 = scmp.eq.s32.totalorder %s11, 0
    %p57 = por %p55, %p56
    %p58 = scmp.ne.s32.totalorder %s47, %s50
    %p59 = scmp.eq.s32.totalorder %s16, 7
    %p60 = por %p58, %p59
    %p61 = scmp.ne.s32.totalorder %s50, %s51
    %p62 = scmp.eq.s32.totalorder %s16, 0
    %p63 = por %p61, %p62
    %p64 = scmp.ne.s32.totalorder %s50, %s51
    %p65 = scmp.eq.s32.totalorder %s17, 7
    %p66 = por %p64, %p65
    %p68 = scmp.ne.s32.totalorder %s51, %s67
    %p69 = scmp.eq.s32.totalorder %s17, 0
    %p70 = por %p68, %p69
    %s72 = sadd.s32 %s71, 1
    %p75 = scmp.eq.s32.totalorder %s11, 7
    %p76 = scmp.ne.s32.totalorder %s71, %s73
    %p77 = scmp.eq.s32.totalorder %s11, 0
    %p78 = por %p76, %p77
    %p79 = scmp.ne.s32.totalorder %s71, %s73
    %p80 = scmp.eq.s32.totalorder %s16, 7
    %p81 = por %p79, %p80
    %p82 = scmp.ne.s32.totalorder %s73, %s74
    %p83 = scmp.eq.s32.totalorder %s16, 0
    %p84 = por %p82, %p83
    %p85 = scmp.ne.s32.totalorder %s73, %s74
    %p86 = scmp.eq.s32.totalorder %s17, 7
    %p87 = por %p85, %p86
    %p89 = scmp.ne.s32.totalorder %s74, %s88
    %p90 = scmp.eq.s32.totalorder %s17, 0
    %p91 = por %p89, %p90
    %s93 = sadd.s32 %s92, 1
    %p96 = scmp.eq.s32.totalorder %s11, 7
    %p97 = scmp.ne.s32.totalorder %s92, %s94
    %p98 = scmp.eq.s32.totalorder %s11, 0
    %p99 = por %p97, %p98
    %p100 = scmp.ne.s32.totalorder %s92, %s94
    %p101 = scmp.eq.s32.totalorder %s16, 7
    %p102 = por %p100, %p101
    %p103 = scmp.ne.s32.totalorder %s94, %s95
    %p104 = scmp.eq.s32.totalorder %s16, 0
    %p105 = por %p103, %p104
    %p106 = scmp.ne.s32.totalorder %s94, %s95
    %p107 = scmp.eq.s32.totalorder %s17, 7
    %p108 = por %p106, %p107
    %p110 = scmp.ne.s32.totalorder %s95, %s109
    %p111 = scmp.eq.s32.totalorder %s17, 0
    %p112 = por %p110, %p111
    %s114 = sadd.s32 %s113, 1
    %p117 = scmp.eq.s32.totalorder %s11, 7
    %p118 = scmp.ne.s32.totalorder %s113, %s115
    %p119 = scmp.eq.s32.totalorder %s11, 0
    %p120 = por %p118, %p119
    %p121 = scmp.ne.s32.totalorder %s113, %s115
    %p122 = scmp.eq.s32.totalorder %s16, 7
    %p123 = por %p121, %p122
    %p124 = scmp.ne.s32.totalorder %s115, %s116
    %p125 = scmp.eq.s32.totalorder %s16, 0
    %p126 = por %p124, %p125
    %p127 = scmp.ne.s32.totalorder %s115, %s116
    %p128 = scmp.eq.s32.totalorder %s17, 7
    %p129 = por %p127, %p128
    %p131 = scmp.ne.s32.totalorder %s116, %s130
    %p132 = scmp.eq.s32.totalorder %s17, 0
    %p133 = por %p131, %p132
    %s135 = sadd.s32 %s134, 1
    %p138 = scmp.eq.s32.totalorder %s11, 7
    %p139 = scmp.ne.s32.totalorder %s134, %s136
    %p140 = scmp.eq.s32.totalorder %s11, 0
    %p141 = por %p139, %p140
    %p142 = scmp.ne.s32.totalorder %s134, %s136
    %p143 = scmp.eq.s32.totalorder %s16, 7
    %p144 = por %p142, %p143
    %p145 = scmp.ne.s32.totalorder %s136, %s137
    %p146 = scmp.eq.s32.totalorder %s16, 0
    %p147 = por %p145, %p146
    %p148 = scmp.ne.s32.totalorder %s136, %s137
    %p149 = scmp.eq.s32.totalorder %s17, 7
    %p150 = por %p148, %p149
    %p152 = scmp.ne.s32.totalorder %s137, %s151
    %p153 = scmp.eq.s32.totalorder %s17, 0
    %p154 = por %p152, %p153
    %p155 = scmp.le.s32.totalorder 1, %s11
    %p156 = scmp.lt.s32.totalorder %s11, 9
    %p157 = pnand %p155, %p156
    %p158 = pneg %p157
    // Predicated region
    $region9: #{cnn_forward.5} parent=5 // pred_check
      _
    $region10: #{cnn_forward.5} parent=5 // pred_check_branch
      %160 = sbr.rel (%p157) target = $region12
    $region11: #{cnn_forward.5} parent=5 // pred_region
      %s161 = ssub.s32 %s11, 1
      // Predicated region
      $region13: #{cnn_forward.5} parent=11 // pred_check
        %p162 = pneg %p84
      $region14: #{cnn_forward.5} parent=11 // pred_check_branch
        %164 = sbr.rel (%p162) target = $region16
      $region15: #{cnn_forward.5} parent=11 // pred_region
        _
      $region16: #{cnn_forward.5} parent=11 // pred_fallthru
        _
      // Predicated region
      $region17: #{cnn_forward.5} parent=11 // pred_check
        %p165 = pneg %p105
      $region18: #{cnn_forward.5} parent=11 // pred_check_branch
        %167 = sbr.rel (%p165) target = $region20
      $region19: #{cnn_forward.5} parent=11 // pred_region
        _
      $region20: #{cnn_forward.5} parent=11 // pred_fallthru
        _
      // Predicated region
      $region21: #{cnn_forward.5} parent=11 // pred_check
        %p168 = pneg %p126
      $region22: #{cnn_forward.5} parent=11 // pred_check_branch
        %170 = sbr.rel (%p168) target = $region24
      $region23: #{cnn_forward.5} parent=11 // pred_region
        _
      $region24: #{cnn_forward.5} parent=11 // pred_fallthru
        _
    $region12: #{cnn_forward.5} parent=5 // pred_fallthru
      _
    %p171 = scmp.lt.s32.totalorder %s11, 8
    // Predicated region
    $region25: #{cnn_forward.5} parent=5 // pred_check
      %p172 = pneg %p171
    $region26: #{cnn_forward.5} parent=5 // pred_check_branch
      %174 = sbr.rel (%p172) target = $region28
    $region27: #{cnn_forward.5} parent=5 // pred_region
      // Predicated region
      $region29: #{cnn_forward.5} parent=27 // pred_check
        %p175 = pneg %p31
      $region30: #{cnn_forward.5} parent=27 // pred_check_branch
        %177 = sbr.rel (%p175) target = $region32
      $region31: #{cnn_forward.5} parent=27 // pred_region
        %s178 = smul.u32 4, %s11
        %p179 = scmp.lt.s32.totalorder %s178, 31
        %s180 = scalar_select %p179, %s178, 31
        %s181 = smul.addr %s180, 4
        %s182 = scalar_lea.vmem %s0, %s181
        %s183 = smul.u32 4, %s11
      $region32: #{cnn_forward.5} parent=27 // pred_fallthru
        _
      // Predicated region
      $region33: #{cnn_forward.5} parent=27 // pred_check
        %p184 = pneg %p57
      $region34: #{cnn_forward.5} parent=27 // pred_check_branch
        %186 = sbr.rel (%p184) target = $region36
      $region35: #{cnn_forward.5} parent=27 // pred_region
        %s187 = smul.u32 64, %s11
        %p188 = scmp.lt.s32.totalorder %s187, 511
        %s189 = scalar_select %p188, %s187, 511
        %s190 = smul.addr %s189, 2
        %s191 = smul.addr %s190, 4
        %s192 = scalar_lea.vmem %s1, %s191
        %s193 = smul.u32 64, %s11
      $region36: #{cnn_forward.5} parent=27 // pred_fallthru
        _
    $region28: #{cnn_forward.5} parent=5 // pred_fallthru
      _
    %p194 = scmp.le.s32.totalorder 1, %s11
    %p195 = scmp.lt.s32.totalorder %s11, 9
    %p196 = pnand %p194, %p195
    %p197 = pneg %p196
    // Predicated region
    $region37: #{cnn_forward.5} parent=5 // pred_check
      _
    $region38: #{cnn_forward.5} parent=5 // pred_check_branch
      %199 = sbr.rel (%p196) target = $region40
    $region39: #{cnn_forward.5} parent=5 // pred_region
      %s200 = ssub.s32 %s11, 1
      %s201 = smul.u32 4, %s16
      %p202 = scmp.lt.s32.totalorder %s201, 31
      %s203 = scalar_select %p202, %s201, 31
      %s204 = smul.addr %s203, 4
      %s205 = scalar_lea.vmem %s0, %s204
      %p206 = pneg %p37
      %p207 = pneg %p34
      %s208 = smul.u32 64, %s16
      %p209 = scmp.lt.s32.totalorder %s208, 511
      %s210 = scalar_select %p209, %s208, 511
      %s211 = smul.addr %s210, 2
      %s212 = smul.addr %s211, 4
      %s213 = scalar_lea.vmem %s1, %s212
      %p214 = pneg %p63
      %p215 = pneg %p60
      %p216 = pneg %p84
      %p217 = pneg %p81
      %p218 = pneg %p105
      %p219 = pneg %p102
      %p220 = pneg %p126
      %p221 = pneg %p123
      %p222 = pneg %p147
      %p223 = pneg %p144
      %s224 = smul.u32 4, %s16
      %p225 = scmp.lt.s32.totalorder %s224, 31
      %s226 = scalar_select %p225, %s224, 31
      %s227 = smul.addr %s226, 4
      %s228 = scalar_lea.vmem %s0, %s227
      %s229 = smul.u32 4, %s16
      %s230 = smul.u32 64, %s16
      %p231 = scmp.lt.s32.totalorder %s230, 511
      %s232 = scalar_select %p231, %s230, 511
      %s233 = smul.addr %s232, 2
      %s234 = smul.addr %s233, 4
      %s235 = scalar_lea.vmem %s1, %s234
      %s236 = smul.u32 64, %s16
      %p237 = scmp.eq.s32.totalorder %s16, 0
      // Predicated region
      $region41: #{cnn_forward.5} parent=39 // pred_check
        %p238 = pneg %p237
      $region42: #{cnn_forward.5} parent=39 // pred_check_branch
        %240 = sbr.rel (%p238) target = $region44
      $region43: #{cnn_forward.5} parent=39 // pred_region
        %241 = vst [vmem:[#allocation2] sm:$0xff] 0.0
        %242 = vst [vmem:[#allocation2 + $0x8] sm:$0xff] 0.0
      $region44: #{cnn_forward.5} parent=39 // pred_fallthru
        _
      %v243 = vld [vmem:[#allocation2] sm:$0xff]
      %v244 = vld [vmem:[#allocation2 + $0x8] sm:$0xff]
      %v245 = vld [vmem:[%s228] sm:$0xff]
      %v246 = vld [vmem:[%s228 + $0x8] sm:$0xff]
      %v247 = vld [vmem:[%s235] sm:$0xff]
      %v248 = vld [vmem:[%s235 + $0x8] sm:$0xff]
      %v249 = vld [vmem:[%s235 + $0x10] sm:$0xff]
      %v250 = vld [vmem:[%s235 + $0x18] sm:$0xff]
      %v251 = vld [vmem:[%s235 + $0x20] sm:$0xff]
      %v252 = vld [vmem:[%s235 + $0x28] sm:$0xff]
      %v253 = vld [vmem:[%s235 + $0x30] sm:$0xff]
      %v254 = vld [vmem:[%s235 + $0x38] sm:$0xff]
      %v255 = vld [vmem:[%s235 + $0x40] sm:$0xff]
      %v256 = vld [vmem:[%s235 + $0x48] sm:$0xff]
      %v257 = vld [vmem:[%s235 + $0x50] sm:$0xff]
      %v258 = vld [vmem:[%s235 + $0x58] sm:$0xff]
      %v259 = vld [vmem:[%s235 + $0x60] sm:$0xff]
      %v260 = vld [vmem:[%s235 + $0x68] sm:$0xff]
      %v261 = vld [vmem:[%s235 + $0x70] sm:$0xff]
      %v262 = vld [vmem:[%s235 + $0x78] sm:$0xff]
      %v263 = vld [vmem:[%s235 + $0x80] sm:$0xff]
      %v264 = vld [vmem:[%s235 + $0x88] sm:$0xff]
      %v265 = vld [vmem:[%s235 + $0x90] sm:$0xff]
      %v266 = vld [vmem:[%s235 + $0x98] sm:$0xff]
      %v267 = vld [vmem:[%s235 + $0xa0] sm:$0xff]
      %v268 = vld [vmem:[%s235 + $0xa8] sm:$0xff]
      %v269 = vld [vmem:[%s235 + $0xb0] sm:$0xff]
      %v270 = vld [vmem:[%s235 + $0xb8] sm:$0xff]
      %v271 = vld [vmem:[%s235 + $0xc0] sm:$0xff]
      %v272 = vld [vmem:[%s235 + $0xc8] sm:$0xff]
      %v273 = vld [vmem:[%s235 + $0xd0] sm:$0xff]
      %v274 = vld [vmem:[%s235 + $0xd8] sm:$0xff]
      %v275 = vld [vmem:[%s235 + $0xe0] sm:$0xff]
      %v276 = vld [vmem:[%s235 + $0xe8] sm:$0xff]
      %v277 = vld [vmem:[%s235 + $0xf0] sm:$0xff]
      %v278 = vld [vmem:[%s235 + $0xf8] sm:$0xff]
      %v279 = vld [vmem:[%s235 + $0x100] sm:$0xff]
      %v280 = vld [vmem:[%s235 + $0x108] sm:$0xff]
      %v281 = vld [vmem:[%s235 + $0x110] sm:$0xff]
      %v282 = vld [vmem:[%s235 + $0x118] sm:$0xff]
      %v283 = vld [vmem:[%s235 + $0x120] sm:$0xff]
      %v284 = vld [vmem:[%s235 + $0x128] sm:$0xff]
      %v285 = vld [vmem:[%s235 + $0x130] sm:$0xff]
      %v286 = vld [vmem:[%s235 + $0x138] sm:$0xff]
      %v287 = vld [vmem:[%s235 + $0x140] sm:$0xff]
      %v288 = vld [vmem:[%s235 + $0x148] sm:$0xff]
      %v289 = vld [vmem:[%s235 + $0x150] sm:$0xff]
      %v290 = vld [vmem:[%s235 + $0x158] sm:$0xff]
      %v291 = vld [vmem:[%s235 + $0x160] sm:$0xff]
      %v292 = vld [vmem:[%s235 + $0x168] sm:$0xff]
      %v293 = vld [vmem:[%s235 + $0x170] sm:$0xff]
      %v294 = vld [vmem:[%s235 + $0x178] sm:$0xff]
      %v295 = vld [vmem:[%s235 + $0x180] sm:$0xff]
      %v296 = vld [vmem:[%s235 + $0x188] sm:$0xff]
      %v297 = vld [vmem:[%s235 + $0x190] sm:$0xff]
      %v298 = vld [vmem:[%s235 + $0x198] sm:$0xff]
      %v299 = vld [vmem:[%s235 + $0x1a0] sm:$0xff]
      %v300 = vld [vmem:[%s235 + $0x1a8] sm:$0xff]
      %v301 = vld [vmem:[%s235 + $0x1b0] sm:$0xff]
      %v302 = vld [vmem:[%s235 + $0x1b8] sm:$0xff]
      %v303 = vld [vmem:[%s235 + $0x1c0] sm:$0xff]
      %v304 = vld [vmem:[%s235 + $0x1c8] sm:$0xff]
      %v305 = vld [vmem:[%s235 + $0x1d0] sm:$0xff]
      %v306 = vld [vmem:[%s235 + $0x1d8] sm:$0xff]
      %v307 = vld [vmem:[%s235 + $0x1e0] sm:$0xff]
      %v308 = vld [vmem:[%s235 + $0x1e8] sm:$0xff]
      %v309 = vld [vmem:[%s235 + $0x1f0] sm:$0xff]
      %v310 = vld [vmem:[%s235 + $0x1f8] sm:$0xff]
      %v313 = vunpack.c.l.b16 %v245
      %v314 = vunpack.c.h.b16 %v245
      %v315 = vunpack.c.l.b16 %v246
      %v316 = vunpack.c.h.b16 %v246
      %v317 = vpack.c.b16 %v313, %v313
      %v318 = vpack.c.b16 %v314, %v314
      %v319 = vpack.c.b16 %v315, %v315
      %v320 = vpack.c.b16 %v316, %v316
      %v389 = vunpack.c.l.b16 %v247
      %v390 = vunpack.c.h.b16 %v247
      %v391 = vunpack.c.l.b16 %v248
      %v392 = vunpack.c.h.b16 %v248
      %v393 = vunpack.c.l.b16 %v249
      %v394 = vunpack.c.h.b16 %v249
      %v395 = vunpack.c.l.b16 %v250
      %v396 = vunpack.c.h.b16 %v250
      %v397 = vunpack.c.l.b16 %v251
      %v398 = vunpack.c.h.b16 %v251
      %v399 = vunpack.c.l.b16 %v252
      %v400 = vunpack.c.h.b16 %v252
      %v401 = vunpack.c.l.b16 %v253
      %v402 = vunpack.c.h.b16 %v253
      %v403 = vunpack.c.l.b16 %v254
      %v404 = vunpack.c.h.b16 %v254
      %v405 = vunpack.c.l.b16 %v255
      %v406 = vunpack.c.h.b16 %v255
      %v407 = vunpack.c.l.b16 %v256
      %v408 = vunpack.c.h.b16 %v256
      %v409 = vunpack.c.l.b16 %v257
      %v410 = vunpack.c.h.b16 %v257
      %v411 = vunpack.c.l.b16 %v258
      %v412 = vunpack.c.h.b16 %v258
      %v413 = vunpack.c.l.b16 %v259
      %v414 = vunpack.c.h.b16 %v259
      %v415 = vunpack.c.l.b16 %v260
      %v416 = vunpack.c.h.b16 %v260
      %v417 = vunpack.c.l.b16 %v261
      %v418 = vunpack.c.h.b16 %v261
      %v419 = vunpack.c.l.b16 %v262
      %v420 = vunpack.c.h.b16 %v262
      %v421 = vunpack.c.l.b16 %v263
      %v422 = vunpack.c.h.b16 %v263
      %v423 = vunpack.c.l.b16 %v264
      %v424 = vunpack.c.h.b16 %v264
      %v425 = vunpack.c.l.b16 %v265
      %v426 = vunpack.c.h.b16 %v265
      %v427 = vunpack.c.l.b16 %v266
      %v428 = vunpack.c.h.b16 %v266
      %v429 = vunpack.c.l.b16 %v267
      %v430 = vunpack.c.h.b16 %v267
      %v431 = vunpack.c.l.b16 %v268
      %v432 = vunpack.c.h.b16 %v268
      %v433 = vunpack.c.l.b16 %v269
      %v434 = vunpack.c.h.b16 %v269
      %v435 = vunpack.c.l.b16 %v270
      %v436 = vunpack.c.h.b16 %v270
      %v437 = vunpack.c.l.b16 %v271
      %v438 = vunpack.c.h.b16 %v271
      %v439 = vunpack.c.l.b16 %v272
      %v440 = vunpack.c.h.b16 %v272
      %v441 = vunpack.c.l.b16 %v273
      %v442 = vunpack.c.h.b16 %v273
      %v443 = vunpack.c.l.b16 %v274
      %v444 = vunpack.c.h.b16 %v274
      %v445 = vunpack.c.l.b16 %v275
      %v446 = vunpack.c.h.b16 %v275
      %v447 = vunpack.c.l.b16 %v276
      %v448 = vunpack.c.h.b16 %v276
      %v449 = vunpack.c.l.b16 %v277
      %v450 = vunpack.c.h.b16 %v277
      %v451 = vunpack.c.l.b16 %v278
      %v452 = vunpack.c.h.b16 %v278
      %v453 = vunpack.c.l.b16 %v279
      %v454 = vunpack.c.h.b16 %v279
      %v455 = vunpack.c.l.b16 %v280
      %v456 = vunpack.c.h.b16 %v280
      %v457 = vunpack.c.l.b16 %v281
      %v458 = vunpack.c.h.b16 %v281
      %v459 = vunpack.c.l.b16 %v282
      %v460 = vunpack.c.h.b16 %v282
      %v461 = vunpack.c.l.b16 %v283
      %v462 = vunpack.c.h.b16 %v283
      %v463 = vunpack.c.l.b16 %v284
      %v464 = vunpack.c.h.b16 %v284
      %v465 = vunpack.c.l.b16 %v285
      %v466 = vunpack.c.h.b16 %v285
      %v467 = vunpack.c.l.b16 %v286
      %v468 = vunpack.c.h.b16 %v286
      %v469 = vunpack.c.l.b16 %v287
      %v470 = vunpack.c.h.b16 %v287
      %v471 = vunpack.c.l.b16 %v288
      %v472 = vunpack.c.h.b16 %v288
      %v473 = vunpack.c.l.b16 %v289
      %v474 = vunpack.c.h.b16 %v289
      %v475 = vunpack.c.l.b16 %v290
      %v476 = vunpack.c.h.b16 %v290
      %v477 = vunpack.c.l.b16 %v291
      %v478 = vunpack.c.h.b16 %v291
      %v479 = vunpack.c.l.b16 %v292
      %v480 = vunpack.c.h.b16 %v292
      %v481 = vunpack.c.l.b16 %v293
      %v482 = vunpack.c.h.b16 %v293
      %v483 = vunpack.c.l.b16 %v294
      %v484 = vunpack.c.h.b16 %v294
      %v485 = vunpack.c.l.b16 %v295
      %v486 = vunpack.c.h.b16 %v295
      %v487 = vunpack.c.l.b16 %v296
      %v488 = vunpack.c.h.b16 %v296
      %v489 = vunpack.c.l.b16 %v297
      %v490 = vunpack.c.h.b16 %v297
      %v491 = vunpack.c.l.b16 %v298
      %v492 = vunpack.c.h.b16 %v298
      %v493 = vunpack.c.l.b16 %v299
      %v494 = vunpack.c.h.b16 %v299
      %v495 = vunpack.c.l.b16 %v300
      %v496 = vunpack.c.h.b16 %v300
      %v497 = vunpack.c.l.b16 %v301
      %v498 = vunpack.c.h.b16 %v301
      %v499 = vunpack.c.l.b16 %v302
      %v500 = vunpack.c.h.b16 %v302
      %v501 = vunpack.c.l.b16 %v303
      %v502 = vunpack.c.h.b16 %v303
      %v503 = vunpack.c.l.b16 %v304
      %v504 = vunpack.c.h.b16 %v304
      %v505 = vunpack.c.l.b16 %v305
      %v506 = vunpack.c.h.b16 %v305
      %v507 = vunpack.c.l.b16 %v306
      %v508 = vunpack.c.h.b16 %v306
      %v509 = vunpack.c.l.b16 %v307
      %v510 = vunpack.c.h.b16 %v307
      %v511 = vunpack.c.l.b16 %v308
      %v512 = vunpack.c.h.b16 %v308
      %v513 = vunpack.c.l.b16 %v309
      %v514 = vunpack.c.h.b16 %v309
      %v515 = vunpack.c.l.b16 %v310
      %v516 = vunpack.c.h.b16 %v310
      %v517 = vpack.c.b16 %v391, %v389
      %v518 = vpack.c.b16 %v392, %v390
      %v519 = vpack.c.b16 %v395, %v393
      %v520 = vpack.c.b16 %v396, %v394
      %v521 = vpack.c.b16 %v399, %v397
      %v522 = vpack.c.b16 %v400, %v398
      %v523 = vpack.c.b16 %v403, %v401
      %v524 = vpack.c.b16 %v404, %v402
      %v525 = vpack.c.b16 %v407, %v405
      %v526 = vpack.c.b16 %v408, %v406
      %v527 = vpack.c.b16 %v411, %v409
      %v528 = vpack.c.b16 %v412, %v410
      %v529 = vpack.c.b16 %v415, %v413
      %v530 = vpack.c.b16 %v416, %v414
      %v531 = vpack.c.b16 %v419, %v417
      %v532 = vpack.c.b16 %v420, %v418
      %v533 = vpack.c.b16 %v423, %v421
      %v534 = vpack.c.b16 %v424, %v422
      %v535 = vpack.c.b16 %v427, %v425
      %v536 = vpack.c.b16 %v428, %v426
      %v537 = vpack.c.b16 %v431, %v429
      %v538 = vpack.c.b16 %v432, %v430
      %v539 = vpack.c.b16 %v435, %v433
      %v540 = vpack.c.b16 %v436, %v434
      %v541 = vpack.c.b16 %v439, %v437
      %v542 = vpack.c.b16 %v440, %v438
      %v543 = vpack.c.b16 %v443, %v441
      %v544 = vpack.c.b16 %v444, %v442
      %v545 = vpack.c.b16 %v447, %v445
      %v546 = vpack.c.b16 %v448, %v446
      %v547 = vpack.c.b16 %v451, %v449
      %v548 = vpack.c.b16 %v452, %v450
      %v549 = vpack.c.b16 %v455, %v453
      %v550 = vpack.c.b16 %v456, %v454
      %v551 = vpack.c.b16 %v459, %v457
      %v552 = vpack.c.b16 %v460, %v458
      %v553 = vpack.c.b16 %v463, %v461
      %v554 = vpack.c.b16 %v464, %v462
      %v555 = vpack.c.b16 %v467, %v465
      %v556 = vpack.c.b16 %v468, %v466
      %v557 = vpack.c.b16 %v471, %v469
      %v558 = vpack.c.b16 %v472, %v470
      %v559 = vpack.c.b16 %v475, %v473
      %v560 = vpack.c.b16 %v476, %v474
      %v561 = vpack.c.b16 %v479, %v477
      %v562 = vpack.c.b16 %v480, %v478
      %v563 = vpack.c.b16 %v483, %v481
      %v564 = vpack.c.b16 %v484, %v482
      %v565 = vpack.c.b16 %v487, %v485
      %v566 = vpack.c.b16 %v488, %v486
      %v567 = vpack.c.b16 %v491, %v489
      %v568 = vpack.c.b16 %v492, %v490
      %v569 = vpack.c.b16 %v495, %v493
      %v570 = vpack.c.b16 %v496, %v494
      %v571 = vpack.c.b16 %v499, %v497
      %v572 = vpack.c.b16 %v500, %v498
      %v573 = vpack.c.b16 %v503, %v501
      %v574 = vpack.c.b16 %v504, %v502
      %v575 = vpack.c.b16 %v507, %v505
      %v576 = vpack.c.b16 %v508, %v506
      %v577 = vpack.c.b16 %v511, %v509
      %v578 = vpack.c.b16 %v512, %v510
      %v579 = vpack.c.b16 %v515, %v513
      %v580 = vpack.c.b16 %v516, %v514
      %645 = vmatpush.bf16.msra.mxu0 %v531
      %646 = vmatpush.bf16.msra.mxu0 %v529
      %647 = vmatpush.bf16.msra.mxu0 %v527
      %648 = vmatpush.bf16.msra.mxu0 %v525
      %649 = vmatpush.bf16.msra.mxu0 %v523
      %650 = vmatpush.bf16.msra.mxu0 %v521
      %651 = vmatpush.bf16.msra.mxu0 %v519
      %652 = vmatpush.bf16.msra.mxu0 %v517
      %653 = vmatmul.bf16.gmra.mxu0 %v317
      %v654 = vpop.f32.mrf.mxu0
      %v655 = vadd.f32 0.0, %v654
      %v656 = vpop.f32.mrf.mxu0
      %657 = vdwg.mxu0
      %658 = vmatpush.bf16.msra.mxu0 %v547
      %659 = vmatpush.bf16.msra.mxu0 %v545
      %660 = vmatpush.bf16.msra.mxu0 %v543
      %661 = vmatpush.bf16.msra.mxu0 %v541
      %662 = vmatpush.bf16.msra.mxu0 %v539
      %663 = vmatpush.bf16.msra.mxu0 %v537
      %664 = vmatpush.bf16.msra.mxu0 %v535
      %665 = vmatpush.bf16.msra.mxu0 %v533
      %666 = vmatmul.bf16.gmra.mxu0 %v318
      %v667 = vpop.f32.mrf.mxu0
      %v668 = vadd.f32 %v655, %v667
      %v669 = vpop.f32.mrf.mxu0
      %670 = vdwg.mxu0
      %671 = vmatpush.bf16.msra.mxu0 %v563
      %672 = vmatpush.bf16.msra.mxu0 %v561
      %673 = vmatpush.bf16.msra.mxu0 %v559
      %674 = vmatpush.bf16.msra.mxu0 %v557
      %675 = vmatpush.bf16.msra.mxu0 %v555
      %676 = vmatpush.bf16.msra.mxu0 %v553
      %677 = vmatpush.bf16.msra.mxu0 %v551
      %678 = vmatpush.bf16.msra.mxu0 %v549
      %679 = vmatmul.bf16.gmra.mxu0 %v319
      %v680 = vpop.f32.mrf.mxu0
      %v681 = vadd.f32 %v668, %v680
      %v682 = vpop.f32.mrf.mxu0
      %683 = vdwg.mxu0
      %684 = vmatpush.bf16.msra.mxu0 %v579
      %685 = vmatpush.bf16.msra.mxu0 %v577
      %686 = vmatpush.bf16.msra.mxu0 %v575
      %687 = vmatpush.bf16.msra.mxu0 %v573
      %688 = vmatpush.bf16.msra.mxu0 %v571
      %689 = vmatpush.bf16.msra.mxu0 %v569
      %690 = vmatpush.bf16.msra.mxu0 %v567
      %691 = vmatpush.bf16.msra.mxu0 %v565
      %692 = vmatmul.bf16.gmra.mxu0 %v320
      %v693 = vpop.f32.mrf.mxu0
      %v694 = vadd.f32 %v681, %v693
      %v695 = vpop.f32.mrf.mxu0
      %696 = vdwg.mxu0
      %697 = vmatpush.bf16.msra.mxu0 %v532
      %698 = vmatpush.bf16.msra.mxu0 %v530
      %699 = vmatpush.bf16.msra.mxu0 %v528
      %700 = vmatpush.bf16.msra.mxu0 %v526
      %701 = vmatpush.bf16.msra.mxu0 %v524
      %702 = vmatpush.bf16.msra.mxu0 %v522
      %703 = vmatpush.bf16.msra.mxu0 %v520
      %704 = vmatpush.bf16.msra.mxu0 %v518
      %705 = vmatmul.bf16.gmra.mxu0 %v317
      %v706 = vpop.f32.mrf.mxu0
      %v707 = vadd.f32 0.0, %v706
      %v708 = vpop.f32.mrf.mxu0
      %709 = vdwg.mxu0
      %710 = vmatpush.bf16.msra.mxu0 %v548
      %711 = vmatpush.bf16.msra.mxu0 %v546
      %712 = vmatpush.bf16.msra.mxu0 %v544
      %713 = vmatpush.bf16.msra.mxu0 %v542
      %714 = vmatpush.bf16.msra.mxu0 %v540
      %715 = vmatpush.bf16.msra.mxu0 %v538
      %716 = vmatpush.bf16.msra.mxu0 %v536
      %717 = vmatpush.bf16.msra.mxu0 %v534
      %718 = vmatmul.bf16.gmra.mxu0 %v318
      %v719 = vpop.f32.mrf.mxu0
      %v720 = vadd.f32 %v707, %v719
      %v721 = vpop.f32.mrf.mxu0
      %722 = vdwg.mxu0
      %723 = vmatpush.bf16.msra.mxu0 %v564
      %724 = vmatpush.bf16.msra.mxu0 %v562
      %725 = vmatpush.bf16.msra.mxu0 %v560
      %726 = vmatpush.bf16.msra.mxu0 %v558
      %727 = vmatpush.bf16.msra.mxu0 %v556
      %728 = vmatpush.bf16.msra.mxu0 %v554
      %729 = vmatpush.bf16.msra.mxu0 %v552
      %730 = vmatpush.bf16.msra.mxu0 %v550
      %731 = vmatmul.bf16.gmra.mxu0 %v319
      %v732 = vpop.f32.mrf.mxu0
      %v733 = vadd.f32 %v720, %v732
      %v734 = vpop.f32.mrf.mxu0
      %735 = vdwg.mxu0
      %736 = vmatpush.bf16.msra.mxu0 %v580
      %737 = vmatpush.bf16.msra.mxu0 %v578
      %738 = vmatpush.bf16.msra.mxu0 %v576
      %739 = vmatpush.bf16.msra.mxu0 %v574
      %740 = vmatpush.bf16.msra.mxu0 %v572
      %741 = vmatpush.bf16.msra.mxu0 %v570
      %742 = vmatpush.bf16.msra.mxu0 %v568
      %743 = vmatpush.bf16.msra.mxu0 %v566
      %744 = vmatmul.bf16.gmra.mxu0 %v320
      %v745 = vpop.f32.mrf.mxu0
      %v746 = vadd.f32 %v733, %v745
      %v747 = vpop.f32.mrf.mxu0
      %748 = vdwg.mxu0
      %v749 = vadd.f32 %v243, %v694
      %v750 = vadd.f32 %v244, %v746
      %751 = vst [vmem:[#allocation2] sm:$0xff] %v749
      %752 = vst [vmem:[#allocation2 + $0x8] sm:$0xff] %v750
      %p753 = scmp.eq.s32.totalorder %s16, 7
      // Predicated region
      $region45: #{cnn_forward.5} parent=39 // pred_check
        %p754 = pneg %p753
      $region46: #{cnn_forward.5} parent=39 // pred_check_branch
        %756 = sbr.rel (%p754) target = $region48
      $region47: #{cnn_forward.5} parent=39 // pred_region
        %v757 = vld [vmem:[#allocation2] sm:$0xff]
        %v758 = vld [vmem:[#allocation2 + $0x8] sm:$0xff]
        %v759 = vld [vmem:[%s2] sm:$0x3]
        %v761 = vperm.slane %v759, 0
        %v762 = vperm.slane %v759, 1
        %v765 = vadd.f32 %v757, %v761
        %v766 = vadd.f32 %v758, %v762
        %v767 = vmax.f32 %v765, 0.0
        %v768 = vmax.f32 %v766, 0.0
        %v769 = vpack.c.bf16 %v767, %v767
        %v770 = vpack.c.bf16 %v768, %v768
        %v771 = vld [vmem:[%s3] sm:$0xf]
        %v772 = vld [vmem:[%s3 + $0x4] sm:$0xf]
        %v773 = vld [vmem:[%s3 + $0x8] sm:$0xf]
        %v774 = vld [vmem:[%s3 + $0xc] sm:$0xf]
        %v775 = vld [vmem:[%s3 + $0x10] sm:$0xf]
        %v776 = vld [vmem:[%s3 + $0x14] sm:$0xf]
        %v777 = vld [vmem:[%s3 + $0x18] sm:$0xf]
        %v778 = vld [vmem:[%s3 + $0x1c] sm:$0xf]
        %v779 = vld [vmem:[%s3 + $0x20] sm:$0xf]
        %v780 = vld [vmem:[%s3 + $0x24] sm:$0xf]
        %v781 = vld [vmem:[%s3 + $0x28] sm:$0xf]
        %v782 = vld [vmem:[%s3 + $0x2c] sm:$0xf]
        %v783 = vld [vmem:[%s3 + $0x30] sm:$0xf]
        %v784 = vld [vmem:[%s3 + $0x34] sm:$0xf]
        %v785 = vld [vmem:[%s3 + $0x38] sm:$0xf]
        %v786 = vld [vmem:[%s3 + $0x3c] sm:$0xf]
        %v787 = vld [vmem:[%s3 + $0x40] sm:$0xf]
        %v788 = vld [vmem:[%s3 + $0x44] sm:$0xf]
        %v789 = vld [vmem:[%s3 + $0x48] sm:$0xf]
        %v790 = vld [vmem:[%s3 + $0x4c] sm:$0xf]
        %v791 = vld [vmem:[%s3 + $0x50] sm:$0xf]
        %v792 = vld [vmem:[%s3 + $0x54] sm:$0xf]
        %v793 = vld [vmem:[%s3 + $0x58] sm:$0xf]
        %v794 = vld [vmem:[%s3 + $0x5c] sm:$0xf]
        %v795 = vld [vmem:[%s3 + $0x60] sm:$0xf]
        %v796 = vld [vmem:[%s3 + $0x64] sm:$0xf]
        %v797 = vld [vmem:[%s3 + $0x68] sm:$0xf]
        %v798 = vld [vmem:[%s3 + $0x6c] sm:$0xf]
        %v799 = vld [vmem:[%s3 + $0x70] sm:$0xf]
        %v800 = vld [vmem:[%s3 + $0x74] sm:$0xf]
        %v801 = vld [vmem:[%s3 + $0x78] sm:$0xf]
        %v802 = vld [vmem:[%s3 + $0x7c] sm:$0xf]
        %v803 = vld [vmem:[%s4] sm:$0x1]
        %v805 = vperm.slane %v803, 0
        %v839 = vunpack.c.l.b16 %v771
        %v840 = vunpack.c.l.b16 %v772
        %v841 = vunpack.c.l.b16 %v773
        %v842 = vunpack.c.l.b16 %v774
        %v843 = vunpack.c.l.b16 %v775
        %v844 = vunpack.c.l.b16 %v776
        %v845 = vunpack.c.l.b16 %v777
        %v846 = vunpack.c.l.b16 %v778
        %v847 = vunpack.c.l.b16 %v779
        %v848 = vunpack.c.l.b16 %v780
        %v849 = vunpack.c.l.b16 %v781
        %v850 = vunpack.c.l.b16 %v782
        %v851 = vunpack.c.l.b16 %v783
        %v852 = vunpack.c.l.b16 %v784
        %v853 = vunpack.c.l.b16 %v785
        %v854 = vunpack.c.l.b16 %v786
        %v855 = vunpack.c.l.b16 %v787
        %v856 = vunpack.c.l.b16 %v788
        %v857 = vunpack.c.l.b16 %v789
        %v858 = vunpack.c.l.b16 %v790
        %v859 = vunpack.c.l.b16 %v791
        %v860 = vunpack.c.l.b16 %v792
        %v861 = vunpack.c.l.b16 %v793
        %v862 = vunpack.c.l.b16 %v794
        %v863 = vunpack.c.l.b16 %v795
        %v864 = vunpack.c.l.b16 %v796
        %v865 = vunpack.c.l.b16 %v797
        %v866 = vunpack.c.l.b16 %v798
        %v867 = vunpack.c.l.b16 %v799
        %v868 = vunpack.c.l.b16 %v800
        %v869 = vunpack.c.l.b16 %v801
        %v870 = vunpack.c.l.b16 %v802
        %v871 = vpack.c.b16 %v840, %v839
        %v872 = vpack.c.b16 %v842, %v841
        %v873 = vpack.c.b16 %v844, %v843
        %v874 = vpack.c.b16 %v846, %v845
        %v875 = vpack.c.b16 %v848, %v847
        %v876 = vpack.c.b16 %v850, %v849
        %v877 = vpack.c.b16 %v852, %v851
        %v878 = vpack.c.b16 %v854, %v853
        %v879 = vpack.c.b16 %v856, %v855
        %v880 = vpack.c.b16 %v858, %v857
        %v881 = vpack.c.b16 %v860, %v859
        %v882 = vpack.c.b16 %v862, %v861
        %v883 = vpack.c.b16 %v864, %v863
        %v884 = vpack.c.b16 %v866, %v865
        %v885 = vpack.c.b16 %v868, %v867
        %v886 = vpack.c.b16 %v870, %v869
        %903 = vmatpush.bf16.msra.mxu0 %v878
        %904 = vmatpush.bf16.msra.mxu0 %v877
        %905 = vmatpush.bf16.msra.mxu0 %v876
        %906 = vmatpush.bf16.msra.mxu0 %v875
        %907 = vmatpush.bf16.msra.mxu0 %v874
        %908 = vmatpush.bf16.msra.mxu0 %v873
        %909 = vmatpush.bf16.msra.mxu0 %v872
        %910 = vmatpush.bf16.msra.mxu0 %v871
        %911 = vmatmul.bf16.gmra.mxu0 %v769
        %v912 = vpop.f32.mrf.mxu0
        %v913 = vadd.f32 %v805, %v912
        %v914 = vpop.f32.mrf.mxu0
        %915 = vdwg.mxu0
        %916 = vmatpush.bf16.msra.mxu0 %v886
        %917 = vmatpush.bf16.msra.mxu0 %v885
        %918 = vmatpush.bf16.msra.mxu0 %v884
        %919 = vmatpush.bf16.msra.mxu0 %v883
        %920 = vmatpush.bf16.msra.mxu0 %v882
        %921 = vmatpush.bf16.msra.mxu0 %v881
        %922 = vmatpush.bf16.msra.mxu0 %v880
        %923 = vmatpush.bf16.msra.mxu0 %v879
        %924 = vmatmul.bf16.gmra.mxu0 %v770
        %v925 = vpop.f32.mrf.mxu0
        %v926 = vadd.f32 %v913, %v925
        %v927 = vpop.f32.mrf.mxu0
        %928 = vdwg.mxu0
        %929 = vst [vmem:[%s5] sm:$0xff] %v926
      $region48: #{cnn_forward.5} parent=39 // pred_fallthru
        _
      // Predicated region
      $region49: #{cnn_forward.5} parent=39 // pred_check
        %p930 = pneg %p144
      $region50: #{cnn_forward.5} parent=39 // pred_check_branch
        %932 = sbr.rel (%p930) target = $region52
      $region51: #{cnn_forward.5} parent=39 // pred_region
        _
      $region52: #{cnn_forward.5} parent=39 // pred_fallthru
        _
      // Predicated region
      $region53: #{cnn_forward.5} parent=39 // pred_check
        %p933 = pneg %p144
      $region54: #{cnn_forward.5} parent=39 // pred_check_branch
        %935 = sbr.rel (%p933) target = $region56
      $region55: #{cnn_forward.5} parent=39 // pred_region
        _
      $region56: #{cnn_forward.5} parent=39 // pred_fallthru
        _
    $region40: #{cnn_forward.5} parent=5 // pred_fallthru
      _
    %p936 = scmp.le.s32.totalorder 2, %s11
    // Predicated region
    $region57: #{cnn_forward.5} parent=5 // pred_check
      %p937 = pneg %p936
    $region58: #{cnn_forward.5} parent=5 // pred_check_branch
      %939 = sbr.rel (%p937) target = $region60
    $region59: #{cnn_forward.5} parent=5 // pred_region
      %s940 = ssub.s32 %s11, 2
    $region60: #{cnn_forward.5} parent=5 // pred_fallthru
      _
  $region6: #{cnn_forward.5} parent=0 // loop_footer
    %s15 = sadd.s32 1, %s11
  $region7: #{cnn_forward.5} parent=0 // loop_footer_branch
    %10 = sbr.rel target = $region3
  $region8: #{cnn_forward.5} parent=0 // loop_exit
    _

</llo_original>
